<compile_context>
chip_gen: v7x
topology: tpu7x:2x2x1
jax: 0.10.0
libtpu: 0.0.40
codegen_flags: <defaults>
</compile_context>

<pallas_src>
import functools

import jax
import jax.numpy as jnp
from jax.experimental import pallas as pl
from jax.experimental.pallas import tpu as pltpu


# ----------------------------- layout constants -----------------------------
NP = 8                    # padded batch slots (row stride 1, innermost)
W_STRIDE = NP             # 8  : padded-pool w coordinate stride (w in 0..7)
H_STRIDE = 8 * W_STRIDE   # 64 : padded-pool h coordinate stride (h in 0..7)
R1 = 8 * H_STRIDE         # 512: pooled slab rows   (row = h*64 + w*8 + n)
R2 = 6 * H_STRIDE         # 384: conv2 slab rows    (row = oh*64 + ow*8 + n)
C = 128                   # lane width
K1 = 32                   # conv1 im2col K (25 taps -> 32)
KFC1 = 640                # packed fc1 K: 40 positions (36 used) * 16 lanes


def _elu(v):
    # ELU(alpha=1): x if x > 0 else exp(x) - 1  (clamp exp arg for safety)
    return jnp.where(v > 0, v, jnp.exp(jnp.minimum(v, 0.0)) - 1.0)


# ------------------------------- Pallas kernel -------------------------------

def fused_net_kernel(p1_ref, w1_ref, t1_ref, w2_ref, t2_ref,
                     fc1w_hbm, fc1b_ref, fc2w_hbm, fc2b_ref,
                     fc3w_hbm, fc3b_ref,
                     o_ref,
                     pool_ref, h2_ref, lhs_ref,
                     fc1w_buf, fc2w_buf, fc3w_buf, dma_sems,
                     *, n_batch):
    # ---- prefetch the fc weights (HBM -> VMEM) behind the conv compute -----
    cp_fc1 = pltpu.make_async_copy(fc1w_hbm, fc1w_buf, dma_sems.at[0])
    cp_fc2 = pltpu.make_async_copy(fc2w_hbm, fc2w_buf, dma_sems.at[1])
    cp_fc3 = pltpu.make_async_copy(fc3w_hbm, fc3w_buf, dma_sems.at[2])
    cp_fc1.start()
    cp_fc2.start()
    cp_fc3.start()

    lane = jax.lax.broadcasted_iota(jnp.int32, (1, C), 1)

    # ---- conv1 (BN scale folded into bf16 weights) + 2x2 max pool ----------
    # pool slab lanes: channel c replicated in 4 groups (lane 32k + c), one
    # group per conv2 tap; processed in 128-row chunks (no VMEM RMW).
    for chunk in range(R1 // 128):
        r0 = 128 * chunk
        acc = None
        for b in range(4):                                  # 4 pool phases
            blk = p1_ref[b * R1 + r0: b * R1 + r0 + 128, :]
            h = jnp.dot(blk, w1_ref[...], preferred_element_type=jnp.float32)
            acc = h if acc is None else jnp.maximum(acc, h)
        pool_ref[r0:r0 + 128, :] = acc

    # BN1 shift + ELU hoisted AFTER the pool max (exact: ELU(.+t) monotone and
    # the scale is already inside the max), applied only on the valid 5x5
    # rows.  Ring rows keep their exact-zero dot value = conv2's zero padding.
    for hh in range(1, 6):
        r = hh * H_STRIDE + W_STRIDE
        pool_ref[r:r + 5 * NP, :] = _elu(pool_ref[r:r + 5 * NP, :] +
                                         t1_ref[...])

    # ---- conv2 + BN2 + ELU: 4 taps merged into ONE dot per 128-row chunk ---
    # merged weight rows = lane group 32k + cin; output lanes replicate the 10
    # channels in 8 groups of 16 (lane 16m + cout) so fc1 can mask-pack them.
    tap_off = (0, W_STRIDE, H_STRIDE, H_STRIDE + W_STRIDE)
    gmask = [((lane >= 32 * k) & (lane < 32 * k + 6)).astype(jnp.float32)
             for k in range(4)]
    for chunk in range(R2 // 128):
        r0 = 128 * chunk
        x2 = None
        for k, off in enumerate(tap_off):
            part = pool_ref[off + r0: off + r0 + 128, :] * gmask[k]
            x2 = part if x2 is None else x2 + part
        h2 = jnp.dot(x2.astype(jnp.bfloat16), w2_ref[...],
                     preferred_element_type=jnp.float32)
        h2_ref[r0:r0 + 128, :] = _elu(h2 + t2_ref[...])

    # ---- flatten: pack the 36 (position x 10ch) blocks into a dense [8,640]
    #      fc1 LHS with lane masks (channels already replicated per group) ----
    pmask = [((lane >= 16 * j) & (lane < 16 * j + 10)).astype(jnp.float32)
             for j in range(8)]
    for g in range(KFC1 // C):                 # 5 lane groups of 8 positions
        grp = jnp.zeros((NP, C), jnp.float32)
        for j in range(8):
            p = 8 * g + j
            if p >= 36:
                break
            oh, ow = p // 6, p % 6
            r = oh * H_STRIDE + ow * W_STRIDE
            grp = grp + h2_ref[r:r + NP, :] * pmask[j]
        lhs_ref[:, C * g:C * (g + 1)] = grp

    # ---- fc1 / fc2 / fc3 (weights prefetched above) -------------------------
    cp_fc1.wait()
    y = jnp.dot(lhs_ref[...].astype(jnp.bfloat16), fc1w_buf[...],
                preferred_element_type=jnp.float32)
    y = _elu(y + fc1b_ref[...])
    # TODO(synk): nn.Dropout(0.3) reproduced in eval mode (identity); training
    # mode stochastic masking is not implemented.
    cp_fc2.wait()
    y = _elu(jnp.dot(y.astype(jnp.bfloat16), fc2w_buf[...],
                     preferred_element_type=jnp.float32) + fc2b_ref[...])
    cp_fc3.wait()
    y = jnp.dot(y.astype(jnp.bfloat16), fc3w_buf[...],
                preferred_element_type=jnp.float32) + fc3b_ref[...]

    # only the final tiny result is written to HBM
    o_ref[...] = y[:n_batch, :3]


# ------------------------------- JAX wrapper ---------------------------------

def _build_conv1_blocks(x_nchw):
    """conv1 im2col rearranged into the 4 pool-phase blocks with the kernel's
    (h, w, n)-strided row layout; emitted in bf16 (MXU operand dtype).
    Depends only on the raw input (one fused XLA op feeding the kernel)."""
    n = x_nchw.shape[0]
    xp = jnp.pad(x_nchw[:, 0].astype(jnp.float32), ((0, 0), (2, 2), (2, 2)))
    # pats[n, oh, ow, ki*5+kj] = xp[n, oh+ki, ow+kj]
    pats = jnp.stack([xp[:, ki:ki + 10, kj:kj + 10]
                      for ki in range(5) for kj in range(5)], axis=-1)
    blocks = []
    for di in range(2):
        for dj in range(2):
            sub = pats[:, di::2, dj::2, :]                  # [n, 5, 5, 25]
            blk = jnp.zeros((8, 8, NP, 25), jnp.float32)    # (h, w, n, tap)
            blk = blk.at[1:6, 1:6, :n, :].set(jnp.transpose(sub, (1, 2, 0, 3)))
            blocks.append(blk.reshape(R1, 25))
    p1 = jnp.concatenate(blocks, axis=0)                    # [2048, 25]
    p1 = jnp.pad(p1, ((0, 0), (0, K1 - 25)))                # [2048, 32]
    return p1.astype(jnp.bfloat16)


def conv2d_net_forward(x_nchw, params):
    n = x_nchw.shape[0]
    assert n <= NP, "this toy-shape kernel packs the batch into 8 row slots"
    p1 = _build_conv1_blocks(x_nchw)

    vmem = pl.BlockSpec(memory_space=pltpu.MemorySpace.VMEM)
    hbm = pl.BlockSpec(memory_space=pl.ANY)     # manually prefetched in-kernel
    args = (p1, params['w1m'], params['t1'], params['w2m'], params['t2'],
            params['fc1w'], params['fc1b'], params['fc2w'], params['fc2b'],
            params['fc3w'], params['fc3b'])
    in_specs = [vmem, vmem, vmem, vmem, vmem,
                hbm, vmem, hbm, vmem, hbm, vmem]

    return pl.pallas_call(
        functools.partial(fused_net_kernel, n_batch=n),
        out_shape=jax.ShapeDtypeStruct((n, 3), jnp.float32),
        in_specs=in_specs,
        out_specs=vmem,
        scratch_shapes=[
            pltpu.VMEM((R1, C), jnp.float32),      # pooled (padded) slab
            pltpu.VMEM((R2, C), jnp.float32),      # conv2 output slab
            pltpu.VMEM((NP, KFC1), jnp.float32),   # packed fc1 LHS
            pltpu.VMEM((KFC1, C), jnp.bfloat16),   # fc1 weight prefetch buf
            pltpu.VMEM((C, C), jnp.bfloat16),      # fc2 weight prefetch buf
            pltpu.VMEM((C, C), jnp.bfloat16),      # fc3 weight prefetch buf
            pltpu.SemaphoreType.DMA((3,)),
        ],
    )(*args)


# --------------------------- parameters & packing ----------------------------

def init_torch_params(key):
    ks = jax.random.split(key, 18)
    return {
        'w1': jax.random.normal(ks[0], (6, 1, 5, 5), jnp.float32) * 0.1,
        'b1': jax.random.normal(ks[1], (6,), jnp.float32) * 0.05,
        'w2': jax.random.normal(ks[2], (10, 6, 2, 2), jnp.float32) * 0.1,
        'b2': jax.random.normal(ks[3], (10,), jnp.float32) * 0.05,
        # BatchNorm2d eval-mode params (randomized to exercise the BN folding)
        'bn1_g': 1.0 + 0.1 * jax.random.normal(ks[4], (6,), jnp.float32),
        'bn1_b': 0.1 * jax.random.normal(ks[5], (6,), jnp.float32),
        'bn1_m': 0.1 * jax.random.normal(ks[6], (6,), jnp.float32),
        'bn1_v': jax.random.uniform(ks[7], (6,), jnp.float32, 0.5, 1.5),
        'bn2_g': 1.0 + 0.1 * jax.random.normal(ks[8], (10,), jnp.float32),
        'bn2_b': 0.1 * jax.random.normal(ks[9], (10,), jnp.float32),
        'bn2_m': 0.1 * jax.random.normal(ks[10], (10,), jnp.float32),
        'bn2_v': jax.random.uniform(ks[11], (10,), jnp.float32, 0.5, 1.5),
        'fc1_w': jax.random.normal(ks[12], (84, 360), jnp.float32) * 0.05,
        'fc1_b': jax.random.normal(ks[13], (84,), jnp.float32) * 0.05,
        'fc2_w': jax.random.normal(ks[14], (36, 84), jnp.float32) * 0.05,
        'fc2_b': jax.random.normal(ks[15], (36,), jnp.float32) * 0.05,
        'fc3_w': jax.random.normal(ks[16], (3, 36), jnp.float32) * 0.05,
        'fc3_b': jax.random.normal(ks[17], (3,), jnp.float32) * 0.05,
    }


def _row128(v):
    return jnp.pad(v, (0, C - v.shape[0]))[None, :].astype(jnp.float32)


def _pad2(a, rows, cols):
    return jnp.pad(a, ((0, rows - a.shape[0]), (0, cols - a.shape[1])))


def pack_params(t, eps=1e-5):
    # fold conv bias + eval-mode BatchNorm into per-channel scale/shift; the
    # scales are folded straight into the (bf16) conv weights.
    s1 = t['bn1_g'] / jnp.sqrt(t['bn1_v'] + eps)
    sh1 = t['bn1_b'] + (t['b1'] - t['bn1_m']) * s1
    s2 = t['bn2_g'] / jnp.sqrt(t['bn2_v'] + eps)
    sh2 = t['bn2_b'] + (t['b2'] - t['bn2_m']) * s2

    # conv1 weight [6,1,5,5] -> [25 taps, 6 ch] * s1, replicated into 4 lane
    # groups of 32 (one per conv2 2x2 tap); zero-padded to [32, 128].
    w1t = t['w1'].reshape(6, 25).T * s1[None, :]             # [25, 6]
    w1m = jnp.zeros((K1, C), jnp.float32)
    t1 = jnp.zeros((1, C), jnp.float32)
    for k in range(4):
        w1m = w1m.at[:25, 32 * k:32 * k + 6].set(w1t)
        t1 = t1.at[0, 32 * k:32 * k + 6].set(sh1)

    # conv2 merged weight [128,128]: row 32k+cin, col 16m+cout =
    # w2[cout,cin,di,dj]*s2[cout], with k = di*2+dj; output channels are
    # replicated in 8 lane groups of 16 so fc1 can mask-pack them directly.
    w2t = (jnp.transpose(t['w2'], (2, 3, 1, 0)).reshape(4, 6, 10)
           * s2[None, None, :])
    w2m = jnp.zeros((C, C), jnp.float32)
    t2 = jnp.zeros((1, C), jnp.float32)
    for k in range(4):
        for m in range(8):
            w2m = w2m.at[32 * k:32 * k + 6, 16 * m:16 * m + 10].set(w2t[k])
    for m in range(8):
        t2 = t2.at[0, 16 * m:16 * m + 10].set(sh2)

    # fc1 packed densely: K row 16*p + c  <->  PyTorch flat index c*36 + p.
    fpc = jnp.transpose(t['fc1_w'].reshape(84, 10, 36), (2, 1, 0))  # [36,10,84]
    fc1 = jnp.zeros((KFC1 // 16, 16, C), jnp.float32)
    fc1 = fc1.at[:36, :10, :84].set(fpc)
    fc1 = fc1.reshape(KFC1, C)

    bf = jnp.bfloat16
    return {
        'w1m': w1m.astype(bf), 't1': t1,
        'w2m': w2m.astype(bf), 't2': t2,
        'fc1w': fc1.astype(bf), 'fc1b': _row128(t['fc1_b']),
        'fc2w': _pad2(t['fc2_w'].T, C, C).astype(bf),
        'fc2b': _row128(t['fc2_b']),
        'fc3w': _pad2(t['fc3_w'].T, C, C).astype(bf),
        'fc3b': _row128(t['fc3_b']),
    }


# --------------------------- pure-JAX reference ------------------------------

def reference_forward(x, t, eps=1e-5):
    def bn(z, g, b, m, v):
        return ((z - m[None, :, None, None]) /
                jnp.sqrt(v + eps)[None, :, None, None] *
                g[None, :, None, None] + b[None, :, None, None])

    z = jax.lax.conv_general_dilated(x, t['w1'], (1, 1), ((2, 2), (2, 2)),
                                     dimension_numbers=('NCHW', 'OIHW', 'NCHW'))
    z = z + t['b1'][None, :, None, None]
    z = _elu(bn(z, t['bn1_g'], t['bn1_b'], t['bn1_m'], t['bn1_v']))
    z = jax.lax.reduce_window(z, -jnp.inf, jax.lax.max,
                              (1, 1, 2, 2), (1, 1, 2, 2), 'VALID')
    z = jax.lax.conv_general_dilated(z, t['w2'], (1, 1), ((1, 1), (1, 1)),
                                     dimension_numbers=('NCHW', 'OIHW', 'NCHW'))
    z = z + t['b2'][None, :, None, None]
    z = _elu(bn(z, t['bn2_g'], t['bn2_b'], t['bn2_m'], t['bn2_v']))
    f = z.reshape(z.shape[0], 10 * 6 * 6)
    f = _elu(f @ t['fc1_w'].T + t['fc1_b'])
    f = _elu(f @ t['fc2_w'].T + t['fc2_b'])
    return f @ t['fc3_w'].T + t['fc3_b']


# ------------------------------------ main ------------------------------------

if __name__ == "__main__":
    key = jax.random.PRNGKey(0)
    kx, kp = jax.random.split(key)
    # Forward implies NCHW input [N, 1, 10, 10] (so the flatten is 10*6*6)
    x = jax.random.normal(kx, (2, 1, 10, 10), jnp.float32)

    torch_params = init_torch_params(kp)
    params = pack_params(torch_params)

    out = jax.jit(conv2d_net_forward)(x, params)
    out = jax.block_until_ready(out)
    assert out.shape == (2, 3) and out.dtype == jnp.float32

    ref = reference_forward(x, torch_params)
    err = float(jnp.max(jnp.abs(out - ref)))
    print(f"max|pallas - reference| = {err:.3e}")
    # bf16 MXU operands -> loosened parity tolerance vs the f32 reference
    assert err < 5e-2, f"mismatch vs f32 reference: {err}"
    print("KERNEL_OK")
</pallas_src>

<mosaic_0001>
module attributes {stable_mosaic.version = 11 : i64} {
  func.func @fused_net_kernel(%arg0: memref<2048x32xbf16, #tpu.memory_space<vmem>>, %arg1: memref<32x128xbf16, #tpu.memory_space<vmem>>, %arg2: memref<1x128xf32, #tpu.memory_space<vmem>>, %arg3: memref<128x128xbf16, #tpu.memory_space<vmem>>, %arg4: memref<1x128xf32, #tpu.memory_space<vmem>>, %arg5: memref<640x128xbf16, #tpu.memory_space<any>>, %arg6: memref<1x128xf32, #tpu.memory_space<vmem>>, %arg7: memref<128x128xbf16, #tpu.memory_space<any>>, %arg8: memref<1x128xf32, #tpu.memory_space<vmem>>, %arg9: memref<128x128xbf16, #tpu.memory_space<any>>, %arg10: memref<1x128xf32, #tpu.memory_space<vmem>>, %arg11: memref<2x3xf32, #tpu.memory_space<vmem>>, %arg12: memref<512x128xf32, #tpu.memory_space<vmem>>, %arg13: memref<384x128xf32, #tpu.memory_space<vmem>>, %arg14: memref<8x640xf32, #tpu.memory_space<vmem>>, %arg15: memref<640x128xbf16, #tpu.memory_space<vmem>>, %arg16: memref<128x128xbf16, #tpu.memory_space<vmem>>, %arg17: memref<128x128xbf16, #tpu.memory_space<vmem>>, %arg18: memref<3x!tpu.dma_semaphore, #tpu.memory_space<semaphore_mem>>) attributes {dimension_semantics = [], scalar_prefetch = 0 : i64, scratch_operands = 7 : i64, tpu.core_type = #tpu.core_type<tc>} {
    %c0_i32 = arith.constant 0 : i32
    %0 = tpu.memref_slice %arg18[%c0_i32] : memref<3x!tpu.dma_semaphore, #tpu.memory_space<semaphore_mem>> -> memref<1x!tpu.dma_semaphore, #tpu.memory_space<semaphore_mem>>
    %1 = tpu.memref_squeeze %0 : memref<1x!tpu.dma_semaphore, #tpu.memory_space<semaphore_mem>> -> memref<!tpu.dma_semaphore, #tpu.memory_space<semaphore_mem>>
    tpu.enqueue_dma source(%arg5 : memref<640x128xbf16, #tpu.memory_space<any>>) target(%arg15 : memref<640x128xbf16, #tpu.memory_space<vmem>>) target_semaphore(%1 : memref<!tpu.dma_semaphore, #tpu.memory_space<semaphore_mem>>)
    %c1_i32 = arith.constant 1 : i32
    %2 = tpu.memref_slice %arg18[%c1_i32] : memref<3x!tpu.dma_semaphore, #tpu.memory_space<semaphore_mem>> -> memref<1x!tpu.dma_semaphore, #tpu.memory_space<semaphore_mem>>
    %3 = tpu.memref_squeeze %2 : memref<1x!tpu.dma_semaphore, #tpu.memory_space<semaphore_mem>> -> memref<!tpu.dma_semaphore, #tpu.memory_space<semaphore_mem>>
    tpu.enqueue_dma source(%arg7 : memref<128x128xbf16, #tpu.memory_space<any>>) target(%arg16 : memref<128x128xbf16, #tpu.memory_space<vmem>>) target_semaphore(%3 : memref<!tpu.dma_semaphore, #tpu.memory_space<semaphore_mem>>)
    %c2_i32 = arith.constant 2 : i32
    %4 = tpu.memref_slice %arg18[%c2_i32] : memref<3x!tpu.dma_semaphore, #tpu.memory_space<semaphore_mem>> -> memref<1x!tpu.dma_semaphore, #tpu.memory_space<semaphore_mem>>
    %5 = tpu.memref_squeeze %4 : memref<1x!tpu.dma_semaphore, #tpu.memory_space<semaphore_mem>> -> memref<!tpu.dma_semaphore, #tpu.memory_space<semaphore_mem>>
    tpu.enqueue_dma source(%arg9 : memref<128x128xbf16, #tpu.memory_space<any>>) target(%arg17 : memref<128x128xbf16, #tpu.memory_space<vmem>>) target_semaphore(%5 : memref<!tpu.dma_semaphore, #tpu.memory_space<semaphore_mem>>)
    %6 = tpu.iota {dimensions = array<i32: 1>} : vector<1x128xi32>
    %c0 = arith.constant 0 : index
    %c0_0 = arith.constant 0 : index
    %7 = vector.load %arg0[%c0, %c0_0] : memref<2048x32xbf16, #tpu.memory_space<vmem>>, vector<128x32xbf16>
    %c0_1 = arith.constant 0 : index
    %c0_2 = arith.constant 0 : index
    %8 = vector.load %arg1[%c0_1, %c0_2] : memref<32x128xbf16, #tpu.memory_space<vmem>>, vector<32x128xbf16>
    %cst = arith.constant dense<0.000000e+00> : vector<128x128xf32>
    %9 = tpu.matmul %7, %8, %cst {dimension_numbers = #tpu.dot_dimension_numbers<[1], [0], [0], [1], [0, 0, 1, 1], [], []>} : vector<128x32xbf16>, vector<32x128xbf16>, vector<128x128xf32> -> vector<128x128xf32>
    %c512 = arith.constant 512 : index
    %c0_3 = arith.constant 0 : index
    %10 = vector.load %arg0[%c512, %c0_3] : memref<2048x32xbf16, #tpu.memory_space<vmem>>, vector<128x32xbf16>
    %c0_4 = arith.constant 0 : index
    %c0_5 = arith.constant 0 : index
    %11 = vector.load %arg1[%c0_4, %c0_5] : memref<32x128xbf16, #tpu.memory_space<vmem>>, vector<32x128xbf16>
    %cst_6 = arith.constant dense<0.000000e+00> : vector<128x128xf32>
    %12 = tpu.matmul %10, %11, %cst_6 {dimension_numbers = #tpu.dot_dimension_numbers<[1], [0], [0], [1], [0, 0, 1, 1], [], []>} : vector<128x32xbf16>, vector<32x128xbf16>, vector<128x128xf32> -> vector<128x128xf32>
    %13 = arith.maximumf %9, %12 : vector<128x128xf32>
    %c1024 = arith.constant 1024 : index
    %c0_7 = arith.constant 0 : index
    %14 = vector.load %arg0[%c1024, %c0_7] : memref<2048x32xbf16, #tpu.memory_space<vmem>>, vector<128x32xbf16>
    %c0_8 = arith.constant 0 : index
    %c0_9 = arith.constant 0 : index
    %15 = vector.load %arg1[%c0_8, %c0_9] : memref<32x128xbf16, #tpu.memory_space<vmem>>, vector<32x128xbf16>
    %cst_10 = arith.constant dense<0.000000e+00> : vector<128x128xf32>
    %16 = tpu.matmul %14, %15, %cst_10 {dimension_numbers = #tpu.dot_dimension_numbers<[1], [0], [0], [1], [0, 0, 1, 1], [], []>} : vector<128x32xbf16>, vector<32x128xbf16>, vector<128x128xf32> -> vector<128x128xf32>
    %17 = arith.maximumf %13, %16 : vector<128x128xf32>
    %c1536 = arith.constant 1536 : index
    %c0_11 = arith.constant 0 : index
    %18 = vector.load %arg0[%c1536, %c0_11] : memref<2048x32xbf16, #tpu.memory_space<vmem>>, vector<128x32xbf16>
    %c0_12 = arith.constant 0 : index
    %c0_13 = arith.constant 0 : index
    %19 = vector.load %arg1[%c0_12, %c0_13] : memref<32x128xbf16, #tpu.memory_space<vmem>>, vector<32x128xbf16>
    %cst_14 = arith.constant dense<0.000000e+00> : vector<128x128xf32>
    %20 = tpu.matmul %18, %19, %cst_14 {dimension_numbers = #tpu.dot_dimension_numbers<[1], [0], [0], [1], [0, 0, 1, 1], [], []>} : vector<128x32xbf16>, vector<32x128xbf16>, vector<128x128xf32> -> vector<128x128xf32>
    %21 = arith.maximumf %17, %20 : vector<128x128xf32>
    %c0_15 = arith.constant 0 : index
    %c0_16 = arith.constant 0 : index
    %22 = vector.load %arg12[%c0_15, %c0_16] : memref<512x128xf32, #tpu.memory_space<vmem>>, vector<128x128xf32>
    tpu.vector_store %arg12[%c0_15, %c0_16], %21 {strides = array<i32>} : memref<512x128xf32, #tpu.memory_space<vmem>>, vector<128x128xf32>,
    %c128 = arith.constant 128 : index
    %c0_17 = arith.constant 0 : index
    %23 = vector.load %arg0[%c128, %c0_17] : memref<2048x32xbf16, #tpu.memory_space<vmem>>, vector<128x32xbf16>
    %c0_18 = arith.constant 0 : index
    %c0_19 = arith.constant 0 : index
    %24 = vector.load %arg1[%c0_18, %c0_19] : memref<32x128xbf16, #tpu.memory_space<vmem>>, vector<32x128xbf16>
    %cst_20 = arith.constant dense<0.000000e+00> : vector<128x128xf32>
    %25 = tpu.matmul %23, %24, %cst_20 {dimension_numbers = #tpu.dot_dimension_numbers<[1], [0], [0], [1], [0, 0, 1, 1], [], []>} : vector<128x32xbf16>, vector<32x128xbf16>, vector<128x128xf32> -> vector<128x128xf32>
    %c640 = arith.constant 640 : index
    %c0_21 = arith.constant 0 : index
    %26 = vector.load %arg0[%c640, %c0_21] : memref<2048x32xbf16, #tpu.memory_space<vmem>>, vector<128x32xbf16>
    %c0_22 = arith.constant 0 : index
    %c0_23 = arith.constant 0 : index
    %27 = vector.load %arg1[%c0_22, %c0_23] : memref<32x128xbf16, #tpu.memory_space<vmem>>, vector<32x128xbf16>
    %cst_24 = arith.constant dense<0.000000e+00> : vector<128x128xf32>
    %28 = tpu.matmul %26, %27, %cst_24 {dimension_numbers = #tpu.dot_dimension_numbers<[1], [0], [0], [1], [0, 0, 1, 1], [], []>} : vector<128x32xbf16>, vector<32x128xbf16>, vector<128x128xf32> -> vector<128x128xf32>
    %29 = arith.maximumf %25, %28 : vector<128x128xf32>
    %c1152 = arith.constant 1152 : index
    %c0_25 = arith.constant 0 : index
    %30 = vector.load %arg0[%c1152, %c0_25] : memref<2048x32xbf16, #tpu.memory_space<vmem>>, vector<128x32xbf16>
    %c0_26 = arith.constant 0 : index
    %c0_27 = arith.constant 0 : index
    %31 = vector.load %arg1[%c0_26, %c0_27] : memref<32x128xbf16, #tpu.memory_space<vmem>>, vector<32x128xbf16>
    %cst_28 = arith.constant dense<0.000000e+00> : vector<128x128xf32>
    %32 = tpu.matmul %30, %31, %cst_28 {dimension_numbers = #tpu.dot_dimension_numbers<[1], [0], [0], [1], [0, 0, 1, 1], [], []>} : vector<128x32xbf16>, vector<32x128xbf16>, vector<128x128xf32> -> vector<128x128xf32>
    %33 = arith.maximumf %29, %32 : vector<128x128xf32>
    %c1664 = arith.constant 1664 : index
    %c0_29 = arith.constant 0 : index
    %34 = vector.load %arg0[%c1664, %c0_29] : memref<2048x32xbf16, #tpu.memory_space<vmem>>, vector<128x32xbf16>
    %c0_30 = arith.constant 0 : index
    %c0_31 = arith.constant 0 : index
    %35 = vector.load %arg1[%c0_30, %c0_31] : memref<32x128xbf16, #tpu.memory_space<vmem>>, vector<32x128xbf16>
    %cst_32 = arith.constant dense<0.000000e+00> : vector<128x128xf32>
    %36 = tpu.matmul %34, %35, %cst_32 {dimension_numbers = #tpu.dot_dimension_numbers<[1], [0], [0], [1], [0, 0, 1, 1], [], []>} : vector<128x32xbf16>, vector<32x128xbf16>, vector<128x128xf32> -> vector<128x128xf32>
    %37 = arith.maximumf %33, %36 : vector<128x128xf32>
    %c128_33 = arith.constant 128 : index
    %c0_34 = arith.constant 0 : index
    %38 = vector.load %arg12[%c128_33, %c0_34] : memref<512x128xf32, #tpu.memory_space<vmem>>, vector<128x128xf32>
    tpu.vector_store %arg12[%c128_33, %c0_34], %37 {strides = array<i32>} : memref<512x128xf32, #tpu.memory_space<vmem>>, vector<128x128xf32>,
    %c256 = arith.constant 256 : index
    %c0_35 = arith.constant 0 : index
    %39 = vector.load %arg0[%c256, %c0_35] : memref<2048x32xbf16, #tpu.memory_space<vmem>>, vector<128x32xbf16>
    %c0_36 = arith.constant 0 : index
    %c0_37 = arith.constant 0 : index
    %40 = vector.load %arg1[%c0_36, %c0_37] : memref<32x128xbf16, #tpu.memory_space<vmem>>, vector<32x128xbf16>
    %cst_38 = arith.constant dense<0.000000e+00> : vector<128x128xf32>
    %41 = tpu.matmul %39, %40, %cst_38 {dimension_numbers = #tpu.dot_dimension_numbers<[1], [0], [0], [1], [0, 0, 1, 1], [], []>} : vector<128x32xbf16>, vector<32x128xbf16>, vector<128x128xf32> -> vector<128x128xf32>
    %c768 = arith.constant 768 : index
    %c0_39 = arith.constant 0 : index
    %42 = vector.load %arg0[%c768, %c0_39] : memref<2048x32xbf16, #tpu.memory_space<vmem>>, vector<128x32xbf16>
    %c0_40 = arith.constant 0 : index
    %c0_41 = arith.constant 0 : index
    %43 = vector.load %arg1[%c0_40, %c0_41] : memref<32x128xbf16, #tpu.memory_space<vmem>>, vector<32x128xbf16>
    %cst_42 = arith.constant dense<0.000000e+00> : vector<128x128xf32>
    %44 = tpu.matmul %42, %43, %cst_42 {dimension_numbers = #tpu.dot_dimension_numbers<[1], [0], [0], [1], [0, 0, 1, 1], [], []>} : vector<128x32xbf16>, vector<32x128xbf16>, vector<128x128xf32> -> vector<128x128xf32>
    %45 = arith.maximumf %41, %44 : vector<128x128xf32>
    %c1280 = arith.constant 1280 : index
    %c0_43 = arith.constant 0 : index
    %46 = vector.load %arg0[%c1280, %c0_43] : memref<2048x32xbf16, #tpu.memory_space<vmem>>, vector<128x32xbf16>
    %c0_44 = arith.constant 0 : index
    %c0_45 = arith.constant 0 : index
    %47 = vector.load %arg1[%c0_44, %c0_45] : memref<32x128xbf16, #tpu.memory_space<vmem>>, vector<32x128xbf16>
    %cst_46 = arith.constant dense<0.000000e+00> : vector<128x128xf32>
    %48 = tpu.matmul %46, %47, %cst_46 {dimension_numbers = #tpu.dot_dimension_numbers<[1], [0], [0], [1], [0, 0, 1, 1], [], []>} : vector<128x32xbf16>, vector<32x128xbf16>, vector<128x128xf32> -> vector<128x128xf32>
    %49 = arith.maximumf %45, %48 : vector<128x128xf32>
    %c1792 = arith.constant 1792 : index
    %c0_47 = arith.constant 0 : index
    %50 = vector.load %arg0[%c1792, %c0_47] : memref<2048x32xbf16, #tpu.memory_space<vmem>>, vector<128x32xbf16>
    %c0_48 = arith.constant 0 : index
    %c0_49 = arith.constant 0 : index
    %51 = vector.load %arg1[%c0_48, %c0_49] : memref<32x128xbf16, #tpu.memory_space<vmem>>, vector<32x128xbf16>
    %cst_50 = arith.constant dense<0.000000e+00> : vector<128x128xf32>
    %52 = tpu.matmul %50, %51, %cst_50 {dimension_numbers = #tpu.dot_dimension_numbers<[1], [0], [0], [1], [0, 0, 1, 1], [], []>} : vector<128x32xbf16>, vector<32x128xbf16>, vector<128x128xf32> -> vector<128x128xf32>
    %53 = arith.maximumf %49, %52 : vector<128x128xf32>
    %c256_51 = arith.constant 256 : index
    %c0_52 = arith.constant 0 : index
    %54 = vector.load %arg12[%c256_51, %c0_52] : memref<512x128xf32, #tpu.memory_space<vmem>>, vector<128x128xf32>
    tpu.vector_store %arg12[%c256_51, %c0_52], %53 {strides = array<i32>} : memref<512x128xf32, #tpu.memory_space<vmem>>, vector<128x128xf32>,
    %c384 = arith.constant 384 : index
    %c0_53 = arith.constant 0 : index
    %55 = vector.load %arg0[%c384, %c0_53] : memref<2048x32xbf16, #tpu.memory_space<vmem>>, vector<128x32xbf16>
    %c0_54 = arith.constant 0 : index
    %c0_55 = arith.constant 0 : index
    %56 = vector.load %arg1[%c0_54, %c0_55] : memref<32x128xbf16, #tpu.memory_space<vmem>>, vector<32x128xbf16>
    %cst_56 = arith.constant dense<0.000000e+00> : vector<128x128xf32>
    %57 = tpu.matmul %55, %56, %cst_56 {dimension_numbers = #tpu.dot_dimension_numbers<[1], [0], [0], [1], [0, 0, 1, 1], [], []>} : vector<128x32xbf16>, vector<32x128xbf16>, vector<128x128xf32> -> vector<128x128xf32>
    %c896 = arith.constant 896 : index
    %c0_57 = arith.constant 0 : index
    %58 = vector.load %arg0[%c896, %c0_57] : memref<2048x32xbf16, #tpu.memory_space<vmem>>, vector<128x32xbf16>
    %c0_58 = arith.constant 0 : index
    %c0_59 = arith.constant 0 : index
    %59 = vector.load %arg1[%c0_58, %c0_59] : memref<32x128xbf16, #tpu.memory_space<vmem>>, vector<32x128xbf16>
    %cst_60 = arith.constant dense<0.000000e+00> : vector<128x128xf32>
    %60 = tpu.matmul %58, %59, %cst_60 {dimension_numbers = #tpu.dot_dimension_numbers<[1], [0], [0], [1], [0, 0, 1, 1], [], []>} : vector<128x32xbf16>, vector<32x128xbf16>, vector<128x128xf32> -> vector<128x128xf32>
    %61 = arith.maximumf %57, %60 : vector<128x128xf32>
    %c1408 = arith.constant 1408 : index
    %c0_61 = arith.constant 0 : index
    %62 = vector.load %arg0[%c1408, %c0_61] : memref<2048x32xbf16, #tpu.memory_space<vmem>>, vector<128x32xbf16>
    %c0_62 = arith.constant 0 : index
    %c0_63 = arith.constant 0 : index
    %63 = vector.load %arg1[%c0_62, %c0_63] : memref<32x128xbf16, #tpu.memory_space<vmem>>, vector<32x128xbf16>
    %cst_64 = arith.constant dense<0.000000e+00> : vector<128x128xf32>
    %64 = tpu.matmul %62, %63, %cst_64 {dimension_numbers = #tpu.dot_dimension_numbers<[1], [0], [0], [1], [0, 0, 1, 1], [], []>} : vector<128x32xbf16>, vector<32x128xbf16>, vector<128x128xf32> -> vector<128x128xf32>
    %65 = arith.maximumf %61, %64 : vector<128x128xf32>
    %c1920 = arith.constant 1920 : index
    %c0_65 = arith.constant 0 : index
    %66 = vector.load %arg0[%c1920, %c0_65] : memref<2048x32xbf16, #tpu.memory_space<vmem>>, vector<128x32xbf16>
    %c0_66 = arith.constant 0 : index
    %c0_67 = arith.constant 0 : index
    %67 = vector.load %arg1[%c0_66, %c0_67] : memref<32x128xbf16, #tpu.memory_space<vmem>>, vector<32x128xbf16>
    %cst_68 = arith.constant dense<0.000000e+00> : vector<128x128xf32>
    %68 = tpu.matmul %66, %67, %cst_68 {dimension_numbers = #tpu.dot_dimension_numbers<[1], [0], [0], [1], [0, 0, 1, 1], [], []>} : vector<128x32xbf16>, vector<32x128xbf16>, vector<128x128xf32> -> vector<128x128xf32>
    %69 = arith.maximumf %65, %68 : vector<128x128xf32>
    %c384_69 = arith.constant 384 : index
    %c0_70 = arith.constant 0 : index
    %70 = vector.load %arg12[%c384_69, %c0_70] : memref<512x128xf32, #tpu.memory_space<vmem>>, vector<128x128xf32>
    tpu.vector_store %arg12[%c384_69, %c0_70], %69 {strides = array<i32>} : memref<512x128xf32, #tpu.memory_space<vmem>>, vector<128x128xf32>,
    %c72 = arith.constant 72 : index
    %c0_71 = arith.constant 0 : index
    %71 = vector.load %arg12[%c72, %c0_71] : memref<512x128xf32, #tpu.memory_space<vmem>>, vector<40x128xf32>
    %c0_72 = arith.constant 0 : index
    %c0_73 = arith.constant 0 : index
    %72 = vector.load %arg2[%c0_72, %c0_73] : memref<1x128xf32, #tpu.memory_space<vmem>>, vector<1x128xf32>
    %73 = vector.broadcast %72 : vector<1x128xf32> to vector<40x128xf32>
    %74 = arith.addf %71, %73 : vector<40x128xf32>
    %cst_74 = arith.constant 0.000000e+00 : f32
    %75 = vector.broadcast %cst_74 : f32 to vector<40x128xf32>
    %76 = arith.cmpf ogt, %74, %75 : vector<40x128xf32>
    %cst_75 = arith.constant 0.000000e+00 : f32
    %77 = vector.broadcast %cst_75 : f32 to vector<40x128xf32>
    %78 = arith.minimumf %74, %77 : vector<40x128xf32>
    %79 = math.exp %78 : vector<40x128xf32>
    %cst_76 = arith.constant 1.000000e+00 : f32
    %80 = vector.broadcast %cst_76 : f32 to vector<40x128xf32>
    %81 = arith.subf %79, %80 : vector<40x128xf32>
    %82 = arith.select %76, %74, %81 : vector<40x128xi1>, vector<40x128xf32>
    %c72_77 = arith.constant 72 : index
    %c0_78 = arith.constant 0 : index
    %83 = vector.load %arg12[%c72_77, %c0_78] : memref<512x128xf32, #tpu.memory_space<vmem>>, vector<40x128xf32>
    tpu.vector_store %arg12[%c72_77, %c0_78], %82 {strides = array<i32>} : memref<512x128xf32, #tpu.memory_space<vmem>>, vector<40x128xf32>,
    %c136 = arith.constant 136 : index
    %c0_79 = arith.constant 0 : index
    %84 = vector.load %arg12[%c136, %c0_79] : memref<512x128xf32, #tpu.memory_space<vmem>>, vector<40x128xf32>
    %c0_80 = arith.constant 0 : index
    %c0_81 = arith.constant 0 : index
    %85 = vector.load %arg2[%c0_80, %c0_81] : memref<1x128xf32, #tpu.memory_space<vmem>>, vector<1x128xf32>
    %86 = vector.broadcast %85 : vector<1x128xf32> to vector<40x128xf32>
    %87 = arith.addf %84, %86 : vector<40x128xf32>
    %cst_82 = arith.constant 0.000000e+00 : f32
    %88 = vector.broadcast %cst_82 : f32 to vector<40x128xf32>
    %89 = arith.cmpf ogt, %87, %88 : vector<40x128xf32>
    %cst_83 = arith.constant 0.000000e+00 : f32
    %90 = vector.broadcast %cst_83 : f32 to vector<40x128xf32>
    %91 = arith.minimumf %87, %90 : vector<40x128xf32>
    %92 = math.exp %91 : vector<40x128xf32>
    %cst_84 = arith.constant 1.000000e+00 : f32
    %93 = vector.broadcast %cst_84 : f32 to vector<40x128xf32>
    %94 = arith.subf %92, %93 : vector<40x128xf32>
    %95 = arith.select %89, %87, %94 : vector<40x128xi1>, vector<40x128xf32>
    %c136_85 = arith.constant 136 : index
    %c0_86 = arith.constant 0 : index
    %96 = vector.load %arg12[%c136_85, %c0_86] : memref<512x128xf32, #tpu.memory_space<vmem>>, vector<40x128xf32>
    tpu.vector_store %arg12[%c136_85, %c0_86], %95 {strides = array<i32>} : memref<512x128xf32, #tpu.memory_space<vmem>>, vector<40x128xf32>,
    %c200 = arith.constant 200 : index
    %c0_87 = arith.constant 0 : index
    %97 = vector.load %arg12[%c200, %c0_87] : memref<512x128xf32, #tpu.memory_space<vmem>>, vector<40x128xf32>
    %c0_88 = arith.constant 0 : index
    %c0_89 = arith.constant 0 : index
    %98 = vector.load %arg2[%c0_88, %c0_89] : memref<1x128xf32, #tpu.memory_space<vmem>>, vector<1x128xf32>
    %99 = vector.broadcast %98 : vector<1x128xf32> to vector<40x128xf32>
    %100 = arith.addf %97, %99 : vector<40x128xf32>
    %cst_90 = arith.constant 0.000000e+00 : f32
    %101 = vector.broadcast %cst_90 : f32 to vector<40x128xf32>
    %102 = arith.cmpf ogt, %100, %101 : vector<40x128xf32>
    %cst_91 = arith.constant 0.000000e+00 : f32
    %103 = vector.broadcast %cst_91 : f32 to vector<40x128xf32>
    %104 = arith.minimumf %100, %103 : vector<40x128xf32>
    %105 = math.exp %104 : vector<40x128xf32>
    %cst_92 = arith.constant 1.000000e+00 : f32
    %106 = vector.broadcast %cst_92 : f32 to vector<40x128xf32>
    %107 = arith.subf %105, %106 : vector<40x128xf32>
    %108 = arith.select %102, %100, %107 : vector<40x128xi1>, vector<40x128xf32>
    %c200_93 = arith.constant 200 : index
    %c0_94 = arith.constant 0 : index
    %109 = vector.load %arg12[%c200_93, %c0_94] : memref<512x128xf32, #tpu.memory_space<vmem>>, vector<40x128xf32>
    tpu.vector_store %arg12[%c200_93, %c0_94], %108 {strides = array<i32>} : memref<512x128xf32, #tpu.memory_space<vmem>>, vector<40x128xf32>,
    %c264 = arith.constant 264 : index
    %c0_95 = arith.constant 0 : index
    %110 = vector.load %arg12[%c264, %c0_95] : memref<512x128xf32, #tpu.memory_space<vmem>>, vector<40x128xf32>
    %c0_96 = arith.constant 0 : index
    %c0_97 = arith.constant 0 : index
    %111 = vector.load %arg2[%c0_96, %c0_97] : memref<1x128xf32, #tpu.memory_space<vmem>>, vector<1x128xf32>
    %112 = vector.broadcast %111 : vector<1x128xf32> to vector<40x128xf32>
    %113 = arith.addf %110, %112 : vector<40x128xf32>
    %cst_98 = arith.constant 0.000000e+00 : f32
    %114 = vector.broadcast %cst_98 : f32 to vector<40x128xf32>
    %115 = arith.cmpf ogt, %113, %114 : vector<40x128xf32>
    %cst_99 = arith.constant 0.000000e+00 : f32
    %116 = vector.broadcast %cst_99 : f32 to vector<40x128xf32>
    %117 = arith.minimumf %113, %116 : vector<40x128xf32>
    %118 = math.exp %117 : vector<40x128xf32>
    %cst_100 = arith.constant 1.000000e+00 : f32
    %119 = vector.broadcast %cst_100 : f32 to vector<40x128xf32>
    %120 = arith.subf %118, %119 : vector<40x128xf32>
    %121 = arith.select %115, %113, %120 : vector<40x128xi1>, vector<40x128xf32>
    %c264_101 = arith.constant 264 : index
    %c0_102 = arith.constant 0 : index
    %122 = vector.load %arg12[%c264_101, %c0_102] : memref<512x128xf32, #tpu.memory_space<vmem>>, vector<40x128xf32>
    tpu.vector_store %arg12[%c264_101, %c0_102], %121 {strides = array<i32>} : memref<512x128xf32, #tpu.memory_space<vmem>>, vector<40x128xf32>,
    %c328 = arith.constant 328 : index
    %c0_103 = arith.constant 0 : index
    %123 = vector.load %arg12[%c328, %c0_103] : memref<512x128xf32, #tpu.memory_space<vmem>>, vector<40x128xf32>
    %c0_104 = arith.constant 0 : index
    %c0_105 = arith.constant 0 : index
    %124 = vector.load %arg2[%c0_104, %c0_105] : memref<1x128xf32, #tpu.memory_space<vmem>>, vector<1x128xf32>
    %125 = vector.broadcast %124 : vector<1x128xf32> to vector<40x128xf32>
    %126 = arith.addf %123, %125 : vector<40x128xf32>
    %cst_106 = arith.constant 0.000000e+00 : f32
    %127 = vector.broadcast %cst_106 : f32 to vector<40x128xf32>
    %128 = arith.cmpf ogt, %126, %127 : vector<40x128xf32>
    %cst_107 = arith.constant 0.000000e+00 : f32
    %129 = vector.broadcast %cst_107 : f32 to vector<40x128xf32>
    %130 = arith.minimumf %126, %129 : vector<40x128xf32>
    %131 = math.exp %130 : vector<40x128xf32>
    %cst_108 = arith.constant 1.000000e+00 : f32
    %132 = vector.broadcast %cst_108 : f32 to vector<40x128xf32>
    %133 = arith.subf %131, %132 : vector<40x128xf32>
    %134 = arith.select %128, %126, %133 : vector<40x128xi1>, vector<40x128xf32>
    %c328_109 = arith.constant 328 : index
    %c0_110 = arith.constant 0 : index
    %135 = vector.load %arg12[%c328_109, %c0_110] : memref<512x128xf32, #tpu.memory_space<vmem>>, vector<40x128xf32>
    tpu.vector_store %arg12[%c328_109, %c0_110], %134 {strides = array<i32>} : memref<512x128xf32, #tpu.memory_space<vmem>>, vector<40x128xf32>,
    %c0_i32_111 = arith.constant 0 : i32
    %136 = vector.broadcast %c0_i32_111 : i32 to vector<1x128xi32>
    %137 = arith.cmpi sge, %6, %136 : vector<1x128xi32>
    %c6_i32 = arith.constant 6 : i32
    %138 = vector.broadcast %c6_i32 : i32 to vector<1x128xi32>
    %139 = arith.cmpi slt, %6, %138 : vector<1x128xi32>
    %140 = arith.andi %137, %139 : vector<1x128xi1>
    %141 = arith.extui %140 : vector<1x128xi1> to vector<1x128xi32>
    %142 = arith.sitofp %141 : vector<1x128xi32> to vector<1x128xf32>
    %c32_i32 = arith.constant 32 : i32
    %143 = vector.broadcast %c32_i32 : i32 to vector<1x128xi32>
    %144 = arith.cmpi sge, %6, %143 : vector<1x128xi32>
    %c38_i32 = arith.constant 38 : i32
    %145 = vector.broadcast %c38_i32 : i32 to vector<1x128xi32>
    %146 = arith.cmpi slt, %6, %145 : vector<1x128xi32>
    %147 = arith.andi %144, %146 : vector<1x128xi1>
    %148 = arith.extui %147 : vector<1x128xi1> to vector<1x128xi32>
    %149 = arith.sitofp %148 : vector<1x128xi32> to vector<1x128xf32>
    %c64_i32 = arith.constant 64 : i32
    %150 = vector.broadcast %c64_i32 : i32 to vector<1x128xi32>
    %151 = arith.cmpi sge, %6, %150 : vector<1x128xi32>
    %c70_i32 = arith.constant 70 : i32
    %152 = vector.broadcast %c70_i32 : i32 to vector<1x128xi32>
    %153 = arith.cmpi slt, %6, %152 : vector<1x128xi32>
    %154 = arith.andi %151, %153 : vector<1x128xi1>
    %155 = arith.extui %154 : vector<1x128xi1> to vector<1x128xi32>
    %156 = arith.sitofp %155 : vector<1x128xi32> to vector<1x128xf32>
    %c96_i32 = arith.constant 96 : i32
    %157 = vector.broadcast %c96_i32 : i32 to vector<1x128xi32>
    %158 = arith.cmpi sge, %6, %157 : vector<1x128xi32>
    %c102_i32 = arith.constant 102 : i32
    %159 = vector.broadcast %c102_i32 : i32 to vector<1x128xi32>
    %160 = arith.cmpi slt, %6, %159 : vector<1x128xi32>
    %161 = arith.andi %158, %160 : vector<1x128xi1>
    %162 = arith.extui %161 : vector<1x128xi1> to vector<1x128xi32>
    %163 = arith.sitofp %162 : vector<1x128xi32> to vector<1x128xf32>
    %c0_112 = arith.constant 0 : index
    %c0_113 = arith.constant 0 : index
    %164 = vector.load %arg12[%c0_112, %c0_113] : memref<512x128xf32, #tpu.memory_space<vmem>>, vector<128x128xf32>
    %165 = vector.broadcast %142 : vector<1x128xf32> to vector<128x128xf32>
    %166 = arith.mulf %164, %165 : vector<128x128xf32>
    %c8 = arith.constant 8 : index
    %c0_114 = arith.constant 0 : index
    %167 = vector.load %arg12[%c8, %c0_114] : memref<512x128xf32, #tpu.memory_space<vmem>>, vector<128x128xf32>
    %168 = vector.broadcast %149 : vector<1x128xf32> to vector<128x128xf32>
    %169 = arith.mulf %167, %168 : vector<128x128xf32>
    %170 = arith.addf %166, %169 : vector<128x128xf32>
    %c64 = arith.constant 64 : index
    %c0_115 = arith.constant 0 : index
    %171 = vector.load %arg12[%c64, %c0_115] : memref<512x128xf32, #tpu.memory_space<vmem>>, vector<128x128xf32>
    %172 = vector.broadcast %156 : vector<1x128xf32> to vector<128x128xf32>
    %173 = arith.mulf %171, %172 : vector<128x128xf32>
    %174 = arith.addf %170, %173 : vector<128x128xf32>
    %c72_116 = arith.constant 72 : index
    %c0_117 = arith.constant 0 : index
    %175 = vector.load %arg12[%c72_116, %c0_117] : memref<512x128xf32, #tpu.memory_space<vmem>>, vector<128x128xf32>
    %176 = vector.broadcast %163 : vector<1x128xf32> to vector<128x128xf32>
    %177 = arith.mulf %175, %176 : vector<128x128xf32>
    %178 = arith.addf %174, %177 : vector<128x128xf32>
    %179 = arith.truncf %178 : vector<128x128xf32> to vector<128x128xbf16>
    %c0_118 = arith.constant 0 : index
    %c0_119 = arith.constant 0 : index
    %180 = vector.load %arg3[%c0_118, %c0_119] : memref<128x128xbf16, #tpu.memory_space<vmem>>, vector<128x128xbf16>
    %cst_120 = arith.constant dense<0.000000e+00> : vector<128x128xf32>
    %181 = tpu.matmul %179, %180, %cst_120 {dimension_numbers = #tpu.dot_dimension_numbers<[1], [0], [0], [1], [0, 0, 1, 1], [], []>} : vector<128x128xbf16>, vector<128x128xbf16>, vector<128x128xf32> -> vector<128x128xf32>
    %c0_121 = arith.constant 0 : index
    %c0_122 = arith.constant 0 : index
    %182 = vector.load %arg4[%c0_121, %c0_122] : memref<1x128xf32, #tpu.memory_space<vmem>>, vector<1x128xf32>
    %183 = vector.broadcast %182 : vector<1x128xf32> to vector<128x128xf32>
    %184 = arith.addf %181, %183 : vector<128x128xf32>
    %cst_123 = arith.constant 0.000000e+00 : f32
    %185 = vector.broadcast %cst_123 : f32 to vector<128x128xf32>
    %186 = arith.cmpf ogt, %184, %185 : vector<128x128xf32>
    %cst_124 = arith.constant 0.000000e+00 : f32
    %187 = vector.broadcast %cst_124 : f32 to vector<128x128xf32>
    %188 = arith.minimumf %184, %187 : vector<128x128xf32>
    %189 = math.exp %188 : vector<128x128xf32>
    %cst_125 = arith.constant 1.000000e+00 : f32
    %190 = vector.broadcast %cst_125 : f32 to vector<128x128xf32>
    %191 = arith.subf %189, %190 : vector<128x128xf32>
    %192 = arith.select %186, %184, %191 : vector<128x128xi1>, vector<128x128xf32>
    %c0_126 = arith.constant 0 : index
    %c0_127 = arith.constant 0 : index
    %193 = vector.load %arg13[%c0_126, %c0_127] : memref<384x128xf32, #tpu.memory_space<vmem>>, vector<128x128xf32>
    tpu.vector_store %arg13[%c0_126, %c0_127], %192 {strides = array<i32>} : memref<384x128xf32, #tpu.memory_space<vmem>>, vector<128x128xf32>,
    %c128_128 = arith.constant 128 : index
    %c0_129 = arith.constant 0 : index
    %194 = vector.load %arg12[%c128_128, %c0_129] : memref<512x128xf32, #tpu.memory_space<vmem>>, vector<128x128xf32>
    %195 = vector.broadcast %142 : vector<1x128xf32> to vector<128x128xf32>
    %196 = arith.mulf %194, %195 : vector<128x128xf32>
    %c136_130 = arith.constant 136 : index
    %c0_131 = arith.constant 0 : index
    %197 = vector.load %arg12[%c136_130, %c0_131] : memref<512x128xf32, #tpu.memory_space<vmem>>, vector<128x128xf32>
    %198 = vector.broadcast %149 : vector<1x128xf32> to vector<128x128xf32>
    %199 = arith.mulf %197, %198 : vector<128x128xf32>
    %200 = arith.addf %196, %199 : vector<128x128xf32>
    %c192 = arith.constant 192 : index
    %c0_132 = arith.constant 0 : index
    %201 = vector.load %arg12[%c192, %c0_132] : memref<512x128xf32, #tpu.memory_space<vmem>>, vector<128x128xf32>
    %202 = vector.broadcast %156 : vector<1x128xf32> to vector<128x128xf32>
    %203 = arith.mulf %201, %202 : vector<128x128xf32>
    %204 = arith.addf %200, %203 : vector<128x128xf32>
    %c200_133 = arith.constant 200 : index
    %c0_134 = arith.constant 0 : index
    %205 = vector.load %arg12[%c200_133, %c0_134] : memref<512x128xf32, #tpu.memory_space<vmem>>, vector<128x128xf32>
    %206 = vector.broadcast %163 : vector<1x128xf32> to vector<128x128xf32>
    %207 = arith.mulf %205, %206 : vector<128x128xf32>
    %208 = arith.addf %204, %207 : vector<128x128xf32>
    %209 = arith.truncf %208 : vector<128x128xf32> to vector<128x128xbf16>
    %c0_135 = arith.constant 0 : index
    %c0_136 = arith.constant 0 : index
    %210 = vector.load %arg3[%c0_135, %c0_136] : memref<128x128xbf16, #tpu.memory_space<vmem>>, vector<128x128xbf16>
    %cst_137 = arith.constant dense<0.000000e+00> : vector<128x128xf32>
    %211 = tpu.matmul %209, %210, %cst_137 {dimension_numbers = #tpu.dot_dimension_numbers<[1], [0], [0], [1], [0, 0, 1, 1], [], []>} : vector<128x128xbf16>, vector<128x128xbf16>, vector<128x128xf32> -> vector<128x128xf32>
    %c0_138 = arith.constant 0 : index
    %c0_139 = arith.constant 0 : index
    %212 = vector.load %arg4[%c0_138, %c0_139] : memref<1x128xf32, #tpu.memory_space<vmem>>, vector<1x128xf32>
    %213 = vector.broadcast %212 : vector<1x128xf32> to vector<128x128xf32>
    %214 = arith.addf %211, %213 : vector<128x128xf32>
    %cst_140 = arith.constant 0.000000e+00 : f32
    %215 = vector.broadcast %cst_140 : f32 to vector<128x128xf32>
    %216 = arith.cmpf ogt, %214, %215 : vector<128x128xf32>
    %cst_141 = arith.constant 0.000000e+00 : f32
    %217 = vector.broadcast %cst_141 : f32 to vector<128x128xf32>
    %218 = arith.minimumf %214, %217 : vector<128x128xf32>
    %219 = math.exp %218 : vector<128x128xf32>
    %cst_142 = arith.constant 1.000000e+00 : f32
    %220 = vector.broadcast %cst_142 : f32 to vector<128x128xf32>
    %221 = arith.subf %219, %220 : vector<128x128xf32>
    %222 = arith.select %216, %214, %221 : vector<128x128xi1>, vector<128x128xf32>
    %c128_143 = arith.constant 128 : index
    %c0_144 = arith.constant 0 : index
    %223 = vector.load %arg13[%c128_143, %c0_144] : memref<384x128xf32, #tpu.memory_space<vmem>>, vector<128x128xf32>
    tpu.vector_store %arg13[%c128_143, %c0_144], %222 {strides = array<i32>} : memref<384x128xf32, #tpu.memory_space<vmem>>, vector<128x128xf32>,
    %c256_145 = arith.constant 256 : index
    %c0_146 = arith.constant 0 : index
    %224 = vector.load %arg12[%c256_145, %c0_146] : memref<512x128xf32, #tpu.memory_space<vmem>>, vector<128x128xf32>
    %225 = vector.broadcast %142 : vector<1x128xf32> to vector<128x128xf32>
    %226 = arith.mulf %224, %225 : vector<128x128xf32>
    %c264_147 = arith.constant 264 : index
    %c0_148 = arith.constant 0 : index
    %227 = vector.load %arg12[%c264_147, %c0_148] : memref<512x128xf32, #tpu.memory_space<vmem>>, vector<128x128xf32>
    %228 = vector.broadcast %149 : vector<1x128xf32> to vector<128x128xf32>
    %229 = arith.mulf %227, %228 : vector<128x128xf32>
    %230 = arith.addf %226, %229 : vector<128x128xf32>
    %c320 = arith.constant 320 : index
    %c0_149 = arith.constant 0 : index
    %231 = vector.load %arg12[%c320, %c0_149] : memref<512x128xf32, #tpu.memory_space<vmem>>, vector<128x128xf32>
    %232 = vector.broadcast %156 : vector<1x128xf32> to vector<128x128xf32>
    %233 = arith.mulf %231, %232 : vector<128x128xf32>
    %234 = arith.addf %230, %233 : vector<128x128xf32>
    %c328_150 = arith.constant 328 : index
    %c0_151 = arith.constant 0 : index
    %235 = vector.load %arg12[%c328_150, %c0_151] : memref<512x128xf32, #tpu.memory_space<vmem>>, vector<128x128xf32>
    %236 = vector.broadcast %163 : vector<1x128xf32> to vector<128x128xf32>
    %237 = arith.mulf %235, %236 : vector<128x128xf32>
    %238 = arith.addf %234, %237 : vector<128x128xf32>
    %239 = arith.truncf %238 : vector<128x128xf32> to vector<128x128xbf16>
    %c0_152 = arith.constant 0 : index
    %c0_153 = arith.constant 0 : index
    %240 = vector.load %arg3[%c0_152, %c0_153] : memref<128x128xbf16, #tpu.memory_space<vmem>>, vector<128x128xbf16>
    %cst_154 = arith.constant dense<0.000000e+00> : vector<128x128xf32>
    %241 = tpu.matmul %239, %240, %cst_154 {dimension_numbers = #tpu.dot_dimension_numbers<[1], [0], [0], [1], [0, 0, 1, 1], [], []>} : vector<128x128xbf16>, vector<128x128xbf16>, vector<128x128xf32> -> vector<128x128xf32>
    %c0_155 = arith.constant 0 : index
    %c0_156 = arith.constant 0 : index
    %242 = vector.load %arg4[%c0_155, %c0_156] : memref<1x128xf32, #tpu.memory_space<vmem>>, vector<1x128xf32>
    %243 = vector.broadcast %242 : vector<1x128xf32> to vector<128x128xf32>
    %244 = arith.addf %241, %243 : vector<128x128xf32>
    %cst_157 = arith.constant 0.000000e+00 : f32
    %245 = vector.broadcast %cst_157 : f32 to vector<128x128xf32>
    %246 = arith.cmpf ogt, %244, %245 : vector<128x128xf32>
    %cst_158 = arith.constant 0.000000e+00 : f32
    %247 = vector.broadcast %cst_158 : f32 to vector<128x128xf32>
    %248 = arith.minimumf %244, %247 : vector<128x128xf32>
    %249 = math.exp %248 : vector<128x128xf32>
    %cst_159 = arith.constant 1.000000e+00 : f32
    %250 = vector.broadcast %cst_159 : f32 to vector<128x128xf32>
    %251 = arith.subf %249, %250 : vector<128x128xf32>
    %252 = arith.select %246, %244, %251 : vector<128x128xi1>, vector<128x128xf32>
    %c256_160 = arith.constant 256 : index
    %c0_161 = arith.constant 0 : index
    %253 = vector.load %arg13[%c256_160, %c0_161] : memref<384x128xf32, #tpu.memory_space<vmem>>, vector<128x128xf32>
    tpu.vector_store %arg13[%c256_160, %c0_161], %252 {strides = array<i32>} : memref<384x128xf32, #tpu.memory_space<vmem>>, vector<128x128xf32>,
    %c0_i32_162 = arith.constant 0 : i32
    %254 = vector.broadcast %c0_i32_162 : i32 to vector<1x128xi32>
    %255 = arith.cmpi sge, %6, %254 : vector<1x128xi32>
    %c10_i32 = arith.constant 10 : i32
    %256 = vector.broadcast %c10_i32 : i32 to vector<1x128xi32>
    %257 = arith.cmpi slt, %6, %256 : vector<1x128xi32>
    %258 = arith.andi %255, %257 : vector<1x128xi1>
    %259 = arith.extui %258 : vector<1x128xi1> to vector<1x128xi32>
    %260 = arith.sitofp %259 : vector<1x128xi32> to vector<1x128xf32>
    %c16_i32 = arith.constant 16 : i32
    %261 = vector.broadcast %c16_i32 : i32 to vector<1x128xi32>
    %262 = arith.cmpi sge, %6, %261 : vector<1x128xi32>
    %c26_i32 = arith.constant 26 : i32
    %263 = vector.broadcast %c26_i32 : i32 to vector<1x128xi32>
    %264 = arith.cmpi slt, %6, %263 : vector<1x128xi32>
    %265 = arith.andi %262, %264 : vector<1x128xi1>
    %266 = arith.extui %265 : vector<1x128xi1> to vector<1x128xi32>
    %267 = arith.sitofp %266 : vector<1x128xi32> to vector<1x128xf32>
    %c32_i32_163 = arith.constant 32 : i32
    %268 = vector.broadcast %c32_i32_163 : i32 to vector<1x128xi32>
    %269 = arith.cmpi sge, %6, %268 : vector<1x128xi32>
    %c42_i32 = arith.constant 42 : i32
    %270 = vector.broadcast %c42_i32 : i32 to vector<1x128xi32>
    %271 = arith.cmpi slt, %6, %270 : vector<1x128xi32>
    %272 = arith.andi %269, %271 : vector<1x128xi1>
    %273 = arith.extui %272 : vector<1x128xi1> to vector<1x128xi32>
    %274 = arith.sitofp %273 : vector<1x128xi32> to vector<1x128xf32>
    %c48_i32 = arith.constant 48 : i32
    %275 = vector.broadcast %c48_i32 : i32 to vector<1x128xi32>
    %276 = arith.cmpi sge, %6, %275 : vector<1x128xi32>
    %c58_i32 = arith.constant 58 : i32
    %277 = vector.broadcast %c58_i32 : i32 to vector<1x128xi32>
    %278 = arith.cmpi slt, %6, %277 : vector<1x128xi32>
    %279 = arith.andi %276, %278 : vector<1x128xi1>
    %280 = arith.extui %279 : vector<1x128xi1> to vector<1x128xi32>
    %281 = arith.sitofp %280 : vector<1x128xi32> to vector<1x128xf32>
    %c64_i32_164 = arith.constant 64 : i32
    %282 = vector.broadcast %c64_i32_164 : i32 to vector<1x128xi32>
    %283 = arith.cmpi sge, %6, %282 : vector<1x128xi32>
    %c74_i32 = arith.constant 74 : i32
    %284 = vector.broadcast %c74_i32 : i32 to vector<1x128xi32>
    %285 = arith.cmpi slt, %6, %284 : vector<1x128xi32>
    %286 = arith.andi %283, %285 : vector<1x128xi1>
    %287 = arith.extui %286 : vector<1x128xi1> to vector<1x128xi32>
    %288 = arith.sitofp %287 : vector<1x128xi32> to vector<1x128xf32>
    %c80_i32 = arith.constant 80 : i32
    %289 = vector.broadcast %c80_i32 : i32 to vector<1x128xi32>
    %290 = arith.cmpi sge, %6, %289 : vector<1x128xi32>
    %c90_i32 = arith.constant 90 : i32
    %291 = vector.broadcast %c90_i32 : i32 to vector<1x128xi32>
    %292 = arith.cmpi slt, %6, %291 : vector<1x128xi32>
    %293 = arith.andi %290, %292 : vector<1x128xi1>
    %294 = arith.extui %293 : vector<1x128xi1> to vector<1x128xi32>
    %295 = arith.sitofp %294 : vector<1x128xi32> to vector<1x128xf32>
    %c96_i32_165 = arith.constant 96 : i32
    %296 = vector.broadcast %c96_i32_165 : i32 to vector<1x128xi32>
    %297 = arith.cmpi sge, %6, %296 : vector<1x128xi32>
    %c106_i32 = arith.constant 106 : i32
    %298 = vector.broadcast %c106_i32 : i32 to vector<1x128xi32>
    %299 = arith.cmpi slt, %6, %298 : vector<1x128xi32>
    %300 = arith.andi %297, %299 : vector<1x128xi1>
    %301 = arith.extui %300 : vector<1x128xi1> to vector<1x128xi32>
    %302 = arith.sitofp %301 : vector<1x128xi32> to vector<1x128xf32>
    %c112_i32 = arith.constant 112 : i32
    %303 = vector.broadcast %c112_i32 : i32 to vector<1x128xi32>
    %304 = arith.cmpi sge, %6, %303 : vector<1x128xi32>
    %c122_i32 = arith.constant 122 : i32
    %305 = vector.broadcast %c122_i32 : i32 to vector<1x128xi32>
    %306 = arith.cmpi slt, %6, %305 : vector<1x128xi32>
    %307 = arith.andi %304, %306 : vector<1x128xi1>
    %308 = arith.extui %307 : vector<1x128xi1> to vector<1x128xi32>
    %309 = arith.sitofp %308 : vector<1x128xi32> to vector<1x128xf32>
    %cst_166 = arith.constant 0.000000e+00 : f32
    %310 = vector.broadcast %cst_166 : f32 to vector<8x128xf32>
    %c0_167 = arith.constant 0 : index
    %c0_168 = arith.constant 0 : index
    %311 = vector.load %arg13[%c0_167, %c0_168] : memref<384x128xf32, #tpu.memory_space<vmem>>, vector<8x128xf32>
    %312 = vector.broadcast %260 : vector<1x128xf32> to vector<8x128xf32>
    %313 = arith.mulf %311, %312 : vector<8x128xf32>
    %314 = arith.addf %310, %313 : vector<8x128xf32>
    %c8_169 = arith.constant 8 : index
    %c0_170 = arith.constant 0 : index
    %315 = vector.load %arg13[%c8_169, %c0_170] : memref<384x128xf32, #tpu.memory_space<vmem>>, vector<8x128xf32>
    %316 = vector.broadcast %267 : vector<1x128xf32> to vector<8x128xf32>
    %317 = arith.mulf %315, %316 : vector<8x128xf32>
    %318 = arith.addf %314, %317 : vector<8x128xf32>
    %c16 = arith.constant 16 : index
    %c0_171 = arith.constant 0 : index
    %319 = vector.load %arg13[%c16, %c0_171] : memref<384x128xf32, #tpu.memory_space<vmem>>, vector<8x128xf32>
    %320 = vector.broadcast %274 : vector<1x128xf32> to vector<8x128xf32>
    %321 = arith.mulf %319, %320 : vector<8x128xf32>
    %322 = arith.addf %318, %321 : vector<8x128xf32>
    %c24 = arith.constant 24 : index
    %c0_172 = arith.constant 0 : index
    %323 = vector.load %arg13[%c24, %c0_172] : memref<384x128xf32, #tpu.memory_space<vmem>>, vector<8x128xf32>
    %324 = vector.broadcast %281 : vector<1x128xf32> to vector<8x128xf32>
    %325 = arith.mulf %323, %324 : vector<8x128xf32>
    %326 = arith.addf %322, %325 : vector<8x128xf32>
    %c32 = arith.constant 32 : index
    %c0_173 = arith.constant 0 : index
    %327 = vector.load %arg13[%c32, %c0_173] : memref<384x128xf32, #tpu.memory_space<vmem>>, vector<8x128xf32>
    %328 = vector.broadcast %288 : vector<1x128xf32> to vector<8x128xf32>
    %329 = arith.mulf %327, %328 : vector<8x128xf32>
    %330 = arith.addf %326, %329 : vector<8x128xf32>
    %c40 = arith.constant 40 : index
    %c0_174 = arith.constant 0 : index
    %331 = vector.load %arg13[%c40, %c0_174] : memref<384x128xf32, #tpu.memory_space<vmem>>, vector<8x128xf32>
    %332 = vector.broadcast %295 : vector<1x128xf32> to vector<8x128xf32>
    %333 = arith.mulf %331, %332 : vector<8x128xf32>
    %334 = arith.addf %330, %333 : vector<8x128xf32>
    %c64_175 = arith.constant 64 : index
    %c0_176 = arith.constant 0 : index
    %335 = vector.load %arg13[%c64_175, %c0_176] : memref<384x128xf32, #tpu.memory_space<vmem>>, vector<8x128xf32>
    %336 = vector.broadcast %302 : vector<1x128xf32> to vector<8x128xf32>
    %337 = arith.mulf %335, %336 : vector<8x128xf32>
    %338 = arith.addf %334, %337 : vector<8x128xf32>
    %c72_177 = arith.constant 72 : index
    %c0_178 = arith.constant 0 : index
    %339 = vector.load %arg13[%c72_177, %c0_178] : memref<384x128xf32, #tpu.memory_space<vmem>>, vector<8x128xf32>
    %340 = vector.broadcast %309 : vector<1x128xf32> to vector<8x128xf32>
    %341 = arith.mulf %339, %340 : vector<8x128xf32>
    %342 = arith.addf %338, %341 : vector<8x128xf32>
    %c0_179 = arith.constant 0 : index
    %c0_180 = arith.constant 0 : index
    %343 = vector.load %arg14[%c0_179, %c0_180] : memref<8x640xf32, #tpu.memory_space<vmem>>, vector<8x128xf32>
    tpu.vector_store %arg14[%c0_179, %c0_180], %342 {strides = array<i32>} : memref<8x640xf32, #tpu.memory_space<vmem>>, vector<8x128xf32>,
    %cst_181 = arith.constant 0.000000e+00 : f32
    %344 = vector.broadcast %cst_181 : f32 to vector<8x128xf32>
    %c80 = arith.constant 80 : index
    %c0_182 = arith.constant 0 : index
    %345 = vector.load %arg13[%c80, %c0_182] : memref<384x128xf32, #tpu.memory_space<vmem>>, vector<8x128xf32>
    %346 = vector.broadcast %260 : vector<1x128xf32> to vector<8x128xf32>
    %347 = arith.mulf %345, %346 : vector<8x128xf32>
    %348 = arith.addf %344, %347 : vector<8x128xf32>
    %c88 = arith.constant 88 : index
    %c0_183 = arith.constant 0 : index
    %349 = vector.load %arg13[%c88, %c0_183] : memref<384x128xf32, #tpu.memory_space<vmem>>, vector<8x128xf32>
    %350 = vector.broadcast %267 : vector<1x128xf32> to vector<8x128xf32>
    %351 = arith.mulf %349, %350 : vector<8x128xf32>
    %352 = arith.addf %348, %351 : vector<8x128xf32>
    %c96 = arith.constant 96 : index
    %c0_184 = arith.constant 0 : index
    %353 = vector.load %arg13[%c96, %c0_184] : memref<384x128xf32, #tpu.memory_space<vmem>>, vector<8x128xf32>
    %354 = vector.broadcast %274 : vector<1x128xf32> to vector<8x128xf32>
    %355 = arith.mulf %353, %354 : vector<8x128xf32>
    %356 = arith.addf %352, %355 : vector<8x128xf32>
    %c104 = arith.constant 104 : index
    %c0_185 = arith.constant 0 : index
    %357 = vector.load %arg13[%c104, %c0_185] : memref<384x128xf32, #tpu.memory_space<vmem>>, vector<8x128xf32>
    %358 = vector.broadcast %281 : vector<1x128xf32> to vector<8x128xf32>
    %359 = arith.mulf %357, %358 : vector<8x128xf32>
    %360 = arith.addf %356, %359 : vector<8x128xf32>
    %c128_186 = arith.constant 128 : index
    %c0_187 = arith.constant 0 : index
    %361 = vector.load %arg13[%c128_186, %c0_187] : memref<384x128xf32, #tpu.memory_space<vmem>>, vector<8x128xf32>
    %362 = vector.broadcast %288 : vector<1x128xf32> to vector<8x128xf32>
    %363 = arith.mulf %361, %362 : vector<8x128xf32>
    %364 = arith.addf %360, %363 : vector<8x128xf32>
    %c136_188 = arith.constant 136 : index
    %c0_189 = arith.constant 0 : index
    %365 = vector.load %arg13[%c136_188, %c0_189] : memref<384x128xf32, #tpu.memory_space<vmem>>, vector<8x128xf32>
    %366 = vector.broadcast %295 : vector<1x128xf32> to vector<8x128xf32>
    %367 = arith.mulf %365, %366 : vector<8x128xf32>
    %368 = arith.addf %364, %367 : vector<8x128xf32>
    %c144 = arith.constant 144 : index
    %c0_190 = arith.constant 0 : index
    %369 = vector.load %arg13[%c144, %c0_190] : memref<384x128xf32, #tpu.memory_space<vmem>>, vector<8x128xf32>
    %370 = vector.broadcast %302 : vector<1x128xf32> to vector<8x128xf32>
    %371 = arith.mulf %369, %370 : vector<8x128xf32>
    %372 = arith.addf %368, %371 : vector<8x128xf32>
    %c152 = arith.constant 152 : index
    %c0_191 = arith.constant 0 : index
    %373 = vector.load %arg13[%c152, %c0_191] : memref<384x128xf32, #tpu.memory_space<vmem>>, vector<8x128xf32>
    %374 = vector.broadcast %309 : vector<1x128xf32> to vector<8x128xf32>
    %375 = arith.mulf %373, %374 : vector<8x128xf32>
    %376 = arith.addf %372, %375 : vector<8x128xf32>
    %c0_192 = arith.constant 0 : index
    %c128_193 = arith.constant 128 : index
    %377 = vector.load %arg14[%c0_192, %c128_193] : memref<8x640xf32, #tpu.memory_space<vmem>>, vector<8x128xf32>
    tpu.vector_store %arg14[%c0_192, %c128_193], %376 {strides = array<i32>} : memref<8x640xf32, #tpu.memory_space<vmem>>, vector<8x128xf32>,
    %cst_194 = arith.constant 0.000000e+00 : f32
    %378 = vector.broadcast %cst_194 : f32 to vector<8x128xf32>
    %c160 = arith.constant 160 : index
    %c0_195 = arith.constant 0 : index
    %379 = vector.load %arg13[%c160, %c0_195] : memref<384x128xf32, #tpu.memory_space<vmem>>, vector<8x128xf32>
    %380 = vector.broadcast %260 : vector<1x128xf32> to vector<8x128xf32>
    %381 = arith.mulf %379, %380 : vector<8x128xf32>
    %382 = arith.addf %378, %381 : vector<8x128xf32>
    %c168 = arith.constant 168 : index
    %c0_196 = arith.constant 0 : index
    %383 = vector.load %arg13[%c168, %c0_196] : memref<384x128xf32, #tpu.memory_space<vmem>>, vector<8x128xf32>
    %384 = vector.broadcast %267 : vector<1x128xf32> to vector<8x128xf32>
    %385 = arith.mulf %383, %384 : vector<8x128xf32>
    %386 = arith.addf %382, %385 : vector<8x128xf32>
    %c192_197 = arith.constant 192 : index
    %c0_198 = arith.constant 0 : index
    %387 = vector.load %arg13[%c192_197, %c0_198] : memref<384x128xf32, #tpu.memory_space<vmem>>, vector<8x128xf32>
    %388 = vector.broadcast %274 : vector<1x128xf32> to vector<8x128xf32>
    %389 = arith.mulf %387, %388 : vector<8x128xf32>
    %390 = arith.addf %386, %389 : vector<8x128xf32>
    %c200_199 = arith.constant 200 : index
    %c0_200 = arith.constant 0 : index
    %391 = vector.load %arg13[%c200_199, %c0_200] : memref<384x128xf32, #tpu.memory_space<vmem>>, vector<8x128xf32>
    %392 = vector.broadcast %281 : vector<1x128xf32> to vector<8x128xf32>
    %393 = arith.mulf %391, %392 : vector<8x128xf32>
    %394 = arith.addf %390, %393 : vector<8x128xf32>
    %c208 = arith.constant 208 : index
    %c0_201 = arith.constant 0 : index
    %395 = vector.load %arg13[%c208, %c0_201] : memref<384x128xf32, #tpu.memory_space<vmem>>, vector<8x128xf32>
    %396 = vector.broadcast %288 : vector<1x128xf32> to vector<8x128xf32>
    %397 = arith.mulf %395, %396 : vector<8x128xf32>
    %398 = arith.addf %394, %397 : vector<8x128xf32>
    %c216 = arith.constant 216 : index
    %c0_202 = arith.constant 0 : index
    %399 = vector.load %arg13[%c216, %c0_202] : memref<384x128xf32, #tpu.memory_space<vmem>>, vector<8x128xf32>
    %400 = vector.broadcast %295 : vector<1x128xf32> to vector<8x128xf32>
    %401 = arith.mulf %399, %400 : vector<8x128xf32>
    %402 = arith.addf %398, %401 : vector<8x128xf32>
    %c224 = arith.constant 224 : index
    %c0_203 = arith.constant 0 : index
    %403 = vector.load %arg13[%c224, %c0_203] : memref<384x128xf32, #tpu.memory_space<vmem>>, vector<8x128xf32>
    %404 = vector.broadcast %302 : vector<1x128xf32> to vector<8x128xf32>
    %405 = arith.mulf %403, %404 : vector<8x128xf32>
    %406 = arith.addf %402, %405 : vector<8x128xf32>
    %c232 = arith.constant 232 : index
    %c0_204 = arith.constant 0 : index
    %407 = vector.load %arg13[%c232, %c0_204] : memref<384x128xf32, #tpu.memory_space<vmem>>, vector<8x128xf32>
    %408 = vector.broadcast %309 : vector<1x128xf32> to vector<8x128xf32>
    %409 = arith.mulf %407, %408 : vector<8x128xf32>
    %410 = arith.addf %406, %409 : vector<8x128xf32>
    %c0_205 = arith.constant 0 : index
    %c256_206 = arith.constant 256 : index
    %411 = vector.load %arg14[%c0_205, %c256_206] : memref<8x640xf32, #tpu.memory_space<vmem>>, vector<8x128xf32>
    tpu.vector_store %arg14[%c0_205, %c256_206], %410 {strides = array<i32>} : memref<8x640xf32, #tpu.memory_space<vmem>>, vector<8x128xf32>,
    %cst_207 = arith.constant 0.000000e+00 : f32
    %412 = vector.broadcast %cst_207 : f32 to vector<8x128xf32>
    %c256_208 = arith.constant 256 : index
    %c0_209 = arith.constant 0 : index
    %413 = vector.load %arg13[%c256_208, %c0_209] : memref<384x128xf32, #tpu.memory_space<vmem>>, vector<8x128xf32>
    %414 = vector.broadcast %260 : vector<1x128xf32> to vector<8x128xf32>
    %415 = arith.mulf %413, %414 : vector<8x128xf32>
    %416 = arith.addf %412, %415 : vector<8x128xf32>
    %c264_210 = arith.constant 264 : index
    %c0_211 = arith.constant 0 : index
    %417 = vector.load %arg13[%c264_210, %c0_211] : memref<384x128xf32, #tpu.memory_space<vmem>>, vector<8x128xf32>
    %418 = vector.broadcast %267 : vector<1x128xf32> to vector<8x128xf32>
    %419 = arith.mulf %417, %418 : vector<8x128xf32>
    %420 = arith.addf %416, %419 : vector<8x128xf32>
    %c272 = arith.constant 272 : index
    %c0_212 = arith.constant 0 : index
    %421 = vector.load %arg13[%c272, %c0_212] : memref<384x128xf32, #tpu.memory_space<vmem>>, vector<8x128xf32>
    %422 = vector.broadcast %274 : vector<1x128xf32> to vector<8x128xf32>
    %423 = arith.mulf %421, %422 : vector<8x128xf32>
    %424 = arith.addf %420, %423 : vector<8x128xf32>
    %c280 = arith.constant 280 : index
    %c0_213 = arith.constant 0 : index
    %425 = vector.load %arg13[%c280, %c0_213] : memref<384x128xf32, #tpu.memory_space<vmem>>, vector<8x128xf32>
    %426 = vector.broadcast %281 : vector<1x128xf32> to vector<8x128xf32>
    %427 = arith.mulf %425, %426 : vector<8x128xf32>
    %428 = arith.addf %424, %427 : vector<8x128xf32>
    %c288 = arith.constant 288 : index
    %c0_214 = arith.constant 0 : index
    %429 = vector.load %arg13[%c288, %c0_214] : memref<384x128xf32, #tpu.memory_space<vmem>>, vector<8x128xf32>
    %430 = vector.broadcast %288 : vector<1x128xf32> to vector<8x128xf32>
    %431 = arith.mulf %429, %430 : vector<8x128xf32>
    %432 = arith.addf %428, %431 : vector<8x128xf32>
    %c296 = arith.constant 296 : index
    %c0_215 = arith.constant 0 : index
    %433 = vector.load %arg13[%c296, %c0_215] : memref<384x128xf32, #tpu.memory_space<vmem>>, vector<8x128xf32>
    %434 = vector.broadcast %295 : vector<1x128xf32> to vector<8x128xf32>
    %435 = arith.mulf %433, %434 : vector<8x128xf32>
    %436 = arith.addf %432, %435 : vector<8x128xf32>
    %c320_216 = arith.constant 320 : index
    %c0_217 = arith.constant 0 : index
    %437 = vector.load %arg13[%c320_216, %c0_217] : memref<384x128xf32, #tpu.memory_space<vmem>>, vector<8x128xf32>
    %438 = vector.broadcast %302 : vector<1x128xf32> to vector<8x128xf32>
    %439 = arith.mulf %437, %438 : vector<8x128xf32>
    %440 = arith.addf %436, %439 : vector<8x128xf32>
    %c328_218 = arith.constant 328 : index
    %c0_219 = arith.constant 0 : index
    %441 = vector.load %arg13[%c328_218, %c0_219] : memref<384x128xf32, #tpu.memory_space<vmem>>, vector<8x128xf32>
    %442 = vector.broadcast %309 : vector<1x128xf32> to vector<8x128xf32>
    %443 = arith.mulf %441, %442 : vector<8x128xf32>
    %444 = arith.addf %440, %443 : vector<8x128xf32>
    %c0_220 = arith.constant 0 : index
    %c384_221 = arith.constant 384 : index
    %445 = vector.load %arg14[%c0_220, %c384_221] : memref<8x640xf32, #tpu.memory_space<vmem>>, vector<8x128xf32>
    tpu.vector_store %arg14[%c0_220, %c384_221], %444 {strides = array<i32>} : memref<8x640xf32, #tpu.memory_space<vmem>>, vector<8x128xf32>,
    %cst_222 = arith.constant 0.000000e+00 : f32
    %446 = vector.broadcast %cst_222 : f32 to vector<8x128xf32>
    %c336 = arith.constant 336 : index
    %c0_223 = arith.constant 0 : index
    %447 = vector.load %arg13[%c336, %c0_223] : memref<384x128xf32, #tpu.memory_space<vmem>>, vector<8x128xf32>
    %448 = vector.broadcast %260 : vector<1x128xf32> to vector<8x128xf32>
    %449 = arith.mulf %447, %448 : vector<8x128xf32>
    %450 = arith.addf %446, %449 : vector<8x128xf32>
    %c344 = arith.constant 344 : index
    %c0_224 = arith.constant 0 : index
    %451 = vector.load %arg13[%c344, %c0_224] : memref<384x128xf32, #tpu.memory_space<vmem>>, vector<8x128xf32>
    %452 = vector.broadcast %267 : vector<1x128xf32> to vector<8x128xf32>
    %453 = arith.mulf %451, %452 : vector<8x128xf32>
    %454 = arith.addf %450, %453 : vector<8x128xf32>
    %c352 = arith.constant 352 : index
    %c0_225 = arith.constant 0 : index
    %455 = vector.load %arg13[%c352, %c0_225] : memref<384x128xf32, #tpu.memory_space<vmem>>, vector<8x128xf32>
    %456 = vector.broadcast %274 : vector<1x128xf32> to vector<8x128xf32>
    %457 = arith.mulf %455, %456 : vector<8x128xf32>
    %458 = arith.addf %454, %457 : vector<8x128xf32>
    %c360 = arith.constant 360 : index
    %c0_226 = arith.constant 0 : index
    %459 = vector.load %arg13[%c360, %c0_226] : memref<384x128xf32, #tpu.memory_space<vmem>>, vector<8x128xf32>
    %460 = vector.broadcast %281 : vector<1x128xf32> to vector<8x128xf32>
    %461 = arith.mulf %459, %460 : vector<8x128xf32>
    %462 = arith.addf %458, %461 : vector<8x128xf32>
    %c0_227 = arith.constant 0 : index
    %c512_228 = arith.constant 512 : index
    %463 = vector.load %arg14[%c0_227, %c512_228] : memref<8x640xf32, #tpu.memory_space<vmem>>, vector<8x128xf32>
    tpu.vector_store %arg14[%c0_227, %c512_228], %462 {strides = array<i32>} : memref<8x640xf32, #tpu.memory_space<vmem>>, vector<8x128xf32>,
    %c0_i32_229 = arith.constant 0 : i32
    %464 = tpu.memref_slice %arg18[%c0_i32_229] : memref<3x!tpu.dma_semaphore, #tpu.memory_space<semaphore_mem>> -> memref<1x!tpu.dma_semaphore, #tpu.memory_space<semaphore_mem>>
    %465 = tpu.memref_squeeze %464 : memref<1x!tpu.dma_semaphore, #tpu.memory_space<semaphore_mem>> -> memref<!tpu.dma_semaphore, #tpu.memory_space<semaphore_mem>>
    tpu.wait_dma2 semaphore(%465 : memref<!tpu.dma_semaphore, #tpu.memory_space<semaphore_mem>>) src(%arg5 : memref<640x128xbf16, #tpu.memory_space<any>>) dst(%arg15 : memref<640x128xbf16, #tpu.memory_space<vmem>>)
    %c0_230 = arith.constant 0 : index
    %c0_231 = arith.constant 0 : index
    %466 = vector.load %arg14[%c0_230, %c0_231] : memref<8x640xf32, #tpu.memory_space<vmem>>, vector<8x640xf32>
    %467 = arith.truncf %466 : vector<8x640xf32> to vector<8x640xbf16>
    %c0_232 = arith.constant 0 : index
    %c0_233 = arith.constant 0 : index
    %468 = vector.load %arg15[%c0_232, %c0_233] : memref<640x128xbf16, #tpu.memory_space<vmem>>, vector<640x128xbf16>
    %cst_234 = arith.constant dense<0.000000e+00> : vector<8x128xf32>
    %469 = tpu.matmul %467, %468, %cst_234 {dimension_numbers = #tpu.dot_dimension_numbers<[1], [0], [0], [1], [0, 0, 1, 1], [], []>} : vector<8x640xbf16>, vector<640x128xbf16>, vector<8x128xf32> -> vector<8x128xf32>
    %c0_235 = arith.constant 0 : index
    %c0_236 = arith.constant 0 : index
    %470 = vector.load %arg6[%c0_235, %c0_236] : memref<1x128xf32, #tpu.memory_space<vmem>>, vector<1x128xf32>
    %471 = vector.broadcast %470 : vector<1x128xf32> to vector<8x128xf32>
    %472 = arith.addf %469, %471 : vector<8x128xf32>
    %cst_237 = arith.constant 0.000000e+00 : f32
    %473 = vector.broadcast %cst_237 : f32 to vector<8x128xf32>
    %474 = arith.cmpf ogt, %472, %473 : vector<8x128xf32>
    %cst_238 = arith.constant 0.000000e+00 : f32
    %475 = vector.broadcast %cst_238 : f32 to vector<8x128xf32>
    %476 = arith.minimumf %472, %475 : vector<8x128xf32>
    %477 = math.exp %476 : vector<8x128xf32>
    %cst_239 = arith.constant 1.000000e+00 : f32
    %478 = vector.broadcast %cst_239 : f32 to vector<8x128xf32>
    %479 = arith.subf %477, %478 : vector<8x128xf32>
    %480 = arith.select %474, %472, %479 : vector<8x128xi1>, vector<8x128xf32>
    %c1_i32_240 = arith.constant 1 : i32
    %481 = tpu.memref_slice %arg18[%c1_i32_240] : memref<3x!tpu.dma_semaphore, #tpu.memory_space<semaphore_mem>> -> memref<1x!tpu.dma_semaphore, #tpu.memory_space<semaphore_mem>>
    %482 = tpu.memref_squeeze %481 : memref<1x!tpu.dma_semaphore, #tpu.memory_space<semaphore_mem>> -> memref<!tpu.dma_semaphore, #tpu.memory_space<semaphore_mem>>
    tpu.wait_dma2 semaphore(%482 : memref<!tpu.dma_semaphore, #tpu.memory_space<semaphore_mem>>) src(%arg7 : memref<128x128xbf16, #tpu.memory_space<any>>) dst(%arg16 : memref<128x128xbf16, #tpu.memory_space<vmem>>)
    %483 = arith.truncf %480 : vector<8x128xf32> to vector<8x128xbf16>
    %c0_241 = arith.constant 0 : index
    %c0_242 = arith.constant 0 : index
    %484 = vector.load %arg16[%c0_241, %c0_242] : memref<128x128xbf16, #tpu.memory_space<vmem>>, vector<128x128xbf16>
    %cst_243 = arith.constant dense<0.000000e+00> : vector<8x128xf32>
    %485 = tpu.matmul %483, %484, %cst_243 {dimension_numbers = #tpu.dot_dimension_numbers<[1], [0], [0], [1], [0, 0, 1, 1], [], []>} : vector<8x128xbf16>, vector<128x128xbf16>, vector<8x128xf32> -> vector<8x128xf32>
    %c0_244 = arith.constant 0 : index
    %c0_245 = arith.constant 0 : index
    %486 = vector.load %arg8[%c0_244, %c0_245] : memref<1x128xf32, #tpu.memory_space<vmem>>, vector<1x128xf32>
    %487 = vector.broadcast %486 : vector<1x128xf32> to vector<8x128xf32>
    %488 = arith.addf %485, %487 : vector<8x128xf32>
    %cst_246 = arith.constant 0.000000e+00 : f32
    %489 = vector.broadcast %cst_246 : f32 to vector<8x128xf32>
    %490 = arith.cmpf ogt, %488, %489 : vector<8x128xf32>
    %cst_247 = arith.constant 0.000000e+00 : f32
    %491 = vector.broadcast %cst_247 : f32 to vector<8x128xf32>
    %492 = arith.minimumf %488, %491 : vector<8x128xf32>
    %493 = math.exp %492 : vector<8x128xf32>
    %cst_248 = arith.constant 1.000000e+00 : f32
    %494 = vector.broadcast %cst_248 : f32 to vector<8x128xf32>
    %495 = arith.subf %493, %494 : vector<8x128xf32>
    %496 = arith.select %490, %488, %495 : vector<8x128xi1>, vector<8x128xf32>
    %c2_i32_249 = arith.constant 2 : i32
    %497 = tpu.memref_slice %arg18[%c2_i32_249] : memref<3x!tpu.dma_semaphore, #tpu.memory_space<semaphore_mem>> -> memref<1x!tpu.dma_semaphore, #tpu.memory_space<semaphore_mem>>
    %498 = tpu.memref_squeeze %497 : memref<1x!tpu.dma_semaphore, #tpu.memory_space<semaphore_mem>> -> memref<!tpu.dma_semaphore, #tpu.memory_space<semaphore_mem>>
    tpu.wait_dma2 semaphore(%498 : memref<!tpu.dma_semaphore, #tpu.memory_space<semaphore_mem>>) src(%arg9 : memref<128x128xbf16, #tpu.memory_space<any>>) dst(%arg17 : memref<128x128xbf16, #tpu.memory_space<vmem>>)
    %499 = arith.truncf %496 : vector<8x128xf32> to vector<8x128xbf16>
    %c0_250 = arith.constant 0 : index
    %c0_251 = arith.constant 0 : index
    %500 = vector.load %arg17[%c0_250, %c0_251] : memref<128x128xbf16, #tpu.memory_space<vmem>>, vector<128x128xbf16>
    %cst_252 = arith.constant dense<0.000000e+00> : vector<8x128xf32>
    %501 = tpu.matmul %499, %500, %cst_252 {dimension_numbers = #tpu.dot_dimension_numbers<[1], [0], [0], [1], [0, 0, 1, 1], [], []>} : vector<8x128xbf16>, vector<128x128xbf16>, vector<8x128xf32> -> vector<8x128xf32>
    %c0_253 = arith.constant 0 : index
    %c0_254 = arith.constant 0 : index
    %502 = vector.load %arg10[%c0_253, %c0_254] : memref<1x128xf32, #tpu.memory_space<vmem>>, vector<1x128xf32>
    %503 = vector.broadcast %502 : vector<1x128xf32> to vector<8x128xf32>
    %504 = arith.addf %501, %503 : vector<8x128xf32>
    %505 = vector.extract_strided_slice %504 {offsets = [0, 0], sizes = [2, 3], strides = [1, 1]} : vector<8x128xf32> to vector<2x3xf32>
    %c0_255 = arith.constant 0 : index
    %c0_256 = arith.constant 0 : index
    %506 = vector.load %arg11[%c0_255, %c0_256] : memref<2x3xf32, #tpu.memory_space<vmem>>, vector<2x3xf32>
    tpu.vector_store %arg11[%c0_255, %c0_256], %505 {strides = array<i32>} : memref<2x3xf32, #tpu.memory_space<vmem>>, vector<2x3xf32>,
    return
  }
}

</mosaic_0001>

<llo_original>
// kernel: conv2d_net_forward.1
$region0: #{conv2d_net_forward.1}
  #allocation0 [shape = 'u32[]', space=smem, size = 0x4, offset = 0x4, fixed_abs, tag = 'smem constant byte address 0x4 - core index']
  #allocation1 [shape = 'u32[144,128]{1,0:T(1,128)}', space=vmem, size = 0x12000, scoped, tag = 'internal scratch']
  #allocation2 [shape = 'f32[512,128]{1,0:T(8,128)}', space=vmem, size = 0x40000, scoped, tag = 'scratch operand']
  #allocation3 [shape = 'f32[384,128]{1,0:T(8,128)}', space=vmem, size = 0x30000, scoped, tag = 'scratch operand']
  #allocation4 [shape = 'f32[8,640]{1,0:T(8,128)}', space=vmem, size = 0x5000, scoped, tag = 'scratch operand']
  #allocation5 [shape = 'bf16[640,128]{1,0:T(16,128)(2,1)}', space=vmem, size = 0x28000, scoped, tag = 'scratch operand']
  #allocation6 [shape = 'bf16[128,128]{1,0:T(16,128)(2,1)}', space=vmem, size = 0x8000, scoped, tag = 'scratch operand']
  #allocation7 [shape = 'bf16[128,128]{1,0:T(16,128)(2,1)}', space=vmem, size = 0x8000, scoped, tag = 'scratch operand']
  #allocation8 [shape = 's32[3]{0}', space=sflag, size = 0xc, scoped, tag = 'scratch operand']
  #allocation11 [shape = 's32[]', space=sflag, size = 0x4, offset = 0, fixed_abs, tag = 'sflag constant byte address 0x0 - dummy sync flag']
  #allocation12 [shape = 's32[]', space=sflag, size = 0x4, offset = 0, fixed_abs, tag = 'sflag constant byte address 0x0 - dummy sync flag']
  #allocation13 [shape = 's32[]', space=sflag, size = 0x4, offset = 0, fixed_abs, tag = 'sflag constant byte address 0x0 - dummy sync flag']
  %s0 = inlined_call_operand.vmem [shape: bf16[2048,32], index: 0, kind: input, shape index: {}]
  %s1 = inlined_call_operand.vmem [shape: bf16[32,128], index: 1, kind: input, shape index: {}]
  %s2 = inlined_call_operand.vmem [shape: f32[1,128], index: 2, kind: input, shape index: {}]
  %s3 = inlined_call_operand.vmem [shape: bf16[128,128], index: 3, kind: input, shape index: {}]
  %s4 = inlined_call_operand.vmem [shape: f32[1,128], index: 4, kind: input, shape index: {}]
  %s5 = inlined_call_operand.vmem [shape: bf16[640,128], index: 5, kind: input, shape index: {}]
  %s6 = inlined_call_operand.vmem [shape: f32[1,128], index: 6, kind: input, shape index: {}]
  %s7 = inlined_call_operand.vmem [shape: bf16[128,128], index: 7, kind: input, shape index: {}]
  %s8 = inlined_call_operand.vmem [shape: f32[1,128], index: 8, kind: input, shape index: {}]
  %s9 = inlined_call_operand.vmem [shape: bf16[128,128], index: 9, kind: input, shape index: {}]
  %s10 = inlined_call_operand.vmem [shape: f32[1,128], index: 10, kind: input, shape index: {}]
  %s11 = inlined_call_operand.hbm [shape: f32[2,3], index: 11, kind: output, shape index: {}]
  %s12 = sld [smem:[#allocation0]]
  $region144: #{conv2d_net_forward.1} parent=0
    _
  %s14 = ssub.s32 1, %s12
  %s15 = scalar_select 0, %s14, %s12
  $region1: #{conv2d_net_forward.1} parent=0
    #allocation9 [shape = 'u8[1024]{0}', space=vmem, size = 0x400, scoped, tag = 'output window, operand 0, single buffered']
    #allocation10 [shape = 's32[1]{0}', space=sflag, size = 0x4, scoped, tag = 'scoped memory for conv2d_net_forward.1']
    %16 = vsyncpa [#allocation10], 0
    // Predicated region
    $region2: #{conv2d_net_forward.1} parent=1 // pred_check
      _
    $region3: #{conv2d_net_forward.1} parent=1 // pred_check_branch
      %18 = sbr.rel (0) target = $region5
    $region4: #{conv2d_net_forward.1} parent=1 // pred_region
      _
    $region5: #{conv2d_net_forward.1} parent=1 // pred_fallthru
      _
    // Predicated region
    $region6: #{conv2d_net_forward.1} parent=1 // pred_check
      _
    $region7: #{conv2d_net_forward.1} parent=1 // pred_check_branch
      %20 = sbr.rel (0) target = $region9
    $region8: #{conv2d_net_forward.1} parent=1 // pred_region
      _
    $region9: #{conv2d_net_forward.1} parent=1 // pred_fallthru
      _
    // Predicated region
    $region10: #{conv2d_net_forward.1} parent=1 // pred_check
      _
    $region11: #{conv2d_net_forward.1} parent=1 // pred_check_branch
      %22 = sbr.rel (0) target = $region13
    $region12: #{conv2d_net_forward.1} parent=1 // pred_region
      _
    $region13: #{conv2d_net_forward.1} parent=1 // pred_fallthru
      _
    // Predicated region
    $region14: #{conv2d_net_forward.1} parent=1 // pred_check
      _
    $region15: #{conv2d_net_forward.1} parent=1 // pred_check_branch
      %24 = sbr.rel (0) target = $region17
    $region16: #{conv2d_net_forward.1} parent=1 // pred_region
      _
    $region17: #{conv2d_net_forward.1} parent=1 // pred_fallthru
      _
    // Predicated region
    $region18: #{conv2d_net_forward.1} parent=1 // pred_check
      _
    $region19: #{conv2d_net_forward.1} parent=1 // pred_check_branch
      %26 = sbr.rel (0) target = $region21
    $region20: #{conv2d_net_forward.1} parent=1 // pred_region
      _
    $region21: #{conv2d_net_forward.1} parent=1 // pred_fallthru
      _
    // Predicated region
    $region22: #{conv2d_net_forward.1} parent=1 // pred_check
      _
    $region23: #{conv2d_net_forward.1} parent=1 // pred_check_branch
      %28 = sbr.rel (0) target = $region25
    $region24: #{conv2d_net_forward.1} parent=1 // pred_region
      _
    $region25: #{conv2d_net_forward.1} parent=1 // pred_fallthru
      _
    // Predicated region
    $region26: #{conv2d_net_forward.1} parent=1 // pred_check
      _
    $region27: #{conv2d_net_forward.1} parent=1 // pred_check_branch
      %30 = sbr.rel (0) target = $region29
    $region28: #{conv2d_net_forward.1} parent=1 // pred_region
      _
    $region29: #{conv2d_net_forward.1} parent=1 // pred_fallthru
      _
    // Predicated region
    $region30: #{conv2d_net_forward.1} parent=1 // pred_check
      _
    $region31: #{conv2d_net_forward.1} parent=1 // pred_check_branch
      %32 = sbr.rel (0) target = $region33
    $region32: #{conv2d_net_forward.1} parent=1 // pred_region
      _
    $region33: #{conv2d_net_forward.1} parent=1 // pred_fallthru
      _
    %p35 = scmp.lt.u32.totalorder 320, 8
    %p36 = pneg %p35
    // Predicated region
    $region34: #{conv2d_net_forward.1} parent=1 // pred_check
      _
    $region35: #{conv2d_net_forward.1} parent=1 // pred_check_branch
      %38 = sbr.rel (%p35) target = $region37
    $region36: #{conv2d_net_forward.1} parent=1 // pred_region
      %s53 = sand.u32 320, 7
      %p54 = scmp.eq.s32.totalorder %s53, 0
      // Predicated region
      $region49: #{conv2d_net_forward.1} parent=36 // pred_check
        %p55 = pneg %p54
      $region50: #{conv2d_net_forward.1} parent=36 // pred_check_branch
        %57 = sbr.rel (%p55) target = $region52
      $region51: #{conv2d_net_forward.1} parent=36 // pred_region
        loop: start=0, step=1, limit=1
        $region53: #{conv2d_net_forward.1} parent=51 // loop_pre_header
          _
        $region54: #{conv2d_net_forward.1} parent=51 // loop_header
          %s59 = sphi 0, %s63
          %p60 = scmp.ge.s32.totalorder %s59, 1
          %s64 = sphi %s5, %s5
          %s65 = sphi [#allocation5], [#allocation5]
        $region55: #{conv2d_net_forward.1} parent=51 // loop_header_branch
          %62 = sbr.rel (%p60) target = $region59
        $region56: #{conv2d_net_forward.1} parent=51 // loop_body
          %v66 = vld [vmem:[%s64] sm:$0xff]
          %67 = vst [vmem:[%s65] sm:$0xff] %v66
          %v68 = vld [vmem:[%s64 + $0x8] sm:$0xff]
          %69 = vst [vmem:[%s65 + $0x8] sm:$0xff] %v68
          %v70 = vld [vmem:[%s64 + $0x10] sm:$0xff]
          %71 = vst [vmem:[%s65 + $0x10] sm:$0xff] %v70
          %v72 = vld [vmem:[%s64 + $0x18] sm:$0xff]
          %73 = vst [vmem:[%s65 + $0x18] sm:$0xff] %v72
          %v74 = vld [vmem:[%s64 + $0x20] sm:$0xff]
          %75 = vst [vmem:[%s65 + $0x20] sm:$0xff] %v74
          %v76 = vld [vmem:[%s64 + $0x28] sm:$0xff]
          %77 = vst [vmem:[%s65 + $0x28] sm:$0xff] %v76
          %v78 = vld [vmem:[%s64 + $0x30] sm:$0xff]
          %79 = vst [vmem:[%s65 + $0x30] sm:$0xff] %v78
          %v80 = vld [vmem:[%s64 + $0x38] sm:$0xff]
          %81 = vst [vmem:[%s65 + $0x38] sm:$0xff] %v80
          %v82 = vld [vmem:[%s64 + $0x40] sm:$0xff]
          %83 = vst [vmem:[%s65 + $0x40] sm:$0xff] %v82
          %v84 = vld [vmem:[%s64 + $0x48] sm:$0xff]
          %85 = vst [vmem:[%s65 + $0x48] sm:$0xff] %v84
          %v86 = vld [vmem:[%s64 + $0x50] sm:$0xff]
          %87 = vst [vmem:[%s65 + $0x50] sm:$0xff] %v86
          %v88 = vld [vmem:[%s64 + $0x58] sm:$0xff]
          %89 = vst [vmem:[%s65 + $0x58] sm:$0xff] %v88
          %v90 = vld [vmem:[%s64 + $0x60] sm:$0xff]
          %91 = vst [vmem:[%s65 + $0x60] sm:$0xff] %v90
          %v92 = vld [vmem:[%s64 + $0x68] sm:$0xff]
          %93 = vst [vmem:[%s65 + $0x68] sm:$0xff] %v92
          %v94 = vld [vmem:[%s64 + $0x70] sm:$0xff]
          %95 = vst [vmem:[%s65 + $0x70] sm:$0xff] %v94
          %v96 = vld [vmem:[%s64 + $0x78] sm:$0xff]
          %97 = vst [vmem:[%s65 + $0x78] sm:$0xff] %v96
          %v98 = vld [vmem:[%s64 + $0x80] sm:$0xff]
          %99 = vst [vmem:[%s65 + $0x80] sm:$0xff] %v98
          %v100 = vld [vmem:[%s64 + $0x88] sm:$0xff]
          %101 = vst [vmem:[%s65 + $0x88] sm:$0xff] %v100
          %v102 = vld [vmem:[%s64 + $0x90] sm:$0xff]
          %103 = vst [vmem:[%s65 + $0x90] sm:$0xff] %v102
          %v104 = vld [vmem:[%s64 + $0x98] sm:$0xff]
          %105 = vst [vmem:[%s65 + $0x98] sm:$0xff] %v104
          %v106 = vld [vmem:[%s64 + $0xa0] sm:$0xff]
          %107 = vst [vmem:[%s65 + $0xa0] sm:$0xff] %v106
          %v108 = vld [vmem:[%s64 + $0xa8] sm:$0xff]
          %109 = vst [vmem:[%s65 + $0xa8] sm:$0xff] %v108
          %v110 = vld [vmem:[%s64 + $0xb0] sm:$0xff]
          %111 = vst [vmem:[%s65 + $0xb0] sm:$0xff] %v110
          %v112 = vld [vmem:[%s64 + $0xb8] sm:$0xff]
          %113 = vst [vmem:[%s65 + $0xb8] sm:$0xff] %v112
          %v114 = vld [vmem:[%s64 + $0xc0] sm:$0xff]
          %115 = vst [vmem:[%s65 + $0xc0] sm:$0xff] %v114
          %v116 = vld [vmem:[%s64 + $0xc8] sm:$0xff]
          %117 = vst [vmem:[%s65 + $0xc8] sm:$0xff] %v116
          %v118 = vld [vmem:[%s64 + $0xd0] sm:$0xff]
          %119 = vst [vmem:[%s65 + $0xd0] sm:$0xff] %v118
          %v120 = vld [vmem:[%s64 + $0xd8] sm:$0xff]
          %121 = vst [vmem:[%s65 + $0xd8] sm:$0xff] %v120
          %v122 = vld [vmem:[%s64 + $0xe0] sm:$0xff]
          %123 = vst [vmem:[%s65 + $0xe0] sm:$0xff] %v122
          %v124 = vld [vmem:[%s64 + $0xe8] sm:$0xff]
          %125 = vst [vmem:[%s65 + $0xe8] sm:$0xff] %v124
          %v126 = vld [vmem:[%s64 + $0xf0] sm:$0xff]
          %127 = vst [vmem:[%s65 + $0xf0] sm:$0xff] %v126
          %v128 = vld [vmem:[%s64 + $0xf8] sm:$0xff]
          %129 = vst [vmem:[%s65 + $0xf8] sm:$0xff] %v128
          %v130 = vld [vmem:[%s64 + $0x100] sm:$0xff]
          %131 = vst [vmem:[%s65 + $0x100] sm:$0xff] %v130
          %v132 = vld [vmem:[%s64 + $0x108] sm:$0xff]
          %133 = vst [vmem:[%s65 + $0x108] sm:$0xff] %v132
          %v134 = vld [vmem:[%s64 + $0x110] sm:$0xff]
          %135 = vst [vmem:[%s65 + $0x110] sm:$0xff] %v134
          %v136 = vld [vmem:[%s64 + $0x118] sm:$0xff]
          %137 = vst [vmem:[%s65 + $0x118] sm:$0xff] %v136
          %v138 = vld [vmem:[%s64 + $0x120] sm:$0xff]
          %139 = vst [vmem:[%s65 + $0x120] sm:$0xff] %v138
          %v140 = vld [vmem:[%s64 + $0x128] sm:$0xff]
          %141 = vst [vmem:[%s65 + $0x128] sm:$0xff] %v140
          %v142 = vld [vmem:[%s64 + $0x130] sm:$0xff]
          %143 = vst [vmem:[%s65 + $0x130] sm:$0xff] %v142
          %v144 = vld [vmem:[%s64 + $0x138] sm:$0xff]
          %145 = vst [vmem:[%s65 + $0x138] sm:$0xff] %v144
        $region57: #{conv2d_net_forward.1} parent=51 // loop_footer
          %s63 = sadd.s32 1, %s59
        $region58: #{conv2d_net_forward.1} parent=51 // loop_footer_branch
          %58 = sbr.rel target = $region54
        $region59: #{conv2d_net_forward.1} parent=51 // loop_exit
          _
      $region52: #{conv2d_net_forward.1} parent=36 // pred_fallthru
        _
      %p146 = pneg %p54
      // Predicated region
      $region60: #{conv2d_net_forward.1} parent=36 // pred_check
        _
      $region61: #{conv2d_net_forward.1} parent=36 // pred_check_branch
        %148 = sbr.rel (%p54) target = $region63
      $region62: #{conv2d_net_forward.1} parent=36 // pred_region
        %s149 = sand.u32 320, 7
      $region63: #{conv2d_net_forward.1} parent=36 // pred_fallthru
        _
    $region37: #{conv2d_net_forward.1} parent=1 // pred_fallthru
      _
    // Predicated region
    $region38: #{conv2d_net_forward.1} parent=1 // pred_check
      %p39 = pneg %p35
    $region39: #{conv2d_net_forward.1} parent=1 // pred_check_branch
      %41 = sbr.rel (%p39) target = $region41
    $region40: #{conv2d_net_forward.1} parent=1 // pred_region
      %s42 = sshllo.u32 0, 320
      loop: start=0, step=1, limit=1
      $region42: #{conv2d_net_forward.1} parent=40 // loop_pre_header
        _
      $region43: #{conv2d_net_forward.1} parent=40 // loop_header
        %s44 = sphi 0, %s48
        %p45 = scmp.ge.s32.totalorder %s44, 1
        %s49 = sphi %s5, %s5
        %s50 = sphi [#allocation5], [#allocation5]
      $region44: #{conv2d_net_forward.1} parent=40 // loop_header_branch
        %47 = sbr.rel (%p45) target = $region48
      $region45: #{conv2d_net_forward.1} parent=40 // loop_body
        %v51 = vld [vmem:[%s49] sm:%s42]
        %52 = vst [vmem:[%s50] sm:%s42] %v51
      $region46: #{conv2d_net_forward.1} parent=40 // loop_footer
        %s48 = sadd.s32 1, %s44
      $region47: #{conv2d_net_forward.1} parent=40 // loop_footer_branch
        %43 = sbr.rel target = $region43
      $region48: #{conv2d_net_forward.1} parent=40 // loop_exit
        _
    $region41: #{conv2d_net_forward.1} parent=1 // pred_fallthru
      _
    // Predicated region
    $region64: #{conv2d_net_forward.1} parent=1 // pred_check
      _
    $region65: #{conv2d_net_forward.1} parent=1 // pred_check_branch
      %152 = sbr.rel (0) target = $region67
    $region66: #{conv2d_net_forward.1} parent=1 // pred_region
      %153 = vsyncadd [#allocation8], 5120
    $region67: #{conv2d_net_forward.1} parent=1 // pred_fallthru
      _
    %s154 = scalar_lea.sflag [#allocation8], 1
    %p156 = scmp.lt.u32.totalorder 64, 8
    %p157 = pneg %p156
    // Predicated region
    $region68: #{conv2d_net_forward.1} parent=1 // pred_check
      _
    $region69: #{conv2d_net_forward.1} parent=1 // pred_check_branch
      %159 = sbr.rel (%p156) target = $region71
    $region70: #{conv2d_net_forward.1} parent=1 // pred_region
      %s174 = sand.u32 64, 7
      %p175 = scmp.eq.s32.totalorder %s174, 0
      // Predicated region
      $region83: #{conv2d_net_forward.1} parent=70 // pred_check
        %p176 = pneg %p175
      $region84: #{conv2d_net_forward.1} parent=70 // pred_check_branch
        %178 = sbr.rel (%p176) target = $region86
      $region85: #{conv2d_net_forward.1} parent=70 // pred_region
        loop: start=0, step=1, limit=1
        $region87: #{conv2d_net_forward.1} parent=85 // loop_pre_header
          _
        $region88: #{conv2d_net_forward.1} parent=85 // loop_header
          %s180 = sphi 0, %s184
          %p181 = scmp.ge.s32.totalorder %s180, 1
          %s185 = sphi %s7, %s7
          %s186 = sphi [#allocation6], [#allocation6]
        $region89: #{conv2d_net_forward.1} parent=85 // loop_header_branch
          %183 = sbr.rel (%p181) target = $region93
        $region90: #{conv2d_net_forward.1} parent=85 // loop_body
          %v187 = vld [vmem:[%s185] sm:$0xff]
          %188 = vst [vmem:[%s186] sm:$0xff] %v187
          %v189 = vld [vmem:[%s185 + $0x8] sm:$0xff]
          %190 = vst [vmem:[%s186 + $0x8] sm:$0xff] %v189
          %v191 = vld [vmem:[%s185 + $0x10] sm:$0xff]
          %192 = vst [vmem:[%s186 + $0x10] sm:$0xff] %v191
          %v193 = vld [vmem:[%s185 + $0x18] sm:$0xff]
          %194 = vst [vmem:[%s186 + $0x18] sm:$0xff] %v193
          %v195 = vld [vmem:[%s185 + $0x20] sm:$0xff]
          %196 = vst [vmem:[%s186 + $0x20] sm:$0xff] %v195
          %v197 = vld [vmem:[%s185 + $0x28] sm:$0xff]
          %198 = vst [vmem:[%s186 + $0x28] sm:$0xff] %v197
          %v199 = vld [vmem:[%s185 + $0x30] sm:$0xff]
          %200 = vst [vmem:[%s186 + $0x30] sm:$0xff] %v199
          %v201 = vld [vmem:[%s185 + $0x38] sm:$0xff]
          %202 = vst [vmem:[%s186 + $0x38] sm:$0xff] %v201
        $region91: #{conv2d_net_forward.1} parent=85 // loop_footer
          %s184 = sadd.s32 1, %s180
        $region92: #{conv2d_net_forward.1} parent=85 // loop_footer_branch
          %179 = sbr.rel target = $region88
        $region93: #{conv2d_net_forward.1} parent=85 // loop_exit
          _
      $region86: #{conv2d_net_forward.1} parent=70 // pred_fallthru
        _
      %p203 = pneg %p175
      // Predicated region
      $region94: #{conv2d_net_forward.1} parent=70 // pred_check
        _
      $region95: #{conv2d_net_forward.1} parent=70 // pred_check_branch
        %205 = sbr.rel (%p175) target = $region97
      $region96: #{conv2d_net_forward.1} parent=70 // pred_region
        %s206 = sand.u32 64, 7
      $region97: #{conv2d_net_forward.1} parent=70 // pred_fallthru
        _
    $region71: #{conv2d_net_forward.1} parent=1 // pred_fallthru
      _
    // Predicated region
    $region72: #{conv2d_net_forward.1} parent=1 // pred_check
      %p160 = pneg %p156
    $region73: #{conv2d_net_forward.1} parent=1 // pred_check_branch
      %162 = sbr.rel (%p160) target = $region75
    $region74: #{conv2d_net_forward.1} parent=1 // pred_region
      %s163 = sshllo.u32 0, 64
      loop: start=0, step=1, limit=1
      $region76: #{conv2d_net_forward.1} parent=74 // loop_pre_header
        _
      $region77: #{conv2d_net_forward.1} parent=74 // loop_header
        %s165 = sphi 0, %s169
        %p166 = scmp.ge.s32.totalorder %s165, 1
        %s170 = sphi %s7, %s7
        %s171 = sphi [#allocation6], [#allocation6]
      $region78: #{conv2d_net_forward.1} parent=74 // loop_header_branch
        %168 = sbr.rel (%p166) target = $region82
      $region79: #{conv2d_net_forward.1} parent=74 // loop_body
        %v172 = vld [vmem:[%s170] sm:%s163]
        %173 = vst [vmem:[%s171] sm:%s163] %v172
      $region80: #{conv2d_net_forward.1} parent=74 // loop_footer
        %s169 = sadd.s32 1, %s165
      $region81: #{conv2d_net_forward.1} parent=74 // loop_footer_branch
        %164 = sbr.rel target = $region77
      $region82: #{conv2d_net_forward.1} parent=74 // loop_exit
        _
    $region75: #{conv2d_net_forward.1} parent=1 // pred_fallthru
      _
    // Predicated region
    $region98: #{conv2d_net_forward.1} parent=1 // pred_check
      _
    $region99: #{conv2d_net_forward.1} parent=1 // pred_check_branch
      %209 = sbr.rel (0) target = $region101
    $region100: #{conv2d_net_forward.1} parent=1 // pred_region
      %210 = vsyncadd %s154, 1024
    $region101: #{conv2d_net_forward.1} parent=1 // pred_fallthru
      _
    %s211 = scalar_lea.sflag [#allocation8], 2
    %p213 = scmp.lt.u32.totalorder 64, 8
    %p214 = pneg %p213
    // Predicated region
    $region102: #{conv2d_net_forward.1} parent=1 // pred_check
      _
    $region103: #{conv2d_net_forward.1} parent=1 // pred_check_branch
      %216 = sbr.rel (%p213) target = $region105
    $region104: #{conv2d_net_forward.1} parent=1 // pred_region
      %s231 = sand.u32 64, 7
      %p232 = scmp.eq.s32.totalorder %s231, 0
      // Predicated region
      $region117: #{conv2d_net_forward.1} parent=104 // pred_check
        %p233 = pneg %p232
      $region118: #{conv2d_net_forward.1} parent=104 // pred_check_branch
        %235 = sbr.rel (%p233) target = $region120
      $region119: #{conv2d_net_forward.1} parent=104 // pred_region
        loop: start=0, step=1, limit=1
        $region121: #{conv2d_net_forward.1} parent=119 // loop_pre_header
          _
        $region122: #{conv2d_net_forward.1} parent=119 // loop_header
          %s237 = sphi 0, %s241
          %p238 = scmp.ge.s32.totalorder %s237, 1
          %s242 = sphi %s9, %s9
          %s243 = sphi [#allocation7], [#allocation7]
        $region123: #{conv2d_net_forward.1} parent=119 // loop_header_branch
          %240 = sbr.rel (%p238) target = $region127
        $region124: #{conv2d_net_forward.1} parent=119 // loop_body
          %v244 = vld [vmem:[%s242] sm:$0xff]
          %245 = vst [vmem:[%s243] sm:$0xff] %v244
          %v246 = vld [vmem:[%s242 + $0x8] sm:$0xff]
          %247 = vst [vmem:[%s243 + $0x8] sm:$0xff] %v246
          %v248 = vld [vmem:[%s242 + $0x10] sm:$0xff]
          %249 = vst [vmem:[%s243 + $0x10] sm:$0xff] %v248
          %v250 = vld [vmem:[%s242 + $0x18] sm:$0xff]
          %251 = vst [vmem:[%s243 + $0x18] sm:$0xff] %v250
          %v252 = vld [vmem:[%s242 + $0x20] sm:$0xff]
          %253 = vst [vmem:[%s243 + $0x20] sm:$0xff] %v252
          %v254 = vld [vmem:[%s242 + $0x28] sm:$0xff]
          %255 = vst [vmem:[%s243 + $0x28] sm:$0xff] %v254
          %v256 = vld [vmem:[%s242 + $0x30] sm:$0xff]
          %257 = vst [vmem:[%s243 + $0x30] sm:$0xff] %v256
          %v258 = vld [vmem:[%s242 + $0x38] sm:$0xff]
          %259 = vst [vmem:[%s243 + $0x38] sm:$0xff] %v258
        $region125: #{conv2d_net_forward.1} parent=119 // loop_footer
          %s241 = sadd.s32 1, %s237
        $region126: #{conv2d_net_forward.1} parent=119 // loop_footer_branch
          %236 = sbr.rel target = $region122
        $region127: #{conv2d_net_forward.1} parent=119 // loop_exit
          _
      $region120: #{conv2d_net_forward.1} parent=104 // pred_fallthru
        _
      %p260 = pneg %p232
      // Predicated region
      $region128: #{conv2d_net_forward.1} parent=104 // pred_check
        _
      $region129: #{conv2d_net_forward.1} parent=104 // pred_check_branch
        %262 = sbr.rel (%p232) target = $region131
      $region130: #{conv2d_net_forward.1} parent=104 // pred_region
        %s263 = sand.u32 64, 7
      $region131: #{conv2d_net_forward.1} parent=104 // pred_fallthru
        _
    $region105: #{conv2d_net_forward.1} parent=1 // pred_fallthru
      _
    // Predicated region
    $region106: #{conv2d_net_forward.1} parent=1 // pred_check
      %p217 = pneg %p213
    $region107: #{conv2d_net_forward.1} parent=1 // pred_check_branch
      %219 = sbr.rel (%p217) target = $region109
    $region108: #{conv2d_net_forward.1} parent=1 // pred_region
      %s220 = sshllo.u32 0, 64
      loop: start=0, step=1, limit=1
      $region110: #{conv2d_net_forward.1} parent=108 // loop_pre_header
        _
      $region111: #{conv2d_net_forward.1} parent=108 // loop_header
        %s222 = sphi 0, %s226
        %p223 = scmp.ge.s32.totalorder %s222, 1
        %s227 = sphi %s9, %s9
        %s228 = sphi [#allocation7], [#allocation7]
      $region112: #{conv2d_net_forward.1} parent=108 // loop_header_branch
        %225 = sbr.rel (%p223) target = $region116
      $region113: #{conv2d_net_forward.1} parent=108 // loop_body
        %v229 = vld [vmem:[%s227] sm:%s220]
        %230 = vst [vmem:[%s228] sm:%s220] %v229
      $region114: #{conv2d_net_forward.1} parent=108 // loop_footer
        %s226 = sadd.s32 1, %s222
      $region115: #{conv2d_net_forward.1} parent=108 // loop_footer_branch
        %221 = sbr.rel target = $region111
      $region116: #{conv2d_net_forward.1} parent=108 // loop_exit
        _
    $region109: #{conv2d_net_forward.1} parent=1 // pred_fallthru
      _
    // Predicated region
    $region132: #{conv2d_net_forward.1} parent=1 // pred_check
      _
    $region133: #{conv2d_net_forward.1} parent=1 // pred_check_branch
      %266 = sbr.rel (0) target = $region135
    $region134: #{conv2d_net_forward.1} parent=1 // pred_region
      %267 = vsyncadd %s211, 1024
    $region135: #{conv2d_net_forward.1} parent=1 // pred_fallthru
      _
    %v268 = vlaneseq
    %v269 = vand.u32 %v268, 127
    %v270 = vld [vmem:[%s0] sm:$0xf]
    %v271 = vld [vmem:[%s0 + $0x4] sm:$0xf]
    %v272 = vld [vmem:[%s0 + $0x8] sm:$0xf]
    %v273 = vld [vmem:[%s0 + $0xc] sm:$0xf]
    %v274 = vld [vmem:[%s0 + $0x10] sm:$0xf]
    %v275 = vld [vmem:[%s0 + $0x14] sm:$0xf]
    %v276 = vld [vmem:[%s0 + $0x18] sm:$0xf]
    %v277 = vld [vmem:[%s0 + $0x1c] sm:$0xf]
    %v278 = vld [vmem:[%s0 + $0x20] sm:$0xf]
    %v279 = vld [vmem:[%s0 + $0x24] sm:$0xf]
    %v280 = vld [vmem:[%s0 + $0x28] sm:$0xf]
    %v281 = vld [vmem:[%s0 + $0x2c] sm:$0xf]
    %v282 = vld [vmem:[%s0 + $0x30] sm:$0xf]
    %v283 = vld [vmem:[%s0 + $0x34] sm:$0xf]
    %v284 = vld [vmem:[%s0 + $0x38] sm:$0xf]
    %v285 = vld [vmem:[%s0 + $0x3c] sm:$0xf]
    %v286 = vld [vmem:[%s1] sm:$0xf]
    %v287 = vld [vmem:[%s1 + $0x4] sm:$0xf]
    %v288 = vld [vmem:[%s1 + $0x8] sm:$0xf]
    %v289 = vld [vmem:[%s1 + $0xc] sm:$0xf]
    %v306 = vunpack.c.l.b16 %v270
    %v307 = vunpack.c.l.b16 %v271
    %v308 = vunpack.c.l.b16 %v272
    %v309 = vunpack.c.l.b16 %v273
    %v310 = vunpack.c.l.b16 %v274
    %v311 = vunpack.c.l.b16 %v275
    %v312 = vunpack.c.l.b16 %v276
    %v313 = vunpack.c.l.b16 %v277
    %v314 = vunpack.c.l.b16 %v278
    %v315 = vunpack.c.l.b16 %v279
    %v316 = vunpack.c.l.b16 %v280
    %v317 = vunpack.c.l.b16 %v281
    %v318 = vunpack.c.l.b16 %v282
    %v319 = vunpack.c.l.b16 %v283
    %v320 = vunpack.c.l.b16 %v284
    %v321 = vunpack.c.l.b16 %v285
    %v322 = vpack.c.b16 %v307, %v306
    %v323 = vpack.c.b16 %v309, %v308
    %v324 = vpack.c.b16 %v311, %v310
    %v325 = vpack.c.b16 %v313, %v312
    %v326 = vpack.c.b16 %v315, %v314
    %v327 = vpack.c.b16 %v317, %v316
    %v328 = vpack.c.b16 %v319, %v318
    %v329 = vpack.c.b16 %v321, %v320
    %v334 = vunpack.c.l.b16 %v286
    %v335 = vunpack.c.l.b16 %v287
    %v336 = vunpack.c.l.b16 %v288
    %v337 = vunpack.c.l.b16 %v289
    %v338 = vpack.c.b16 %v335, %v334
    %v339 = vpack.c.b16 %v337, %v336
    %vm342 = vcmask 261120
    %v344 = vsel %vm342, %v322, 0
    %v347 = vsel %vm342, %v323, 0
    %v350 = vsel %vm342, %v324, 0
    %v353 = vsel %vm342, %v325, 0
    %v356 = vsel %vm342, %v326, 0
    %v359 = vsel %vm342, %v327, 0
    %v362 = vsel %vm342, %v328, 0
    %v365 = vsel %vm342, %v329, 0
    %367 = vmatprep.subr.bf16.mxu0 0
    %368 = vmatpush1.bf16.msra.mxu0 %v338
    %369 = vmatprep.subr.bf16.mxu0 0
    %370 = vmatpush1.bf16.msra.mxu0 %v339
    %371 = vmatprep.subr.bf16.mxu0 0
    %372 = vmatpush1.bf16.msra.mxu0 0
    %373 = vmatprep.subr.bf16.mxu0 0
    %374 = vmatpush1.bf16.msra.mxu0 0
    %375 = vmatprep.subr.bf16.mxu0 0
    %376 = vmatpush1.bf16.msra.mxu0 0
    %377 = vmatprep.subr.bf16.mxu0 0
    %378 = vmatpush1.bf16.msra.mxu0 0
    %379 = vmatprep.subr.bf16.mxu0 0
    %380 = vmatpush1.bf16.msra.mxu0 0
    %381 = vmatprep.subr.bf16.mxu0 0
    %382 = vmatpush1.bf16.msra.mxu0 0
    %383 = vmatprep.subr.bf16.mxu0 0
    %384 = vmatpush1.bf16.msra.mxu0 0
    %385 = vmatprep.subr.bf16.mxu0 0
    %386 = vmatpush1.bf16.msra.mxu0 0
    %387 = vmatprep.subr.bf16.mxu0 0
    %388 = vmatpush1.bf16.msra.mxu0 0
    %389 = vmatprep.subr.bf16.mxu0 0
    %390 = vmatpush1.bf16.msra.mxu0 0
    %391 = vmatprep.subr.bf16.mxu0 0
    %392 = vmatpush1.bf16.msra.mxu0 0
    %393 = vmatprep.subr.bf16.mxu0 0
    %394 = vmatpush1.bf16.msra.mxu0 0
    %395 = vmatprep.subr.bf16.mxu0 0
    %396 = vmatpush1.bf16.msra.mxu0 0
    %397 = vmatprep.subr.bf16.mxu0 0
    %398 = vmatpush1.bf16.msra.mxu0 0
    %399 = vmatprep.mubr.bf16.mxu0 0
    %400 = vmatmul.mubr.bf16.gmra.mrb[0].mxu0 %v344
    %v401 = vpop.f32.mrb[0].mxu0
    %v402 = vadd.f32 0.0, %v401
    %v403 = vpop.f32.mrb[0].mxu0
    %v404 = vpop.f32.mrb[0].mxu0
    %v405 = vadd.f32 0.0, %v404
    %v406 = vpop.f32.mrb[0].mxu0
    %407 = vmatprep.mubr.bf16.mxu0 0
    %408 = vmatmul.mubr.bf16.gmra.mrb[0].mxu0 %v347
    %v409 = vpop.f32.mrb[0].mxu0
    %v410 = vadd.f32 0.0, %v409
    %v411 = vpop.f32.mrb[0].mxu0
    %v412 = vpop.f32.mrb[0].mxu0
    %v413 = vadd.f32 0.0, %v412
    %v414 = vpop.f32.mrb[0].mxu0
    %415 = vmatprep.mubr.bf16.mxu0 0
    %416 = vmatmul.mubr.bf16.gmra.mrb[0].mxu0 %v350
    %v417 = vpop.f32.mrb[0].mxu0
    %v418 = vadd.f32 0.0, %v417
    %v419 = vpop.f32.mrb[0].mxu0
    %v420 = vpop.f32.mrb[0].mxu0
    %v421 = vadd.f32 0.0, %v420
    %v422 = vpop.f32.mrb[0].mxu0
    %423 = vmatprep.mubr.bf16.mxu0 0
    %424 = vmatmul.mubr.bf16.gmra.mrb[0].mxu0 %v353
    %v425 = vpop.f32.mrb[0].mxu0
    %v426 = vadd.f32 0.0, %v425
    %v427 = vpop.f32.mrb[0].mxu0
    %v428 = vpop.f32.mrb[0].mxu0
    %v429 = vadd.f32 0.0, %v428
    %v430 = vpop.f32.mrb[0].mxu0
    %431 = vmatprep.mubr.bf16.mxu0 0
    %432 = vmatmul.mubr.bf16.gmra.mrb[0].mxu0 %v356
    %v433 = vpop.f32.mrb[0].mxu0
    %v434 = vadd.f32 0.0, %v433
    %v435 = vpop.f32.mrb[0].mxu0
    %v436 = vpop.f32.mrb[0].mxu0
    %v437 = vadd.f32 0.0, %v436
    %v438 = vpop.f32.mrb[0].mxu0
    %439 = vmatprep.mubr.bf16.mxu0 0
    %440 = vmatmul.mubr.bf16.gmra.mrb[0].mxu0 %v359
    %v441 = vpop.f32.mrb[0].mxu0
    %v442 = vadd.f32 0.0, %v441
    %v443 = vpop.f32.mrb[0].mxu0
    %v444 = vpop.f32.mrb[0].mxu0
    %v445 = vadd.f32 0.0, %v444
    %v446 = vpop.f32.mrb[0].mxu0
    %447 = vmatprep.mubr.bf16.mxu0 0
    %448 = vmatmul.mubr.bf16.gmra.mrb[0].mxu0 %v362
    %v449 = vpop.f32.mrb[0].mxu0
    %v450 = vadd.f32 0.0, %v449
    %v451 = vpop.f32.mrb[0].mxu0
    %v452 = vpop.f32.mrb[0].mxu0
    %v453 = vadd.f32 0.0, %v452
    %v454 = vpop.f32.mrb[0].mxu0
    %455 = vmatprep.mubr.bf16.mxu0 0
    %456 = vmatmul.mubr.bf16.gmra.mrb[0].mxu0 %v365
    %v457 = vpop.f32.mrb[0].mxu0
    %v458 = vadd.f32 0.0, %v457
    %v459 = vpop.f32.mrb[0].mxu0
    %v460 = vpop.f32.mrb[0].mxu0
    %v461 = vadd.f32 0.0, %v460
    %v462 = vpop.f32.mrb[0].mxu0
    %463 = vdwg.mxu0
    %v464 = vld [vmem:[%s0 + $0x100] sm:$0xf]
    %v465 = vld [vmem:[%s0 + $0x104] sm:$0xf]
    %v466 = vld [vmem:[%s0 + $0x108] sm:$0xf]
    %v467 = vld [vmem:[%s0 + $0x10c] sm:$0xf]
    %v468 = vld [vmem:[%s0 + $0x110] sm:$0xf]
    %v469 = vld [vmem:[%s0 + $0x114] sm:$0xf]
    %v470 = vld [vmem:[%s0 + $0x118] sm:$0xf]
    %v471 = vld [vmem:[%s0 + $0x11c] sm:$0xf]
    %v472 = vld [vmem:[%s0 + $0x120] sm:$0xf]
    %v473 = vld [vmem:[%s0 + $0x124] sm:$0xf]
    %v474 = vld [vmem:[%s0 + $0x128] sm:$0xf]
    %v475 = vld [vmem:[%s0 + $0x12c] sm:$0xf]
    %v476 = vld [vmem:[%s0 + $0x130] sm:$0xf]
    %v477 = vld [vmem:[%s0 + $0x134] sm:$0xf]
    %v478 = vld [vmem:[%s0 + $0x138] sm:$0xf]
    %v479 = vld [vmem:[%s0 + $0x13c] sm:$0xf]
    %v496 = vunpack.c.l.b16 %v464
    %v497 = vunpack.c.l.b16 %v465
    %v498 = vunpack.c.l.b16 %v466
    %v499 = vunpack.c.l.b16 %v467
    %v500 = vunpack.c.l.b16 %v468
    %v501 = vunpack.c.l.b16 %v469
    %v502 = vunpack.c.l.b16 %v470
    %v503 = vunpack.c.l.b16 %v471
    %v504 = vunpack.c.l.b16 %v472
    %v505 = vunpack.c.l.b16 %v473
    %v506 = vunpack.c.l.b16 %v474
    %v507 = vunpack.c.l.b16 %v475
    %v508 = vunpack.c.l.b16 %v476
    %v509 = vunpack.c.l.b16 %v477
    %v510 = vunpack.c.l.b16 %v478
    %v511 = vunpack.c.l.b16 %v479
    %v512 = vpack.c.b16 %v497, %v496
    %v513 = vpack.c.b16 %v499, %v498
    %v514 = vpack.c.b16 %v501, %v500
    %v515 = vpack.c.b16 %v503, %v502
    %v516 = vpack.c.b16 %v505, %v504
    %v517 = vpack.c.b16 %v507, %v506
    %v518 = vpack.c.b16 %v509, %v508
    %v519 = vpack.c.b16 %v511, %v510
    %v521 = vsel %vm342, %v512, 0
    %v524 = vsel %vm342, %v513, 0
    %v527 = vsel %vm342, %v514, 0
    %v530 = vsel %vm342, %v515, 0
    %v533 = vsel %vm342, %v516, 0
    %v536 = vsel %vm342, %v517, 0
    %v539 = vsel %vm342, %v518, 0
    %v542 = vsel %vm342, %v519, 0
    %544 = vmatprep.subr.bf16.mxu0 0
    %545 = vmatpush1.bf16.msra.mxu0 %v338
    %546 = vmatprep.subr.bf16.mxu0 0
    %547 = vmatpush1.bf16.msra.mxu0 %v339
    %548 = vmatprep.subr.bf16.mxu0 0
    %549 = vmatpush1.bf16.msra.mxu0 0
    %550 = vmatprep.subr.bf16.mxu0 0
    %551 = vmatpush1.bf16.msra.mxu0 0
    %552 = vmatprep.subr.bf16.mxu0 0
    %553 = vmatpush1.bf16.msra.mxu0 0
    %554 = vmatprep.subr.bf16.mxu0 0
    %555 = vmatpush1.bf16.msra.mxu0 0
    %556 = vmatprep.subr.bf16.mxu0 0
    %557 = vmatpush1.bf16.msra.mxu0 0
    %558 = vmatprep.subr.bf16.mxu0 0
    %559 = vmatpush1.bf16.msra.mxu0 0
    %560 = vmatprep.subr.bf16.mxu0 0
    %561 = vmatpush1.bf16.msra.mxu0 0
    %562 = vmatprep.subr.bf16.mxu0 0
    %563 = vmatpush1.bf16.msra.mxu0 0
    %564 = vmatprep.subr.bf16.mxu0 0
    %565 = vmatpush1.bf16.msra.mxu0 0
    %566 = vmatprep.subr.bf16.mxu0 0
    %567 = vmatpush1.bf16.msra.mxu0 0
    %568 = vmatprep.subr.bf16.mxu0 0
    %569 = vmatpush1.bf16.msra.mxu0 0
    %570 = vmatprep.subr.bf16.mxu0 0
    %571 = vmatpush1.bf16.msra.mxu0 0
    %572 = vmatprep.subr.bf16.mxu0 0
    %573 = vmatpush1.bf16.msra.mxu0 0
    %574 = vmatprep.subr.bf16.mxu0 0
    %575 = vmatpush1.bf16.msra.mxu0 0
    %576 = vmatprep.mubr.bf16.mxu0 0
    %577 = vmatmul.mubr.bf16.gmra.mrb[0].mxu0 %v521
    %v578 = vpop.f32.mrb[0].mxu0
    %v579 = vadd.f32 0.0, %v578
    %v580 = vpop.f32.mrb[0].mxu0
    %v581 = vpop.f32.mrb[0].mxu0
    %v582 = vadd.f32 0.0, %v581
    %v583 = vpop.f32.mrb[0].mxu0
    %584 = vmatprep.mubr.bf16.mxu0 0
    %585 = vmatmul.mubr.bf16.gmra.mrb[0].mxu0 %v524
    %v586 = vpop.f32.mrb[0].mxu0
    %v587 = vadd.f32 0.0, %v586
    %v588 = vpop.f32.mrb[0].mxu0
    %v589 = vpop.f32.mrb[0].mxu0
    %v590 = vadd.f32 0.0, %v589
    %v591 = vpop.f32.mrb[0].mxu0
    %592 = vmatprep.mubr.bf16.mxu0 0
    %593 = vmatmul.mubr.bf16.gmra.mrb[0].mxu0 %v527
    %v594 = vpop.f32.mrb[0].mxu0
    %v595 = vadd.f32 0.0, %v594
    %v596 = vpop.f32.mrb[0].mxu0
    %v597 = vpop.f32.mrb[0].mxu0
    %v598 = vadd.f32 0.0, %v597
    %v599 = vpop.f32.mrb[0].mxu0
    %600 = vmatprep.mubr.bf16.mxu0 0
    %601 = vmatmul.mubr.bf16.gmra.mrb[0].mxu0 %v530
    %v602 = vpop.f32.mrb[0].mxu0
    %v603 = vadd.f32 0.0, %v602
    %v604 = vpop.f32.mrb[0].mxu0
    %v605 = vpop.f32.mrb[0].mxu0
    %v606 = vadd.f32 0.0, %v605
    %v607 = vpop.f32.mrb[0].mxu0
    %608 = vmatprep.mubr.bf16.mxu0 0
    %609 = vmatmul.mubr.bf16.gmra.mrb[0].mxu0 %v533
    %v610 = vpop.f32.mrb[0].mxu0
    %v611 = vadd.f32 0.0, %v610
    %v612 = vpop.f32.mrb[0].mxu0
    %v613 = vpop.f32.mrb[0].mxu0
    %v614 = vadd.f32 0.0, %v613
    %v615 = vpop.f32.mrb[0].mxu0
    %616 = vmatprep.mubr.bf16.mxu0 0
    %617 = vmatmul.mubr.bf16.gmra.mrb[0].mxu0 %v536
    %v618 = vpop.f32.mrb[0].mxu0
    %v619 = vadd.f32 0.0, %v618
    %v620 = vpop.f32.mrb[0].mxu0
    %v621 = vpop.f32.mrb[0].mxu0
    %v622 = vadd.f32 0.0, %v621
    %v623 = vpop.f32.mrb[0].mxu0
    %624 = vmatprep.mubr.bf16.mxu0 0
    %625 = vmatmul.mubr.bf16.gmra.mrb[0].mxu0 %v539
    %v626 = vpop.f32.mrb[0].mxu0
    %v627 = vadd.f32 0.0, %v626
    %v628 = vpop.f32.mrb[0].mxu0
    %v629 = vpop.f32.mrb[0].mxu0
    %v630 = vadd.f32 0.0, %v629
    %v631 = vpop.f32.mrb[0].mxu0
    %632 = vmatprep.mubr.bf16.mxu0 0
    %633 = vmatmul.mubr.bf16.gmra.mrb[0].mxu0 %v542
    %v634 = vpop.f32.mrb[0].mxu0
    %v635 = vadd.f32 0.0, %v634
    %v636 = vpop.f32.mrb[0].mxu0
    %v637 = vpop.f32.mrb[0].mxu0
    %v638 = vadd.f32 0.0, %v637
    %v639 = vpop.f32.mrb[0].mxu0
    %640 = vdwg.mxu0
    %v641 = vmax.f32 %v402, %v579
    %v642 = vmax.f32 %v405, %v582
    %v643 = vmax.f32 %v410, %v587
    %v644 = vmax.f32 %v413, %v590
    %v645 = vmax.f32 %v418, %v595
    %v646 = vmax.f32 %v421, %v598
    %v647 = vmax.f32 %v426, %v603
    %v648 = vmax.f32 %v429, %v606
    %v649 = vmax.f32 %v434, %v611
    %v650 = vmax.f32 %v437, %v614
    %v651 = vmax.f32 %v442, %v619
    %v652 = vmax.f32 %v445, %v622
    %v653 = vmax.f32 %v450, %v627
    %v654 = vmax.f32 %v453, %v630
    %v655 = vmax.f32 %v458, %v635
    %v656 = vmax.f32 %v461, %v638
    %v657 = vld [vmem:[%s0 + $0x200] sm:$0xf]
    %v658 = vld [vmem:[%s0 + $0x204] sm:$0xf]
    %v659 = vld [vmem:[%s0 + $0x208] sm:$0xf]
    %v660 = vld [vmem:[%s0 + $0x20c] sm:$0xf]
    %v661 = vld [vmem:[%s0 + $0x210] sm:$0xf]
    %v662 = vld [vmem:[%s0 + $0x214] sm:$0xf]
    %v663 = vld [vmem:[%s0 + $0x218] sm:$0xf]
    %v664 = vld [vmem:[%s0 + $0x21c] sm:$0xf]
    %v665 = vld [vmem:[%s0 + $0x220] sm:$0xf]
    %v666 = vld [vmem:[%s0 + $0x224] sm:$0xf]
    %v667 = vld [vmem:[%s0 + $0x228] sm:$0xf]
    %v668 = vld [vmem:[%s0 + $0x22c] sm:$0xf]
    %v669 = vld [vmem:[%s0 + $0x230] sm:$0xf]
    %v670 = vld [vmem:[%s0 + $0x234] sm:$0xf]
    %v671 = vld [vmem:[%s0 + $0x238] sm:$0xf]
    %v672 = vld [vmem:[%s0 + $0x23c] sm:$0xf]
    %v689 = vunpack.c.l.b16 %v657
    %v690 = vunpack.c.l.b16 %v658
    %v691 = vunpack.c.l.b16 %v659
    %v692 = vunpack.c.l.b16 %v660
    %v693 = vunpack.c.l.b16 %v661
    %v694 = vunpack.c.l.b16 %v662
    %v695 = vunpack.c.l.b16 %v663
    %v696 = vunpack.c.l.b16 %v664
    %v697 = vunpack.c.l.b16 %v665
    %v698 = vunpack.c.l.b16 %v666
    %v699 = vunpack.c.l.b16 %v667
    %v700 = vunpack.c.l.b16 %v668
    %v701 = vunpack.c.l.b16 %v669
    %v702 = vunpack.c.l.b16 %v670
    %v703 = vunpack.c.l.b16 %v671
    %v704 = vunpack.c.l.b16 %v672
    %v705 = vpack.c.b16 %v690, %v689
    %v706 = vpack.c.b16 %v692, %v691
    %v707 = vpack.c.b16 %v694, %v693
    %v708 = vpack.c.b16 %v696, %v695
    %v709 = vpack.c.b16 %v698, %v697
    %v710 = vpack.c.b16 %v700, %v699
    %v711 = vpack.c.b16 %v702, %v701
    %v712 = vpack.c.b16 %v704, %v703
    %v714 = vsel %vm342, %v705, 0
    %v717 = vsel %vm342, %v706, 0
    %v720 = vsel %vm342, %v707, 0
    %v723 = vsel %vm342, %v708, 0
    %v726 = vsel %vm342, %v709, 0
    %v729 = vsel %vm342, %v710, 0
    %v732 = vsel %vm342, %v711, 0
    %v735 = vsel %vm342, %v712, 0
    %737 = vmatprep.subr.bf16.mxu0 0
    %738 = vmatpush1.bf16.msra.mxu0 %v338
    %739 = vmatprep.subr.bf16.mxu0 0
    %740 = vmatpush1.bf16.msra.mxu0 %v339
    %741 = vmatprep.subr.bf16.mxu0 0
    %742 = vmatpush1.bf16.msra.mxu0 0
    %743 = vmatprep.subr.bf16.mxu0 0
    %744 = vmatpush1.bf16.msra.mxu0 0
    %745 = vmatprep.subr.bf16.mxu0 0
    %746 = vmatpush1.bf16.msra.mxu0 0
    %747 = vmatprep.subr.bf16.mxu0 0
    %748 = vmatpush1.bf16.msra.mxu0 0
    %749 = vmatprep.subr.bf16.mxu0 0
    %750 = vmatpush1.bf16.msra.mxu0 0
    %751 = vmatprep.subr.bf16.mxu0 0
    %752 = vmatpush1.bf16.msra.mxu0 0
    %753 = vmatprep.subr.bf16.mxu0 0
    %754 = vmatpush1.bf16.msra.mxu0 0
    %755 = vmatprep.subr.bf16.mxu0 0
    %756 = vmatpush1.bf16.msra.mxu0 0
    %757 = vmatprep.subr.bf16.mxu0 0
    %758 = vmatpush1.bf16.msra.mxu0 0
    %759 = vmatprep.subr.bf16.mxu0 0
    %760 = vmatpush1.bf16.msra.mxu0 0
    %761 = vmatprep.subr.bf16.mxu0 0
    %762 = vmatpush1.bf16.msra.mxu0 0
    %763 = vmatprep.subr.bf16.mxu0 0
    %764 = vmatpush1.bf16.msra.mxu0 0
    %765 = vmatprep.subr.bf16.mxu0 0
    %766 = vmatpush1.bf16.msra.mxu0 0
    %767 = vmatprep.subr.bf16.mxu0 0
    %768 = vmatpush1.bf16.msra.mxu0 0
    %769 = vmatprep.mubr.bf16.mxu0 0
    %770 = vmatmul.mubr.bf16.gmra.mrb[0].mxu0 %v714
    %v771 = vpop.f32.mrb[0].mxu0
    %v772 = vadd.f32 0.0, %v771
    %v773 = vpop.f32.mrb[0].mxu0
    %v774 = vpop.f32.mrb[0].mxu0
    %v775 = vadd.f32 0.0, %v774
    %v776 = vpop.f32.mrb[0].mxu0
    %777 = vmatprep.mubr.bf16.mxu0 0
    %778 = vmatmul.mubr.bf16.gmra.mrb[0].mxu0 %v717
    %v779 = vpop.f32.mrb[0].mxu0
    %v780 = vadd.f32 0.0, %v779
    %v781 = vpop.f32.mrb[0].mxu0
    %v782 = vpop.f32.mrb[0].mxu0
    %v783 = vadd.f32 0.0, %v782
    %v784 = vpop.f32.mrb[0].mxu0
    %785 = vmatprep.mubr.bf16.mxu0 0
    %786 = vmatmul.mubr.bf16.gmra.mrb[0].mxu0 %v720
    %v787 = vpop.f32.mrb[0].mxu0
    %v788 = vadd.f32 0.0, %v787
    %v789 = vpop.f32.mrb[0].mxu0
    %v790 = vpop.f32.mrb[0].mxu0
    %v791 = vadd.f32 0.0, %v790
    %v792 = vpop.f32.mrb[0].mxu0
    %793 = vmatprep.mubr.bf16.mxu0 0
    %794 = vmatmul.mubr.bf16.gmra.mrb[0].mxu0 %v723
    %v795 = vpop.f32.mrb[0].mxu0
    %v796 = vadd.f32 0.0, %v795
    %v797 = vpop.f32.mrb[0].mxu0
    %v798 = vpop.f32.mrb[0].mxu0
    %v799 = vadd.f32 0.0, %v798
    %v800 = vpop.f32.mrb[0].mxu0
    %801 = vmatprep.mubr.bf16.mxu0 0
    %802 = vmatmul.mubr.bf16.gmra.mrb[0].mxu0 %v726
    %v803 = vpop.f32.mrb[0].mxu0
    %v804 = vadd.f32 0.0, %v803
    %v805 = vpop.f32.mrb[0].mxu0
    %v806 = vpop.f32.mrb[0].mxu0
    %v807 = vadd.f32 0.0, %v806
    %v808 = vpop.f32.mrb[0].mxu0
    %809 = vmatprep.mubr.bf16.mxu0 0
    %810 = vmatmul.mubr.bf16.gmra.mrb[0].mxu0 %v729
    %v811 = vpop.f32.mrb[0].mxu0
    %v812 = vadd.f32 0.0, %v811
    %v813 = vpop.f32.mrb[0].mxu0
    %v814 = vpop.f32.mrb[0].mxu0
    %v815 = vadd.f32 0.0, %v814
    %v816 = vpop.f32.mrb[0].mxu0
    %817 = vmatprep.mubr.bf16.mxu0 0
    %818 = vmatmul.mubr.bf16.gmra.mrb[0].mxu0 %v732
    %v819 = vpop.f32.mrb[0].mxu0
    %v820 = vadd.f32 0.0, %v819
    %v821 = vpop.f32.mrb[0].mxu0
    %v822 = vpop.f32.mrb[0].mxu0
    %v823 = vadd.f32 0.0, %v822
    %v824 = vpop.f32.mrb[0].mxu0
    %825 = vmatprep.mubr.bf16.mxu0 0
    %826 = vmatmul.mubr.bf16.gmra.mrb[0].mxu0 %v735
    %v827 = vpop.f32.mrb[0].mxu0
    %v828 = vadd.f32 0.0, %v827
    %v829 = vpop.f32.mrb[0].mxu0
    %v830 = vpop.f32.mrb[0].mxu0
    %v831 = vadd.f32 0.0, %v830
    %v832 = vpop.f32.mrb[0].mxu0
    %833 = vdwg.mxu0
    %v834 = vmax.f32 %v641, %v772
    %v835 = vmax.f32 %v642, %v775
    %v836 = vmax.f32 %v643, %v780
    %v837 = vmax.f32 %v644, %v783
    %v838 = vmax.f32 %v645, %v788
    %v839 = vmax.f32 %v646, %v791
    %v840 = vmax.f32 %v647, %v796
    %v841 = vmax.f32 %v648, %v799
    %v842 = vmax.f32 %v649, %v804
    %v843 = vmax.f32 %v650, %v807
    %v844 = vmax.f32 %v651, %v812
    %v845 = vmax.f32 %v652, %v815
    %v846 = vmax.f32 %v653, %v820
    %v847 = vmax.f32 %v654, %v823
    %v848 = vmax.f32 %v655, %v828
    %v849 = vmax.f32 %v656, %v831
    %v850 = vld [vmem:[%s0 + $0x300] sm:$0xf]
    %v851 = vld [vmem:[%s0 + $0x304] sm:$0xf]
    %v852 = vld [vmem:[%s0 + $0x308] sm:$0xf]
    %v853 = vld [vmem:[%s0 + $0x30c] sm:$0xf]
    %v854 = vld [vmem:[%s0 + $0x310] sm:$0xf]
    %v855 = vld [vmem:[%s0 + $0x314] sm:$0xf]
    %v856 = vld [vmem:[%s0 + $0x318] sm:$0xf]
    %v857 = vld [vmem:[%s0 + $0x31c] sm:$0xf]
    %v858 = vld [vmem:[%s0 + $0x320] sm:$0xf]
    %v859 = vld [vmem:[%s0 + $0x324] sm:$0xf]
    %v860 = vld [vmem:[%s0 + $0x328] sm:$0xf]
    %v861 = vld [vmem:[%s0 + $0x32c] sm:$0xf]
    %v862 = vld [vmem:[%s0 + $0x330] sm:$0xf]
    %v863 = vld [vmem:[%s0 + $0x334] sm:$0xf]
    %v864 = vld [vmem:[%s0 + $0x338] sm:$0xf]
    %v865 = vld [vmem:[%s0 + $0x33c] sm:$0xf]
    %v882 = vunpack.c.l.b16 %v850
    %v883 = vunpack.c.l.b16 %v851
    %v884 = vunpack.c.l.b16 %v852
    %v885 = vunpack.c.l.b16 %v853
    %v886 = vunpack.c.l.b16 %v854
    %v887 = vunpack.c.l.b16 %v855
    %v888 = vunpack.c.l.b16 %v856
    %v889 = vunpack.c.l.b16 %v857
    %v890 = vunpack.c.l.b16 %v858
    %v891 = vunpack.c.l.b16 %v859
    %v892 = vunpack.c.l.b16 %v860
    %v893 = vunpack.c.l.b16 %v861
    %v894 = vunpack.c.l.b16 %v862
    %v895 = vunpack.c.l.b16 %v863
    %v896 = vunpack.c.l.b16 %v864
    %v897 = vunpack.c.l.b16 %v865
    %v898 = vpack.c.b16 %v883, %v882
    %v899 = vpack.c.b16 %v885, %v884
    %v900 = vpack.c.b16 %v887, %v886
    %v901 = vpack.c.b16 %v889, %v888
    %v902 = vpack.c.b16 %v891, %v890
    %v903 = vpack.c.b16 %v893, %v892
    %v904 = vpack.c.b16 %v895, %v894
    %v905 = vpack.c.b16 %v897, %v896
    %v907 = vsel %vm342, %v898, 0
    %v910 = vsel %vm342, %v899, 0
    %v913 = vsel %vm342, %v900, 0
    %v916 = vsel %vm342, %v901, 0
    %v919 = vsel %vm342, %v902, 0
    %v922 = vsel %vm342, %v903, 0
    %v925 = vsel %vm342, %v904, 0
    %v928 = vsel %vm342, %v905, 0
    %930 = vmatprep.subr.bf16.mxu0 0
    %931 = vmatpush1.bf16.msra.mxu0 %v338
    %932 = vmatprep.subr.bf16.mxu0 0
    %933 = vmatpush1.bf16.msra.mxu0 %v339
    %934 = vmatprep.subr.bf16.mxu0 0
    %935 = vmatpush1.bf16.msra.mxu0 0
    %936 = vmatprep.subr.bf16.mxu0 0
    %937 = vmatpush1.bf16.msra.mxu0 0
    %938 = vmatprep.subr.bf16.mxu0 0
    %939 = vmatpush1.bf16.msra.mxu0 0
    %940 = vmatprep.subr.bf16.mxu0 0
    %941 = vmatpush1.bf16.msra.mxu0 0
    %942 = vmatprep.subr.bf16.mxu0 0
    %943 = vmatpush1.bf16.msra.mxu0 0
    %944 = vmatprep.subr.bf16.mxu0 0
    %945 = vmatpush1.bf16.msra.mxu0 0
    %946 = vmatprep.subr.bf16.mxu0 0
    %947 = vmatpush1.bf16.msra.mxu0 0
    %948 = vmatprep.subr.bf16.mxu0 0
    %949 = vmatpush1.bf16.msra.mxu0 0
    %950 = vmatprep.subr.bf16.mxu0 0
    %951 = vmatpush1.bf16.msra.mxu0 0
    %952 = vmatprep.subr.bf16.mxu0 0
    %953 = vmatpush1.bf16.msra.mxu0 0
    %954 = vmatprep.subr.bf16.mxu0 0
    %955 = vmatpush1.bf16.msra.mxu0 0
    %956 = vmatprep.subr.bf16.mxu0 0
    %957 = vmatpush1.bf16.msra.mxu0 0
    %958 = vmatprep.subr.bf16.mxu0 0
    %959 = vmatpush1.bf16.msra.mxu0 0
    %960 = vmatprep.subr.bf16.mxu0 0
    %961 = vmatpush1.bf16.msra.mxu0 0
    %962 = vmatprep.mubr.bf16.mxu0 0
    %963 = vmatmul.mubr.bf16.gmra.mrb[0].mxu0 %v907
    %v964 = vpop.f32.mrb[0].mxu0
    %v965 = vadd.f32 0.0, %v964
    %v966 = vpop.f32.mrb[0].mxu0
    %v967 = vpop.f32.mrb[0].mxu0
    %v968 = vadd.f32 0.0, %v967
    %v969 = vpop.f32.mrb[0].mxu0
    %970 = vmatprep.mubr.bf16.mxu0 0
    %971 = vmatmul.mubr.bf16.gmra.mrb[0].mxu0 %v910
    %v972 = vpop.f32.mrb[0].mxu0
    %v973 = vadd.f32 0.0, %v972
    %v974 = vpop.f32.mrb[0].mxu0
    %v975 = vpop.f32.mrb[0].mxu0
    %v976 = vadd.f32 0.0, %v975
    %v977 = vpop.f32.mrb[0].mxu0
    %978 = vmatprep.mubr.bf16.mxu0 0
    %979 = vmatmul.mubr.bf16.gmra.mrb[0].mxu0 %v913
    %v980 = vpop.f32.mrb[0].mxu0
    %v981 = vadd.f32 0.0, %v980
    %v982 = vpop.f32.mrb[0].mxu0
    %v983 = vpop.f32.mrb[0].mxu0
    %v984 = vadd.f32 0.0, %v983
    %v985 = vpop.f32.mrb[0].mxu0
    %986 = vmatprep.mubr.bf16.mxu0 0
    %987 = vmatmul.mubr.bf16.gmra.mrb[0].mxu0 %v916
    %v988 = vpop.f32.mrb[0].mxu0
    %v989 = vadd.f32 0.0, %v988
    %v990 = vpop.f32.mrb[0].mxu0
    %v991 = vpop.f32.mrb[0].mxu0
    %v992 = vadd.f32 0.0, %v991
    %v993 = vpop.f32.mrb[0].mxu0
    %994 = vmatprep.mubr.bf16.mxu0 0
    %995 = vmatmul.mubr.bf16.gmra.mrb[0].mxu0 %v919
    %v996 = vpop.f32.mrb[0].mxu0
    %v997 = vadd.f32 0.0, %v996
    %v998 = vpop.f32.mrb[0].mxu0
    %v999 = vpop.f32.mrb[0].mxu0
    %v1000 = vadd.f32 0.0, %v999
    %v1001 = vpop.f32.mrb[0].mxu0
    %1002 = vmatprep.mubr.bf16.mxu0 0
    %1003 = vmatmul.mubr.bf16.gmra.mrb[0].mxu0 %v922
    %v1004 = vpop.f32.mrb[0].mxu0
    %v1005 = vadd.f32 0.0, %v1004
    %v1006 = vpop.f32.mrb[0].mxu0
    %v1007 = vpop.f32.mrb[0].mxu0
    %v1008 = vadd.f32 0.0, %v1007
    %v1009 = vpop.f32.mrb[0].mxu0
    %1010 = vmatprep.mubr.bf16.mxu0 0
    %1011 = vmatmul.mubr.bf16.gmra.mrb[0].mxu0 %v925
    %v1012 = vpop.f32.mrb[0].mxu0
    %v1013 = vadd.f32 0.0, %v1012
    %v1014 = vpop.f32.mrb[0].mxu0
    %v1015 = vpop.f32.mrb[0].mxu0
    %v1016 = vadd.f32 0.0, %v1015
    %v1017 = vpop.f32.mrb[0].mxu0
    %1018 = vmatprep.mubr.bf16.mxu0 0
    %1019 = vmatmul.mubr.bf16.gmra.mrb[0].mxu0 %v928
    %v1020 = vpop.f32.mrb[0].mxu0
    %v1021 = vadd.f32 0.0, %v1020
    %v1022 = vpop.f32.mrb[0].mxu0
    %v1023 = vpop.f32.mrb[0].mxu0
    %v1024 = vadd.f32 0.0, %v1023
    %v1025 = vpop.f32.mrb[0].mxu0
    %1026 = vdwg.mxu0
    %v1027 = vmax.f32 %v834, %v965
    %v1028 = vmax.f32 %v835, %v968
    %v1029 = vmax.f32 %v836, %v973
    %v1030 = vmax.f32 %v837, %v976
    %v1031 = vmax.f32 %v838, %v981
    %v1032 = vmax.f32 %v839, %v984
    %v1033 = vmax.f32 %v840, %v989
    %v1034 = vmax.f32 %v841, %v992
    %v1035 = vmax.f32 %v842, %v997
    %v1036 = vmax.f32 %v843, %v1000
    %v1037 = vmax.f32 %v844, %v1005
    %v1038 = vmax.f32 %v845, %v1008
    %v1039 = vmax.f32 %v846, %v1013
    %v1040 = vmax.f32 %v847, %v1016
    %v1041 = vmax.f32 %v848, %v1021
    %v1042 = vmax.f32 %v849, %v1024
    %1043 = vst [vmem:[#allocation2] sm:$0xff] %v1027
    %1044 = vst [vmem:[#allocation2 + $0x8] sm:$0xff] %v1028
    %1045 = vst [vmem:[#allocation2 + $0x10] sm:$0xff] %v1029
    %1046 = vst [vmem:[#allocation2 + $0x18] sm:$0xff] %v1030
    %1047 = vst [vmem:[#allocation2 + $0x20] sm:$0xff] %v1031
    %1048 = vst [vmem:[#allocation2 + $0x28] sm:$0xff] %v1032
    %1049 = vst [vmem:[#allocation2 + $0x30] sm:$0xff] %v1033
    %1050 = vst [vmem:[#allocation2 + $0x38] sm:$0xff] %v1034
    %1051 = vst [vmem:[#allocation2 + $0x40] sm:$0xff] %v1035
    %1052 = vst [vmem:[#allocation2 + $0x48] sm:$0xff] %v1036
    %1053 = vst [vmem:[#allocation2 + $0x50] sm:$0xff] %v1037
    %1054 = vst [vmem:[#allocation2 + $0x58] sm:$0xff] %v1038
    %1055 = vst [vmem:[#allocation2 + $0x60] sm:$0xff] %v1039
    %1056 = vst [vmem:[#allocation2 + $0x68] sm:$0xff] %v1040
    %1057 = vst [vmem:[#allocation2 + $0x70] sm:$0xff] %v1041
    %1058 = vst [vmem:[#allocation2 + $0x78] sm:$0xff] %v1042
    %v1059 = vld [vmem:[%s0 + $0x40] sm:$0xf]
    %v1060 = vld [vmem:[%s0 + $0x44] sm:$0xf]
    %v1061 = vld [vmem:[%s0 + $0x48] sm:$0xf]
    %v1062 = vld [vmem:[%s0 + $0x4c] sm:$0xf]
    %v1063 = vld [vmem:[%s0 + $0x50] sm:$0xf]
    %v1064 = vld [vmem:[%s0 + $0x54] sm:$0xf]
    %v1065 = vld [vmem:[%s0 + $0x58] sm:$0xf]
    %v1066 = vld [vmem:[%s0 + $0x5c] sm:$0xf]
    %v1067 = vld [vmem:[%s0 + $0x60] sm:$0xf]
    %v1068 = vld [vmem:[%s0 + $0x64] sm:$0xf]
    %v1069 = vld [vmem:[%s0 + $0x68] sm:$0xf]
    %v1070 = vld [vmem:[%s0 + $0x6c] sm:$0xf]
    %v1071 = vld [vmem:[%s0 + $0x70] sm:$0xf]
    %v1072 = vld [vmem:[%s0 + $0x74] sm:$0xf]
    %v1073 = vld [vmem:[%s0 + $0x78] sm:$0xf]
    %v1074 = vld [vmem:[%s0 + $0x7c] sm:$0xf]
    %v1075 = vld [vmem:[%s1] sm:$0xf]
    %v1076 = vld [vmem:[%s1 + $0x4] sm:$0xf]
    %v1077 = vld [vmem:[%s1 + $0x8] sm:$0xf]
    %v1078 = vld [vmem:[%s1 + $0xc] sm:$0xf]
    %v1095 = vunpack.c.l.b16 %v1059
    %v1096 = vunpack.c.l.b16 %v1060
    %v1097 = vunpack.c.l.b16 %v1061
    %v1098 = vunpack.c.l.b16 %v1062
    %v1099 = vunpack.c.l.b16 %v1063
    %v1100 = vunpack.c.l.b16 %v1064
    %v1101 = vunpack.c.l.b16 %v1065
    %v1102 = vunpack.c.l.b16 %v1066
    %v1103 = vunpack.c.l.b16 %v1067
    %v1104 = vunpack.c.l.b16 %v1068
    %v1105 = vunpack.c.l.b16 %v1069
    %v1106 = vunpack.c.l.b16 %v1070
    %v1107 = vunpack.c.l.b16 %v1071
    %v1108 = vunpack.c.l.b16 %v1072
    %v1109 = vunpack.c.l.b16 %v1073
    %v1110 = vunpack.c.l.b16 %v1074
    %v1111 = vpack.c.b16 %v1096, %v1095
    %v1112 = vpack.c.b16 %v1098, %v1097
    %v1113 = vpack.c.b16 %v1100, %v1099
    %v1114 = vpack.c.b16 %v1102, %v1101
    %v1115 = vpack.c.b16 %v1104, %v1103
    %v1116 = vpack.c.b16 %v1106, %v1105
    %v1117 = vpack.c.b16 %v1108, %v1107
    %v1118 = vpack.c.b16 %v1110, %v1109
    %v1123 = vunpack.c.l.b16 %v1075
    %v1124 = vunpack.c.l.b16 %v1076
    %v1125 = vunpack.c.l.b16 %v1077
    %v1126 = vunpack.c.l.b16 %v1078
    %v1127 = vpack.c.b16 %v1124, %v1123
    %v1128 = vpack.c.b16 %v1126, %v1125
    %v1132 = vsel %vm342, %v1111, 0
    %v1135 = vsel %vm342, %v1112, 0
    %v1138 = vsel %vm342, %v1113, 0
    %v1141 = vsel %vm342, %v1114, 0
    %v1144 = vsel %vm342, %v1115, 0
    %v1147 = vsel %vm342, %v1116, 0
    %v1150 = vsel %vm342, %v1117, 0
    %v1153 = vsel %vm342, %v1118, 0
    %1155 = vmatprep.subr.bf16.mxu0 0
    %1156 = vmatpush1.bf16.msra.mxu0 %v1127
    %1157 = vmatprep.subr.bf16.mxu0 0
    %1158 = vmatpush1.bf16.msra.mxu0 %v1128
    %1159 = vmatprep.subr.bf16.mxu0 0
    %1160 = vmatpush1.bf16.msra.mxu0 0
    %1161 = vmatprep.subr.bf16.mxu0 0
    %1162 = vmatpush1.bf16.msra.mxu0 0
    %1163 = vmatprep.subr.bf16.mxu0 0
    %1164 = vmatpush1.bf16.msra.mxu0 0
    %1165 = vmatprep.subr.bf16.mxu0 0
    %1166 = vmatpush1.bf16.msra.mxu0 0
    %1167 = vmatprep.subr.bf16.mxu0 0
    %1168 = vmatpush1.bf16.msra.mxu0 0
    %1169 = vmatprep.subr.bf16.mxu0 0
    %1170 = vmatpush1.bf16.msra.mxu0 0
    %1171 = vmatprep.subr.bf16.mxu0 0
    %1172 = vmatpush1.bf16.msra.mxu0 0
    %1173 = vmatprep.subr.bf16.mxu0 0
    %1174 = vmatpush1.bf16.msra.mxu0 0
    %1175 = vmatprep.subr.bf16.mxu0 0
    %1176 = vmatpush1.bf16.msra.mxu0 0
    %1177 = vmatprep.subr.bf16.mxu0 0
    %1178 = vmatpush1.bf16.msra.mxu0 0
    %1179 = vmatprep.subr.bf16.mxu0 0
    %1180 = vmatpush1.bf16.msra.mxu0 0
    %1181 = vmatprep.subr.bf16.mxu0 0
    %1182 = vmatpush1.bf16.msra.mxu0 0
    %1183 = vmatprep.subr.bf16.mxu0 0
    %1184 = vmatpush1.bf16.msra.mxu0 0
    %1185 = vmatprep.subr.bf16.mxu0 0
    %1186 = vmatpush1.bf16.msra.mxu0 0
    %1187 = vmatprep.mubr.bf16.mxu0 0
    %1188 = vmatmul.mubr.bf16.gmra.mrb[0].mxu0 %v1132
    %v1189 = vpop.f32.mrb[0].mxu0
    %v1190 = vadd.f32 0.0, %v1189
    %v1191 = vpop.f32.mrb[0].mxu0
    %v1192 = vpop.f32.mrb[0].mxu0
    %v1193 = vadd.f32 0.0, %v1192
    %v1194 = vpop.f32.mrb[0].mxu0
    %1195 = vmatprep.mubr.bf16.mxu0 0
    %1196 = vmatmul.mubr.bf16.gmra.mrb[0].mxu0 %v1135
    %v1197 = vpop.f32.mrb[0].mxu0
    %v1198 = vadd.f32 0.0, %v1197
    %v1199 = vpop.f32.mrb[0].mxu0
    %v1200 = vpop.f32.mrb[0].mxu0
    %v1201 = vadd.f32 0.0, %v1200
    %v1202 = vpop.f32.mrb[0].mxu0
    %1203 = vmatprep.mubr.bf16.mxu0 0
    %1204 = vmatmul.mubr.bf16.gmra.mrb[0].mxu0 %v1138
    %v1205 = vpop.f32.mrb[0].mxu0
    %v1206 = vadd.f32 0.0, %v1205
    %v1207 = vpop.f32.mrb[0].mxu0
    %v1208 = vpop.f32.mrb[0].mxu0
    %v1209 = vadd.f32 0.0, %v1208
    %v1210 = vpop.f32.mrb[0].mxu0
    %1211 = vmatprep.mubr.bf16.mxu0 0
    %1212 = vmatmul.mubr.bf16.gmra.mrb[0].mxu0 %v1141
    %v1213 = vpop.f32.mrb[0].mxu0
    %v1214 = vadd.f32 0.0, %v1213
    %v1215 = vpop.f32.mrb[0].mxu0
    %v1216 = vpop.f32.mrb[0].mxu0
    %v1217 = vadd.f32 0.0, %v1216
    %v1218 = vpop.f32.mrb[0].mxu0
    %1219 = vmatprep.mubr.bf16.mxu0 0
    %1220 = vmatmul.mubr.bf16.gmra.mrb[0].mxu0 %v1144
    %v1221 = vpop.f32.mrb[0].mxu0
    %v1222 = vadd.f32 0.0, %v1221
    %v1223 = vpop.f32.mrb[0].mxu0
    %v1224 = vpop.f32.mrb[0].mxu0
    %v1225 = vadd.f32 0.0, %v1224
    %v1226 = vpop.f32.mrb[0].mxu0
    %1227 = vmatprep.mubr.bf16.mxu0 0
    %1228 = vmatmul.mubr.bf16.gmra.mrb[0].mxu0 %v1147
    %v1229 = vpop.f32.mrb[0].mxu0
    %v1230 = vadd.f32 0.0, %v1229
    %v1231 = vpop.f32.mrb[0].mxu0
    %v1232 = vpop.f32.mrb[0].mxu0
    %v1233 = vadd.f32 0.0, %v1232
    %v1234 = vpop.f32.mrb[0].mxu0
    %1235 = vmatprep.mubr.bf16.mxu0 0
    %1236 = vmatmul.mubr.bf16.gmra.mrb[0].mxu0 %v1150
    %v1237 = vpop.f32.mrb[0].mxu0
    %v1238 = vadd.f32 0.0, %v1237
    %v1239 = vpop.f32.mrb[0].mxu0
    %v1240 = vpop.f32.mrb[0].mxu0
    %v1241 = vadd.f32 0.0, %v1240
    %v1242 = vpop.f32.mrb[0].mxu0
    %1243 = vmatprep.mubr.bf16.mxu0 0
    %1244 = vmatmul.mubr.bf16.gmra.mrb[0].mxu0 %v1153
    %v1245 = vpop.f32.mrb[0].mxu0
    %v1246 = vadd.f32 0.0, %v1245
    %v1247 = vpop.f32.mrb[0].mxu0
    %v1248 = vpop.f32.mrb[0].mxu0
    %v1249 = vadd.f32 0.0, %v1248
    %v1250 = vpop.f32.mrb[0].mxu0
    %1251 = vdwg.mxu0
    %v1252 = vld [vmem:[%s0 + $0x140] sm:$0xf]
    %v1253 = vld [vmem:[%s0 + $0x144] sm:$0xf]
    %v1254 = vld [vmem:[%s0 + $0x148] sm:$0xf]
    %v1255 = vld [vmem:[%s0 + $0x14c] sm:$0xf]
    %v1256 = vld [vmem:[%s0 + $0x150] sm:$0xf]
    %v1257 = vld [vmem:[%s0 + $0x154] sm:$0xf]
    %v1258 = vld [vmem:[%s0 + $0x158] sm:$0xf]
    %v1259 = vld [vmem:[%s0 + $0x15c] sm:$0xf]
    %v1260 = vld [vmem:[%s0 + $0x160] sm:$0xf]
    %v1261 = vld [vmem:[%s0 + $0x164] sm:$0xf]
    %v1262 = vld [vmem:[%s0 + $0x168] sm:$0xf]
    %v1263 = vld [vmem:[%s0 + $0x16c] sm:$0xf]
    %v1264 = vld [vmem:[%s0 + $0x170] sm:$0xf]
    %v1265 = vld [vmem:[%s0 + $0x174] sm:$0xf]
    %v1266 = vld [vmem:[%s0 + $0x178] sm:$0xf]
    %v1267 = vld [vmem:[%s0 + $0x17c] sm:$0xf]
    %v1284 = vunpack.c.l.b16 %v1252
    %v1285 = vunpack.c.l.b16 %v1253
    %v1286 = vunpack.c.l.b16 %v1254
    %v1287 = vunpack.c.l.b16 %v1255
    %v1288 = vunpack.c.l.b16 %v1256
    %v1289 = vunpack.c.l.b16 %v1257
    %v1290 = vunpack.c.l.b16 %v1258
    %v1291 = vunpack.c.l.b16 %v1259
    %v1292 = vunpack.c.l.b16 %v1260
    %v1293 = vunpack.c.l.b16 %v1261
    %v1294 = vunpack.c.l.b16 %v1262
    %v1295 = vunpack.c.l.b16 %v1263
    %v1296 = vunpack.c.l.b16 %v1264
    %v1297 = vunpack.c.l.b16 %v1265
    %v1298 = vunpack.c.l.b16 %v1266
    %v1299 = vunpack.c.l.b16 %v1267
    %v1300 = vpack.c.b16 %v1285, %v1284
    %v1301 = vpack.c.b16 %v1287, %v1286
    %v1302 = vpack.c.b16 %v1289, %v1288
    %v1303 = vpack.c.b16 %v1291, %v1290
    %v1304 = vpack.c.b16 %v1293, %v1292
    %v1305 = vpack.c.b16 %v1295, %v1294
    %v1306 = vpack.c.b16 %v1297, %v1296
    %v1307 = vpack.c.b16 %v1299, %v1298
    %v1309 = vsel %vm342, %v1300, 0
    %v1312 = vsel %vm342, %v1301, 0
    %v1315 = vsel %vm342, %v1302, 0
    %v1318 = vsel %vm342, %v1303, 0
    %v1321 = vsel %vm342, %v1304, 0
    %v1324 = vsel %vm342, %v1305, 0
    %v1327 = vsel %vm342, %v1306, 0
    %v1330 = vsel %vm342, %v1307, 0
    %1332 = vmatprep.subr.bf16.mxu0 0
    %1333 = vmatpush1.bf16.msra.mxu0 %v1127
    %1334 = vmatprep.subr.bf16.mxu0 0
    %1335 = vmatpush1.bf16.msra.mxu0 %v1128
    %1336 = vmatprep.subr.bf16.mxu0 0
    %1337 = vmatpush1.bf16.msra.mxu0 0
    %1338 = vmatprep.subr.bf16.mxu0 0
    %1339 = vmatpush1.bf16.msra.mxu0 0
    %1340 = vmatprep.subr.bf16.mxu0 0
    %1341 = vmatpush1.bf16.msra.mxu0 0
    %1342 = vmatprep.subr.bf16.mxu0 0
    %1343 = vmatpush1.bf16.msra.mxu0 0
    %1344 = vmatprep.subr.bf16.mxu0 0
    %1345 = vmatpush1.bf16.msra.mxu0 0
    %1346 = vmatprep.subr.bf16.mxu0 0
    %1347 = vmatpush1.bf16.msra.mxu0 0
    %1348 = vmatprep.subr.bf16.mxu0 0
    %1349 = vmatpush1.bf16.msra.mxu0 0
    %1350 = vmatprep.subr.bf16.mxu0 0
    %1351 = vmatpush1.bf16.msra.mxu0 0
    %1352 = vmatprep.subr.bf16.mxu0 0
    %1353 = vmatpush1.bf16.msra.mxu0 0
    %1354 = vmatprep.subr.bf16.mxu0 0
    %1355 = vmatpush1.bf16.msra.mxu0 0
    %1356 = vmatprep.subr.bf16.mxu0 0
    %1357 = vmatpush1.bf16.msra.mxu0 0
    %1358 = vmatprep.subr.bf16.mxu0 0
    %1359 = vmatpush1.bf16.msra.mxu0 0
    %1360 = vmatprep.subr.bf16.mxu0 0
    %1361 = vmatpush1.bf16.msra.mxu0 0
    %1362 = vmatprep.subr.bf16.mxu0 0
    %1363 = vmatpush1.bf16.msra.mxu0 0
    %1364 = vmatprep.mubr.bf16.mxu0 0
    %1365 = vmatmul.mubr.bf16.gmra.mrb[0].mxu0 %v1309
    %v1366 = vpop.f32.mrb[0].mxu0
    %v1367 = vadd.f32 0.0, %v1366
    %v1368 = vpop.f32.mrb[0].mxu0
    %v1369 = vpop.f32.mrb[0].mxu0
    %v1370 = vadd.f32 0.0, %v1369
    %v1371 = vpop.f32.mrb[0].mxu0
    %1372 = vmatprep.mubr.bf16.mxu0 0
    %1373 = vmatmul.mubr.bf16.gmra.mrb[0].mxu0 %v1312
    %v1374 = vpop.f32.mrb[0].mxu0
    %v1375 = vadd.f32 0.0, %v1374
    %v1376 = vpop.f32.mrb[0].mxu0
    %v1377 = vpop.f32.mrb[0].mxu0
    %v1378 = vadd.f32 0.0, %v1377
    %v1379 = vpop.f32.mrb[0].mxu0
    %1380 = vmatprep.mubr.bf16.mxu0 0
    %1381 = vmatmul.mubr.bf16.gmra.mrb[0].mxu0 %v1315
    %v1382 = vpop.f32.mrb[0].mxu0
    %v1383 = vadd.f32 0.0, %v1382
    %v1384 = vpop.f32.mrb[0].mxu0
    %v1385 = vpop.f32.mrb[0].mxu0
    %v1386 = vadd.f32 0.0, %v1385
    %v1387 = vpop.f32.mrb[0].mxu0
    %1388 = vmatprep.mubr.bf16.mxu0 0
    %1389 = vmatmul.mubr.bf16.gmra.mrb[0].mxu0 %v1318
    %v1390 = vpop.f32.mrb[0].mxu0
    %v1391 = vadd.f32 0.0, %v1390
    %v1392 = vpop.f32.mrb[0].mxu0
    %v1393 = vpop.f32.mrb[0].mxu0
    %v1394 = vadd.f32 0.0, %v1393
    %v1395 = vpop.f32.mrb[0].mxu0
    %1396 = vmatprep.mubr.bf16.mxu0 0
    %1397 = vmatmul.mubr.bf16.gmra.mrb[0].mxu0 %v1321
    %v1398 = vpop.f32.mrb[0].mxu0
    %v1399 = vadd.f32 0.0, %v1398
    %v1400 = vpop.f32.mrb[0].mxu0
    %v1401 = vpop.f32.mrb[0].mxu0
    %v1402 = vadd.f32 0.0, %v1401
    %v1403 = vpop.f32.mrb[0].mxu0
    %1404 = vmatprep.mubr.bf16.mxu0 0
    %1405 = vmatmul.mubr.bf16.gmra.mrb[0].mxu0 %v1324
    %v1406 = vpop.f32.mrb[0].mxu0
    %v1407 = vadd.f32 0.0, %v1406
    %v1408 = vpop.f32.mrb[0].mxu0
    %v1409 = vpop.f32.mrb[0].mxu0
    %v1410 = vadd.f32 0.0, %v1409
    %v1411 = vpop.f32.mrb[0].mxu0
    %1412 = vmatprep.mubr.bf16.mxu0 0
    %1413 = vmatmul.mubr.bf16.gmra.mrb[0].mxu0 %v1327
    %v1414 = vpop.f32.mrb[0].mxu0
    %v1415 = vadd.f32 0.0, %v1414
    %v1416 = vpop.f32.mrb[0].mxu0
    %v1417 = vpop.f32.mrb[0].mxu0
    %v1418 = vadd.f32 0.0, %v1417
    %v1419 = vpop.f32.mrb[0].mxu0
    %1420 = vmatprep.mubr.bf16.mxu0 0
    %1421 = vmatmul.mubr.bf16.gmra.mrb[0].mxu0 %v1330
    %v1422 = vpop.f32.mrb[0].mxu0
    %v1423 = vadd.f32 0.0, %v1422
    %v1424 = vpop.f32.mrb[0].mxu0
    %v1425 = vpop.f32.mrb[0].mxu0
    %v1426 = vadd.f32 0.0, %v1425
    %v1427 = vpop.f32.mrb[0].mxu0
    %1428 = vdwg.mxu0
    %v1429 = vmax.f32 %v1190, %v1367
    %v1430 = vmax.f32 %v1193, %v1370
    %v1431 = vmax.f32 %v1198, %v1375
    %v1432 = vmax.f32 %v1201, %v1378
    %v1433 = vmax.f32 %v1206, %v1383
    %v1434 = vmax.f32 %v1209, %v1386
    %v1435 = vmax.f32 %v1214, %v1391
    %v1436 = vmax.f32 %v1217, %v1394
    %v1437 = vmax.f32 %v1222, %v1399
    %v1438 = vmax.f32 %v1225, %v1402
    %v1439 = vmax.f32 %v1230, %v1407
    %v1440 = vmax.f32 %v1233, %v1410
    %v1441 = vmax.f32 %v1238, %v1415
    %v1442 = vmax.f32 %v1241, %v1418
    %v1443 = vmax.f32 %v1246, %v1423
    %v1444 = vmax.f32 %v1249, %v1426
    %v1445 = vld [vmem:[%s0 + $0x240] sm:$0xf]
    %v1446 = vld [vmem:[%s0 + $0x244] sm:$0xf]
    %v1447 = vld [vmem:[%s0 + $0x248] sm:$0xf]
    %v1448 = vld [vmem:[%s0 + $0x24c] sm:$0xf]
    %v1449 = vld [vmem:[%s0 + $0x250] sm:$0xf]
    %v1450 = vld [vmem:[%s0 + $0x254] sm:$0xf]
    %v1451 = vld [vmem:[%s0 + $0x258] sm:$0xf]
    %v1452 = vld [vmem:[%s0 + $0x25c] sm:$0xf]
    %v1453 = vld [vmem:[%s0 + $0x260] sm:$0xf]
    %v1454 = vld [vmem:[%s0 + $0x264] sm:$0xf]
    %v1455 = vld [vmem:[%s0 + $0x268] sm:$0xf]
    %v1456 = vld [vmem:[%s0 + $0x26c] sm:$0xf]
    %v1457 = vld [vmem:[%s0 + $0x270] sm:$0xf]
    %v1458 = vld [vmem:[%s0 + $0x274] sm:$0xf]
    %v1459 = vld [vmem:[%s0 + $0x278] sm:$0xf]
    %v1460 = vld [vmem:[%s0 + $0x27c] sm:$0xf]
    %v1477 = vunpack.c.l.b16 %v1445
    %v1478 = vunpack.c.l.b16 %v1446
    %v1479 = vunpack.c.l.b16 %v1447
    %v1480 = vunpack.c.l.b16 %v1448
    %v1481 = vunpack.c.l.b16 %v1449
    %v1482 = vunpack.c.l.b16 %v1450
    %v1483 = vunpack.c.l.b16 %v1451
    %v1484 = vunpack.c.l.b16 %v1452
    %v1485 = vunpack.c.l.b16 %v1453
    %v1486 = vunpack.c.l.b16 %v1454
    %v1487 = vunpack.c.l.b16 %v1455
    %v1488 = vunpack.c.l.b16 %v1456
    %v1489 = vunpack.c.l.b16 %v1457
    %v1490 = vunpack.c.l.b16 %v1458
    %v1491 = vunpack.c.l.b16 %v1459
    %v1492 = vunpack.c.l.b16 %v1460
    %v1493 = vpack.c.b16 %v1478, %v1477
    %v1494 = vpack.c.b16 %v1480, %v1479
    %v1495 = vpack.c.b16 %v1482, %v1481
    %v1496 = vpack.c.b16 %v1484, %v1483
    %v1497 = vpack.c.b16 %v1486, %v1485
    %v1498 = vpack.c.b16 %v1488, %v1487
    %v1499 = vpack.c.b16 %v1490, %v1489
    %v1500 = vpack.c.b16 %v1492, %v1491
    %v1502 = vsel %vm342, %v1493, 0
    %v1505 = vsel %vm342, %v1494, 0
    %v1508 = vsel %vm342, %v1495, 0
    %v1511 = vsel %vm342, %v1496, 0
    %v1514 = vsel %vm342, %v1497, 0
    %v1517 = vsel %vm342, %v1498, 0
    %v1520 = vsel %vm342, %v1499, 0
    %v1523 = vsel %vm342, %v1500, 0
    %1525 = vmatprep.subr.bf16.mxu0 0
    %1526 = vmatpush1.bf16.msra.mxu0 %v1127
    %1527 = vmatprep.subr.bf16.mxu0 0
    %1528 = vmatpush1.bf16.msra.mxu0 %v1128
    %1529 = vmatprep.subr.bf16.mxu0 0
    %1530 = vmatpush1.bf16.msra.mxu0 0
    %1531 = vmatprep.subr.bf16.mxu0 0
    %1532 = vmatpush1.bf16.msra.mxu0 0
    %1533 = vmatprep.subr.bf16.mxu0 0
    %1534 = vmatpush1.bf16.msra.mxu0 0
    %1535 = vmatprep.subr.bf16.mxu0 0
    %1536 = vmatpush1.bf16.msra.mxu0 0
    %1537 = vmatprep.subr.bf16.mxu0 0
    %1538 = vmatpush1.bf16.msra.mxu0 0
    %1539 = vmatprep.subr.bf16.mxu0 0
    %1540 = vmatpush1.bf16.msra.mxu0 0
    %1541 = vmatprep.subr.bf16.mxu0 0
    %1542 = vmatpush1.bf16.msra.mxu0 0
    %1543 = vmatprep.subr.bf16.mxu0 0
    %1544 = vmatpush1.bf16.msra.mxu0 0
    %1545 = vmatprep.subr.bf16.mxu0 0
    %1546 = vmatpush1.bf16.msra.mxu0 0
    %1547 = vmatprep.subr.bf16.mxu0 0
    %1548 = vmatpush1.bf16.msra.mxu0 0
    %1549 = vmatprep.subr.bf16.mxu0 0
    %1550 = vmatpush1.bf16.msra.mxu0 0
    %1551 = vmatprep.subr.bf16.mxu0 0
    %1552 = vmatpush1.bf16.msra.mxu0 0
    %1553 = vmatprep.subr.bf16.mxu0 0
    %1554 = vmatpush1.bf16.msra.mxu0 0
    %1555 = vmatprep.subr.bf16.mxu0 0
    %1556 = vmatpush1.bf16.msra.mxu0 0
    %1557 = vmatprep.mubr.bf16.mxu0 0
    %1558 = vmatmul.mubr.bf16.gmra.mrb[0].mxu0 %v1502
    %v1559 = vpop.f32.mrb[0].mxu0
    %v1560 = vadd.f32 0.0, %v1559
    %v1561 = vpop.f32.mrb[0].mxu0
    %v1562 = vpop.f32.mrb[0].mxu0
    %v1563 = vadd.f32 0.0, %v1562
    %v1564 = vpop.f32.mrb[0].mxu0
    %1565 = vmatprep.mubr.bf16.mxu0 0
    %1566 = vmatmul.mubr.bf16.gmra.mrb[0].mxu0 %v1505
    %v1567 = vpop.f32.mrb[0].mxu0
    %v1568 = vadd.f32 0.0, %v1567
    %v1569 = vpop.f32.mrb[0].mxu0
    %v1570 = vpop.f32.mrb[0].mxu0
    %v1571 = vadd.f32 0.0, %v1570
    %v1572 = vpop.f32.mrb[0].mxu0
    %1573 = vmatprep.mubr.bf16.mxu0 0
    %1574 = vmatmul.mubr.bf16.gmra.mrb[0].mxu0 %v1508
    %v1575 = vpop.f32.mrb[0].mxu0
    %v1576 = vadd.f32 0.0, %v1575
    %v1577 = vpop.f32.mrb[0].mxu0
    %v1578 = vpop.f32.mrb[0].mxu0
    %v1579 = vadd.f32 0.0, %v1578
    %v1580 = vpop.f32.mrb[0].mxu0
    %1581 = vmatprep.mubr.bf16.mxu0 0
    %1582 = vmatmul.mubr.bf16.gmra.mrb[0].mxu0 %v1511
    %v1583 = vpop.f32.mrb[0].mxu0
    %v1584 = vadd.f32 0.0, %v1583
    %v1585 = vpop.f32.mrb[0].mxu0
    %v1586 = vpop.f32.mrb[0].mxu0
    %v1587 = vadd.f32 0.0, %v1586
    %v1588 = vpop.f32.mrb[0].mxu0
    %1589 = vmatprep.mubr.bf16.mxu0 0
    %1590 = vmatmul.mubr.bf16.gmra.mrb[0].mxu0 %v1514
    %v1591 = vpop.f32.mrb[0].mxu0
    %v1592 = vadd.f32 0.0, %v1591
    %v1593 = vpop.f32.mrb[0].mxu0
    %v1594 = vpop.f32.mrb[0].mxu0
    %v1595 = vadd.f32 0.0, %v1594
    %v1596 = vpop.f32.mrb[0].mxu0
    %1597 = vmatprep.mubr.bf16.mxu0 0
    %1598 = vmatmul.mubr.bf16.gmra.mrb[0].mxu0 %v1517
    %v1599 = vpop.f32.mrb[0].mxu0
    %v1600 = vadd.f32 0.0, %v1599
    %v1601 = vpop.f32.mrb[0].mxu0
    %v1602 = vpop.f32.mrb[0].mxu0
    %v1603 = vadd.f32 0.0, %v1602
    %v1604 = vpop.f32.mrb[0].mxu0
    %1605 = vmatprep.mubr.bf16.mxu0 0
    %1606 = vmatmul.mubr.bf16.gmra.mrb[0].mxu0 %v1520
    %v1607 = vpop.f32.mrb[0].mxu0
    %v1608 = vadd.f32 0.0, %v1607
    %v1609 = vpop.f32.mrb[0].mxu0
    %v1610 = vpop.f32.mrb[0].mxu0
    %v1611 = vadd.f32 0.0, %v1610
    %v1612 = vpop.f32.mrb[0].mxu0
    %1613 = vmatprep.mubr.bf16.mxu0 0
    %1614 = vmatmul.mubr.bf16.gmra.mrb[0].mxu0 %v1523
    %v1615 = vpop.f32.mrb[0].mxu0
    %v1616 = vadd.f32 0.0, %v1615
    %v1617 = vpop.f32.mrb[0].mxu0
    %v1618 = vpop.f32.mrb[0].mxu0
    %v1619 = vadd.f32 0.0, %v1618
    %v1620 = vpop.f32.mrb[0].mxu0
    %1621 = vdwg.mxu0
    %v1622 = vmax.f32 %v1429, %v1560
    %v1623 = vmax.f32 %v1430, %v1563
    %v1624 = vmax.f32 %v1431, %v1568
    %v1625 = vmax.f32 %v1432, %v1571
    %v1626 = vmax.f32 %v1433, %v1576
    %v1627 = vmax.f32 %v1434, %v1579
    %v1628 = vmax.f32 %v1435, %v1584
    %v1629 = vmax.f32 %v1436, %v1587
    %v1630 = vmax.f32 %v1437, %v1592
    %v1631 = vmax.f32 %v1438, %v1595
    %v1632 = vmax.f32 %v1439, %v1600
    %v1633 = vmax.f32 %v1440, %v1603
    %v1634 = vmax.f32 %v1441, %v1608
    %v1635 = vmax.f32 %v1442, %v1611
    %v1636 = vmax.f32 %v1443, %v1616
    %v1637 = vmax.f32 %v1444, %v1619
    %v1638 = vld [vmem:[%s0 + $0x340] sm:$0xf]
    %v1639 = vld [vmem:[%s0 + $0x344] sm:$0xf]
    %v1640 = vld [vmem:[%s0 + $0x348] sm:$0xf]
    %v1641 = vld [vmem:[%s0 + $0x34c] sm:$0xf]
    %v1642 = vld [vmem:[%s0 + $0x350] sm:$0xf]
    %v1643 = vld [vmem:[%s0 + $0x354] sm:$0xf]
    %v1644 = vld [vmem:[%s0 + $0x358] sm:$0xf]
    %v1645 = vld [vmem:[%s0 + $0x35c] sm:$0xf]
    %v1646 = vld [vmem:[%s0 + $0x360] sm:$0xf]
    %v1647 = vld [vmem:[%s0 + $0x364] sm:$0xf]
    %v1648 = vld [vmem:[%s0 + $0x368] sm:$0xf]
    %v1649 = vld [vmem:[%s0 + $0x36c] sm:$0xf]
    %v1650 = vld [vmem:[%s0 + $0x370] sm:$0xf]
    %v1651 = vld [vmem:[%s0 + $0x374] sm:$0xf]
    %v1652 = vld [vmem:[%s0 + $0x378] sm:$0xf]
    %v1653 = vld [vmem:[%s0 + $0x37c] sm:$0xf]
    %v1670 = vunpack.c.l.b16 %v1638
    %v1671 = vunpack.c.l.b16 %v1639
    %v1672 = vunpack.c.l.b16 %v1640
    %v1673 = vunpack.c.l.b16 %v1641
    %v1674 = vunpack.c.l.b16 %v1642
    %v1675 = vunpack.c.l.b16 %v1643
    %v1676 = vunpack.c.l.b16 %v1644
    %v1677 = vunpack.c.l.b16 %v1645
    %v1678 = vunpack.c.l.b16 %v1646
    %v1679 = vunpack.c.l.b16 %v1647
    %v1680 = vunpack.c.l.b16 %v1648
    %v1681 = vunpack.c.l.b16 %v1649
    %v1682 = vunpack.c.l.b16 %v1650
    %v1683 = vunpack.c.l.b16 %v1651
    %v1684 = vunpack.c.l.b16 %v1652
    %v1685 = vunpack.c.l.b16 %v1653
    %v1686 = vpack.c.b16 %v1671, %v1670
    %v1687 = vpack.c.b16 %v1673, %v1672
    %v1688 = vpack.c.b16 %v1675, %v1674
    %v1689 = vpack.c.b16 %v1677, %v1676
    %v1690 = vpack.c.b16 %v1679, %v1678
    %v1691 = vpack.c.b16 %v1681, %v1680
    %v1692 = vpack.c.b16 %v1683, %v1682
    %v1693 = vpack.c.b16 %v1685, %v1684
    %v1695 = vsel %vm342, %v1686, 0
    %v1698 = vsel %vm342, %v1687, 0
    %v1701 = vsel %vm342, %v1688, 0
    %v1704 = vsel %vm342, %v1689, 0
    %v1707 = vsel %vm342, %v1690, 0
    %v1710 = vsel %vm342, %v1691, 0
    %v1713 = vsel %vm342, %v1692, 0
    %v1716 = vsel %vm342, %v1693, 0
    %1718 = vmatprep.subr.bf16.mxu0 0
    %1719 = vmatpush1.bf16.msra.mxu0 %v1127
    %1720 = vmatprep.subr.bf16.mxu0 0
    %1721 = vmatpush1.bf16.msra.mxu0 %v1128
    %1722 = vmatprep.subr.bf16.mxu0 0
    %1723 = vmatpush1.bf16.msra.mxu0 0
    %1724 = vmatprep.subr.bf16.mxu0 0
    %1725 = vmatpush1.bf16.msra.mxu0 0
    %1726 = vmatprep.subr.bf16.mxu0 0
    %1727 = vmatpush1.bf16.msra.mxu0 0
    %1728 = vmatprep.subr.bf16.mxu0 0
    %1729 = vmatpush1.bf16.msra.mxu0 0
    %1730 = vmatprep.subr.bf16.mxu0 0
    %1731 = vmatpush1.bf16.msra.mxu0 0
    %1732 = vmatprep.subr.bf16.mxu0 0
    %1733 = vmatpush1.bf16.msra.mxu0 0
    %1734 = vmatprep.subr.bf16.mxu0 0
    %1735 = vmatpush1.bf16.msra.mxu0 0
    %1736 = vmatprep.subr.bf16.mxu0 0
    %1737 = vmatpush1.bf16.msra.mxu0 0
    %1738 = vmatprep.subr.bf16.mxu0 0
    %1739 = vmatpush1.bf16.msra.mxu0 0
    %1740 = vmatprep.subr.bf16.mxu0 0
    %1741 = vmatpush1.bf16.msra.mxu0 0
    %1742 = vmatprep.subr.bf16.mxu0 0
    %1743 = vmatpush1.bf16.msra.mxu0 0
    %1744 = vmatprep.subr.bf16.mxu0 0
    %1745 = vmatpush1.bf16.msra.mxu0 0
    %1746 = vmatprep.subr.bf16.mxu0 0
    %1747 = vmatpush1.bf16.msra.mxu0 0
    %1748 = vmatprep.subr.bf16.mxu0 0
    %1749 = vmatpush1.bf16.msra.mxu0 0
    %1750 = vmatprep.mubr.bf16.mxu0 0
    %1751 = vmatmul.mubr.bf16.gmra.mrb[0].mxu0 %v1695
    %v1752 = vpop.f32.mrb[0].mxu0
    %v1753 = vadd.f32 0.0, %v1752
    %v1754 = vpop.f32.mrb[0].mxu0
    %v1755 = vpop.f32.mrb[0].mxu0
    %v1756 = vadd.f32 0.0, %v1755
    %v1757 = vpop.f32.mrb[0].mxu0
    %1758 = vmatprep.mubr.bf16.mxu0 0
    %1759 = vmatmul.mubr.bf16.gmra.mrb[0].mxu0 %v1698
    %v1760 = vpop.f32.mrb[0].mxu0
    %v1761 = vadd.f32 0.0, %v1760
    %v1762 = vpop.f32.mrb[0].mxu0
    %v1763 = vpop.f32.mrb[0].mxu0
    %v1764 = vadd.f32 0.0, %v1763
    %v1765 = vpop.f32.mrb[0].mxu0
    %1766 = vmatprep.mubr.bf16.mxu0 0
    %1767 = vmatmul.mubr.bf16.gmra.mrb[0].mxu0 %v1701
    %v1768 = vpop.f32.mrb[0].mxu0
    %v1769 = vadd.f32 0.0, %v1768
    %v1770 = vpop.f32.mrb[0].mxu0
    %v1771 = vpop.f32.mrb[0].mxu0
    %v1772 = vadd.f32 0.0, %v1771
    %v1773 = vpop.f32.mrb[0].mxu0
    %1774 = vmatprep.mubr.bf16.mxu0 0
    %1775 = vmatmul.mubr.bf16.gmra.mrb[0].mxu0 %v1704
    %v1776 = vpop.f32.mrb[0].mxu0
    %v1777 = vadd.f32 0.0, %v1776
    %v1778 = vpop.f32.mrb[0].mxu0
    %v1779 = vpop.f32.mrb[0].mxu0
    %v1780 = vadd.f32 0.0, %v1779
    %v1781 = vpop.f32.mrb[0].mxu0
    %1782 = vmatprep.mubr.bf16.mxu0 0
    %1783 = vmatmul.mubr.bf16.gmra.mrb[0].mxu0 %v1707
    %v1784 = vpop.f32.mrb[0].mxu0
    %v1785 = vadd.f32 0.0, %v1784
    %v1786 = vpop.f32.mrb[0].mxu0
    %v1787 = vpop.f32.mrb[0].mxu0
    %v1788 = vadd.f32 0.0, %v1787
    %v1789 = vpop.f32.mrb[0].mxu0
    %1790 = vmatprep.mubr.bf16.mxu0 0
    %1791 = vmatmul.mubr.bf16.gmra.mrb[0].mxu0 %v1710
    %v1792 = vpop.f32.mrb[0].mxu0
    %v1793 = vadd.f32 0.0, %v1792
    %v1794 = vpop.f32.mrb[0].mxu0
    %v1795 = vpop.f32.mrb[0].mxu0
    %v1796 = vadd.f32 0.0, %v1795
    %v1797 = vpop.f32.mrb[0].mxu0
    %1798 = vmatprep.mubr.bf16.mxu0 0
    %1799 = vmatmul.mubr.bf16.gmra.mrb[0].mxu0 %v1713
    %v1800 = vpop.f32.mrb[0].mxu0
    %v1801 = vadd.f32 0.0, %v1800
    %v1802 = vpop.f32.mrb[0].mxu0
    %v1803 = vpop.f32.mrb[0].mxu0
    %v1804 = vadd.f32 0.0, %v1803
    %v1805 = vpop.f32.mrb[0].mxu0
    %1806 = vmatprep.mubr.bf16.mxu0 0
    %1807 = vmatmul.mubr.bf16.gmra.mrb[0].mxu0 %v1716
    %v1808 = vpop.f32.mrb[0].mxu0
    %v1809 = vadd.f32 0.0, %v1808
    %v1810 = vpop.f32.mrb[0].mxu0
    %v1811 = vpop.f32.mrb[0].mxu0
    %v1812 = vadd.f32 0.0, %v1811
    %v1813 = vpop.f32.mrb[0].mxu0
    %1814 = vdwg.mxu0
    %v1815 = vmax.f32 %v1622, %v1753
    %v1816 = vmax.f32 %v1623, %v1756
    %v1817 = vmax.f32 %v1624, %v1761
    %v1818 = vmax.f32 %v1625, %v1764
    %v1819 = vmax.f32 %v1626, %v1769
    %v1820 = vmax.f32 %v1627, %v1772
    %v1821 = vmax.f32 %v1628, %v1777
    %v1822 = vmax.f32 %v1629, %v1780
    %v1823 = vmax.f32 %v1630, %v1785
    %v1824 = vmax.f32 %v1631, %v1788
    %v1825 = vmax.f32 %v1632, %v1793
    %v1826 = vmax.f32 %v1633, %v1796
    %v1827 = vmax.f32 %v1634, %v1801
    %v1828 = vmax.f32 %v1635, %v1804
    %v1829 = vmax.f32 %v1636, %v1809
    %v1830 = vmax.f32 %v1637, %v1812
    %1831 = vst [vmem:[#allocation2 + $0x80] sm:$0xff] %v1815
    %1832 = vst [vmem:[#allocation2 + $0x88] sm:$0xff] %v1816
    %1833 = vst [vmem:[#allocation2 + $0x90] sm:$0xff] %v1817
    %1834 = vst [vmem:[#allocation2 + $0x98] sm:$0xff] %v1818
    %1835 = vst [vmem:[#allocation2 + $0xa0] sm:$0xff] %v1819
    %1836 = vst [vmem:[#allocation2 + $0xa8] sm:$0xff] %v1820
    %1837 = vst [vmem:[#allocation2 + $0xb0] sm:$0xff] %v1821
    %1838 = vst [vmem:[#allocation2 + $0xb8] sm:$0xff] %v1822
    %1839 = vst [vmem:[#allocation2 + $0xc0] sm:$0xff] %v1823
    %1840 = vst [vmem:[#allocation2 + $0xc8] sm:$0xff] %v1824
    %1841 = vst [vmem:[#allocation2 + $0xd0] sm:$0xff] %v1825
    %1842 = vst [vmem:[#allocation2 + $0xd8] sm:$0xff] %v1826
    %1843 = vst [vmem:[#allocation2 + $0xe0] sm:$0xff] %v1827
    %1844 = vst [vmem:[#allocation2 + $0xe8] sm:$0xff] %v1828
    %1845 = vst [vmem:[#allocation2 + $0xf0] sm:$0xff] %v1829
    %1846 = vst [vmem:[#allocation2 + $0xf8] sm:$0xff] %v1830
    %v1847 = vld [vmem:[%s0 + $0x80] sm:$0xf]
    %v1848 = vld [vmem:[%s0 + $0x84] sm:$0xf]
    %v1849 = vld [vmem:[%s0 + $0x88] sm:$0xf]
    %v1850 = vld [vmem:[%s0 + $0x8c] sm:$0xf]
    %v1851 = vld [vmem:[%s0 + $0x90] sm:$0xf]
    %v1852 = vld [vmem:[%s0 + $0x94] sm:$0xf]
    %v1853 = vld [vmem:[%s0 + $0x98] sm:$0xf]
    %v1854 = vld [vmem:[%s0 + $0x9c] sm:$0xf]
    %v1855 = vld [vmem:[%s0 + $0xa0] sm:$0xf]
    %v1856 = vld [vmem:[%s0 + $0xa4] sm:$0xf]
    %v1857 = vld [vmem:[%s0 + $0xa8] sm:$0xf]
    %v1858 = vld [vmem:[%s0 + $0xac] sm:$0xf]
    %v1859 = vld [vmem:[%s0 + $0xb0] sm:$0xf]
    %v1860 = vld [vmem:[%s0 + $0xb4] sm:$0xf]
    %v1861 = vld [vmem:[%s0 + $0xb8] sm:$0xf]
    %v1862 = vld [vmem:[%s0 + $0xbc] sm:$0xf]
    %v1863 = vld [vmem:[%s1] sm:$0xf]
    %v1864 = vld [vmem:[%s1 + $0x4] sm:$0xf]
    %v1865 = vld [vmem:[%s1 + $0x8] sm:$0xf]
    %v1866 = vld [vmem:[%s1 + $0xc] sm:$0xf]
    %v1883 = vunpack.c.l.b16 %v1847
    %v1884 = vunpack.c.l.b16 %v1848
    %v1885 = vunpack.c.l.b16 %v1849
    %v1886 = vunpack.c.l.b16 %v1850
    %v1887 = vunpack.c.l.b16 %v1851
    %v1888 = vunpack.c.l.b16 %v1852
    %v1889 = vunpack.c.l.b16 %v1853
    %v1890 = vunpack.c.l.b16 %v1854
    %v1891 = vunpack.c.l.b16 %v1855
    %v1892 = vunpack.c.l.b16 %v1856
    %v1893 = vunpack.c.l.b16 %v1857
    %v1894 = vunpack.c.l.b16 %v1858
    %v1895 = vunpack.c.l.b16 %v1859
    %v1896 = vunpack.c.l.b16 %v1860
    %v1897 = vunpack.c.l.b16 %v1861
    %v1898 = vunpack.c.l.b16 %v1862
    %v1899 = vpack.c.b16 %v1884, %v1883
    %v1900 = vpack.c.b16 %v1886, %v1885
    %v1901 = vpack.c.b16 %v1888, %v1887
    %v1902 = vpack.c.b16 %v1890, %v1889
    %v1903 = vpack.c.b16 %v1892, %v1891
    %v1904 = vpack.c.b16 %v1894, %v1893
    %v1905 = vpack.c.b16 %v1896, %v1895
    %v1906 = vpack.c.b16 %v1898, %v1897
    %v1911 = vunpack.c.l.b16 %v1863
    %v1912 = vunpack.c.l.b16 %v1864
    %v1913 = vunpack.c.l.b16 %v1865
    %v1914 = vunpack.c.l.b16 %v1866
    %v1915 = vpack.c.b16 %v1912, %v1911
    %v1916 = vpack.c.b16 %v1914, %v1913
    %v1920 = vsel %vm342, %v1899, 0
    %v1923 = vsel %vm342, %v1900, 0
    %v1926 = vsel %vm342, %v1901, 0
    %v1929 = vsel %vm342, %v1902, 0
    %v1932 = vsel %vm342, %v1903, 0
    %v1935 = vsel %vm342, %v1904, 0
    %v1938 = vsel %vm342, %v1905, 0
    %v1941 = vsel %vm342, %v1906, 0
    %1943 = vmatprep.subr.bf16.mxu0 0
    %1944 = vmatpush1.bf16.msra.mxu0 %v1915
    %1945 = vmatprep.subr.bf16.mxu0 0
    %1946 = vmatpush1.bf16.msra.mxu0 %v1916
    %1947 = vmatprep.subr.bf16.mxu0 0
    %1948 = vmatpush1.bf16.msra.mxu0 0
    %1949 = vmatprep.subr.bf16.mxu0 0
    %1950 = vmatpush1.bf16.msra.mxu0 0
    %1951 = vmatprep.subr.bf16.mxu0 0
    %1952 = vmatpush1.bf16.msra.mxu0 0
    %1953 = vmatprep.subr.bf16.mxu0 0
    %1954 = vmatpush1.bf16.msra.mxu0 0
    %1955 = vmatprep.subr.bf16.mxu0 0
    %1956 = vmatpush1.bf16.msra.mxu0 0
    %1957 = vmatprep.subr.bf16.mxu0 0
    %1958 = vmatpush1.bf16.msra.mxu0 0
    %1959 = vmatprep.subr.bf16.mxu0 0
    %1960 = vmatpush1.bf16.msra.mxu0 0
    %1961 = vmatprep.subr.bf16.mxu0 0
    %1962 = vmatpush1.bf16.msra.mxu0 0
    %1963 = vmatprep.subr.bf16.mxu0 0
    %1964 = vmatpush1.bf16.msra.mxu0 0
    %1965 = vmatprep.subr.bf16.mxu0 0
    %1966 = vmatpush1.bf16.msra.mxu0 0
    %1967 = vmatprep.subr.bf16.mxu0 0
    %1968 = vmatpush1.bf16.msra.mxu0 0
    %1969 = vmatprep.subr.bf16.mxu0 0
    %1970 = vmatpush1.bf16.msra.mxu0 0
    %1971 = vmatprep.subr.bf16.mxu0 0
    %1972 = vmatpush1.bf16.msra.mxu0 0
    %1973 = vmatprep.subr.bf16.mxu0 0
    %1974 = vmatpush1.bf16.msra.mxu0 0
    %1975 = vmatprep.mubr.bf16.mxu0 0
    %1976 = vmatmul.mubr.bf16.gmra.mrb[0].mxu0 %v1920
    %v1977 = vpop.f32.mrb[0].mxu0
    %v1978 = vadd.f32 0.0, %v1977
    %v1979 = vpop.f32.mrb[0].mxu0
    %v1980 = vpop.f32.mrb[0].mxu0
    %v1981 = vadd.f32 0.0, %v1980
    %v1982 = vpop.f32.mrb[0].mxu0
    %1983 = vmatprep.mubr.bf16.mxu0 0
    %1984 = vmatmul.mubr.bf16.gmra.mrb[0].mxu0 %v1923
    %v1985 = vpop.f32.mrb[0].mxu0
    %v1986 = vadd.f32 0.0, %v1985
    %v1987 = vpop.f32.mrb[0].mxu0
    %v1988 = vpop.f32.mrb[0].mxu0
    %v1989 = vadd.f32 0.0, %v1988
    %v1990 = vpop.f32.mrb[0].mxu0
    %1991 = vmatprep.mubr.bf16.mxu0 0
    %1992 = vmatmul.mubr.bf16.gmra.mrb[0].mxu0 %v1926
    %v1993 = vpop.f32.mrb[0].mxu0
    %v1994 = vadd.f32 0.0, %v1993
    %v1995 = vpop.f32.mrb[0].mxu0
    %v1996 = vpop.f32.mrb[0].mxu0
    %v1997 = vadd.f32 0.0, %v1996
    %v1998 = vpop.f32.mrb[0].mxu0
    %1999 = vmatprep.mubr.bf16.mxu0 0
    %2000 = vmatmul.mubr.bf16.gmra.mrb[0].mxu0 %v1929
    %v2001 = vpop.f32.mrb[0].mxu0
    %v2002 = vadd.f32 0.0, %v2001
    %v2003 = vpop.f32.mrb[0].mxu0
    %v2004 = vpop.f32.mrb[0].mxu0
    %v2005 = vadd.f32 0.0, %v2004
    %v2006 = vpop.f32.mrb[0].mxu0
    %2007 = vmatprep.mubr.bf16.mxu0 0
    %2008 = vmatmul.mubr.bf16.gmra.mrb[0].mxu0 %v1932
    %v2009 = vpop.f32.mrb[0].mxu0
    %v2010 = vadd.f32 0.0, %v2009
    %v2011 = vpop.f32.mrb[0].mxu0
    %v2012 = vpop.f32.mrb[0].mxu0
    %v2013 = vadd.f32 0.0, %v2012
    %v2014 = vpop.f32.mrb[0].mxu0
    %2015 = vmatprep.mubr.bf16.mxu0 0
    %2016 = vmatmul.mubr.bf16.gmra.mrb[0].mxu0 %v1935
    %v2017 = vpop.f32.mrb[0].mxu0
    %v2018 = vadd.f32 0.0, %v2017
    %v2019 = vpop.f32.mrb[0].mxu0
    %v2020 = vpop.f32.mrb[0].mxu0
    %v2021 = vadd.f32 0.0, %v2020
    %v2022 = vpop.f32.mrb[0].mxu0
    %2023 = vmatprep.mubr.bf16.mxu0 0
    %2024 = vmatmul.mubr.bf16.gmra.mrb[0].mxu0 %v1938
    %v2025 = vpop.f32.mrb[0].mxu0
    %v2026 = vadd.f32 0.0, %v2025
    %v2027 = vpop.f32.mrb[0].mxu0
    %v2028 = vpop.f32.mrb[0].mxu0
    %v2029 = vadd.f32 0.0, %v2028
    %v2030 = vpop.f32.mrb[0].mxu0
    %2031 = vmatprep.mubr.bf16.mxu0 0
    %2032 = vmatmul.mubr.bf16.gmra.mrb[0].mxu0 %v1941
    %v2033 = vpop.f32.mrb[0].mxu0
    %v2034 = vadd.f32 0.0, %v2033
    %v2035 = vpop.f32.mrb[0].mxu0
    %v2036 = vpop.f32.mrb[0].mxu0
    %v2037 = vadd.f32 0.0, %v2036
    %v2038 = vpop.f32.mrb[0].mxu0
    %2039 = vdwg.mxu0
    %v2040 = vld [vmem:[%s0 + $0x180] sm:$0xf]
    %v2041 = vld [vmem:[%s0 + $0x184] sm:$0xf]
    %v2042 = vld [vmem:[%s0 + $0x188] sm:$0xf]
    %v2043 = vld [vmem:[%s0 + $0x18c] sm:$0xf]
    %v2044 = vld [vmem:[%s0 + $0x190] sm:$0xf]
    %v2045 = vld [vmem:[%s0 + $0x194] sm:$0xf]
    %v2046 = vld [vmem:[%s0 + $0x198] sm:$0xf]
    %v2047 = vld [vmem:[%s0 + $0x19c] sm:$0xf]
    %v2048 = vld [vmem:[%s0 + $0x1a0] sm:$0xf]
    %v2049 = vld [vmem:[%s0 + $0x1a4] sm:$0xf]
    %v2050 = vld [vmem:[%s0 + $0x1a8] sm:$0xf]
    %v2051 = vld [vmem:[%s0 + $0x1ac] sm:$0xf]
    %v2052 = vld [vmem:[%s0 + $0x1b0] sm:$0xf]
    %v2053 = vld [vmem:[%s0 + $0x1b4] sm:$0xf]
    %v2054 = vld [vmem:[%s0 + $0x1b8] sm:$0xf]
    %v2055 = vld [vmem:[%s0 + $0x1bc] sm:$0xf]
    %v2072 = vunpack.c.l.b16 %v2040
    %v2073 = vunpack.c.l.b16 %v2041
    %v2074 = vunpack.c.l.b16 %v2042
    %v2075 = vunpack.c.l.b16 %v2043
    %v2076 = vunpack.c.l.b16 %v2044
    %v2077 = vunpack.c.l.b16 %v2045
    %v2078 = vunpack.c.l.b16 %v2046
    %v2079 = vunpack.c.l.b16 %v2047
    %v2080 = vunpack.c.l.b16 %v2048
    %v2081 = vunpack.c.l.b16 %v2049
    %v2082 = vunpack.c.l.b16 %v2050
    %v2083 = vunpack.c.l.b16 %v2051
    %v2084 = vunpack.c.l.b16 %v2052
    %v2085 = vunpack.c.l.b16 %v2053
    %v2086 = vunpack.c.l.b16 %v2054
    %v2087 = vunpack.c.l.b16 %v2055
    %v2088 = vpack.c.b16 %v2073, %v2072
    %v2089 = vpack.c.b16 %v2075, %v2074
    %v2090 = vpack.c.b16 %v2077, %v2076
    %v2091 = vpack.c.b16 %v2079, %v2078
    %v2092 = vpack.c.b16 %v2081, %v2080
    %v2093 = vpack.c.b16 %v2083, %v2082
    %v2094 = vpack.c.b16 %v2085, %v2084
    %v2095 = vpack.c.b16 %v2087, %v2086
    %v2097 = vsel %vm342, %v2088, 0
    %v2100 = vsel %vm342, %v2089, 0
    %v2103 = vsel %vm342, %v2090, 0
    %v2106 = vsel %vm342, %v2091, 0
    %v2109 = vsel %vm342, %v2092, 0
    %v2112 = vsel %vm342, %v2093, 0
    %v2115 = vsel %vm342, %v2094, 0
    %v2118 = vsel %vm342, %v2095, 0
    %2120 = vmatprep.subr.bf16.mxu0 0
    %2121 = vmatpush1.bf16.msra.mxu0 %v1915
    %2122 = vmatprep.subr.bf16.mxu0 0
    %2123 = vmatpush1.bf16.msra.mxu0 %v1916
    %2124 = vmatprep.subr.bf16.mxu0 0
    %2125 = vmatpush1.bf16.msra.mxu0 0
    %2126 = vmatprep.subr.bf16.mxu0 0
    %2127 = vmatpush1.bf16.msra.mxu0 0
    %2128 = vmatprep.subr.bf16.mxu0 0
    %2129 = vmatpush1.bf16.msra.mxu0 0
    %2130 = vmatprep.subr.bf16.mxu0 0
    %2131 = vmatpush1.bf16.msra.mxu0 0
    %2132 = vmatprep.subr.bf16.mxu0 0
    %2133 = vmatpush1.bf16.msra.mxu0 0
    %2134 = vmatprep.subr.bf16.mxu0 0
    %2135 = vmatpush1.bf16.msra.mxu0 0
    %2136 = vmatprep.subr.bf16.mxu0 0
    %2137 = vmatpush1.bf16.msra.mxu0 0
    %2138 = vmatprep.subr.bf16.mxu0 0
    %2139 = vmatpush1.bf16.msra.mxu0 0
    %2140 = vmatprep.subr.bf16.mxu0 0
    %2141 = vmatpush1.bf16.msra.mxu0 0
    %2142 = vmatprep.subr.bf16.mxu0 0
    %2143 = vmatpush1.bf16.msra.mxu0 0
    %2144 = vmatprep.subr.bf16.mxu0 0
    %2145 = vmatpush1.bf16.msra.mxu0 0
    %2146 = vmatprep.subr.bf16.mxu0 0
    %2147 = vmatpush1.bf16.msra.mxu0 0
    %2148 = vmatprep.subr.bf16.mxu0 0
    %2149 = vmatpush1.bf16.msra.mxu0 0
    %2150 = vmatprep.subr.bf16.mxu0 0
    %2151 = vmatpush1.bf16.msra.mxu0 0
    %2152 = vmatprep.mubr.bf16.mxu0 0
    %2153 = vmatmul.mubr.bf16.gmra.mrb[0].mxu0 %v2097
    %v2154 = vpop.f32.mrb[0].mxu0
    %v2155 = vadd.f32 0.0, %v2154
    %v2156 = vpop.f32.mrb[0].mxu0
    %v2157 = vpop.f32.mrb[0].mxu0
    %v2158 = vadd.f32 0.0, %v2157
    %v2159 = vpop.f32.mrb[0].mxu0
    %2160 = vmatprep.mubr.bf16.mxu0 0
    %2161 = vmatmul.mubr.bf16.gmra.mrb[0].mxu0 %v2100
    %v2162 = vpop.f32.mrb[0].mxu0
    %v2163 = vadd.f32 0.0, %v2162
    %v2164 = vpop.f32.mrb[0].mxu0
    %v2165 = vpop.f32.mrb[0].mxu0
    %v2166 = vadd.f32 0.0, %v2165
    %v2167 = vpop.f32.mrb[0].mxu0
    %2168 = vmatprep.mubr.bf16.mxu0 0
    %2169 = vmatmul.mubr.bf16.gmra.mrb[0].mxu0 %v2103
    %v2170 = vpop.f32.mrb[0].mxu0
    %v2171 = vadd.f32 0.0, %v2170
    %v2172 = vpop.f32.mrb[0].mxu0
    %v2173 = vpop.f32.mrb[0].mxu0
    %v2174 = vadd.f32 0.0, %v2173
    %v2175 = vpop.f32.mrb[0].mxu0
    %2176 = vmatprep.mubr.bf16.mxu0 0
    %2177 = vmatmul.mubr.bf16.gmra.mrb[0].mxu0 %v2106
    %v2178 = vpop.f32.mrb[0].mxu0
    %v2179 = vadd.f32 0.0, %v2178
    %v2180 = vpop.f32.mrb[0].mxu0
    %v2181 = vpop.f32.mrb[0].mxu0
    %v2182 = vadd.f32 0.0, %v2181
    %v2183 = vpop.f32.mrb[0].mxu0
    %2184 = vmatprep.mubr.bf16.mxu0 0
    %2185 = vmatmul.mubr.bf16.gmra.mrb[0].mxu0 %v2109
    %v2186 = vpop.f32.mrb[0].mxu0
    %v2187 = vadd.f32 0.0, %v2186
    %v2188 = vpop.f32.mrb[0].mxu0
    %v2189 = vpop.f32.mrb[0].mxu0
    %v2190 = vadd.f32 0.0, %v2189
    %v2191 = vpop.f32.mrb[0].mxu0
    %2192 = vmatprep.mubr.bf16.mxu0 0
    %2193 = vmatmul.mubr.bf16.gmra.mrb[0].mxu0 %v2112
    %v2194 = vpop.f32.mrb[0].mxu0
    %v2195 = vadd.f32 0.0, %v2194
    %v2196 = vpop.f32.mrb[0].mxu0
    %v2197 = vpop.f32.mrb[0].mxu0
    %v2198 = vadd.f32 0.0, %v2197
    %v2199 = vpop.f32.mrb[0].mxu0
    %2200 = vmatprep.mubr.bf16.mxu0 0
    %2201 = vmatmul.mubr.bf16.gmra.mrb[0].mxu0 %v2115
    %v2202 = vpop.f32.mrb[0].mxu0
    %v2203 = vadd.f32 0.0, %v2202
    %v2204 = vpop.f32.mrb[0].mxu0
    %v2205 = vpop.f32.mrb[0].mxu0
    %v2206 = vadd.f32 0.0, %v2205
    %v2207 = vpop.f32.mrb[0].mxu0
    %2208 = vmatprep.mubr.bf16.mxu0 0
    %2209 = vmatmul.mubr.bf16.gmra.mrb[0].mxu0 %v2118
    %v2210 = vpop.f32.mrb[0].mxu0
    %v2211 = vadd.f32 0.0, %v2210
    %v2212 = vpop.f32.mrb[0].mxu0
    %v2213 = vpop.f32.mrb[0].mxu0
    %v2214 = vadd.f32 0.0, %v2213
    %v2215 = vpop.f32.mrb[0].mxu0
    %2216 = vdwg.mxu0
    %v2217 = vmax.f32 %v1978, %v2155
    %v2218 = vmax.f32 %v1981, %v2158
    %v2219 = vmax.f32 %v1986, %v2163
    %v2220 = vmax.f32 %v1989, %v2166
    %v2221 = vmax.f32 %v1994, %v2171
    %v2222 = vmax.f32 %v1997, %v2174
    %v2223 = vmax.f32 %v2002, %v2179
    %v2224 = vmax.f32 %v2005, %v2182
    %v2225 = vmax.f32 %v2010, %v2187
    %v2226 = vmax.f32 %v2013, %v2190
    %v2227 = vmax.f32 %v2018, %v2195
    %v2228 = vmax.f32 %v2021, %v2198
    %v2229 = vmax.f32 %v2026, %v2203
    %v2230 = vmax.f32 %v2029, %v2206
    %v2231 = vmax.f32 %v2034, %v2211
    %v2232 = vmax.f32 %v2037, %v2214
    %v2233 = vld [vmem:[%s0 + $0x280] sm:$0xf]
    %v2234 = vld [vmem:[%s0 + $0x284] sm:$0xf]
    %v2235 = vld [vmem:[%s0 + $0x288] sm:$0xf]
    %v2236 = vld [vmem:[%s0 + $0x28c] sm:$0xf]
    %v2237 = vld [vmem:[%s0 + $0x290] sm:$0xf]
    %v2238 = vld [vmem:[%s0 + $0x294] sm:$0xf]
    %v2239 = vld [vmem:[%s0 + $0x298] sm:$0xf]
    %v2240 = vld [vmem:[%s0 + $0x29c] sm:$0xf]
    %v2241 = vld [vmem:[%s0 + $0x2a0] sm:$0xf]
    %v2242 = vld [vmem:[%s0 + $0x2a4] sm:$0xf]
    %v2243 = vld [vmem:[%s0 + $0x2a8] sm:$0xf]
    %v2244 = vld [vmem:[%s0 + $0x2ac] sm:$0xf]
    %v2245 = vld [vmem:[%s0 + $0x2b0] sm:$0xf]
    %v2246 = vld [vmem:[%s0 + $0x2b4] sm:$0xf]
    %v2247 = vld [vmem:[%s0 + $0x2b8] sm:$0xf]
    %v2248 = vld [vmem:[%s0 + $0x2bc] sm:$0xf]
    %v2265 = vunpack.c.l.b16 %v2233
    %v2266 = vunpack.c.l.b16 %v2234
    %v2267 = vunpack.c.l.b16 %v2235
    %v2268 = vunpack.c.l.b16 %v2236
    %v2269 = vunpack.c.l.b16 %v2237
    %v2270 = vunpack.c.l.b16 %v2238
    %v2271 = vunpack.c.l.b16 %v2239
    %v2272 = vunpack.c.l.b16 %v2240
    %v2273 = vunpack.c.l.b16 %v2241
    %v2274 = vunpack.c.l.b16 %v2242
    %v2275 = vunpack.c.l.b16 %v2243
    %v2276 = vunpack.c.l.b16 %v2244
    %v2277 = vunpack.c.l.b16 %v2245
    %v2278 = vunpack.c.l.b16 %v2246
    %v2279 = vunpack.c.l.b16 %v2247
    %v2280 = vunpack.c.l.b16 %v2248
    %v2281 = vpack.c.b16 %v2266, %v2265
    %v2282 = vpack.c.b16 %v2268, %v2267
    %v2283 = vpack.c.b16 %v2270, %v2269
    %v2284 = vpack.c.b16 %v2272, %v2271
    %v2285 = vpack.c.b16 %v2274, %v2273
    %v2286 = vpack.c.b16 %v2276, %v2275
    %v2287 = vpack.c.b16 %v2278, %v2277
    %v2288 = vpack.c.b16 %v2280, %v2279
    %v2290 = vsel %vm342, %v2281, 0
    %v2293 = vsel %vm342, %v2282, 0
    %v2296 = vsel %vm342, %v2283, 0
    %v2299 = vsel %vm342, %v2284, 0
    %v2302 = vsel %vm342, %v2285, 0
    %v2305 = vsel %vm342, %v2286, 0
    %v2308 = vsel %vm342, %v2287, 0
    %v2311 = vsel %vm342, %v2288, 0
    %2313 = vmatprep.subr.bf16.mxu0 0
    %2314 = vmatpush1.bf16.msra.mxu0 %v1915
    %2315 = vmatprep.subr.bf16.mxu0 0
    %2316 = vmatpush1.bf16.msra.mxu0 %v1916
    %2317 = vmatprep.subr.bf16.mxu0 0
    %2318 = vmatpush1.bf16.msra.mxu0 0
    %2319 = vmatprep.subr.bf16.mxu0 0
    %2320 = vmatpush1.bf16.msra.mxu0 0
    %2321 = vmatprep.subr.bf16.mxu0 0
    %2322 = vmatpush1.bf16.msra.mxu0 0
    %2323 = vmatprep.subr.bf16.mxu0 0
    %2324 = vmatpush1.bf16.msra.mxu0 0
    %2325 = vmatprep.subr.bf16.mxu0 0
    %2326 = vmatpush1.bf16.msra.mxu0 0
    %2327 = vmatprep.subr.bf16.mxu0 0
    %2328 = vmatpush1.bf16.msra.mxu0 0
    %2329 = vmatprep.subr.bf16.mxu0 0
    %2330 = vmatpush1.bf16.msra.mxu0 0
    %2331 = vmatprep.subr.bf16.mxu0 0
    %2332 = vmatpush1.bf16.msra.mxu0 0
    %2333 = vmatprep.subr.bf16.mxu0 0
    %2334 = vmatpush1.bf16.msra.mxu0 0
    %2335 = vmatprep.subr.bf16.mxu0 0
    %2336 = vmatpush1.bf16.msra.mxu0 0
    %2337 = vmatprep.subr.bf16.mxu0 0
    %2338 = vmatpush1.bf16.msra.mxu0 0
    %2339 = vmatprep.subr.bf16.mxu0 0
    %2340 = vmatpush1.bf16.msra.mxu0 0
    %2341 = vmatprep.subr.bf16.mxu0 0
    %2342 = vmatpush1.bf16.msra.mxu0 0
    %2343 = vmatprep.subr.bf16.mxu0 0
    %2344 = vmatpush1.bf16.msra.mxu0 0
    %2345 = vmatprep.mubr.bf16.mxu0 0
    %2346 = vmatmul.mubr.bf16.gmra.mrb[0].mxu0 %v2290
    %v2347 = vpop.f32.mrb[0].mxu0
    %v2348 = vadd.f32 0.0, %v2347
    %v2349 = vpop.f32.mrb[0].mxu0
    %v2350 = vpop.f32.mrb[0].mxu0
    %v2351 = vadd.f32 0.0, %v2350
    %v2352 = vpop.f32.mrb[0].mxu0
    %2353 = vmatprep.mubr.bf16.mxu0 0
    %2354 = vmatmul.mubr.bf16.gmra.mrb[0].mxu0 %v2293
    %v2355 = vpop.f32.mrb[0].mxu0
    %v2356 = vadd.f32 0.0, %v2355
    %v2357 = vpop.f32.mrb[0].mxu0
    %v2358 = vpop.f32.mrb[0].mxu0
    %v2359 = vadd.f32 0.0, %v2358
    %v2360 = vpop.f32.mrb[0].mxu0
    %2361 = vmatprep.mubr.bf16.mxu0 0
    %2362 = vmatmul.mubr.bf16.gmra.mrb[0].mxu0 %v2296
    %v2363 = vpop.f32.mrb[0].mxu0
    %v2364 = vadd.f32 0.0, %v2363
    %v2365 = vpop.f32.mrb[0].mxu0
    %v2366 = vpop.f32.mrb[0].mxu0
    %v2367 = vadd.f32 0.0, %v2366
    %v2368 = vpop.f32.mrb[0].mxu0
    %2369 = vmatprep.mubr.bf16.mxu0 0
    %2370 = vmatmul.mubr.bf16.gmra.mrb[0].mxu0 %v2299
    %v2371 = vpop.f32.mrb[0].mxu0
    %v2372 = vadd.f32 0.0, %v2371
    %v2373 = vpop.f32.mrb[0].mxu0
    %v2374 = vpop.f32.mrb[0].mxu0
    %v2375 = vadd.f32 0.0, %v2374
    %v2376 = vpop.f32.mrb[0].mxu0
    %2377 = vmatprep.mubr.bf16.mxu0 0
    %2378 = vmatmul.mubr.bf16.gmra.mrb[0].mxu0 %v2302
    %v2379 = vpop.f32.mrb[0].mxu0
    %v2380 = vadd.f32 0.0, %v2379
    %v2381 = vpop.f32.mrb[0].mxu0
    %v2382 = vpop.f32.mrb[0].mxu0
    %v2383 = vadd.f32 0.0, %v2382
    %v2384 = vpop.f32.mrb[0].mxu0
    %2385 = vmatprep.mubr.bf16.mxu0 0
    %2386 = vmatmul.mubr.bf16.gmra.mrb[0].mxu0 %v2305
    %v2387 = vpop.f32.mrb[0].mxu0
    %v2388 = vadd.f32 0.0, %v2387
    %v2389 = vpop.f32.mrb[0].mxu0
    %v2390 = vpop.f32.mrb[0].mxu0
    %v2391 = vadd.f32 0.0, %v2390
    %v2392 = vpop.f32.mrb[0].mxu0
    %2393 = vmatprep.mubr.bf16.mxu0 0
    %2394 = vmatmul.mubr.bf16.gmra.mrb[0].mxu0 %v2308
    %v2395 = vpop.f32.mrb[0].mxu0
    %v2396 = vadd.f32 0.0, %v2395
    %v2397 = vpop.f32.mrb[0].mxu0
    %v2398 = vpop.f32.mrb[0].mxu0
    %v2399 = vadd.f32 0.0, %v2398
    %v2400 = vpop.f32.mrb[0].mxu0
    %2401 = vmatprep.mubr.bf16.mxu0 0
    %2402 = vmatmul.mubr.bf16.gmra.mrb[0].mxu0 %v2311
    %v2403 = vpop.f32.mrb[0].mxu0
    %v2404 = vadd.f32 0.0, %v2403
    %v2405 = vpop.f32.mrb[0].mxu0
    %v2406 = vpop.f32.mrb[0].mxu0
    %v2407 = vadd.f32 0.0, %v2406
    %v2408 = vpop.f32.mrb[0].mxu0
    %2409 = vdwg.mxu0
    %v2410 = vmax.f32 %v2217, %v2348
    %v2411 = vmax.f32 %v2218, %v2351
    %v2412 = vmax.f32 %v2219, %v2356
    %v2413 = vmax.f32 %v2220, %v2359
    %v2414 = vmax.f32 %v2221, %v2364
    %v2415 = vmax.f32 %v2222, %v2367
    %v2416 = vmax.f32 %v2223, %v2372
    %v2417 = vmax.f32 %v2224, %v2375
    %v2418 = vmax.f32 %v2225, %v2380
    %v2419 = vmax.f32 %v2226, %v2383
    %v2420 = vmax.f32 %v2227, %v2388
    %v2421 = vmax.f32 %v2228, %v2391
    %v2422 = vmax.f32 %v2229, %v2396
    %v2423 = vmax.f32 %v2230, %v2399
    %v2424 = vmax.f32 %v2231, %v2404
    %v2425 = vmax.f32 %v2232, %v2407
    %v2426 = vld [vmem:[%s0 + $0x380] sm:$0xf]
    %v2427 = vld [vmem:[%s0 + $0x384] sm:$0xf]
    %v2428 = vld [vmem:[%s0 + $0x388] sm:$0xf]
    %v2429 = vld [vmem:[%s0 + $0x38c] sm:$0xf]
    %v2430 = vld [vmem:[%s0 + $0x390] sm:$0xf]
    %v2431 = vld [vmem:[%s0 + $0x394] sm:$0xf]
    %v2432 = vld [vmem:[%s0 + $0x398] sm:$0xf]
    %v2433 = vld [vmem:[%s0 + $0x39c] sm:$0xf]
    %v2434 = vld [vmem:[%s0 + $0x3a0] sm:$0xf]
    %v2435 = vld [vmem:[%s0 + $0x3a4] sm:$0xf]
    %v2436 = vld [vmem:[%s0 + $0x3a8] sm:$0xf]
    %v2437 = vld [vmem:[%s0 + $0x3ac] sm:$0xf]
    %v2438 = vld [vmem:[%s0 + $0x3b0] sm:$0xf]
    %v2439 = vld [vmem:[%s0 + $0x3b4] sm:$0xf]
    %v2440 = vld [vmem:[%s0 + $0x3b8] sm:$0xf]
    %v2441 = vld [vmem:[%s0 + $0x3bc] sm:$0xf]
    %v2458 = vunpack.c.l.b16 %v2426
    %v2459 = vunpack.c.l.b16 %v2427
    %v2460 = vunpack.c.l.b16 %v2428
    %v2461 = vunpack.c.l.b16 %v2429
    %v2462 = vunpack.c.l.b16 %v2430
    %v2463 = vunpack.c.l.b16 %v2431
    %v2464 = vunpack.c.l.b16 %v2432
    %v2465 = vunpack.c.l.b16 %v2433
    %v2466 = vunpack.c.l.b16 %v2434
    %v2467 = vunpack.c.l.b16 %v2435
    %v2468 = vunpack.c.l.b16 %v2436
    %v2469 = vunpack.c.l.b16 %v2437
    %v2470 = vunpack.c.l.b16 %v2438
    %v2471 = vunpack.c.l.b16 %v2439
    %v2472 = vunpack.c.l.b16 %v2440
    %v2473 = vunpack.c.l.b16 %v2441
    %v2474 = vpack.c.b16 %v2459, %v2458
    %v2475 = vpack.c.b16 %v2461, %v2460
    %v2476 = vpack.c.b16 %v2463, %v2462
    %v2477 = vpack.c.b16 %v2465, %v2464
    %v2478 = vpack.c.b16 %v2467, %v2466
    %v2479 = vpack.c.b16 %v2469, %v2468
    %v2480 = vpack.c.b16 %v2471, %v2470
    %v2481 = vpack.c.b16 %v2473, %v2472
    %v2483 = vsel %vm342, %v2474, 0
    %v2486 = vsel %vm342, %v2475, 0
    %v2489 = vsel %vm342, %v2476, 0
    %v2492 = vsel %vm342, %v2477, 0
    %v2495 = vsel %vm342, %v2478, 0
    %v2498 = vsel %vm342, %v2479, 0
    %v2501 = vsel %vm342, %v2480, 0
    %v2504 = vsel %vm342, %v2481, 0
    %2506 = vmatprep.subr.bf16.mxu0 0
    %2507 = vmatpush1.bf16.msra.mxu0 %v1915
    %2508 = vmatprep.subr.bf16.mxu0 0
    %2509 = vmatpush1.bf16.msra.mxu0 %v1916
    %2510 = vmatprep.subr.bf16.mxu0 0
    %2511 = vmatpush1.bf16.msra.mxu0 0
    %2512 = vmatprep.subr.bf16.mxu0 0
    %2513 = vmatpush1.bf16.msra.mxu0 0
    %2514 = vmatprep.subr.bf16.mxu0 0
    %2515 = vmatpush1.bf16.msra.mxu0 0
    %2516 = vmatprep.subr.bf16.mxu0 0
    %2517 = vmatpush1.bf16.msra.mxu0 0
    %2518 = vmatprep.subr.bf16.mxu0 0
    %2519 = vmatpush1.bf16.msra.mxu0 0
    %2520 = vmatprep.subr.bf16.mxu0 0
    %2521 = vmatpush1.bf16.msra.mxu0 0
    %2522 = vmatprep.subr.bf16.mxu0 0
    %2523 = vmatpush1.bf16.msra.mxu0 0
    %2524 = vmatprep.subr.bf16.mxu0 0
    %2525 = vmatpush1.bf16.msra.mxu0 0
    %2526 = vmatprep.subr.bf16.mxu0 0
    %2527 = vmatpush1.bf16.msra.mxu0 0
    %2528 = vmatprep.subr.bf16.mxu0 0
    %2529 = vmatpush1.bf16.msra.mxu0 0
    %2530 = vmatprep.subr.bf16.mxu0 0
    %2531 = vmatpush1.bf16.msra.mxu0 0
    %2532 = vmatprep.subr.bf16.mxu0 0
    %2533 = vmatpush1.bf16.msra.mxu0 0
    %2534 = vmatprep.subr.bf16.mxu0 0
    %2535 = vmatpush1.bf16.msra.mxu0 0
    %2536 = vmatprep.subr.bf16.mxu0 0
    %2537 = vmatpush1.bf16.msra.mxu0 0
    %2538 = vmatprep.mubr.bf16.mxu0 0
    %2539 = vmatmul.mubr.bf16.gmra.mrb[0].mxu0 %v2483
    %v2540 = vpop.f32.mrb[0].mxu0
    %v2541 = vadd.f32 0.0, %v2540
    %v2542 = vpop.f32.mrb[0].mxu0
    %v2543 = vpop.f32.mrb[0].mxu0
    %v2544 = vadd.f32 0.0, %v2543
    %v2545 = vpop.f32.mrb[0].mxu0
    %2546 = vmatprep.mubr.bf16.mxu0 0
    %2547 = vmatmul.mubr.bf16.gmra.mrb[0].mxu0 %v2486
    %v2548 = vpop.f32.mrb[0].mxu0
    %v2549 = vadd.f32 0.0, %v2548
    %v2550 = vpop.f32.mrb[0].mxu0
    %v2551 = vpop.f32.mrb[0].mxu0
    %v2552 = vadd.f32 0.0, %v2551
    %v2553 = vpop.f32.mrb[0].mxu0
    %2554 = vmatprep.mubr.bf16.mxu0 0
    %2555 = vmatmul.mubr.bf16.gmra.mrb[0].mxu0 %v2489
    %v2556 = vpop.f32.mrb[0].mxu0
    %v2557 = vadd.f32 0.0, %v2556
    %v2558 = vpop.f32.mrb[0].mxu0
    %v2559 = vpop.f32.mrb[0].mxu0
    %v2560 = vadd.f32 0.0, %v2559
    %v2561 = vpop.f32.mrb[0].mxu0
    %2562 = vmatprep.mubr.bf16.mxu0 0
    %2563 = vmatmul.mubr.bf16.gmra.mrb[0].mxu0 %v2492
    %v2564 = vpop.f32.mrb[0].mxu0
    %v2565 = vadd.f32 0.0, %v2564
    %v2566 = vpop.f32.mrb[0].mxu0
    %v2567 = vpop.f32.mrb[0].mxu0
    %v2568 = vadd.f32 0.0, %v2567
    %v2569 = vpop.f32.mrb[0].mxu0
    %2570 = vmatprep.mubr.bf16.mxu0 0
    %2571 = vmatmul.mubr.bf16.gmra.mrb[0].mxu0 %v2495
    %v2572 = vpop.f32.mrb[0].mxu0
    %v2573 = vadd.f32 0.0, %v2572
    %v2574 = vpop.f32.mrb[0].mxu0
    %v2575 = vpop.f32.mrb[0].mxu0
    %v2576 = vadd.f32 0.0, %v2575
    %v2577 = vpop.f32.mrb[0].mxu0
    %2578 = vmatprep.mubr.bf16.mxu0 0
    %2579 = vmatmul.mubr.bf16.gmra.mrb[0].mxu0 %v2498
    %v2580 = vpop.f32.mrb[0].mxu0
    %v2581 = vadd.f32 0.0, %v2580
    %v2582 = vpop.f32.mrb[0].mxu0
    %v2583 = vpop.f32.mrb[0].mxu0
    %v2584 = vadd.f32 0.0, %v2583
    %v2585 = vpop.f32.mrb[0].mxu0
    %2586 = vmatprep.mubr.bf16.mxu0 0
    %2587 = vmatmul.mubr.bf16.gmra.mrb[0].mxu0 %v2501
    %v2588 = vpop.f32.mrb[0].mxu0
    %v2589 = vadd.f32 0.0, %v2588
    %v2590 = vpop.f32.mrb[0].mxu0
    %v2591 = vpop.f32.mrb[0].mxu0
    %v2592 = vadd.f32 0.0, %v2591
    %v2593 = vpop.f32.mrb[0].mxu0
    %2594 = vmatprep.mubr.bf16.mxu0 0
    %2595 = vmatmul.mubr.bf16.gmra.mrb[0].mxu0 %v2504
    %v2596 = vpop.f32.mrb[0].mxu0
    %v2597 = vadd.f32 0.0, %v2596
    %v2598 = vpop.f32.mrb[0].mxu0
    %v2599 = vpop.f32.mrb[0].mxu0
    %v2600 = vadd.f32 0.0, %v2599
    %v2601 = vpop.f32.mrb[0].mxu0
    %2602 = vdwg.mxu0
    %v2603 = vmax.f32 %v2410, %v2541
    %v2604 = vmax.f32 %v2411, %v2544
    %v2605 = vmax.f32 %v2412, %v2549
    %v2606 = vmax.f32 %v2413, %v2552
    %v2607 = vmax.f32 %v2414, %v2557
    %v2608 = vmax.f32 %v2415, %v2560
    %v2609 = vmax.f32 %v2416, %v2565
    %v2610 = vmax.f32 %v2417, %v2568
    %v2611 = vmax.f32 %v2418, %v2573
    %v2612 = vmax.f32 %v2419, %v2576
    %v2613 = vmax.f32 %v2420, %v2581
    %v2614 = vmax.f32 %v2421, %v2584
    %v2615 = vmax.f32 %v2422, %v2589
    %v2616 = vmax.f32 %v2423, %v2592
    %v2617 = vmax.f32 %v2424, %v2597
    %v2618 = vmax.f32 %v2425, %v2600
    %2619 = vst [vmem:[#allocation2 + $0x100] sm:$0xff] %v2603
    %2620 = vst [vmem:[#allocation2 + $0x108] sm:$0xff] %v2604
    %2621 = vst [vmem:[#allocation2 + $0x110] sm:$0xff] %v2605
    %2622 = vst [vmem:[#allocation2 + $0x118] sm:$0xff] %v2606
    %2623 = vst [vmem:[#allocation2 + $0x120] sm:$0xff] %v2607
    %2624 = vst [vmem:[#allocation2 + $0x128] sm:$0xff] %v2608
    %2625 = vst [vmem:[#allocation2 + $0x130] sm:$0xff] %v2609
    %2626 = vst [vmem:[#allocation2 + $0x138] sm:$0xff] %v2610
    %2627 = vst [vmem:[#allocation2 + $0x140] sm:$0xff] %v2611
    %2628 = vst [vmem:[#allocation2 + $0x148] sm:$0xff] %v2612
    %2629 = vst [vmem:[#allocation2 + $0x150] sm:$0xff] %v2613
    %2630 = vst [vmem:[#allocation2 + $0x158] sm:$0xff] %v2614
    %2631 = vst [vmem:[#allocation2 + $0x160] sm:$0xff] %v2615
    %2632 = vst [vmem:[#allocation2 + $0x168] sm:$0xff] %v2616
    %2633 = vst [vmem:[#allocation2 + $0x170] sm:$0xff] %v2617
    %2634 = vst [vmem:[#allocation2 + $0x178] sm:$0xff] %v2618
    %v2635 = vld [vmem:[%s0 + $0xc0] sm:$0xf]
    %v2636 = vld [vmem:[%s0 + $0xc4] sm:$0xf]
    %v2637 = vld [vmem:[%s0 + $0xc8] sm:$0xf]
    %v2638 = vld [vmem:[%s0 + $0xcc] sm:$0xf]
    %v2639 = vld [vmem:[%s0 + $0xd0] sm:$0xf]
    %v2640 = vld [vmem:[%s0 + $0xd4] sm:$0xf]
    %v2641 = vld [vmem:[%s0 + $0xd8] sm:$0xf]
    %v2642 = vld [vmem:[%s0 + $0xdc] sm:$0xf]
    %v2643 = vld [vmem:[%s0 + $0xe0] sm:$0xf]
    %v2644 = vld [vmem:[%s0 + $0xe4] sm:$0xf]
    %v2645 = vld [vmem:[%s0 + $0xe8] sm:$0xf]
    %v2646 = vld [vmem:[%s0 + $0xec] sm:$0xf]
    %v2647 = vld [vmem:[%s0 + $0xf0] sm:$0xf]
    %v2648 = vld [vmem:[%s0 + $0xf4] sm:$0xf]
    %v2649 = vld [vmem:[%s0 + $0xf8] sm:$0xf]
    %v2650 = vld [vmem:[%s0 + $0xfc] sm:$0xf]
    %v2651 = vld [vmem:[%s1] sm:$0xf]
    %v2652 = vld [vmem:[%s1 + $0x4] sm:$0xf]
    %v2653 = vld [vmem:[%s1 + $0x8] sm:$0xf]
    %v2654 = vld [vmem:[%s1 + $0xc] sm:$0xf]
    %v2671 = vunpack.c.l.b16 %v2635
    %v2672 = vunpack.c.l.b16 %v2636
    %v2673 = vunpack.c.l.b16 %v2637
    %v2674 = vunpack.c.l.b16 %v2638
    %v2675 = vunpack.c.l.b16 %v2639
    %v2676 = vunpack.c.l.b16 %v2640
    %v2677 = vunpack.c.l.b16 %v2641
    %v2678 = vunpack.c.l.b16 %v2642
    %v2679 = vunpack.c.l.b16 %v2643
    %v2680 = vunpack.c.l.b16 %v2644
    %v2681 = vunpack.c.l.b16 %v2645
    %v2682 = vunpack.c.l.b16 %v2646
    %v2683 = vunpack.c.l.b16 %v2647
    %v2684 = vunpack.c.l.b16 %v2648
    %v2685 = vunpack.c.l.b16 %v2649
    %v2686 = vunpack.c.l.b16 %v2650
    %v2687 = vpack.c.b16 %v2672, %v2671
    %v2688 = vpack.c.b16 %v2674, %v2673
    %v2689 = vpack.c.b16 %v2676, %v2675
    %v2690 = vpack.c.b16 %v2678, %v2677
    %v2691 = vpack.c.b16 %v2680, %v2679
    %v2692 = vpack.c.b16 %v2682, %v2681
    %v2693 = vpack.c.b16 %v2684, %v2683
    %v2694 = vpack.c.b16 %v2686, %v2685
    %v2699 = vunpack.c.l.b16 %v2651
    %v2700 = vunpack.c.l.b16 %v2652
    %v2701 = vunpack.c.l.b16 %v2653
    %v2702 = vunpack.c.l.b16 %v2654
    %v2703 = vpack.c.b16 %v2700, %v2699
    %v2704 = vpack.c.b16 %v2702, %v2701
    %v2708 = vsel %vm342, %v2687, 0
    %v2711 = vsel %vm342, %v2688, 0
    %v2714 = vsel %vm342, %v2689, 0
    %v2717 = vsel %vm342, %v2690, 0
    %v2720 = vsel %vm342, %v2691, 0
    %v2723 = vsel %vm342, %v2692, 0
    %v2726 = vsel %vm342, %v2693, 0
    %v2729 = vsel %vm342, %v2694, 0
    %2731 = vmatprep.subr.bf16.mxu0 0
    %2732 = vmatpush1.bf16.msra.mxu0 %v2703
    %2733 = vmatprep.subr.bf16.mxu0 0
    %2734 = vmatpush1.bf16.msra.mxu0 %v2704
    %2735 = vmatprep.subr.bf16.mxu0 0
    %2736 = vmatpush1.bf16.msra.mxu0 0
    %2737 = vmatprep.subr.bf16.mxu0 0
    %2738 = vmatpush1.bf16.msra.mxu0 0
    %2739 = vmatprep.subr.bf16.mxu0 0
    %2740 = vmatpush1.bf16.msra.mxu0 0
    %2741 = vmatprep.subr.bf16.mxu0 0
    %2742 = vmatpush1.bf16.msra.mxu0 0
    %2743 = vmatprep.subr.bf16.mxu0 0
    %2744 = vmatpush1.bf16.msra.mxu0 0
    %2745 = vmatprep.subr.bf16.mxu0 0
    %2746 = vmatpush1.bf16.msra.mxu0 0
    %2747 = vmatprep.subr.bf16.mxu0 0
    %2748 = vmatpush1.bf16.msra.mxu0 0
    %2749 = vmatprep.subr.bf16.mxu0 0
    %2750 = vmatpush1.bf16.msra.mxu0 0
    %2751 = vmatprep.subr.bf16.mxu0 0
    %2752 = vmatpush1.bf16.msra.mxu0 0
    %2753 = vmatprep.subr.bf16.mxu0 0
    %2754 = vmatpush1.bf16.msra.mxu0 0
    %2755 = vmatprep.subr.bf16.mxu0 0
    %2756 = vmatpush1.bf16.msra.mxu0 0
    %2757 = vmatprep.subr.bf16.mxu0 0
    %2758 = vmatpush1.bf16.msra.mxu0 0
    %2759 = vmatprep.subr.bf16.mxu0 0
    %2760 = vmatpush1.bf16.msra.mxu0 0
    %2761 = vmatprep.subr.bf16.mxu0 0
    %2762 = vmatpush1.bf16.msra.mxu0 0
    %2763 = vmatprep.mubr.bf16.mxu0 0
    %2764 = vmatmul.mubr.bf16.gmra.mrb[0].mxu0 %v2708
    %v2765 = vpop.f32.mrb[0].mxu0
    %v2766 = vadd.f32 0.0, %v2765
    %v2767 = vpop.f32.mrb[0].mxu0
    %v2768 = vpop.f32.mrb[0].mxu0
    %v2769 = vadd.f32 0.0, %v2768
    %v2770 = vpop.f32.mrb[0].mxu0
    %2771 = vmatprep.mubr.bf16.mxu0 0
    %2772 = vmatmul.mubr.bf16.gmra.mrb[0].mxu0 %v2711
    %v2773 = vpop.f32.mrb[0].mxu0
    %v2774 = vadd.f32 0.0, %v2773
    %v2775 = vpop.f32.mrb[0].mxu0
    %v2776 = vpop.f32.mrb[0].mxu0
    %v2777 = vadd.f32 0.0, %v2776
    %v2778 = vpop.f32.mrb[0].mxu0
    %2779 = vmatprep.mubr.bf16.mxu0 0
    %2780 = vmatmul.mubr.bf16.gmra.mrb[0].mxu0 %v2714
    %v2781 = vpop.f32.mrb[0].mxu0
    %v2782 = vadd.f32 0.0, %v2781
    %v2783 = vpop.f32.mrb[0].mxu0
    %v2784 = vpop.f32.mrb[0].mxu0
    %v2785 = vadd.f32 0.0, %v2784
    %v2786 = vpop.f32.mrb[0].mxu0
    %2787 = vmatprep.mubr.bf16.mxu0 0
    %2788 = vmatmul.mubr.bf16.gmra.mrb[0].mxu0 %v2717
    %v2789 = vpop.f32.mrb[0].mxu0
    %v2790 = vadd.f32 0.0, %v2789
    %v2791 = vpop.f32.mrb[0].mxu0
    %v2792 = vpop.f32.mrb[0].mxu0
    %v2793 = vadd.f32 0.0, %v2792
    %v2794 = vpop.f32.mrb[0].mxu0
    %2795 = vmatprep.mubr.bf16.mxu0 0
    %2796 = vmatmul.mubr.bf16.gmra.mrb[0].mxu0 %v2720
    %v2797 = vpop.f32.mrb[0].mxu0
    %v2798 = vadd.f32 0.0, %v2797
    %v2799 = vpop.f32.mrb[0].mxu0
    %v2800 = vpop.f32.mrb[0].mxu0
    %v2801 = vadd.f32 0.0, %v2800
    %v2802 = vpop.f32.mrb[0].mxu0
    %2803 = vmatprep.mubr.bf16.mxu0 0
    %2804 = vmatmul.mubr.bf16.gmra.mrb[0].mxu0 %v2723
    %v2805 = vpop.f32.mrb[0].mxu0
    %v2806 = vadd.f32 0.0, %v2805
    %v2807 = vpop.f32.mrb[0].mxu0
    %v2808 = vpop.f32.mrb[0].mxu0
    %v2809 = vadd.f32 0.0, %v2808
    %v2810 = vpop.f32.mrb[0].mxu0
    %2811 = vmatprep.mubr.bf16.mxu0 0
    %2812 = vmatmul.mubr.bf16.gmra.mrb[0].mxu0 %v2726
    %v2813 = vpop.f32.mrb[0].mxu0
    %v2814 = vadd.f32 0.0, %v2813
    %v2815 = vpop.f32.mrb[0].mxu0
    %v2816 = vpop.f32.mrb[0].mxu0
    %v2817 = vadd.f32 0.0, %v2816
    %v2818 = vpop.f32.mrb[0].mxu0
    %2819 = vmatprep.mubr.bf16.mxu0 0
    %2820 = vmatmul.mubr.bf16.gmra.mrb[0].mxu0 %v2729
    %v2821 = vpop.f32.mrb[0].mxu0
    %v2822 = vadd.f32 0.0, %v2821
    %v2823 = vpop.f32.mrb[0].mxu0
    %v2824 = vpop.f32.mrb[0].mxu0
    %v2825 = vadd.f32 0.0, %v2824
    %v2826 = vpop.f32.mrb[0].mxu0
    %2827 = vdwg.mxu0
    %v2828 = vld [vmem:[%s0 + $0x1c0] sm:$0xf]
    %v2829 = vld [vmem:[%s0 + $0x1c4] sm:$0xf]
    %v2830 = vld [vmem:[%s0 + $0x1c8] sm:$0xf]
    %v2831 = vld [vmem:[%s0 + $0x1cc] sm:$0xf]
    %v2832 = vld [vmem:[%s0 + $0x1d0] sm:$0xf]
    %v2833 = vld [vmem:[%s0 + $0x1d4] sm:$0xf]
    %v2834 = vld [vmem:[%s0 + $0x1d8] sm:$0xf]
    %v2835 = vld [vmem:[%s0 + $0x1dc] sm:$0xf]
    %v2836 = vld [vmem:[%s0 + $0x1e0] sm:$0xf]
    %v2837 = vld [vmem:[%s0 + $0x1e4] sm:$0xf]
    %v2838 = vld [vmem:[%s0 + $0x1e8] sm:$0xf]
    %v2839 = vld [vmem:[%s0 + $0x1ec] sm:$0xf]
    %v2840 = vld [vmem:[%s0 + $0x1f0] sm:$0xf]
    %v2841 = vld [vmem:[%s0 + $0x1f4] sm:$0xf]
    %v2842 = vld [vmem:[%s0 + $0x1f8] sm:$0xf]
    %v2843 = vld [vmem:[%s0 + $0x1fc] sm:$0xf]
    %v2860 = vunpack.c.l.b16 %v2828
    %v2861 = vunpack.c.l.b16 %v2829
    %v2862 = vunpack.c.l.b16 %v2830
    %v2863 = vunpack.c.l.b16 %v2831
    %v2864 = vunpack.c.l.b16 %v2832
    %v2865 = vunpack.c.l.b16 %v2833
    %v2866 = vunpack.c.l.b16 %v2834
    %v2867 = vunpack.c.l.b16 %v2835
    %v2868 = vunpack.c.l.b16 %v2836
    %v2869 = vunpack.c.l.b16 %v2837
    %v2870 = vunpack.c.l.b16 %v2838
    %v2871 = vunpack.c.l.b16 %v2839
    %v2872 = vunpack.c.l.b16 %v2840
    %v2873 = vunpack.c.l.b16 %v2841
    %v2874 = vunpack.c.l.b16 %v2842
    %v2875 = vunpack.c.l.b16 %v2843
    %v2876 = vpack.c.b16 %v2861, %v2860
    %v2877 = vpack.c.b16 %v2863, %v2862
    %v2878 = vpack.c.b16 %v2865, %v2864
    %v2879 = vpack.c.b16 %v2867, %v2866
    %v2880 = vpack.c.b16 %v2869, %v2868
    %v2881 = vpack.c.b16 %v2871, %v2870
    %v2882 = vpack.c.b16 %v2873, %v2872
    %v2883 = vpack.c.b16 %v2875, %v2874
    %v2885 = vsel %vm342, %v2876, 0
    %v2888 = vsel %vm342, %v2877, 0
    %v2891 = vsel %vm342, %v2878, 0
    %v2894 = vsel %vm342, %v2879, 0
    %v2897 = vsel %vm342, %v2880, 0
    %v2900 = vsel %vm342, %v2881, 0
    %v2903 = vsel %vm342, %v2882, 0
    %v2906 = vsel %vm342, %v2883, 0
    %2908 = vmatprep.subr.bf16.mxu0 0
    %2909 = vmatpush1.bf16.msra.mxu0 %v2703
    %2910 = vmatprep.subr.bf16.mxu0 0
    %2911 = vmatpush1.bf16.msra.mxu0 %v2704
    %2912 = vmatprep.subr.bf16.mxu0 0
    %2913 = vmatpush1.bf16.msra.mxu0 0
    %2914 = vmatprep.subr.bf16.mxu0 0
    %2915 = vmatpush1.bf16.msra.mxu0 0
    %2916 = vmatprep.subr.bf16.mxu0 0
    %2917 = vmatpush1.bf16.msra.mxu0 0
    %2918 = vmatprep.subr.bf16.mxu0 0
    %2919 = vmatpush1.bf16.msra.mxu0 0
    %2920 = vmatprep.subr.bf16.mxu0 0
    %2921 = vmatpush1.bf16.msra.mxu0 0
    %2922 = vmatprep.subr.bf16.mxu0 0
    %2923 = vmatpush1.bf16.msra.mxu0 0
    %2924 = vmatprep.subr.bf16.mxu0 0
    %2925 = vmatpush1.bf16.msra.mxu0 0
    %2926 = vmatprep.subr.bf16.mxu0 0
    %2927 = vmatpush1.bf16.msra.mxu0 0
    %2928 = vmatprep.subr.bf16.mxu0 0
    %2929 = vmatpush1.bf16.msra.mxu0 0
    %2930 = vmatprep.subr.bf16.mxu0 0
    %2931 = vmatpush1.bf16.msra.mxu0 0
    %2932 = vmatprep.subr.bf16.mxu0 0
    %2933 = vmatpush1.bf16.msra.mxu0 0
    %2934 = vmatprep.subr.bf16.mxu0 0
    %2935 = vmatpush1.bf16.msra.mxu0 0
    %2936 = vmatprep.subr.bf16.mxu0 0
    %2937 = vmatpush1.bf16.msra.mxu0 0
    %2938 = vmatprep.subr.bf16.mxu0 0
    %2939 = vmatpush1.bf16.msra.mxu0 0
    %2940 = vmatprep.mubr.bf16.mxu0 0
    %2941 = vmatmul.mubr.bf16.gmra.mrb[0].mxu0 %v2885
    %v2942 = vpop.f32.mrb[0].mxu0
    %v2943 = vadd.f32 0.0, %v2942
    %v2944 = vpop.f32.mrb[0].mxu0
    %v2945 = vpop.f32.mrb[0].mxu0
    %v2946 = vadd.f32 0.0, %v2945
    %v2947 = vpop.f32.mrb[0].mxu0
    %2948 = vmatprep.mubr.bf16.mxu0 0
    %2949 = vmatmul.mubr.bf16.gmra.mrb[0].mxu0 %v2888
    %v2950 = vpop.f32.mrb[0].mxu0
    %v2951 = vadd.f32 0.0, %v2950
    %v2952 = vpop.f32.mrb[0].mxu0
    %v2953 = vpop.f32.mrb[0].mxu0
    %v2954 = vadd.f32 0.0, %v2953
    %v2955 = vpop.f32.mrb[0].mxu0
    %2956 = vmatprep.mubr.bf16.mxu0 0
    %2957 = vmatmul.mubr.bf16.gmra.mrb[0].mxu0 %v2891
    %v2958 = vpop.f32.mrb[0].mxu0
    %v2959 = vadd.f32 0.0, %v2958
    %v2960 = vpop.f32.mrb[0].mxu0
    %v2961 = vpop.f32.mrb[0].mxu0
    %v2962 = vadd.f32 0.0, %v2961
    %v2963 = vpop.f32.mrb[0].mxu0
    %2964 = vmatprep.mubr.bf16.mxu0 0
    %2965 = vmatmul.mubr.bf16.gmra.mrb[0].mxu0 %v2894
    %v2966 = vpop.f32.mrb[0].mxu0
    %v2967 = vadd.f32 0.0, %v2966
    %v2968 = vpop.f32.mrb[0].mxu0
    %v2969 = vpop.f32.mrb[0].mxu0
    %v2970 = vadd.f32 0.0, %v2969
    %v2971 = vpop.f32.mrb[0].mxu0
    %2972 = vmatprep.mubr.bf16.mxu0 0
    %2973 = vmatmul.mubr.bf16.gmra.mrb[0].mxu0 %v2897
    %v2974 = vpop.f32.mrb[0].mxu0
    %v2975 = vadd.f32 0.0, %v2974
    %v2976 = vpop.f32.mrb[0].mxu0
    %v2977 = vpop.f32.mrb[0].mxu0
    %v2978 = vadd.f32 0.0, %v2977
    %v2979 = vpop.f32.mrb[0].mxu0
    %2980 = vmatprep.mubr.bf16.mxu0 0
    %2981 = vmatmul.mubr.bf16.gmra.mrb[0].mxu0 %v2900
    %v2982 = vpop.f32.mrb[0].mxu0
    %v2983 = vadd.f32 0.0, %v2982
    %v2984 = vpop.f32.mrb[0].mxu0
    %v2985 = vpop.f32.mrb[0].mxu0
    %v2986 = vadd.f32 0.0, %v2985
    %v2987 = vpop.f32.mrb[0].mxu0
    %2988 = vmatprep.mubr.bf16.mxu0 0
    %2989 = vmatmul.mubr.bf16.gmra.mrb[0].mxu0 %v2903
    %v2990 = vpop.f32.mrb[0].mxu0
    %v2991 = vadd.f32 0.0, %v2990
    %v2992 = vpop.f32.mrb[0].mxu0
    %v2993 = vpop.f32.mrb[0].mxu0
    %v2994 = vadd.f32 0.0, %v2993
    %v2995 = vpop.f32.mrb[0].mxu0
    %2996 = vmatprep.mubr.bf16.mxu0 0
    %2997 = vmatmul.mubr.bf16.gmra.mrb[0].mxu0 %v2906
    %v2998 = vpop.f32.mrb[0].mxu0
    %v2999 = vadd.f32 0.0, %v2998
    %v3000 = vpop.f32.mrb[0].mxu0
    %v3001 = vpop.f32.mrb[0].mxu0
    %v3002 = vadd.f32 0.0, %v3001
    %v3003 = vpop.f32.mrb[0].mxu0
    %3004 = vdwg.mxu0
    %v3005 = vmax.f32 %v2766, %v2943
    %v3006 = vmax.f32 %v2769, %v2946
    %v3007 = vmax.f32 %v2774, %v2951
    %v3008 = vmax.f32 %v2777, %v2954
    %v3009 = vmax.f32 %v2782, %v2959
    %v3010 = vmax.f32 %v2785, %v2962
    %v3011 = vmax.f32 %v2790, %v2967
    %v3012 = vmax.f32 %v2793, %v2970
    %v3013 = vmax.f32 %v2798, %v2975
    %v3014 = vmax.f32 %v2801, %v2978
    %v3015 = vmax.f32 %v2806, %v2983
    %v3016 = vmax.f32 %v2809, %v2986
    %v3017 = vmax.f32 %v2814, %v2991
    %v3018 = vmax.f32 %v2817, %v2994
    %v3019 = vmax.f32 %v2822, %v2999
    %v3020 = vmax.f32 %v2825, %v3002
    %v3021 = vld [vmem:[%s0 + $0x2c0] sm:$0xf]
    %v3022 = vld [vmem:[%s0 + $0x2c4] sm:$0xf]
    %v3023 = vld [vmem:[%s0 + $0x2c8] sm:$0xf]
    %v3024 = vld [vmem:[%s0 + $0x2cc] sm:$0xf]
    %v3025 = vld [vmem:[%s0 + $0x2d0] sm:$0xf]
    %v3026 = vld [vmem:[%s0 + $0x2d4] sm:$0xf]
    %v3027 = vld [vmem:[%s0 + $0x2d8] sm:$0xf]
    %v3028 = vld [vmem:[%s0 + $0x2dc] sm:$0xf]
    %v3029 = vld [vmem:[%s0 + $0x2e0] sm:$0xf]
    %v3030 = vld [vmem:[%s0 + $0x2e4] sm:$0xf]
    %v3031 = vld [vmem:[%s0 + $0x2e8] sm:$0xf]
    %v3032 = vld [vmem:[%s0 + $0x2ec] sm:$0xf]
    %v3033 = vld [vmem:[%s0 + $0x2f0] sm:$0xf]
    %v3034 = vld [vmem:[%s0 + $0x2f4] sm:$0xf]
    %v3035 = vld [vmem:[%s0 + $0x2f8] sm:$0xf]
    %v3036 = vld [vmem:[%s0 + $0x2fc] sm:$0xf]
    %v3053 = vunpack.c.l.b16 %v3021
    %v3054 = vunpack.c.l.b16 %v3022
    %v3055 = vunpack.c.l.b16 %v3023
    %v3056 = vunpack.c.l.b16 %v3024
    %v3057 = vunpack.c.l.b16 %v3025
    %v3058 = vunpack.c.l.b16 %v3026
    %v3059 = vunpack.c.l.b16 %v3027
    %v3060 = vunpack.c.l.b16 %v3028
    %v3061 = vunpack.c.l.b16 %v3029
    %v3062 = vunpack.c.l.b16 %v3030
    %v3063 = vunpack.c.l.b16 %v3031
    %v3064 = vunpack.c.l.b16 %v3032
    %v3065 = vunpack.c.l.b16 %v3033
    %v3066 = vunpack.c.l.b16 %v3034
    %v3067 = vunpack.c.l.b16 %v3035
    %v3068 = vunpack.c.l.b16 %v3036
    %v3069 = vpack.c.b16 %v3054, %v3053
    %v3070 = vpack.c.b16 %v3056, %v3055
    %v3071 = vpack.c.b16 %v3058, %v3057
    %v3072 = vpack.c.b16 %v3060, %v3059
    %v3073 = vpack.c.b16 %v3062, %v3061
    %v3074 = vpack.c.b16 %v3064, %v3063
    %v3075 = vpack.c.b16 %v3066, %v3065
    %v3076 = vpack.c.b16 %v3068, %v3067
    %v3078 = vsel %vm342, %v3069, 0
    %v3081 = vsel %vm342, %v3070, 0
    %v3084 = vsel %vm342, %v3071, 0
    %v3087 = vsel %vm342, %v3072, 0
    %v3090 = vsel %vm342, %v3073, 0
    %v3093 = vsel %vm342, %v3074, 0
    %v3096 = vsel %vm342, %v3075, 0
    %v3099 = vsel %vm342, %v3076, 0
    %3101 = vmatprep.subr.bf16.mxu0 0
    %3102 = vmatpush1.bf16.msra.mxu0 %v2703
    %3103 = vmatprep.subr.bf16.mxu0 0
    %3104 = vmatpush1.bf16.msra.mxu0 %v2704
    %3105 = vmatprep.subr.bf16.mxu0 0
    %3106 = vmatpush1.bf16.msra.mxu0 0
    %3107 = vmatprep.subr.bf16.mxu0 0
    %3108 = vmatpush1.bf16.msra.mxu0 0
    %3109 = vmatprep.subr.bf16.mxu0 0
    %3110 = vmatpush1.bf16.msra.mxu0 0
    %3111 = vmatprep.subr.bf16.mxu0 0
    %3112 = vmatpush1.bf16.msra.mxu0 0
    %3113 = vmatprep.subr.bf16.mxu0 0
    %3114 = vmatpush1.bf16.msra.mxu0 0
    %3115 = vmatprep.subr.bf16.mxu0 0
    %3116 = vmatpush1.bf16.msra.mxu0 0
    %3117 = vmatprep.subr.bf16.mxu0 0
    %3118 = vmatpush1.bf16.msra.mxu0 0
    %3119 = vmatprep.subr.bf16.mxu0 0
    %3120 = vmatpush1.bf16.msra.mxu0 0
    %3121 = vmatprep.subr.bf16.mxu0 0
    %3122 = vmatpush1.bf16.msra.mxu0 0
    %3123 = vmatprep.subr.bf16.mxu0 0
    %3124 = vmatpush1.bf16.msra.mxu0 0
    %3125 = vmatprep.subr.bf16.mxu0 0
    %3126 = vmatpush1.bf16.msra.mxu0 0
    %3127 = vmatprep.subr.bf16.mxu0 0
    %3128 = vmatpush1.bf16.msra.mxu0 0
    %3129 = vmatprep.subr.bf16.mxu0 0
    %3130 = vmatpush1.bf16.msra.mxu0 0
    %3131 = vmatprep.subr.bf16.mxu0 0
    %3132 = vmatpush1.bf16.msra.mxu0 0
    %3133 = vmatprep.mubr.bf16.mxu0 0
    %3134 = vmatmul.mubr.bf16.gmra.mrb[0].mxu0 %v3078
    %v3135 = vpop.f32.mrb[0].mxu0
    %v3136 = vadd.f32 0.0, %v3135
    %v3137 = vpop.f32.mrb[0].mxu0
    %v3138 = vpop.f32.mrb[0].mxu0
    %v3139 = vadd.f32 0.0, %v3138
    %v3140 = vpop.f32.mrb[0].mxu0
    %3141 = vmatprep.mubr.bf16.mxu0 0
    %3142 = vmatmul.mubr.bf16.gmra.mrb[0].mxu0 %v3081
    %v3143 = vpop.f32.mrb[0].mxu0
    %v3144 = vadd.f32 0.0, %v3143
    %v3145 = vpop.f32.mrb[0].mxu0
    %v3146 = vpop.f32.mrb[0].mxu0
    %v3147 = vadd.f32 0.0, %v3146
    %v3148 = vpop.f32.mrb[0].mxu0
    %3149 = vmatprep.mubr.bf16.mxu0 0
    %3150 = vmatmul.mubr.bf16.gmra.mrb[0].mxu0 %v3084
    %v3151 = vpop.f32.mrb[0].mxu0
    %v3152 = vadd.f32 0.0, %v3151
    %v3153 = vpop.f32.mrb[0].mxu0
    %v3154 = vpop.f32.mrb[0].mxu0
    %v3155 = vadd.f32 0.0, %v3154
    %v3156 = vpop.f32.mrb[0].mxu0
    %3157 = vmatprep.mubr.bf16.mxu0 0
    %3158 = vmatmul.mubr.bf16.gmra.mrb[0].mxu0 %v3087
    %v3159 = vpop.f32.mrb[0].mxu0
    %v3160 = vadd.f32 0.0, %v3159
    %v3161 = vpop.f32.mrb[0].mxu0
    %v3162 = vpop.f32.mrb[0].mxu0
    %v3163 = vadd.f32 0.0, %v3162
    %v3164 = vpop.f32.mrb[0].mxu0
    %3165 = vmatprep.mubr.bf16.mxu0 0
    %3166 = vmatmul.mubr.bf16.gmra.mrb[0].mxu0 %v3090
    %v3167 = vpop.f32.mrb[0].mxu0
    %v3168 = vadd.f32 0.0, %v3167
    %v3169 = vpop.f32.mrb[0].mxu0
    %v3170 = vpop.f32.mrb[0].mxu0
    %v3171 = vadd.f32 0.0, %v3170
    %v3172 = vpop.f32.mrb[0].mxu0
    %3173 = vmatprep.mubr.bf16.mxu0 0
    %3174 = vmatmul.mubr.bf16.gmra.mrb[0].mxu0 %v3093
    %v3175 = vpop.f32.mrb[0].mxu0
    %v3176 = vadd.f32 0.0, %v3175
    %v3177 = vpop.f32.mrb[0].mxu0
    %v3178 = vpop.f32.mrb[0].mxu0
    %v3179 = vadd.f32 0.0, %v3178
    %v3180 = vpop.f32.mrb[0].mxu0
    %3181 = vmatprep.mubr.bf16.mxu0 0
    %3182 = vmatmul.mubr.bf16.gmra.mrb[0].mxu0 %v3096
    %v3183 = vpop.f32.mrb[0].mxu0
    %v3184 = vadd.f32 0.0, %v3183
    %v3185 = vpop.f32.mrb[0].mxu0
    %v3186 = vpop.f32.mrb[0].mxu0
    %v3187 = vadd.f32 0.0, %v3186
    %v3188 = vpop.f32.mrb[0].mxu0
    %3189 = vmatprep.mubr.bf16.mxu0 0
    %3190 = vmatmul.mubr.bf16.gmra.mrb[0].mxu0 %v3099
    %v3191 = vpop.f32.mrb[0].mxu0
    %v3192 = vadd.f32 0.0, %v3191
    %v3193 = vpop.f32.mrb[0].mxu0
    %v3194 = vpop.f32.mrb[0].mxu0
    %v3195 = vadd.f32 0.0, %v3194
    %v3196 = vpop.f32.mrb[0].mxu0
    %3197 = vdwg.mxu0
    %v3198 = vmax.f32 %v3005, %v3136
    %v3199 = vmax.f32 %v3006, %v3139
    %v3200 = vmax.f32 %v3007, %v3144
    %v3201 = vmax.f32 %v3008, %v3147
    %v3202 = vmax.f32 %v3009, %v3152
    %v3203 = vmax.f32 %v3010, %v3155
    %v3204 = vmax.f32 %v3011, %v3160
    %v3205 = vmax.f32 %v3012, %v3163
    %v3206 = vmax.f32 %v3013, %v3168
    %v3207 = vmax.f32 %v3014, %v3171
    %v3208 = vmax.f32 %v3015, %v3176
    %v3209 = vmax.f32 %v3016, %v3179
    %v3210 = vmax.f32 %v3017, %v3184
    %v3211 = vmax.f32 %v3018, %v3187
    %v3212 = vmax.f32 %v3019, %v3192
    %v3213 = vmax.f32 %v3020, %v3195
    %v3214 = vld [vmem:[%s0 + $0x3c0] sm:$0xf]
    %v3215 = vld [vmem:[%s0 + $0x3c4] sm:$0xf]
    %v3216 = vld [vmem:[%s0 + $0x3c8] sm:$0xf]
    %v3217 = vld [vmem:[%s0 + $0x3cc] sm:$0xf]
    %v3218 = vld [vmem:[%s0 + $0x3d0] sm:$0xf]
    %v3219 = vld [vmem:[%s0 + $0x3d4] sm:$0xf]
    %v3220 = vld [vmem:[%s0 + $0x3d8] sm:$0xf]
    %v3221 = vld [vmem:[%s0 + $0x3dc] sm:$0xf]
    %v3222 = vld [vmem:[%s0 + $0x3e0] sm:$0xf]
    %v3223 = vld [vmem:[%s0 + $0x3e4] sm:$0xf]
    %v3224 = vld [vmem:[%s0 + $0x3e8] sm:$0xf]
    %v3225 = vld [vmem:[%s0 + $0x3ec] sm:$0xf]
    %v3226 = vld [vmem:[%s0 + $0x3f0] sm:$0xf]
    %v3227 = vld [vmem:[%s0 + $0x3f4] sm:$0xf]
    %v3228 = vld [vmem:[%s0 + $0x3f8] sm:$0xf]
    %v3229 = vld [vmem:[%s0 + $0x3fc] sm:$0xf]
    %v3246 = vunpack.c.l.b16 %v3214
    %v3247 = vunpack.c.l.b16 %v3215
    %v3248 = vunpack.c.l.b16 %v3216
    %v3249 = vunpack.c.l.b16 %v3217
    %v3250 = vunpack.c.l.b16 %v3218
    %v3251 = vunpack.c.l.b16 %v3219
    %v3252 = vunpack.c.l.b16 %v3220
    %v3253 = vunpack.c.l.b16 %v3221
    %v3254 = vunpack.c.l.b16 %v3222
    %v3255 = vunpack.c.l.b16 %v3223
    %v3256 = vunpack.c.l.b16 %v3224
    %v3257 = vunpack.c.l.b16 %v3225
    %v3258 = vunpack.c.l.b16 %v3226
    %v3259 = vunpack.c.l.b16 %v3227
    %v3260 = vunpack.c.l.b16 %v3228
    %v3261 = vunpack.c.l.b16 %v3229
    %v3262 = vpack.c.b16 %v3247, %v3246
    %v3263 = vpack.c.b16 %v3249, %v3248
    %v3264 = vpack.c.b16 %v3251, %v3250
    %v3265 = vpack.c.b16 %v3253, %v3252
    %v3266 = vpack.c.b16 %v3255, %v3254
    %v3267 = vpack.c.b16 %v3257, %v3256
    %v3268 = vpack.c.b16 %v3259, %v3258
    %v3269 = vpack.c.b16 %v3261, %v3260
    %v3271 = vsel %vm342, %v3262, 0
    %v3274 = vsel %vm342, %v3263, 0
    %v3277 = vsel %vm342, %v3264, 0
    %v3280 = vsel %vm342, %v3265, 0
    %v3283 = vsel %vm342, %v3266, 0
    %v3286 = vsel %vm342, %v3267, 0
    %v3289 = vsel %vm342, %v3268, 0
    %v3292 = vsel %vm342, %v3269, 0
    %3294 = vmatprep.subr.bf16.mxu0 0
    %3295 = vmatpush1.bf16.msra.mxu0 %v2703
    %3296 = vmatprep.subr.bf16.mxu0 0
    %3297 = vmatpush1.bf16.msra.mxu0 %v2704
    %3298 = vmatprep.subr.bf16.mxu0 0
    %3299 = vmatpush1.bf16.msra.mxu0 0
    %3300 = vmatprep.subr.bf16.mxu0 0
    %3301 = vmatpush1.bf16.msra.mxu0 0
    %3302 = vmatprep.subr.bf16.mxu0 0
    %3303 = vmatpush1.bf16.msra.mxu0 0
    %3304 = vmatprep.subr.bf16.mxu0 0
    %3305 = vmatpush1.bf16.msra.mxu0 0
    %3306 = vmatprep.subr.bf16.mxu0 0
    %3307 = vmatpush1.bf16.msra.mxu0 0
    %3308 = vmatprep.subr.bf16.mxu0 0
    %3309 = vmatpush1.bf16.msra.mxu0 0
    %3310 = vmatprep.subr.bf16.mxu0 0
    %3311 = vmatpush1.bf16.msra.mxu0 0
    %3312 = vmatprep.subr.bf16.mxu0 0
    %3313 = vmatpush1.bf16.msra.mxu0 0
    %3314 = vmatprep.subr.bf16.mxu0 0
    %3315 = vmatpush1.bf16.msra.mxu0 0
    %3316 = vmatprep.subr.bf16.mxu0 0
    %3317 = vmatpush1.bf16.msra.mxu0 0
    %3318 = vmatprep.subr.bf16.mxu0 0
    %3319 = vmatpush1.bf16.msra.mxu0 0
    %3320 = vmatprep.subr.bf16.mxu0 0
    %3321 = vmatpush1.bf16.msra.mxu0 0
    %3322 = vmatprep.subr.bf16.mxu0 0
    %3323 = vmatpush1.bf16.msra.mxu0 0
    %3324 = vmatprep.subr.bf16.mxu0 0
    %3325 = vmatpush1.bf16.msra.mxu0 0
    %3326 = vmatprep.mubr.bf16.mxu0 0
    %3327 = vmatmul.mubr.bf16.gmra.mrb[0].mxu0 %v3271
    %v3328 = vpop.f32.mrb[0].mxu0
    %v3329 = vadd.f32 0.0, %v3328
    %v3330 = vpop.f32.mrb[0].mxu0
    %v3331 = vpop.f32.mrb[0].mxu0
    %v3332 = vadd.f32 0.0, %v3331
    %v3333 = vpop.f32.mrb[0].mxu0
    %3334 = vmatprep.mubr.bf16.mxu0 0
    %3335 = vmatmul.mubr.bf16.gmra.mrb[0].mxu0 %v3274
    %v3336 = vpop.f32.mrb[0].mxu0
    %v3337 = vadd.f32 0.0, %v3336
    %v3338 = vpop.f32.mrb[0].mxu0
    %v3339 = vpop.f32.mrb[0].mxu0
    %v3340 = vadd.f32 0.0, %v3339
    %v3341 = vpop.f32.mrb[0].mxu0
    %3342 = vmatprep.mubr.bf16.mxu0 0
    %3343 = vmatmul.mubr.bf16.gmra.mrb[0].mxu0 %v3277
    %v3344 = vpop.f32.mrb[0].mxu0
    %v3345 = vadd.f32 0.0, %v3344
    %v3346 = vpop.f32.mrb[0].mxu0
    %v3347 = vpop.f32.mrb[0].mxu0
    %v3348 = vadd.f32 0.0, %v3347
    %v3349 = vpop.f32.mrb[0].mxu0
    %3350 = vmatprep.mubr.bf16.mxu0 0
    %3351 = vmatmul.mubr.bf16.gmra.mrb[0].mxu0 %v3280
    %v3352 = vpop.f32.mrb[0].mxu0
    %v3353 = vadd.f32 0.0, %v3352
    %v3354 = vpop.f32.mrb[0].mxu0
    %v3355 = vpop.f32.mrb[0].mxu0
    %v3356 = vadd.f32 0.0, %v3355
    %v3357 = vpop.f32.mrb[0].mxu0
    %3358 = vmatprep.mubr.bf16.mxu0 0
    %3359 = vmatmul.mubr.bf16.gmra.mrb[0].mxu0 %v3283
    %v3360 = vpop.f32.mrb[0].mxu0
    %v3361 = vadd.f32 0.0, %v3360
    %v3362 = vpop.f32.mrb[0].mxu0
    %v3363 = vpop.f32.mrb[0].mxu0
    %v3364 = vadd.f32 0.0, %v3363
    %v3365 = vpop.f32.mrb[0].mxu0
    %3366 = vmatprep.mubr.bf16.mxu0 0
    %3367 = vmatmul.mubr.bf16.gmra.mrb[0].mxu0 %v3286
    %v3368 = vpop.f32.mrb[0].mxu0
    %v3369 = vadd.f32 0.0, %v3368
    %v3370 = vpop.f32.mrb[0].mxu0
    %v3371 = vpop.f32.mrb[0].mxu0
    %v3372 = vadd.f32 0.0, %v3371
    %v3373 = vpop.f32.mrb[0].mxu0
    %3374 = vmatprep.mubr.bf16.mxu0 0
    %3375 = vmatmul.mubr.bf16.gmra.mrb[0].mxu0 %v3289
    %v3376 = vpop.f32.mrb[0].mxu0
    %v3377 = vadd.f32 0.0, %v3376
    %v3378 = vpop.f32.mrb[0].mxu0
    %v3379 = vpop.f32.mrb[0].mxu0
    %v3380 = vadd.f32 0.0, %v3379
    %v3381 = vpop.f32.mrb[0].mxu0
    %3382 = vmatprep.mubr.bf16.mxu0 0
    %3383 = vmatmul.mubr.bf16.gmra.mrb[0].mxu0 %v3292
    %v3384 = vpop.f32.mrb[0].mxu0
    %v3385 = vadd.f32 0.0, %v3384
    %v3386 = vpop.f32.mrb[0].mxu0
    %v3387 = vpop.f32.mrb[0].mxu0
    %v3388 = vadd.f32 0.0, %v3387
    %v3389 = vpop.f32.mrb[0].mxu0
    %3390 = vdwg.mxu0
    %v3391 = vmax.f32 %v3198, %v3329
    %v3392 = vmax.f32 %v3199, %v3332
    %v3393 = vmax.f32 %v3200, %v3337
    %v3394 = vmax.f32 %v3201, %v3340
    %v3395 = vmax.f32 %v3202, %v3345
    %v3396 = vmax.f32 %v3203, %v3348
    %v3397 = vmax.f32 %v3204, %v3353
    %v3398 = vmax.f32 %v3205, %v3356
    %v3399 = vmax.f32 %v3206, %v3361
    %v3400 = vmax.f32 %v3207, %v3364
    %v3401 = vmax.f32 %v3208, %v3369
    %v3402 = vmax.f32 %v3209, %v3372
    %v3403 = vmax.f32 %v3210, %v3377
    %v3404 = vmax.f32 %v3211, %v3380
    %v3405 = vmax.f32 %v3212, %v3385
    %v3406 = vmax.f32 %v3213, %v3388
    %3407 = vst [vmem:[#allocation2 + $0x180] sm:$0xff] %v3391
    %3408 = vst [vmem:[#allocation2 + $0x188] sm:$0xff] %v3392
    %3409 = vst [vmem:[#allocation2 + $0x190] sm:$0xff] %v3393
    %3410 = vst [vmem:[#allocation2 + $0x198] sm:$0xff] %v3394
    %3411 = vst [vmem:[#allocation2 + $0x1a0] sm:$0xff] %v3395
    %3412 = vst [vmem:[#allocation2 + $0x1a8] sm:$0xff] %v3396
    %3413 = vst [vmem:[#allocation2 + $0x1b0] sm:$0xff] %v3397
    %3414 = vst [vmem:[#allocation2 + $0x1b8] sm:$0xff] %v3398
    %3415 = vst [vmem:[#allocation2 + $0x1c0] sm:$0xff] %v3399
    %3416 = vst [vmem:[#allocation2 + $0x1c8] sm:$0xff] %v3400
    %3417 = vst [vmem:[#allocation2 + $0x1d0] sm:$0xff] %v3401
    %3418 = vst [vmem:[#allocation2 + $0x1d8] sm:$0xff] %v3402
    %3419 = vst [vmem:[#allocation2 + $0x1e0] sm:$0xff] %v3403
    %3420 = vst [vmem:[#allocation2 + $0x1e8] sm:$0xff] %v3404
    %3421 = vst [vmem:[#allocation2 + $0x1f0] sm:$0xff] %v3405
    %3422 = vst [vmem:[#allocation2 + $0x1f8] sm:$0xff] %v3406
    %v3423 = vld [vmem:[#allocation2 + $0x48] sm:$0xff]
    %v3424 = vld [vmem:[#allocation2 + $0x50] sm:$0xff]
    %v3425 = vld [vmem:[#allocation2 + $0x58] sm:$0xff]
    %v3426 = vld [vmem:[#allocation2 + $0x60] sm:$0xff]
    %v3427 = vld [vmem:[#allocation2 + $0x68] sm:$0xff]
    %v3428 = vld [vmem:[%s2] sm:$0x1]
    %v3430 = vlaneseq
    %v3431 = vshrl.u32 %v3430, 7
    %v3432 = vsub.s32 0, %v3431
    %v3433 = vrot.slane %v3428, %v3432
    %v3435 = vadd.f32 %v3423, %v3433
    %v3436 = vadd.f32 %v3424, %v3433
    %v3437 = vadd.f32 %v3425, %v3433
    %v3438 = vadd.f32 %v3426, %v3433
    %v3439 = vadd.f32 %v3427, %v3433
    %vm3440 = vcmp.gt.f32.partialorder %v3435, 0.0
    %vm3441 = vcmp.gt.f32.partialorder %v3436, 0.0
    %vm3442 = vcmp.gt.f32.partialorder %v3437, 0.0
    %vm3443 = vcmp.gt.f32.partialorder %v3438, 0.0
    %vm3444 = vcmp.gt.f32.partialorder %v3439, 0.0
    %v3445 = vmin.f32 %v3435, 0.0
    %v3446 = vmin.f32 %v3436, 0.0
    %v3447 = vmin.f32 %v3437, 0.0
    %v3448 = vmin.f32 %v3438, 0.0
    %v3449 = vmin.f32 %v3439, 0.0
    %v3450 = vmul.f32 %v3445, 1.442695
    %v3451 = vpow.pop %v3450
    %v3452 = vmul.f32 %v3446, 1.442695
    %v3453 = vpow.pop %v3452
    %v3454 = vmul.f32 %v3447, 1.442695
    %v3455 = vpow.pop %v3454
    %v3456 = vmul.f32 %v3448, 1.442695
    %v3457 = vpow.pop %v3456
    %v3458 = vmul.f32 %v3449, 1.442695
    %v3459 = vpow.pop %v3458
    %v3460 = vsub.f32 %v3451, 1.0
    %v3461 = vsub.f32 %v3453, 1.0
    %v3462 = vsub.f32 %v3455, 1.0
    %v3463 = vsub.f32 %v3457, 1.0
    %v3464 = vsub.f32 %v3459, 1.0
    %v3465 = vsel %vm3440, %v3435, %v3460
    %v3466 = vsel %vm3441, %v3436, %v3461
    %v3467 = vsel %vm3442, %v3437, %v3462
    %v3468 = vsel %vm3443, %v3438, %v3463
    %v3469 = vsel %vm3444, %v3439, %v3464
    %3470 = vst [vmem:[#allocation2 + $0x48] sm:$0xff] %v3465
    %3471 = vst [vmem:[#allocation2 + $0x50] sm:$0xff] %v3466
    %3472 = vst [vmem:[#allocation2 + $0x58] sm:$0xff] %v3467
    %3473 = vst [vmem:[#allocation2 + $0x60] sm:$0xff] %v3468
    %3474 = vst [vmem:[#allocation2 + $0x68] sm:$0xff] %v3469
    %v3475 = vld [vmem:[#allocation2 + $0x88] sm:$0xff]
    %v3476 = vld [vmem:[#allocation2 + $0x90] sm:$0xff]
    %v3477 = vld [vmem:[#allocation2 + $0x98] sm:$0xff]
    %v3478 = vld [vmem:[#allocation2 + $0xa0] sm:$0xff]
    %v3479 = vld [vmem:[#allocation2 + $0xa8] sm:$0xff]
    %v3480 = vld [vmem:[%s2] sm:$0x1]
    %v3482 = vlaneseq
    %v3483 = vshrl.u32 %v3482, 7
    %v3484 = vsub.s32 0, %v3483
    %v3485 = vrot.slane %v3480, %v3484
    %v3487 = vadd.f32 %v3475, %v3485
    %v3488 = vadd.f32 %v3476, %v3485
    %v3489 = vadd.f32 %v3477, %v3485
    %v3490 = vadd.f32 %v3478, %v3485
    %v3491 = vadd.f32 %v3479, %v3485
    %vm3492 = vcmp.gt.f32.partialorder %v3487, 0.0
    %vm3493 = vcmp.gt.f32.partialorder %v3488, 0.0
    %vm3494 = vcmp.gt.f32.partialorder %v3489, 0.0
    %vm3495 = vcmp.gt.f32.partialorder %v3490, 0.0
    %vm3496 = vcmp.gt.f32.partialorder %v3491, 0.0
    %v3497 = vmin.f32 %v3487, 0.0
    %v3498 = vmin.f32 %v3488, 0.0
    %v3499 = vmin.f32 %v3489, 0.0
    %v3500 = vmin.f32 %v3490, 0.0
    %v3501 = vmin.f32 %v3491, 0.0
    %v3502 = vmul.f32 %v3497, 1.442695
    %v3503 = vpow.pop %v3502
    %v3504 = vmul.f32 %v3498, 1.442695
    %v3505 = vpow.pop %v3504
    %v3506 = vmul.f32 %v3499, 1.442695
    %v3507 = vpow.pop %v3506
    %v3508 = vmul.f32 %v3500, 1.442695
    %v3509 = vpow.pop %v3508
    %v3510 = vmul.f32 %v3501, 1.442695
    %v3511 = vpow.pop %v3510
    %v3512 = vsub.f32 %v3503, 1.0
    %v3513 = vsub.f32 %v3505, 1.0
    %v3514 = vsub.f32 %v3507, 1.0
    %v3515 = vsub.f32 %v3509, 1.0
    %v3516 = vsub.f32 %v3511, 1.0
    %v3517 = vsel %vm3492, %v3487, %v3512
    %v3518 = vsel %vm3493, %v3488, %v3513
    %v3519 = vsel %vm3494, %v3489, %v3514
    %v3520 = vsel %vm3495, %v3490, %v3515
    %v3521 = vsel %vm3496, %v3491, %v3516
    %3522 = vst [vmem:[#allocation2 + $0x88] sm:$0xff] %v3517
    %3523 = vst [vmem:[#allocation2 + $0x90] sm:$0xff] %v3518
    %3524 = vst [vmem:[#allocation2 + $0x98] sm:$0xff] %v3519
    %3525 = vst [vmem:[#allocation2 + $0xa0] sm:$0xff] %v3520
    %3526 = vst [vmem:[#allocation2 + $0xa8] sm:$0xff] %v3521
    %v3527 = vld [vmem:[#allocation2 + $0xc8] sm:$0xff]
    %v3528 = vld [vmem:[#allocation2 + $0xd0] sm:$0xff]
    %v3529 = vld [vmem:[#allocation2 + $0xd8] sm:$0xff]
    %v3530 = vld [vmem:[#allocation2 + $0xe0] sm:$0xff]
    %v3531 = vld [vmem:[#allocation2 + $0xe8] sm:$0xff]
    %v3532 = vld [vmem:[%s2] sm:$0x1]
    %v3534 = vlaneseq
    %v3535 = vshrl.u32 %v3534, 7
    %v3536 = vsub.s32 0, %v3535
    %v3537 = vrot.slane %v3532, %v3536
    %v3539 = vadd.f32 %v3527, %v3537
    %v3540 = vadd.f32 %v3528, %v3537
    %v3541 = vadd.f32 %v3529, %v3537
    %v3542 = vadd.f32 %v3530, %v3537
    %v3543 = vadd.f32 %v3531, %v3537
    %vm3544 = vcmp.gt.f32.partialorder %v3539, 0.0
    %vm3545 = vcmp.gt.f32.partialorder %v3540, 0.0
    %vm3546 = vcmp.gt.f32.partialorder %v3541, 0.0
    %vm3547 = vcmp.gt.f32.partialorder %v3542, 0.0
    %vm3548 = vcmp.gt.f32.partialorder %v3543, 0.0
    %v3549 = vmin.f32 %v3539, 0.0
    %v3550 = vmin.f32 %v3540, 0.0
    %v3551 = vmin.f32 %v3541, 0.0
    %v3552 = vmin.f32 %v3542, 0.0
    %v3553 = vmin.f32 %v3543, 0.0
    %v3554 = vmul.f32 %v3549, 1.442695
    %v3555 = vpow.pop %v3554
    %v3556 = vmul.f32 %v3550, 1.442695
    %v3557 = vpow.pop %v3556
    %v3558 = vmul.f32 %v3551, 1.442695
    %v3559 = vpow.pop %v3558
    %v3560 = vmul.f32 %v3552, 1.442695
    %v3561 = vpow.pop %v3560
    %v3562 = vmul.f32 %v3553, 1.442695
    %v3563 = vpow.pop %v3562
    %v3564 = vsub.f32 %v3555, 1.0
    %v3565 = vsub.f32 %v3557, 1.0
    %v3566 = vsub.f32 %v3559, 1.0
    %v3567 = vsub.f32 %v3561, 1.0
    %v3568 = vsub.f32 %v3563, 1.0
    %v3569 = vsel %vm3544, %v3539, %v3564
    %v3570 = vsel %vm3545, %v3540, %v3565
    %v3571 = vsel %vm3546, %v3541, %v3566
    %v3572 = vsel %vm3547, %v3542, %v3567
    %v3573 = vsel %vm3548, %v3543, %v3568
    %3574 = vst [vmem:[#allocation2 + $0xc8] sm:$0xff] %v3569
    %3575 = vst [vmem:[#allocation2 + $0xd0] sm:$0xff] %v3570
    %3576 = vst [vmem:[#allocation2 + $0xd8] sm:$0xff] %v3571
    %3577 = vst [vmem:[#allocation2 + $0xe0] sm:$0xff] %v3572
    %3578 = vst [vmem:[#allocation2 + $0xe8] sm:$0xff] %v3573
    %v3579 = vld [vmem:[#allocation2 + $0x108] sm:$0xff]
    %v3580 = vld [vmem:[#allocation2 + $0x110] sm:$0xff]
    %v3581 = vld [vmem:[#allocation2 + $0x118] sm:$0xff]
    %v3582 = vld [vmem:[#allocation2 + $0x120] sm:$0xff]
    %v3583 = vld [vmem:[#allocation2 + $0x128] sm:$0xff]
    %v3584 = vld [vmem:[%s2] sm:$0x1]
    %v3586 = vlaneseq
    %v3587 = vshrl.u32 %v3586, 7
    %v3588 = vsub.s32 0, %v3587
    %v3589 = vrot.slane %v3584, %v3588
    %v3591 = vadd.f32 %v3579, %v3589
    %v3592 = vadd.f32 %v3580, %v3589
    %v3593 = vadd.f32 %v3581, %v3589
    %v3594 = vadd.f32 %v3582, %v3589
    %v3595 = vadd.f32 %v3583, %v3589
    %vm3596 = vcmp.gt.f32.partialorder %v3591, 0.0
    %vm3597 = vcmp.gt.f32.partialorder %v3592, 0.0
    %vm3598 = vcmp.gt.f32.partialorder %v3593, 0.0
    %vm3599 = vcmp.gt.f32.partialorder %v3594, 0.0
    %vm3600 = vcmp.gt.f32.partialorder %v3595, 0.0
    %v3601 = vmin.f32 %v3591, 0.0
    %v3602 = vmin.f32 %v3592, 0.0
    %v3603 = vmin.f32 %v3593, 0.0
    %v3604 = vmin.f32 %v3594, 0.0
    %v3605 = vmin.f32 %v3595, 0.0
    %v3606 = vmul.f32 %v3601, 1.442695
    %v3607 = vpow.pop %v3606
    %v3608 = vmul.f32 %v3602, 1.442695
    %v3609 = vpow.pop %v3608
    %v3610 = vmul.f32 %v3603, 1.442695
    %v3611 = vpow.pop %v3610
    %v3612 = vmul.f32 %v3604, 1.442695
    %v3613 = vpow.pop %v3612
    %v3614 = vmul.f32 %v3605, 1.442695
    %v3615 = vpow.pop %v3614
    %v3616 = vsub.f32 %v3607, 1.0
    %v3617 = vsub.f32 %v3609, 1.0
    %v3618 = vsub.f32 %v3611, 1.0
    %v3619 = vsub.f32 %v3613, 1.0
    %v3620 = vsub.f32 %v3615, 1.0
    %v3621 = vsel %vm3596, %v3591, %v3616
    %v3622 = vsel %vm3597, %v3592, %v3617
    %v3623 = vsel %vm3598, %v3593, %v3618
    %v3624 = vsel %vm3599, %v3594, %v3619
    %v3625 = vsel %vm3600, %v3595, %v3620
    %3626 = vst [vmem:[#allocation2 + $0x108] sm:$0xff] %v3621
    %3627 = vst [vmem:[#allocation2 + $0x110] sm:$0xff] %v3622
    %3628 = vst [vmem:[#allocation2 + $0x118] sm:$0xff] %v3623
    %3629 = vst [vmem:[#allocation2 + $0x120] sm:$0xff] %v3624
    %3630 = vst [vmem:[#allocation2 + $0x128] sm:$0xff] %v3625
    %v3631 = vld [vmem:[#allocation2 + $0x148] sm:$0xff]
    %v3632 = vld [vmem:[#allocation2 + $0x150] sm:$0xff]
    %v3633 = vld [vmem:[#allocation2 + $0x158] sm:$0xff]
    %v3634 = vld [vmem:[#allocation2 + $0x160] sm:$0xff]
    %v3635 = vld [vmem:[#allocation2 + $0x168] sm:$0xff]
    %v3636 = vld [vmem:[%s2] sm:$0x1]
    %v3638 = vlaneseq
    %v3639 = vshrl.u32 %v3638, 7
    %v3640 = vsub.s32 0, %v3639
    %v3641 = vrot.slane %v3636, %v3640
    %v3643 = vadd.f32 %v3631, %v3641
    %v3644 = vadd.f32 %v3632, %v3641
    %v3645 = vadd.f32 %v3633, %v3641
    %v3646 = vadd.f32 %v3634, %v3641
    %v3647 = vadd.f32 %v3635, %v3641
    %vm3648 = vcmp.gt.f32.partialorder %v3643, 0.0
    %vm3649 = vcmp.gt.f32.partialorder %v3644, 0.0
    %vm3650 = vcmp.gt.f32.partialorder %v3645, 0.0
    %vm3651 = vcmp.gt.f32.partialorder %v3646, 0.0
    %vm3652 = vcmp.gt.f32.partialorder %v3647, 0.0
    %v3653 = vmin.f32 %v3643, 0.0
    %v3654 = vmin.f32 %v3644, 0.0
    %v3655 = vmin.f32 %v3645, 0.0
    %v3656 = vmin.f32 %v3646, 0.0
    %v3657 = vmin.f32 %v3647, 0.0
    %v3658 = vmul.f32 %v3653, 1.442695
    %v3659 = vpow.pop %v3658
    %v3660 = vmul.f32 %v3654, 1.442695
    %v3661 = vpow.pop %v3660
    %v3662 = vmul.f32 %v3655, 1.442695
    %v3663 = vpow.pop %v3662
    %v3664 = vmul.f32 %v3656, 1.442695
    %v3665 = vpow.pop %v3664
    %v3666 = vmul.f32 %v3657, 1.442695
    %v3667 = vpow.pop %v3666
    %v3668 = vsub.f32 %v3659, 1.0
    %v3669 = vsub.f32 %v3661, 1.0
    %v3670 = vsub.f32 %v3663, 1.0
    %v3671 = vsub.f32 %v3665, 1.0
    %v3672 = vsub.f32 %v3667, 1.0
    %v3673 = vsel %vm3648, %v3643, %v3668
    %v3674 = vsel %vm3649, %v3644, %v3669
    %v3675 = vsel %vm3650, %v3645, %v3670
    %v3676 = vsel %vm3651, %v3646, %v3671
    %v3677 = vsel %vm3652, %v3647, %v3672
    %3678 = vst [vmem:[#allocation2 + $0x148] sm:$0xff] %v3673
    %3679 = vst [vmem:[#allocation2 + $0x150] sm:$0xff] %v3674
    %3680 = vst [vmem:[#allocation2 + $0x158] sm:$0xff] %v3675
    %3681 = vst [vmem:[#allocation2 + $0x160] sm:$0xff] %v3676
    %3682 = vst [vmem:[#allocation2 + $0x168] sm:$0xff] %v3677
    %vm3683 = vcmp.ge.s32.totalorder %v269, 0
    %vm3684 = vcmp.lt.s32.totalorder %v269, 6
    %vm3685 = vmand %vm3683, %vm3684
    %v3686 = vsel %vm3685, 1, 0
    %v3687 = vcvt.s32.f32 %v3686
    %vm3688 = vcmp.ge.s32.totalorder %v269, 32
    %vm3689 = vcmp.lt.s32.totalorder %v269, 38
    %vm3690 = vmand %vm3688, %vm3689
    %v3691 = vsel %vm3690, 1, 0
    %v3692 = vcvt.s32.f32 %v3691
    %vm3693 = vcmp.ge.s32.totalorder %v269, 64
    %vm3694 = vcmp.lt.s32.totalorder %v269, 70
    %vm3695 = vmand %vm3693, %vm3694
    %v3696 = vsel %vm3695, 1, 0
    %v3697 = vcvt.s32.f32 %v3696
    %vm3698 = vcmp.ge.s32.totalorder %v269, 96
    %vm3699 = vcmp.lt.s32.totalorder %v269, 102
    %vm3700 = vmand %vm3698, %vm3699
    %v3701 = vsel %vm3700, 1, 0
    %v3702 = vcvt.s32.f32 %v3701
    %v3703 = vld [vmem:[#allocation2] sm:$0xff]
    %v3704 = vld [vmem:[#allocation2 + $0x8] sm:$0xff]
    %v3705 = vld [vmem:[#allocation2 + $0x10] sm:$0xff]
    %v3706 = vld [vmem:[#allocation2 + $0x18] sm:$0xff]
    %v3707 = vld [vmem:[#allocation2 + $0x20] sm:$0xff]
    %v3708 = vld [vmem:[#allocation2 + $0x28] sm:$0xff]
    %v3709 = vld [vmem:[#allocation2 + $0x30] sm:$0xff]
    %v3710 = vld [vmem:[#allocation2 + $0x38] sm:$0xff]
    %v3711 = vld [vmem:[#allocation2 + $0x40] sm:$0xff]
    %v3712 = vld [vmem:[#allocation2 + $0x48] sm:$0xff]
    %v3713 = vld [vmem:[#allocation2 + $0x50] sm:$0xff]
    %v3714 = vld [vmem:[#allocation2 + $0x58] sm:$0xff]
    %v3715 = vld [vmem:[#allocation2 + $0x60] sm:$0xff]
    %v3716 = vld [vmem:[#allocation2 + $0x68] sm:$0xff]
    %v3717 = vld [vmem:[#allocation2 + $0x70] sm:$0xff]
    %v3718 = vld [vmem:[#allocation2 + $0x78] sm:$0xff]
    %v3719 = vmul.f32 %v3703, %v3687
    %v3720 = vmul.f32 %v3704, %v3687
    %v3721 = vmul.f32 %v3705, %v3687
    %v3722 = vmul.f32 %v3706, %v3687
    %v3723 = vmul.f32 %v3707, %v3687
    %v3724 = vmul.f32 %v3708, %v3687
    %v3725 = vmul.f32 %v3709, %v3687
    %v3726 = vmul.f32 %v3710, %v3687
    %v3727 = vmul.f32 %v3711, %v3687
    %v3728 = vmul.f32 %v3712, %v3687
    %v3729 = vmul.f32 %v3713, %v3687
    %v3730 = vmul.f32 %v3714, %v3687
    %v3731 = vmul.f32 %v3715, %v3687
    %v3732 = vmul.f32 %v3716, %v3687
    %v3733 = vmul.f32 %v3717, %v3687
    %v3734 = vmul.f32 %v3718, %v3687
    %v3735 = vld [vmem:[#allocation2 + $0x80] sm:$0xff]
    %v3736 = vmul.f32 %v3704, %v3692
    %v3737 = vmul.f32 %v3705, %v3692
    %v3738 = vmul.f32 %v3706, %v3692
    %v3739 = vmul.f32 %v3707, %v3692
    %v3740 = vmul.f32 %v3708, %v3692
    %v3741 = vmul.f32 %v3709, %v3692
    %v3742 = vmul.f32 %v3710, %v3692
    %v3743 = vmul.f32 %v3711, %v3692
    %v3744 = vmul.f32 %v3712, %v3692
    %v3745 = vmul.f32 %v3713, %v3692
    %v3746 = vmul.f32 %v3714, %v3692
    %v3747 = vmul.f32 %v3715, %v3692
    %v3748 = vmul.f32 %v3716, %v3692
    %v3749 = vmul.f32 %v3717, %v3692
    %v3750 = vmul.f32 %v3718, %v3692
    %v3751 = vmul.f32 %v3735, %v3692
    %v3752 = vadd.f32 %v3719, %v3736
    %v3753 = vadd.f32 %v3720, %v3737
    %v3754 = vadd.f32 %v3721, %v3738
    %v3755 = vadd.f32 %v3722, %v3739
    %v3756 = vadd.f32 %v3723, %v3740
    %v3757 = vadd.f32 %v3724, %v3741
    %v3758 = vadd.f32 %v3725, %v3742
    %v3759 = vadd.f32 %v3726, %v3743
    %v3760 = vadd.f32 %v3727, %v3744
    %v3761 = vadd.f32 %v3728, %v3745
    %v3762 = vadd.f32 %v3729, %v3746
    %v3763 = vadd.f32 %v3730, %v3747
    %v3764 = vadd.f32 %v3731, %v3748
    %v3765 = vadd.f32 %v3732, %v3749
    %v3766 = vadd.f32 %v3733, %v3750
    %v3767 = vadd.f32 %v3734, %v3751
    %v3768 = vld [vmem:[#allocation2 + $0x88] sm:$0xff]
    %v3769 = vld [vmem:[#allocation2 + $0x90] sm:$0xff]
    %v3770 = vld [vmem:[#allocation2 + $0x98] sm:$0xff]
    %v3771 = vld [vmem:[#allocation2 + $0xa0] sm:$0xff]
    %v3772 = vld [vmem:[#allocation2 + $0xa8] sm:$0xff]
    %v3773 = vld [vmem:[#allocation2 + $0xb0] sm:$0xff]
    %v3774 = vld [vmem:[#allocation2 + $0xb8] sm:$0xff]
    %v3775 = vmul.f32 %v3711, %v3697
    %v3776 = vmul.f32 %v3712, %v3697
    %v3777 = vmul.f32 %v3713, %v3697
    %v3778 = vmul.f32 %v3714, %v3697
    %v3779 = vmul.f32 %v3715, %v3697
    %v3780 = vmul.f32 %v3716, %v3697
    %v3781 = vmul.f32 %v3717, %v3697
    %v3782 = vmul.f32 %v3718, %v3697
    %v3783 = vmul.f32 %v3735, %v3697
    %v3784 = vmul.f32 %v3768, %v3697
    %v3785 = vmul.f32 %v3769, %v3697
    %v3786 = vmul.f32 %v3770, %v3697
    %v3787 = vmul.f32 %v3771, %v3697
    %v3788 = vmul.f32 %v3772, %v3697
    %v3789 = vmul.f32 %v3773, %v3697
    %v3790 = vmul.f32 %v3774, %v3697
    %v3791 = vadd.f32 %v3752, %v3775
    %v3792 = vadd.f32 %v3753, %v3776
    %v3793 = vadd.f32 %v3754, %v3777
    %v3794 = vadd.f32 %v3755, %v3778
    %v3795 = vadd.f32 %v3756, %v3779
    %v3796 = vadd.f32 %v3757, %v3780
    %v3797 = vadd.f32 %v3758, %v3781
    %v3798 = vadd.f32 %v3759, %v3782
    %v3799 = vadd.f32 %v3760, %v3783
    %v3800 = vadd.f32 %v3761, %v3784
    %v3801 = vadd.f32 %v3762, %v3785
    %v3802 = vadd.f32 %v3763, %v3786
    %v3803 = vadd.f32 %v3764, %v3787
    %v3804 = vadd.f32 %v3765, %v3788
    %v3805 = vadd.f32 %v3766, %v3789
    %v3806 = vadd.f32 %v3767, %v3790
    %v3807 = vld [vmem:[#allocation2 + $0xc0] sm:$0xff]
    %v3808 = vmul.f32 %v3712, %v3702
    %v3809 = vmul.f32 %v3713, %v3702
    %v3810 = vmul.f32 %v3714, %v3702
    %v3811 = vmul.f32 %v3715, %v3702
    %v3812 = vmul.f32 %v3716, %v3702
    %v3813 = vmul.f32 %v3717, %v3702
    %v3814 = vmul.f32 %v3718, %v3702
    %v3815 = vmul.f32 %v3735, %v3702
    %v3816 = vmul.f32 %v3768, %v3702
    %v3817 = vmul.f32 %v3769, %v3702
    %v3818 = vmul.f32 %v3770, %v3702
    %v3819 = vmul.f32 %v3771, %v3702
    %v3820 = vmul.f32 %v3772, %v3702
    %v3821 = vmul.f32 %v3773, %v3702
    %v3822 = vmul.f32 %v3774, %v3702
    %v3823 = vmul.f32 %v3807, %v3702
    %v3824 = vadd.f32 %v3791, %v3808
    %v3825 = vadd.f32 %v3792, %v3809
    %v3826 = vadd.f32 %v3793, %v3810
    %v3827 = vadd.f32 %v3794, %v3811
    %v3828 = vadd.f32 %v3795, %v3812
    %v3829 = vadd.f32 %v3796, %v3813
    %v3830 = vadd.f32 %v3797, %v3814
    %v3831 = vadd.f32 %v3798, %v3815
    %v3832 = vadd.f32 %v3799, %v3816
    %v3833 = vadd.f32 %v3800, %v3817
    %v3834 = vadd.f32 %v3801, %v3818
    %v3835 = vadd.f32 %v3802, %v3819
    %v3836 = vadd.f32 %v3803, %v3820
    %v3837 = vadd.f32 %v3804, %v3821
    %v3838 = vadd.f32 %v3805, %v3822
    %v3839 = vadd.f32 %v3806, %v3823
    %v3840 = vpack.c.bf16 %v3825, %v3824
    %v3841 = vpack.c.bf16 %v3827, %v3826
    %v3842 = vpack.c.bf16 %v3829, %v3828
    %v3843 = vpack.c.bf16 %v3831, %v3830
    %v3844 = vpack.c.bf16 %v3833, %v3832
    %v3845 = vpack.c.bf16 %v3835, %v3834
    %v3846 = vpack.c.bf16 %v3837, %v3836
    %v3847 = vpack.c.bf16 %v3839, %v3838
    %v3848 = vld [vmem:[%s3] sm:$0xf]
    %v3849 = vld [vmem:[%s3 + $0x4] sm:$0xf]
    %v3850 = vld [vmem:[%s3 + $0x8] sm:$0xf]
    %v3851 = vld [vmem:[%s3 + $0xc] sm:$0xf]
    %v3852 = vld [vmem:[%s3 + $0x10] sm:$0xf]
    %v3853 = vld [vmem:[%s3 + $0x14] sm:$0xf]
    %v3854 = vld [vmem:[%s3 + $0x18] sm:$0xf]
    %v3855 = vld [vmem:[%s3 + $0x1c] sm:$0xf]
    %v3856 = vld [vmem:[%s3 + $0x20] sm:$0xf]
    %v3857 = vld [vmem:[%s3 + $0x24] sm:$0xf]
    %v3858 = vld [vmem:[%s3 + $0x28] sm:$0xf]
    %v3859 = vld [vmem:[%s3 + $0x2c] sm:$0xf]
    %v3860 = vld [vmem:[%s3 + $0x30] sm:$0xf]
    %v3861 = vld [vmem:[%s3 + $0x34] sm:$0xf]
    %v3862 = vld [vmem:[%s3 + $0x38] sm:$0xf]
    %v3863 = vld [vmem:[%s3 + $0x3c] sm:$0xf]
    %v3864 = vld [vmem:[%s4] sm:$0x1]
    %v3866 = vlaneseq
    %v3867 = vshrl.u32 %v3866, 7
    %v3868 = vsub.s32 0, %v3867
    %v3869 = vrot.slane %v3864, %v3868
    %v3887 = vunpack.c.l.b16 %v3848
    %v3888 = vunpack.c.l.b16 %v3849
    %v3889 = vunpack.c.l.b16 %v3850
    %v3890 = vunpack.c.l.b16 %v3851
    %v3891 = vunpack.c.l.b16 %v3852
    %v3892 = vunpack.c.l.b16 %v3853
    %v3893 = vunpack.c.l.b16 %v3854
    %v3894 = vunpack.c.l.b16 %v3855
    %v3895 = vunpack.c.l.b16 %v3856
    %v3896 = vunpack.c.l.b16 %v3857
    %v3897 = vunpack.c.l.b16 %v3858
    %v3898 = vunpack.c.l.b16 %v3859
    %v3899 = vunpack.c.l.b16 %v3860
    %v3900 = vunpack.c.l.b16 %v3861
    %v3901 = vunpack.c.l.b16 %v3862
    %v3902 = vunpack.c.l.b16 %v3863
    %v3903 = vpack.c.b16 %v3888, %v3887
    %v3904 = vpack.c.b16 %v3890, %v3889
    %v3905 = vpack.c.b16 %v3892, %v3891
    %v3906 = vpack.c.b16 %v3894, %v3893
    %v3907 = vpack.c.b16 %v3896, %v3895
    %v3908 = vpack.c.b16 %v3898, %v3897
    %v3909 = vpack.c.b16 %v3900, %v3899
    %v3910 = vpack.c.b16 %v3902, %v3901
    %3919 = vmatprep.subr.bf16.mxu0 0
    %3920 = vmatpush1.bf16.msra.mxu0 %v3903
    %3921 = vmatprep.subr.bf16.mxu0 0
    %3922 = vmatpush1.bf16.msra.mxu0 %v3904
    %3923 = vmatprep.subr.bf16.mxu0 0
    %3924 = vmatpush1.bf16.msra.mxu0 %v3905
    %3925 = vmatprep.subr.bf16.mxu0 0
    %3926 = vmatpush1.bf16.msra.mxu0 %v3906
    %3927 = vmatprep.subr.bf16.mxu0 0
    %3928 = vmatpush1.bf16.msra.mxu0 %v3907
    %3929 = vmatprep.subr.bf16.mxu0 0
    %3930 = vmatpush1.bf16.msra.mxu0 %v3908
    %3931 = vmatprep.subr.bf16.mxu0 0
    %3932 = vmatpush1.bf16.msra.mxu0 %v3909
    %3933 = vmatprep.subr.bf16.mxu0 0
    %3934 = vmatpush1.bf16.msra.mxu0 %v3910
    %3935 = vmatprep.subr.bf16.mxu0 0
    %3936 = vmatpush1.bf16.msra.mxu0 0
    %3937 = vmatprep.subr.bf16.mxu0 0
    %3938 = vmatpush1.bf16.msra.mxu0 0
    %3939 = vmatprep.subr.bf16.mxu0 0
    %3940 = vmatpush1.bf16.msra.mxu0 0
    %3941 = vmatprep.subr.bf16.mxu0 0
    %3942 = vmatpush1.bf16.msra.mxu0 0
    %3943 = vmatprep.subr.bf16.mxu0 0
    %3944 = vmatpush1.bf16.msra.mxu0 0
    %3945 = vmatprep.subr.bf16.mxu0 0
    %3946 = vmatpush1.bf16.msra.mxu0 0
    %3947 = vmatprep.subr.bf16.mxu0 0
    %3948 = vmatpush1.bf16.msra.mxu0 0
    %3949 = vmatprep.subr.bf16.mxu0 0
    %3950 = vmatpush1.bf16.msra.mxu0 0
    %3951 = vmatprep.mubr.bf16.mxu0 0
    %3952 = vmatmul.mubr.bf16.gmra.mrb[0].mxu0 %v3840
    %v3953 = vpop.f32.mrb[0].mxu0
    %v3954 = vadd.f32 %v3869, %v3953
    %v3955 = vpop.f32.mrb[0].mxu0
    %v3956 = vpop.f32.mrb[0].mxu0
    %v3957 = vadd.f32 %v3869, %v3956
    %v3958 = vpop.f32.mrb[0].mxu0
    %3959 = vmatprep.mubr.bf16.mxu0 0
    %3960 = vmatmul.mubr.bf16.gmra.mrb[0].mxu0 %v3841
    %v3961 = vpop.f32.mrb[0].mxu0
    %v3962 = vadd.f32 %v3869, %v3961
    %v3963 = vpop.f32.mrb[0].mxu0
    %v3964 = vpop.f32.mrb[0].mxu0
    %v3965 = vadd.f32 %v3869, %v3964
    %v3966 = vpop.f32.mrb[0].mxu0
    %3967 = vmatprep.mubr.bf16.mxu0 0
    %3968 = vmatmul.mubr.bf16.gmra.mrb[0].mxu0 %v3842
    %v3969 = vpop.f32.mrb[0].mxu0
    %v3970 = vadd.f32 %v3869, %v3969
    %v3971 = vpop.f32.mrb[0].mxu0
    %v3972 = vpop.f32.mrb[0].mxu0
    %v3973 = vadd.f32 %v3869, %v3972
    %v3974 = vpop.f32.mrb[0].mxu0
    %3975 = vmatprep.mubr.bf16.mxu0 0
    %3976 = vmatmul.mubr.bf16.gmra.mrb[0].mxu0 %v3843
    %v3977 = vpop.f32.mrb[0].mxu0
    %v3978 = vadd.f32 %v3869, %v3977
    %v3979 = vpop.f32.mrb[0].mxu0
    %v3980 = vpop.f32.mrb[0].mxu0
    %v3981 = vadd.f32 %v3869, %v3980
    %v3982 = vpop.f32.mrb[0].mxu0
    %3983 = vmatprep.mubr.bf16.mxu0 0
    %3984 = vmatmul.mubr.bf16.gmra.mrb[0].mxu0 %v3844
    %v3985 = vpop.f32.mrb[0].mxu0
    %v3986 = vadd.f32 %v3869, %v3985
    %v3987 = vpop.f32.mrb[0].mxu0
    %v3988 = vpop.f32.mrb[0].mxu0
    %v3989 = vadd.f32 %v3869, %v3988
    %v3990 = vpop.f32.mrb[0].mxu0
    %3991 = vmatprep.mubr.bf16.mxu0 0
    %3992 = vmatmul.mubr.bf16.gmra.mrb[0].mxu0 %v3845
    %v3993 = vpop.f32.mrb[0].mxu0
    %v3994 = vadd.f32 %v3869, %v3993
    %v3995 = vpop.f32.mrb[0].mxu0
    %v3996 = vpop.f32.mrb[0].mxu0
    %v3997 = vadd.f32 %v3869, %v3996
    %v3998 = vpop.f32.mrb[0].mxu0
    %3999 = vmatprep.mubr.bf16.mxu0 0
    %4000 = vmatmul.mubr.bf16.gmra.mrb[0].mxu0 %v3846
    %v4001 = vpop.f32.mrb[0].mxu0
    %v4002 = vadd.f32 %v3869, %v4001
    %v4003 = vpop.f32.mrb[0].mxu0
    %v4004 = vpop.f32.mrb[0].mxu0
    %v4005 = vadd.f32 %v3869, %v4004
    %v4006 = vpop.f32.mrb[0].mxu0
    %4007 = vmatprep.mubr.bf16.mxu0 0
    %4008 = vmatmul.mubr.bf16.gmra.mrb[0].mxu0 %v3847
    %v4009 = vpop.f32.mrb[0].mxu0
    %v4010 = vadd.f32 %v3869, %v4009
    %v4011 = vpop.f32.mrb[0].mxu0
    %v4012 = vpop.f32.mrb[0].mxu0
    %v4013 = vadd.f32 %v3869, %v4012
    %v4014 = vpop.f32.mrb[0].mxu0
    %4015 = vdwg.mxu0
    %vm4016 = vcmp.gt.f32.partialorder %v3954, 0.0
    %vm4017 = vcmp.gt.f32.partialorder %v3957, 0.0
    %vm4018 = vcmp.gt.f32.partialorder %v3962, 0.0
    %vm4019 = vcmp.gt.f32.partialorder %v3965, 0.0
    %vm4020 = vcmp.gt.f32.partialorder %v3970, 0.0
    %vm4021 = vcmp.gt.f32.partialorder %v3973, 0.0
    %vm4022 = vcmp.gt.f32.partialorder %v3978, 0.0
    %vm4023 = vcmp.gt.f32.partialorder %v3981, 0.0
    %vm4024 = vcmp.gt.f32.partialorder %v3986, 0.0
    %vm4025 = vcmp.gt.f32.partialorder %v3989, 0.0
    %vm4026 = vcmp.gt.f32.partialorder %v3994, 0.0
    %vm4027 = vcmp.gt.f32.partialorder %v3997, 0.0
    %vm4028 = vcmp.gt.f32.partialorder %v4002, 0.0
    %vm4029 = vcmp.gt.f32.partialorder %v4005, 0.0
    %vm4030 = vcmp.gt.f32.partialorder %v4010, 0.0
    %vm4031 = vcmp.gt.f32.partialorder %v4013, 0.0
    %v4032 = vmin.f32 %v3954, 0.0
    %v4033 = vmin.f32 %v3957, 0.0
    %v4034 = vmin.f32 %v3962, 0.0
    %v4035 = vmin.f32 %v3965, 0.0
    %v4036 = vmin.f32 %v3970, 0.0
    %v4037 = vmin.f32 %v3973, 0.0
    %v4038 = vmin.f32 %v3978, 0.0
    %v4039 = vmin.f32 %v3981, 0.0
    %v4040 = vmin.f32 %v3986, 0.0
    %v4041 = vmin.f32 %v3989, 0.0
    %v4042 = vmin.f32 %v3994, 0.0
    %v4043 = vmin.f32 %v3997, 0.0
    %v4044 = vmin.f32 %v4002, 0.0
    %v4045 = vmin.f32 %v4005, 0.0
    %v4046 = vmin.f32 %v4010, 0.0
    %v4047 = vmin.f32 %v4013, 0.0
    %v4048 = vmul.f32 %v4032, 1.442695
    %v4049 = vpow.pop %v4048
    %v4050 = vmul.f32 %v4033, 1.442695
    %v4051 = vpow.pop %v4050
    %v4052 = vmul.f32 %v4034, 1.442695
    %v4053 = vpow.pop %v4052
    %v4054 = vmul.f32 %v4035, 1.442695
    %v4055 = vpow.pop %v4054
    %v4056 = vmul.f32 %v4036, 1.442695
    %v4057 = vpow.pop %v4056
    %v4058 = vmul.f32 %v4037, 1.442695
    %v4059 = vpow.pop %v4058
    %v4060 = vmul.f32 %v4038, 1.442695
    %v4061 = vpow.pop %v4060
    %v4062 = vmul.f32 %v4039, 1.442695
    %v4063 = vpow.pop %v4062
    %v4064 = vmul.f32 %v4040, 1.442695
    %v4065 = vpow.pop %v4064
    %v4066 = vmul.f32 %v4041, 1.442695
    %v4067 = vpow.pop %v4066
    %v4068 = vmul.f32 %v4042, 1.442695
    %v4069 = vpow.pop %v4068
    %v4070 = vmul.f32 %v4043, 1.442695
    %v4071 = vpow.pop %v4070
    %v4072 = vmul.f32 %v4044, 1.442695
    %v4073 = vpow.pop %v4072
    %v4074 = vmul.f32 %v4045, 1.442695
    %v4075 = vpow.pop %v4074
    %v4076 = vmul.f32 %v4046, 1.442695
    %v4077 = vpow.pop %v4076
    %v4078 = vmul.f32 %v4047, 1.442695
    %v4079 = vpow.pop %v4078
    %v4080 = vsub.f32 %v4049, 1.0
    %v4081 = vsub.f32 %v4051, 1.0
    %v4082 = vsub.f32 %v4053, 1.0
    %v4083 = vsub.f32 %v4055, 1.0
    %v4084 = vsub.f32 %v4057, 1.0
    %v4085 = vsub.f32 %v4059, 1.0
    %v4086 = vsub.f32 %v4061, 1.0
    %v4087 = vsub.f32 %v4063, 1.0
    %v4088 = vsub.f32 %v4065, 1.0
    %v4089 = vsub.f32 %v4067, 1.0
    %v4090 = vsub.f32 %v4069, 1.0
    %v4091 = vsub.f32 %v4071, 1.0
    %v4092 = vsub.f32 %v4073, 1.0
    %v4093 = vsub.f32 %v4075, 1.0
    %v4094 = vsub.f32 %v4077, 1.0
    %v4095 = vsub.f32 %v4079, 1.0
    %v4096 = vsel %vm4016, %v3954, %v4080
    %v4097 = vsel %vm4017, %v3957, %v4081
    %v4098 = vsel %vm4018, %v3962, %v4082
    %v4099 = vsel %vm4019, %v3965, %v4083
    %v4100 = vsel %vm4020, %v3970, %v4084
    %v4101 = vsel %vm4021, %v3973, %v4085
    %v4102 = vsel %vm4022, %v3978, %v4086
    %v4103 = vsel %vm4023, %v3981, %v4087
    %v4104 = vsel %vm4024, %v3986, %v4088
    %v4105 = vsel %vm4025, %v3989, %v4089
    %v4106 = vsel %vm4026, %v3994, %v4090
    %v4107 = vsel %vm4027, %v3997, %v4091
    %v4108 = vsel %vm4028, %v4002, %v4092
    %v4109 = vsel %vm4029, %v4005, %v4093
    %v4110 = vsel %vm4030, %v4010, %v4094
    %v4111 = vsel %vm4031, %v4013, %v4095
    %4112 = vst [vmem:[#allocation3] sm:$0xff] %v4096
    %4113 = vst [vmem:[#allocation3 + $0x8] sm:$0xff] %v4097
    %4114 = vst [vmem:[#allocation3 + $0x10] sm:$0xff] %v4098
    %4115 = vst [vmem:[#allocation3 + $0x18] sm:$0xff] %v4099
    %4116 = vst [vmem:[#allocation3 + $0x20] sm:$0xff] %v4100
    %4117 = vst [vmem:[#allocation3 + $0x28] sm:$0xff] %v4101
    %4118 = vst [vmem:[#allocation3 + $0x30] sm:$0xff] %v4102
    %4119 = vst [vmem:[#allocation3 + $0x38] sm:$0xff] %v4103
    %4120 = vst [vmem:[#allocation3 + $0x40] sm:$0xff] %v4104
    %4121 = vst [vmem:[#allocation3 + $0x48] sm:$0xff] %v4105
    %4122 = vst [vmem:[#allocation3 + $0x50] sm:$0xff] %v4106
    %4123 = vst [vmem:[#allocation3 + $0x58] sm:$0xff] %v4107
    %4124 = vst [vmem:[#allocation3 + $0x60] sm:$0xff] %v4108
    %4125 = vst [vmem:[#allocation3 + $0x68] sm:$0xff] %v4109
    %4126 = vst [vmem:[#allocation3 + $0x70] sm:$0xff] %v4110
    %4127 = vst [vmem:[#allocation3 + $0x78] sm:$0xff] %v4111
    %v4128 = vld [vmem:[#allocation2 + $0x80] sm:$0xff]
    %v4129 = vld [vmem:[#allocation2 + $0x88] sm:$0xff]
    %v4130 = vld [vmem:[#allocation2 + $0x90] sm:$0xff]
    %v4131 = vld [vmem:[#allocation2 + $0x98] sm:$0xff]
    %v4132 = vld [vmem:[#allocation2 + $0xa0] sm:$0xff]
    %v4133 = vld [vmem:[#allocation2 + $0xa8] sm:$0xff]
    %v4134 = vld [vmem:[#allocation2 + $0xb0] sm:$0xff]
    %v4135 = vld [vmem:[#allocation2 + $0xb8] sm:$0xff]
    %v4136 = vld [vmem:[#allocation2 + $0xc0] sm:$0xff]
    %v4137 = vld [vmem:[#allocation2 + $0xc8] sm:$0xff]
    %v4138 = vld [vmem:[#allocation2 + $0xd0] sm:$0xff]
    %v4139 = vld [vmem:[#allocation2 + $0xd8] sm:$0xff]
    %v4140 = vld [vmem:[#allocation2 + $0xe0] sm:$0xff]
    %v4141 = vld [vmem:[#allocation2 + $0xe8] sm:$0xff]
    %v4142 = vld [vmem:[#allocation2 + $0xf0] sm:$0xff]
    %v4143 = vld [vmem:[#allocation2 + $0xf8] sm:$0xff]
    %v4144 = vmul.f32 %v4128, %v3687
    %v4145 = vmul.f32 %v4129, %v3687
    %v4146 = vmul.f32 %v4130, %v3687
    %v4147 = vmul.f32 %v4131, %v3687
    %v4148 = vmul.f32 %v4132, %v3687
    %v4149 = vmul.f32 %v4133, %v3687
    %v4150 = vmul.f32 %v4134, %v3687
    %v4151 = vmul.f32 %v4135, %v3687
    %v4152 = vmul.f32 %v4136, %v3687
    %v4153 = vmul.f32 %v4137, %v3687
    %v4154 = vmul.f32 %v4138, %v3687
    %v4155 = vmul.f32 %v4139, %v3687
    %v4156 = vmul.f32 %v4140, %v3687
    %v4157 = vmul.f32 %v4141, %v3687
    %v4158 = vmul.f32 %v4142, %v3687
    %v4159 = vmul.f32 %v4143, %v3687
    %v4160 = vld [vmem:[#allocation2 + $0x100] sm:$0xff]
    %v4161 = vmul.f32 %v4129, %v3692
    %v4162 = vmul.f32 %v4130, %v3692
    %v4163 = vmul.f32 %v4131, %v3692
    %v4164 = vmul.f32 %v4132, %v3692
    %v4165 = vmul.f32 %v4133, %v3692
    %v4166 = vmul.f32 %v4134, %v3692
    %v4167 = vmul.f32 %v4135, %v3692
    %v4168 = vmul.f32 %v4136, %v3692
    %v4169 = vmul.f32 %v4137, %v3692
    %v4170 = vmul.f32 %v4138, %v3692
    %v4171 = vmul.f32 %v4139, %v3692
    %v4172 = vmul.f32 %v4140, %v3692
    %v4173 = vmul.f32 %v4141, %v3692
    %v4174 = vmul.f32 %v4142, %v3692
    %v4175 = vmul.f32 %v4143, %v3692
    %v4176 = vmul.f32 %v4160, %v3692
    %v4177 = vadd.f32 %v4144, %v4161
    %v4178 = vadd.f32 %v4145, %v4162
    %v4179 = vadd.f32 %v4146, %v4163
    %v4180 = vadd.f32 %v4147, %v4164
    %v4181 = vadd.f32 %v4148, %v4165
    %v4182 = vadd.f32 %v4149, %v4166
    %v4183 = vadd.f32 %v4150, %v4167
    %v4184 = vadd.f32 %v4151, %v4168
    %v4185 = vadd.f32 %v4152, %v4169
    %v4186 = vadd.f32 %v4153, %v4170
    %v4187 = vadd.f32 %v4154, %v4171
    %v4188 = vadd.f32 %v4155, %v4172
    %v4189 = vadd.f32 %v4156, %v4173
    %v4190 = vadd.f32 %v4157, %v4174
    %v4191 = vadd.f32 %v4158, %v4175
    %v4192 = vadd.f32 %v4159, %v4176
    %v4193 = vld [vmem:[#allocation2 + $0x108] sm:$0xff]
    %v4194 = vld [vmem:[#allocation2 + $0x110] sm:$0xff]
    %v4195 = vld [vmem:[#allocation2 + $0x118] sm:$0xff]
    %v4196 = vld [vmem:[#allocation2 + $0x120] sm:$0xff]
    %v4197 = vld [vmem:[#allocation2 + $0x128] sm:$0xff]
    %v4198 = vld [vmem:[#allocation2 + $0x130] sm:$0xff]
    %v4199 = vld [vmem:[#allocation2 + $0x138] sm:$0xff]
    %v4200 = vmul.f32 %v4136, %v3697
    %v4201 = vmul.f32 %v4137, %v3697
    %v4202 = vmul.f32 %v4138, %v3697
    %v4203 = vmul.f32 %v4139, %v3697
    %v4204 = vmul.f32 %v4140, %v3697
    %v4205 = vmul.f32 %v4141, %v3697
    %v4206 = vmul.f32 %v4142, %v3697
    %v4207 = vmul.f32 %v4143, %v3697
    %v4208 = vmul.f32 %v4160, %v3697
    %v4209 = vmul.f32 %v4193, %v3697
    %v4210 = vmul.f32 %v4194, %v3697
    %v4211 = vmul.f32 %v4195, %v3697
    %v4212 = vmul.f32 %v4196, %v3697
    %v4213 = vmul.f32 %v4197, %v3697
    %v4214 = vmul.f32 %v4198, %v3697
    %v4215 = vmul.f32 %v4199, %v3697
    %v4216 = vadd.f32 %v4177, %v4200
    %v4217 = vadd.f32 %v4178, %v4201
    %v4218 = vadd.f32 %v4179, %v4202
    %v4219 = vadd.f32 %v4180, %v4203
    %v4220 = vadd.f32 %v4181, %v4204
    %v4221 = vadd.f32 %v4182, %v4205
    %v4222 = vadd.f32 %v4183, %v4206
    %v4223 = vadd.f32 %v4184, %v4207
    %v4224 = vadd.f32 %v4185, %v4208
    %v4225 = vadd.f32 %v4186, %v4209
    %v4226 = vadd.f32 %v4187, %v4210
    %v4227 = vadd.f32 %v4188, %v4211
    %v4228 = vadd.f32 %v4189, %v4212
    %v4229 = vadd.f32 %v4190, %v4213
    %v4230 = vadd.f32 %v4191, %v4214
    %v4231 = vadd.f32 %v4192, %v4215
    %v4232 = vld [vmem:[#allocation2 + $0x140] sm:$0xff]
    %v4233 = vmul.f32 %v4137, %v3702
    %v4234 = vmul.f32 %v4138, %v3702
    %v4235 = vmul.f32 %v4139, %v3702
    %v4236 = vmul.f32 %v4140, %v3702
    %v4237 = vmul.f32 %v4141, %v3702
    %v4238 = vmul.f32 %v4142, %v3702
    %v4239 = vmul.f32 %v4143, %v3702
    %v4240 = vmul.f32 %v4160, %v3702
    %v4241 = vmul.f32 %v4193, %v3702
    %v4242 = vmul.f32 %v4194, %v3702
    %v4243 = vmul.f32 %v4195, %v3702
    %v4244 = vmul.f32 %v4196, %v3702
    %v4245 = vmul.f32 %v4197, %v3702
    %v4246 = vmul.f32 %v4198, %v3702
    %v4247 = vmul.f32 %v4199, %v3702
    %v4248 = vmul.f32 %v4232, %v3702
    %v4249 = vadd.f32 %v4216, %v4233
    %v4250 = vadd.f32 %v4217, %v4234
    %v4251 = vadd.f32 %v4218, %v4235
    %v4252 = vadd.f32 %v4219, %v4236
    %v4253 = vadd.f32 %v4220, %v4237
    %v4254 = vadd.f32 %v4221, %v4238
    %v4255 = vadd.f32 %v4222, %v4239
    %v4256 = vadd.f32 %v4223, %v4240
    %v4257 = vadd.f32 %v4224, %v4241
    %v4258 = vadd.f32 %v4225, %v4242
    %v4259 = vadd.f32 %v4226, %v4243
    %v4260 = vadd.f32 %v4227, %v4244
    %v4261 = vadd.f32 %v4228, %v4245
    %v4262 = vadd.f32 %v4229, %v4246
    %v4263 = vadd.f32 %v4230, %v4247
    %v4264 = vadd.f32 %v4231, %v4248
    %v4265 = vpack.c.bf16 %v4250, %v4249
    %v4266 = vpack.c.bf16 %v4252, %v4251
    %v4267 = vpack.c.bf16 %v4254, %v4253
    %v4268 = vpack.c.bf16 %v4256, %v4255
    %v4269 = vpack.c.bf16 %v4258, %v4257
    %v4270 = vpack.c.bf16 %v4260, %v4259
    %v4271 = vpack.c.bf16 %v4262, %v4261
    %v4272 = vpack.c.bf16 %v4264, %v4263
    %v4273 = vld [vmem:[%s3] sm:$0xf]
    %v4274 = vld [vmem:[%s3 + $0x4] sm:$0xf]
    %v4275 = vld [vmem:[%s3 + $0x8] sm:$0xf]
    %v4276 = vld [vmem:[%s3 + $0xc] sm:$0xf]
    %v4277 = vld [vmem:[%s3 + $0x10] sm:$0xf]
    %v4278 = vld [vmem:[%s3 + $0x14] sm:$0xf]
    %v4279 = vld [vmem:[%s3 + $0x18] sm:$0xf]
    %v4280 = vld [vmem:[%s3 + $0x1c] sm:$0xf]
    %v4281 = vld [vmem:[%s3 + $0x20] sm:$0xf]
    %v4282 = vld [vmem:[%s3 + $0x24] sm:$0xf]
    %v4283 = vld [vmem:[%s3 + $0x28] sm:$0xf]
    %v4284 = vld [vmem:[%s3 + $0x2c] sm:$0xf]
    %v4285 = vld [vmem:[%s3 + $0x30] sm:$0xf]
    %v4286 = vld [vmem:[%s3 + $0x34] sm:$0xf]
    %v4287 = vld [vmem:[%s3 + $0x38] sm:$0xf]
    %v4288 = vld [vmem:[%s3 + $0x3c] sm:$0xf]
    %v4289 = vld [vmem:[%s4] sm:$0x1]
    %v4291 = vlaneseq
    %v4292 = vshrl.u32 %v4291, 7
    %v4293 = vsub.s32 0, %v4292
    %v4294 = vrot.slane %v4289, %v4293
    %v4312 = vunpack.c.l.b16 %v4273
    %v4313 = vunpack.c.l.b16 %v4274
    %v4314 = vunpack.c.l.b16 %v4275
    %v4315 = vunpack.c.l.b16 %v4276
    %v4316 = vunpack.c.l.b16 %v4277
    %v4317 = vunpack.c.l.b16 %v4278
    %v4318 = vunpack.c.l.b16 %v4279
    %v4319 = vunpack.c.l.b16 %v4280
    %v4320 = vunpack.c.l.b16 %v4281
    %v4321 = vunpack.c.l.b16 %v4282
    %v4322 = vunpack.c.l.b16 %v4283
    %v4323 = vunpack.c.l.b16 %v4284
    %v4324 = vunpack.c.l.b16 %v4285
    %v4325 = vunpack.c.l.b16 %v4286
    %v4326 = vunpack.c.l.b16 %v4287
    %v4327 = vunpack.c.l.b16 %v4288
    %v4328 = vpack.c.b16 %v4313, %v4312
    %v4329 = vpack.c.b16 %v4315, %v4314
    %v4330 = vpack.c.b16 %v4317, %v4316
    %v4331 = vpack.c.b16 %v4319, %v4318
    %v4332 = vpack.c.b16 %v4321, %v4320
    %v4333 = vpack.c.b16 %v4323, %v4322
    %v4334 = vpack.c.b16 %v4325, %v4324
    %v4335 = vpack.c.b16 %v4327, %v4326
    %4344 = vmatprep.subr.bf16.mxu0 0
    %4345 = vmatpush1.bf16.msra.mxu0 %v4328
    %4346 = vmatprep.subr.bf16.mxu0 0
    %4347 = vmatpush1.bf16.msra.mxu0 %v4329
    %4348 = vmatprep.subr.bf16.mxu0 0
    %4349 = vmatpush1.bf16.msra.mxu0 %v4330
    %4350 = vmatprep.subr.bf16.mxu0 0
    %4351 = vmatpush1.bf16.msra.mxu0 %v4331
    %4352 = vmatprep.subr.bf16.mxu0 0
    %4353 = vmatpush1.bf16.msra.mxu0 %v4332
    %4354 = vmatprep.subr.bf16.mxu0 0
    %4355 = vmatpush1.bf16.msra.mxu0 %v4333
    %4356 = vmatprep.subr.bf16.mxu0 0
    %4357 = vmatpush1.bf16.msra.mxu0 %v4334
    %4358 = vmatprep.subr.bf16.mxu0 0
    %4359 = vmatpush1.bf16.msra.mxu0 %v4335
    %4360 = vmatprep.subr.bf16.mxu0 0
    %4361 = vmatpush1.bf16.msra.mxu0 0
    %4362 = vmatprep.subr.bf16.mxu0 0
    %4363 = vmatpush1.bf16.msra.mxu0 0
    %4364 = vmatprep.subr.bf16.mxu0 0
    %4365 = vmatpush1.bf16.msra.mxu0 0
    %4366 = vmatprep.subr.bf16.mxu0 0
    %4367 = vmatpush1.bf16.msra.mxu0 0
    %4368 = vmatprep.subr.bf16.mxu0 0
    %4369 = vmatpush1.bf16.msra.mxu0 0
    %4370 = vmatprep.subr.bf16.mxu0 0
    %4371 = vmatpush1.bf16.msra.mxu0 0
    %4372 = vmatprep.subr.bf16.mxu0 0
    %4373 = vmatpush1.bf16.msra.mxu0 0
    %4374 = vmatprep.subr.bf16.mxu0 0
    %4375 = vmatpush1.bf16.msra.mxu0 0
    %4376 = vmatprep.mubr.bf16.mxu0 0
    %4377 = vmatmul.mubr.bf16.gmra.mrb[0].mxu0 %v4265
    %v4378 = vpop.f32.mrb[0].mxu0
    %v4379 = vadd.f32 %v4294, %v4378
    %v4380 = vpop.f32.mrb[0].mxu0
    %v4381 = vpop.f32.mrb[0].mxu0
    %v4382 = vadd.f32 %v4294, %v4381
    %v4383 = vpop.f32.mrb[0].mxu0
    %4384 = vmatprep.mubr.bf16.mxu0 0
    %4385 = vmatmul.mubr.bf16.gmra.mrb[0].mxu0 %v4266
    %v4386 = vpop.f32.mrb[0].mxu0
    %v4387 = vadd.f32 %v4294, %v4386
    %v4388 = vpop.f32.mrb[0].mxu0
    %v4389 = vpop.f32.mrb[0].mxu0
    %v4390 = vadd.f32 %v4294, %v4389
    %v4391 = vpop.f32.mrb[0].mxu0
    %4392 = vmatprep.mubr.bf16.mxu0 0
    %4393 = vmatmul.mubr.bf16.gmra.mrb[0].mxu0 %v4267
    %v4394 = vpop.f32.mrb[0].mxu0
    %v4395 = vadd.f32 %v4294, %v4394
    %v4396 = vpop.f32.mrb[0].mxu0
    %v4397 = vpop.f32.mrb[0].mxu0
    %v4398 = vadd.f32 %v4294, %v4397
    %v4399 = vpop.f32.mrb[0].mxu0
    %4400 = vmatprep.mubr.bf16.mxu0 0
    %4401 = vmatmul.mubr.bf16.gmra.mrb[0].mxu0 %v4268
    %v4402 = vpop.f32.mrb[0].mxu0
    %v4403 = vadd.f32 %v4294, %v4402
    %v4404 = vpop.f32.mrb[0].mxu0
    %v4405 = vpop.f32.mrb[0].mxu0
    %v4406 = vadd.f32 %v4294, %v4405
    %v4407 = vpop.f32.mrb[0].mxu0
    %4408 = vmatprep.mubr.bf16.mxu0 0
    %4409 = vmatmul.mubr.bf16.gmra.mrb[0].mxu0 %v4269
    %v4410 = vpop.f32.mrb[0].mxu0
    %v4411 = vadd.f32 %v4294, %v4410
    %v4412 = vpop.f32.mrb[0].mxu0
    %v4413 = vpop.f32.mrb[0].mxu0
    %v4414 = vadd.f32 %v4294, %v4413
    %v4415 = vpop.f32.mrb[0].mxu0
    %4416 = vmatprep.mubr.bf16.mxu0 0
    %4417 = vmatmul.mubr.bf16.gmra.mrb[0].mxu0 %v4270
    %v4418 = vpop.f32.mrb[0].mxu0
    %v4419 = vadd.f32 %v4294, %v4418
    %v4420 = vpop.f32.mrb[0].mxu0
    %v4421 = vpop.f32.mrb[0].mxu0
    %v4422 = vadd.f32 %v4294, %v4421
    %v4423 = vpop.f32.mrb[0].mxu0
    %4424 = vmatprep.mubr.bf16.mxu0 0
    %4425 = vmatmul.mubr.bf16.gmra.mrb[0].mxu0 %v4271
    %v4426 = vpop.f32.mrb[0].mxu0
    %v4427 = vadd.f32 %v4294, %v4426
    %v4428 = vpop.f32.mrb[0].mxu0
    %v4429 = vpop.f32.mrb[0].mxu0
    %v4430 = vadd.f32 %v4294, %v4429
    %v4431 = vpop.f32.mrb[0].mxu0
    %4432 = vmatprep.mubr.bf16.mxu0 0
    %4433 = vmatmul.mubr.bf16.gmra.mrb[0].mxu0 %v4272
    %v4434 = vpop.f32.mrb[0].mxu0
    %v4435 = vadd.f32 %v4294, %v4434
    %v4436 = vpop.f32.mrb[0].mxu0
    %v4437 = vpop.f32.mrb[0].mxu0
    %v4438 = vadd.f32 %v4294, %v4437
    %v4439 = vpop.f32.mrb[0].mxu0
    %4440 = vdwg.mxu0
    %vm4441 = vcmp.gt.f32.partialorder %v4379, 0.0
    %vm4442 = vcmp.gt.f32.partialorder %v4382, 0.0
    %vm4443 = vcmp.gt.f32.partialorder %v4387, 0.0
    %vm4444 = vcmp.gt.f32.partialorder %v4390, 0.0
    %vm4445 = vcmp.gt.f32.partialorder %v4395, 0.0
    %vm4446 = vcmp.gt.f32.partialorder %v4398, 0.0
    %vm4447 = vcmp.gt.f32.partialorder %v4403, 0.0
    %vm4448 = vcmp.gt.f32.partialorder %v4406, 0.0
    %vm4449 = vcmp.gt.f32.partialorder %v4411, 0.0
    %vm4450 = vcmp.gt.f32.partialorder %v4414, 0.0
    %vm4451 = vcmp.gt.f32.partialorder %v4419, 0.0
    %vm4452 = vcmp.gt.f32.partialorder %v4422, 0.0
    %vm4453 = vcmp.gt.f32.partialorder %v4427, 0.0
    %vm4454 = vcmp.gt.f32.partialorder %v4430, 0.0
    %vm4455 = vcmp.gt.f32.partialorder %v4435, 0.0
    %vm4456 = vcmp.gt.f32.partialorder %v4438, 0.0
    %v4457 = vmin.f32 %v4379, 0.0
    %v4458 = vmin.f32 %v4382, 0.0
    %v4459 = vmin.f32 %v4387, 0.0
    %v4460 = vmin.f32 %v4390, 0.0
    %v4461 = vmin.f32 %v4395, 0.0
    %v4462 = vmin.f32 %v4398, 0.0
    %v4463 = vmin.f32 %v4403, 0.0
    %v4464 = vmin.f32 %v4406, 0.0
    %v4465 = vmin.f32 %v4411, 0.0
    %v4466 = vmin.f32 %v4414, 0.0
    %v4467 = vmin.f32 %v4419, 0.0
    %v4468 = vmin.f32 %v4422, 0.0
    %v4469 = vmin.f32 %v4427, 0.0
    %v4470 = vmin.f32 %v4430, 0.0
    %v4471 = vmin.f32 %v4435, 0.0
    %v4472 = vmin.f32 %v4438, 0.0
    %v4473 = vmul.f32 %v4457, 1.442695
    %v4474 = vpow.pop %v4473
    %v4475 = vmul.f32 %v4458, 1.442695
    %v4476 = vpow.pop %v4475
    %v4477 = vmul.f32 %v4459, 1.442695
    %v4478 = vpow.pop %v4477
    %v4479 = vmul.f32 %v4460, 1.442695
    %v4480 = vpow.pop %v4479
    %v4481 = vmul.f32 %v4461, 1.442695
    %v4482 = vpow.pop %v4481
    %v4483 = vmul.f32 %v4462, 1.442695
    %v4484 = vpow.pop %v4483
    %v4485 = vmul.f32 %v4463, 1.442695
    %v4486 = vpow.pop %v4485
    %v4487 = vmul.f32 %v4464, 1.442695
    %v4488 = vpow.pop %v4487
    %v4489 = vmul.f32 %v4465, 1.442695
    %v4490 = vpow.pop %v4489
    %v4491 = vmul.f32 %v4466, 1.442695
    %v4492 = vpow.pop %v4491
    %v4493 = vmul.f32 %v4467, 1.442695
    %v4494 = vpow.pop %v4493
    %v4495 = vmul.f32 %v4468, 1.442695
    %v4496 = vpow.pop %v4495
    %v4497 = vmul.f32 %v4469, 1.442695
    %v4498 = vpow.pop %v4497
    %v4499 = vmul.f32 %v4470, 1.442695
    %v4500 = vpow.pop %v4499
    %v4501 = vmul.f32 %v4471, 1.442695
    %v4502 = vpow.pop %v4501
    %v4503 = vmul.f32 %v4472, 1.442695
    %v4504 = vpow.pop %v4503
    %v4505 = vsub.f32 %v4474, 1.0
    %v4506 = vsub.f32 %v4476, 1.0
    %v4507 = vsub.f32 %v4478, 1.0
    %v4508 = vsub.f32 %v4480, 1.0
    %v4509 = vsub.f32 %v4482, 1.0
    %v4510 = vsub.f32 %v4484, 1.0
    %v4511 = vsub.f32 %v4486, 1.0
    %v4512 = vsub.f32 %v4488, 1.0
    %v4513 = vsub.f32 %v4490, 1.0
    %v4514 = vsub.f32 %v4492, 1.0
    %v4515 = vsub.f32 %v4494, 1.0
    %v4516 = vsub.f32 %v4496, 1.0
    %v4517 = vsub.f32 %v4498, 1.0
    %v4518 = vsub.f32 %v4500, 1.0
    %v4519 = vsub.f32 %v4502, 1.0
    %v4520 = vsub.f32 %v4504, 1.0
    %v4521 = vsel %vm4441, %v4379, %v4505
    %v4522 = vsel %vm4442, %v4382, %v4506
    %v4523 = vsel %vm4443, %v4387, %v4507
    %v4524 = vsel %vm4444, %v4390, %v4508
    %v4525 = vsel %vm4445, %v4395, %v4509
    %v4526 = vsel %vm4446, %v4398, %v4510
    %v4527 = vsel %vm4447, %v4403, %v4511
    %v4528 = vsel %vm4448, %v4406, %v4512
    %v4529 = vsel %vm4449, %v4411, %v4513
    %v4530 = vsel %vm4450, %v4414, %v4514
    %v4531 = vsel %vm4451, %v4419, %v4515
    %v4532 = vsel %vm4452, %v4422, %v4516
    %v4533 = vsel %vm4453, %v4427, %v4517
    %v4534 = vsel %vm4454, %v4430, %v4518
    %v4535 = vsel %vm4455, %v4435, %v4519
    %v4536 = vsel %vm4456, %v4438, %v4520
    %4537 = vst [vmem:[#allocation3 + $0x80] sm:$0xff] %v4521
    %4538 = vst [vmem:[#allocation3 + $0x88] sm:$0xff] %v4522
    %4539 = vst [vmem:[#allocation3 + $0x90] sm:$0xff] %v4523
    %4540 = vst [vmem:[#allocation3 + $0x98] sm:$0xff] %v4524
    %4541 = vst [vmem:[#allocation3 + $0xa0] sm:$0xff] %v4525
    %4542 = vst [vmem:[#allocation3 + $0xa8] sm:$0xff] %v4526
    %4543 = vst [vmem:[#allocation3 + $0xb0] sm:$0xff] %v4527
    %4544 = vst [vmem:[#allocation3 + $0xb8] sm:$0xff] %v4528
    %4545 = vst [vmem:[#allocation3 + $0xc0] sm:$0xff] %v4529
    %4546 = vst [vmem:[#allocation3 + $0xc8] sm:$0xff] %v4530
    %4547 = vst [vmem:[#allocation3 + $0xd0] sm:$0xff] %v4531
    %4548 = vst [vmem:[#allocation3 + $0xd8] sm:$0xff] %v4532
    %4549 = vst [vmem:[#allocation3 + $0xe0] sm:$0xff] %v4533
    %4550 = vst [vmem:[#allocation3 + $0xe8] sm:$0xff] %v4534
    %4551 = vst [vmem:[#allocation3 + $0xf0] sm:$0xff] %v4535
    %4552 = vst [vmem:[#allocation3 + $0xf8] sm:$0xff] %v4536
    %v4553 = vld [vmem:[#allocation2 + $0x100] sm:$0xff]
    %v4554 = vld [vmem:[#allocation2 + $0x108] sm:$0xff]
    %v4555 = vld [vmem:[#allocation2 + $0x110] sm:$0xff]
    %v4556 = vld [vmem:[#allocation2 + $0x118] sm:$0xff]
    %v4557 = vld [vmem:[#allocation2 + $0x120] sm:$0xff]
    %v4558 = vld [vmem:[#allocation2 + $0x128] sm:$0xff]
    %v4559 = vld [vmem:[#allocation2 + $0x130] sm:$0xff]
    %v4560 = vld [vmem:[#allocation2 + $0x138] sm:$0xff]
    %v4561 = vld [vmem:[#allocation2 + $0x140] sm:$0xff]
    %v4562 = vld [vmem:[#allocation2 + $0x148] sm:$0xff]
    %v4563 = vld [vmem:[#allocation2 + $0x150] sm:$0xff]
    %v4564 = vld [vmem:[#allocation2 + $0x158] sm:$0xff]
    %v4565 = vld [vmem:[#allocation2 + $0x160] sm:$0xff]
    %v4566 = vld [vmem:[#allocation2 + $0x168] sm:$0xff]
    %v4567 = vld [vmem:[#allocation2 + $0x170] sm:$0xff]
    %v4568 = vld [vmem:[#allocation2 + $0x178] sm:$0xff]
    %v4569 = vmul.f32 %v4553, %v3687
    %v4570 = vmul.f32 %v4554, %v3687
    %v4571 = vmul.f32 %v4555, %v3687
    %v4572 = vmul.f32 %v4556, %v3687
    %v4573 = vmul.f32 %v4557, %v3687
    %v4574 = vmul.f32 %v4558, %v3687
    %v4575 = vmul.f32 %v4559, %v3687
    %v4576 = vmul.f32 %v4560, %v3687
    %v4577 = vmul.f32 %v4561, %v3687
    %v4578 = vmul.f32 %v4562, %v3687
    %v4579 = vmul.f32 %v4563, %v3687
    %v4580 = vmul.f32 %v4564, %v3687
    %v4581 = vmul.f32 %v4565, %v3687
    %v4582 = vmul.f32 %v4566, %v3687
    %v4583 = vmul.f32 %v4567, %v3687
    %v4584 = vmul.f32 %v4568, %v3687
    %v4585 = vld [vmem:[#allocation2 + $0x180] sm:$0xff]
    %v4586 = vmul.f32 %v4554, %v3692
    %v4587 = vmul.f32 %v4555, %v3692
    %v4588 = vmul.f32 %v4556, %v3692
    %v4589 = vmul.f32 %v4557, %v3692
    %v4590 = vmul.f32 %v4558, %v3692
    %v4591 = vmul.f32 %v4559, %v3692
    %v4592 = vmul.f32 %v4560, %v3692
    %v4593 = vmul.f32 %v4561, %v3692
    %v4594 = vmul.f32 %v4562, %v3692
    %v4595 = vmul.f32 %v4563, %v3692
    %v4596 = vmul.f32 %v4564, %v3692
    %v4597 = vmul.f32 %v4565, %v3692
    %v4598 = vmul.f32 %v4566, %v3692
    %v4599 = vmul.f32 %v4567, %v3692
    %v4600 = vmul.f32 %v4568, %v3692
    %v4601 = vmul.f32 %v4585, %v3692
    %v4602 = vadd.f32 %v4569, %v4586
    %v4603 = vadd.f32 %v4570, %v4587
    %v4604 = vadd.f32 %v4571, %v4588
    %v4605 = vadd.f32 %v4572, %v4589
    %v4606 = vadd.f32 %v4573, %v4590
    %v4607 = vadd.f32 %v4574, %v4591
    %v4608 = vadd.f32 %v4575, %v4592
    %v4609 = vadd.f32 %v4576, %v4593
    %v4610 = vadd.f32 %v4577, %v4594
    %v4611 = vadd.f32 %v4578, %v4595
    %v4612 = vadd.f32 %v4579, %v4596
    %v4613 = vadd.f32 %v4580, %v4597
    %v4614 = vadd.f32 %v4581, %v4598
    %v4615 = vadd.f32 %v4582, %v4599
    %v4616 = vadd.f32 %v4583, %v4600
    %v4617 = vadd.f32 %v4584, %v4601
    %v4618 = vld [vmem:[#allocation2 + $0x188] sm:$0xff]
    %v4619 = vld [vmem:[#allocation2 + $0x190] sm:$0xff]
    %v4620 = vld [vmem:[#allocation2 + $0x198] sm:$0xff]
    %v4621 = vld [vmem:[#allocation2 + $0x1a0] sm:$0xff]
    %v4622 = vld [vmem:[#allocation2 + $0x1a8] sm:$0xff]
    %v4623 = vld [vmem:[#allocation2 + $0x1b0] sm:$0xff]
    %v4624 = vld [vmem:[#allocation2 + $0x1b8] sm:$0xff]
    %v4625 = vmul.f32 %v4561, %v3697
    %v4626 = vmul.f32 %v4562, %v3697
    %v4627 = vmul.f32 %v4563, %v3697
    %v4628 = vmul.f32 %v4564, %v3697
    %v4629 = vmul.f32 %v4565, %v3697
    %v4630 = vmul.f32 %v4566, %v3697
    %v4631 = vmul.f32 %v4567, %v3697
    %v4632 = vmul.f32 %v4568, %v3697
    %v4633 = vmul.f32 %v4585, %v3697
    %v4634 = vmul.f32 %v4618, %v3697
    %v4635 = vmul.f32 %v4619, %v3697
    %v4636 = vmul.f32 %v4620, %v3697
    %v4637 = vmul.f32 %v4621, %v3697
    %v4638 = vmul.f32 %v4622, %v3697
    %v4639 = vmul.f32 %v4623, %v3697
    %v4640 = vmul.f32 %v4624, %v3697
    %v4641 = vadd.f32 %v4602, %v4625
    %v4642 = vadd.f32 %v4603, %v4626
    %v4643 = vadd.f32 %v4604, %v4627
    %v4644 = vadd.f32 %v4605, %v4628
    %v4645 = vadd.f32 %v4606, %v4629
    %v4646 = vadd.f32 %v4607, %v4630
    %v4647 = vadd.f32 %v4608, %v4631
    %v4648 = vadd.f32 %v4609, %v4632
    %v4649 = vadd.f32 %v4610, %v4633
    %v4650 = vadd.f32 %v4611, %v4634
    %v4651 = vadd.f32 %v4612, %v4635
    %v4652 = vadd.f32 %v4613, %v4636
    %v4653 = vadd.f32 %v4614, %v4637
    %v4654 = vadd.f32 %v4615, %v4638
    %v4655 = vadd.f32 %v4616, %v4639
    %v4656 = vadd.f32 %v4617, %v4640
    %v4657 = vld [vmem:[#allocation2 + $0x1c0] sm:$0xff]
    %v4658 = vmul.f32 %v4562, %v3702
    %v4659 = vmul.f32 %v4563, %v3702
    %v4660 = vmul.f32 %v4564, %v3702
    %v4661 = vmul.f32 %v4565, %v3702
    %v4662 = vmul.f32 %v4566, %v3702
    %v4663 = vmul.f32 %v4567, %v3702
    %v4664 = vmul.f32 %v4568, %v3702
    %v4665 = vmul.f32 %v4585, %v3702
    %v4666 = vmul.f32 %v4618, %v3702
    %v4667 = vmul.f32 %v4619, %v3702
    %v4668 = vmul.f32 %v4620, %v3702
    %v4669 = vmul.f32 %v4621, %v3702
    %v4670 = vmul.f32 %v4622, %v3702
    %v4671 = vmul.f32 %v4623, %v3702
    %v4672 = vmul.f32 %v4624, %v3702
    %v4673 = vmul.f32 %v4657, %v3702
    %v4674 = vadd.f32 %v4641, %v4658
    %v4675 = vadd.f32 %v4642, %v4659
    %v4676 = vadd.f32 %v4643, %v4660
    %v4677 = vadd.f32 %v4644, %v4661
    %v4678 = vadd.f32 %v4645, %v4662
    %v4679 = vadd.f32 %v4646, %v4663
    %v4680 = vadd.f32 %v4647, %v4664
    %v4681 = vadd.f32 %v4648, %v4665
    %v4682 = vadd.f32 %v4649, %v4666
    %v4683 = vadd.f32 %v4650, %v4667
    %v4684 = vadd.f32 %v4651, %v4668
    %v4685 = vadd.f32 %v4652, %v4669
    %v4686 = vadd.f32 %v4653, %v4670
    %v4687 = vadd.f32 %v4654, %v4671
    %v4688 = vadd.f32 %v4655, %v4672
    %v4689 = vadd.f32 %v4656, %v4673
    %v4690 = vpack.c.bf16 %v4675, %v4674
    %v4691 = vpack.c.bf16 %v4677, %v4676
    %v4692 = vpack.c.bf16 %v4679, %v4678
    %v4693 = vpack.c.bf16 %v4681, %v4680
    %v4694 = vpack.c.bf16 %v4683, %v4682
    %v4695 = vpack.c.bf16 %v4685, %v4684
    %v4696 = vpack.c.bf16 %v4687, %v4686
    %v4697 = vpack.c.bf16 %v4689, %v4688
    %v4698 = vld [vmem:[%s3] sm:$0xf]
    %v4699 = vld [vmem:[%s3 + $0x4] sm:$0xf]
    %v4700 = vld [vmem:[%s3 + $0x8] sm:$0xf]
    %v4701 = vld [vmem:[%s3 + $0xc] sm:$0xf]
    %v4702 = vld [vmem:[%s3 + $0x10] sm:$0xf]
    %v4703 = vld [vmem:[%s3 + $0x14] sm:$0xf]
    %v4704 = vld [vmem:[%s3 + $0x18] sm:$0xf]
    %v4705 = vld [vmem:[%s3 + $0x1c] sm:$0xf]
    %v4706 = vld [vmem:[%s3 + $0x20] sm:$0xf]
    %v4707 = vld [vmem:[%s3 + $0x24] sm:$0xf]
    %v4708 = vld [vmem:[%s3 + $0x28] sm:$0xf]
    %v4709 = vld [vmem:[%s3 + $0x2c] sm:$0xf]
    %v4710 = vld [vmem:[%s3 + $0x30] sm:$0xf]
    %v4711 = vld [vmem:[%s3 + $0x34] sm:$0xf]
    %v4712 = vld [vmem:[%s3 + $0x38] sm:$0xf]
    %v4713 = vld [vmem:[%s3 + $0x3c] sm:$0xf]
    %v4714 = vld [vmem:[%s4] sm:$0x1]
    %v4716 = vlaneseq
    %v4717 = vshrl.u32 %v4716, 7
    %v4718 = vsub.s32 0, %v4717
    %v4719 = vrot.slane %v4714, %v4718
    %v4737 = vunpack.c.l.b16 %v4698
    %v4738 = vunpack.c.l.b16 %v4699
    %v4739 = vunpack.c.l.b16 %v4700
    %v4740 = vunpack.c.l.b16 %v4701
    %v4741 = vunpack.c.l.b16 %v4702
    %v4742 = vunpack.c.l.b16 %v4703
    %v4743 = vunpack.c.l.b16 %v4704
    %v4744 = vunpack.c.l.b16 %v4705
    %v4745 = vunpack.c.l.b16 %v4706
    %v4746 = vunpack.c.l.b16 %v4707
    %v4747 = vunpack.c.l.b16 %v4708
    %v4748 = vunpack.c.l.b16 %v4709
    %v4749 = vunpack.c.l.b16 %v4710
    %v4750 = vunpack.c.l.b16 %v4711
    %v4751 = vunpack.c.l.b16 %v4712
    %v4752 = vunpack.c.l.b16 %v4713
    %v4753 = vpack.c.b16 %v4738, %v4737
    %v4754 = vpack.c.b16 %v4740, %v4739
    %v4755 = vpack.c.b16 %v4742, %v4741
    %v4756 = vpack.c.b16 %v4744, %v4743
    %v4757 = vpack.c.b16 %v4746, %v4745
    %v4758 = vpack.c.b16 %v4748, %v4747
    %v4759 = vpack.c.b16 %v4750, %v4749
    %v4760 = vpack.c.b16 %v4752, %v4751
    %4769 = vmatprep.subr.bf16.mxu0 0
    %4770 = vmatpush1.bf16.msra.mxu0 %v4753
    %4771 = vmatprep.subr.bf16.mxu0 0
    %4772 = vmatpush1.bf16.msra.mxu0 %v4754
    %4773 = vmatprep.subr.bf16.mxu0 0
    %4774 = vmatpush1.bf16.msra.mxu0 %v4755
    %4775 = vmatprep.subr.bf16.mxu0 0
    %4776 = vmatpush1.bf16.msra.mxu0 %v4756
    %4777 = vmatprep.subr.bf16.mxu0 0
    %4778 = vmatpush1.bf16.msra.mxu0 %v4757
    %4779 = vmatprep.subr.bf16.mxu0 0
    %4780 = vmatpush1.bf16.msra.mxu0 %v4758
    %4781 = vmatprep.subr.bf16.mxu0 0
    %4782 = vmatpush1.bf16.msra.mxu0 %v4759
    %4783 = vmatprep.subr.bf16.mxu0 0
    %4784 = vmatpush1.bf16.msra.mxu0 %v4760
    %4785 = vmatprep.subr.bf16.mxu0 0
    %4786 = vmatpush1.bf16.msra.mxu0 0
    %4787 = vmatprep.subr.bf16.mxu0 0
    %4788 = vmatpush1.bf16.msra.mxu0 0
    %4789 = vmatprep.subr.bf16.mxu0 0
    %4790 = vmatpush1.bf16.msra.mxu0 0
    %4791 = vmatprep.subr.bf16.mxu0 0
    %4792 = vmatpush1.bf16.msra.mxu0 0
    %4793 = vmatprep.subr.bf16.mxu0 0
    %4794 = vmatpush1.bf16.msra.mxu0 0
    %4795 = vmatprep.subr.bf16.mxu0 0
    %4796 = vmatpush1.bf16.msra.mxu0 0
    %4797 = vmatprep.subr.bf16.mxu0 0
    %4798 = vmatpush1.bf16.msra.mxu0 0
    %4799 = vmatprep.subr.bf16.mxu0 0
    %4800 = vmatpush1.bf16.msra.mxu0 0
    %4801 = vmatprep.mubr.bf16.mxu0 0
    %4802 = vmatmul.mubr.bf16.gmra.mrb[0].mxu0 %v4690
    %v4803 = vpop.f32.mrb[0].mxu0
    %v4804 = vadd.f32 %v4719, %v4803
    %v4805 = vpop.f32.mrb[0].mxu0
    %v4806 = vpop.f32.mrb[0].mxu0
    %v4807 = vadd.f32 %v4719, %v4806
    %v4808 = vpop.f32.mrb[0].mxu0
    %4809 = vmatprep.mubr.bf16.mxu0 0
    %4810 = vmatmul.mubr.bf16.gmra.mrb[0].mxu0 %v4691
    %v4811 = vpop.f32.mrb[0].mxu0
    %v4812 = vadd.f32 %v4719, %v4811
    %v4813 = vpop.f32.mrb[0].mxu0
    %v4814 = vpop.f32.mrb[0].mxu0
    %v4815 = vadd.f32 %v4719, %v4814
    %v4816 = vpop.f32.mrb[0].mxu0
    %4817 = vmatprep.mubr.bf16.mxu0 0
    %4818 = vmatmul.mubr.bf16.gmra.mrb[0].mxu0 %v4692
    %v4819 = vpop.f32.mrb[0].mxu0
    %v4820 = vadd.f32 %v4719, %v4819
    %v4821 = vpop.f32.mrb[0].mxu0
    %v4822 = vpop.f32.mrb[0].mxu0
    %v4823 = vadd.f32 %v4719, %v4822
    %v4824 = vpop.f32.mrb[0].mxu0
    %4825 = vmatprep.mubr.bf16.mxu0 0
    %4826 = vmatmul.mubr.bf16.gmra.mrb[0].mxu0 %v4693
    %v4827 = vpop.f32.mrb[0].mxu0
    %v4828 = vadd.f32 %v4719, %v4827
    %v4829 = vpop.f32.mrb[0].mxu0
    %v4830 = vpop.f32.mrb[0].mxu0
    %v4831 = vadd.f32 %v4719, %v4830
    %v4832 = vpop.f32.mrb[0].mxu0
    %4833 = vmatprep.mubr.bf16.mxu0 0
    %4834 = vmatmul.mubr.bf16.gmra.mrb[0].mxu0 %v4694
    %v4835 = vpop.f32.mrb[0].mxu0
    %v4836 = vadd.f32 %v4719, %v4835
    %v4837 = vpop.f32.mrb[0].mxu0
    %v4838 = vpop.f32.mrb[0].mxu0
    %v4839 = vadd.f32 %v4719, %v4838
    %v4840 = vpop.f32.mrb[0].mxu0
    %4841 = vmatprep.mubr.bf16.mxu0 0
    %4842 = vmatmul.mubr.bf16.gmra.mrb[0].mxu0 %v4695
    %v4843 = vpop.f32.mrb[0].mxu0
    %v4844 = vadd.f32 %v4719, %v4843
    %v4845 = vpop.f32.mrb[0].mxu0
    %v4846 = vpop.f32.mrb[0].mxu0
    %v4847 = vadd.f32 %v4719, %v4846
    %v4848 = vpop.f32.mrb[0].mxu0
    %4849 = vmatprep.mubr.bf16.mxu0 0
    %4850 = vmatmul.mubr.bf16.gmra.mrb[0].mxu0 %v4696
    %v4851 = vpop.f32.mrb[0].mxu0
    %v4852 = vadd.f32 %v4719, %v4851
    %v4853 = vpop.f32.mrb[0].mxu0
    %v4854 = vpop.f32.mrb[0].mxu0
    %v4855 = vadd.f32 %v4719, %v4854
    %v4856 = vpop.f32.mrb[0].mxu0
    %4857 = vmatprep.mubr.bf16.mxu0 0
    %4858 = vmatmul.mubr.bf16.gmra.mrb[0].mxu0 %v4697
    %v4859 = vpop.f32.mrb[0].mxu0
    %v4860 = vadd.f32 %v4719, %v4859
    %v4861 = vpop.f32.mrb[0].mxu0
    %v4862 = vpop.f32.mrb[0].mxu0
    %v4863 = vadd.f32 %v4719, %v4862
    %v4864 = vpop.f32.mrb[0].mxu0
    %4865 = vdwg.mxu0
    %vm4866 = vcmp.gt.f32.partialorder %v4804, 0.0
    %vm4867 = vcmp.gt.f32.partialorder %v4807, 0.0
    %vm4868 = vcmp.gt.f32.partialorder %v4812, 0.0
    %vm4869 = vcmp.gt.f32.partialorder %v4815, 0.0
    %vm4870 = vcmp.gt.f32.partialorder %v4820, 0.0
    %vm4871 = vcmp.gt.f32.partialorder %v4823, 0.0
    %vm4872 = vcmp.gt.f32.partialorder %v4828, 0.0
    %vm4873 = vcmp.gt.f32.partialorder %v4831, 0.0
    %vm4874 = vcmp.gt.f32.partialorder %v4836, 0.0
    %vm4875 = vcmp.gt.f32.partialorder %v4839, 0.0
    %vm4876 = vcmp.gt.f32.partialorder %v4844, 0.0
    %vm4877 = vcmp.gt.f32.partialorder %v4847, 0.0
    %vm4878 = vcmp.gt.f32.partialorder %v4852, 0.0
    %vm4879 = vcmp.gt.f32.partialorder %v4855, 0.0
    %vm4880 = vcmp.gt.f32.partialorder %v4860, 0.0
    %vm4881 = vcmp.gt.f32.partialorder %v4863, 0.0
    %v4882 = vmin.f32 %v4804, 0.0
    %v4883 = vmin.f32 %v4807, 0.0
    %v4884 = vmin.f32 %v4812, 0.0
    %v4885 = vmin.f32 %v4815, 0.0
    %v4886 = vmin.f32 %v4820, 0.0
    %v4887 = vmin.f32 %v4823, 0.0
    %v4888 = vmin.f32 %v4828, 0.0
    %v4889 = vmin.f32 %v4831, 0.0
    %v4890 = vmin.f32 %v4836, 0.0
    %v4891 = vmin.f32 %v4839, 0.0
    %v4892 = vmin.f32 %v4844, 0.0
    %v4893 = vmin.f32 %v4847, 0.0
    %v4894 = vmin.f32 %v4852, 0.0
    %v4895 = vmin.f32 %v4855, 0.0
    %v4896 = vmin.f32 %v4860, 0.0
    %v4897 = vmin.f32 %v4863, 0.0
    %v4898 = vmul.f32 %v4882, 1.442695
    %v4899 = vpow.pop %v4898
    %v4900 = vmul.f32 %v4883, 1.442695
    %v4901 = vpow.pop %v4900
    %v4902 = vmul.f32 %v4884, 1.442695
    %v4903 = vpow.pop %v4902
    %v4904 = vmul.f32 %v4885, 1.442695
    %v4905 = vpow.pop %v4904
    %v4906 = vmul.f32 %v4886, 1.442695
    %v4907 = vpow.pop %v4906
    %v4908 = vmul.f32 %v4887, 1.442695
    %v4909 = vpow.pop %v4908
    %v4910 = vmul.f32 %v4888, 1.442695
    %v4911 = vpow.pop %v4910
    %v4912 = vmul.f32 %v4889, 1.442695
    %v4913 = vpow.pop %v4912
    %v4914 = vmul.f32 %v4890, 1.442695
    %v4915 = vpow.pop %v4914
    %v4916 = vmul.f32 %v4891, 1.442695
    %v4917 = vpow.pop %v4916
    %v4918 = vmul.f32 %v4892, 1.442695
    %v4919 = vpow.pop %v4918
    %v4920 = vmul.f32 %v4893, 1.442695
    %v4921 = vpow.pop %v4920
    %v4922 = vmul.f32 %v4894, 1.442695
    %v4923 = vpow.pop %v4922
    %v4924 = vmul.f32 %v4895, 1.442695
    %v4925 = vpow.pop %v4924
    %v4926 = vmul.f32 %v4896, 1.442695
    %v4927 = vpow.pop %v4926
    %v4928 = vmul.f32 %v4897, 1.442695
    %v4929 = vpow.pop %v4928
    %v4930 = vsub.f32 %v4899, 1.0
    %v4931 = vsub.f32 %v4901, 1.0
    %v4932 = vsub.f32 %v4903, 1.0
    %v4933 = vsub.f32 %v4905, 1.0
    %v4934 = vsub.f32 %v4907, 1.0
    %v4935 = vsub.f32 %v4909, 1.0
    %v4936 = vsub.f32 %v4911, 1.0
    %v4937 = vsub.f32 %v4913, 1.0
    %v4938 = vsub.f32 %v4915, 1.0
    %v4939 = vsub.f32 %v4917, 1.0
    %v4940 = vsub.f32 %v4919, 1.0
    %v4941 = vsub.f32 %v4921, 1.0
    %v4942 = vsub.f32 %v4923, 1.0
    %v4943 = vsub.f32 %v4925, 1.0
    %v4944 = vsub.f32 %v4927, 1.0
    %v4945 = vsub.f32 %v4929, 1.0
    %v4946 = vsel %vm4866, %v4804, %v4930
    %v4947 = vsel %vm4867, %v4807, %v4931
    %v4948 = vsel %vm4868, %v4812, %v4932
    %v4949 = vsel %vm4869, %v4815, %v4933
    %v4950 = vsel %vm4870, %v4820, %v4934
    %v4951 = vsel %vm4871, %v4823, %v4935
    %v4952 = vsel %vm4872, %v4828, %v4936
    %v4953 = vsel %vm4873, %v4831, %v4937
    %v4954 = vsel %vm4874, %v4836, %v4938
    %v4955 = vsel %vm4875, %v4839, %v4939
    %v4956 = vsel %vm4876, %v4844, %v4940
    %v4957 = vsel %vm4877, %v4847, %v4941
    %v4958 = vsel %vm4878, %v4852, %v4942
    %v4959 = vsel %vm4879, %v4855, %v4943
    %v4960 = vsel %vm4880, %v4860, %v4944
    %v4961 = vsel %vm4881, %v4863, %v4945
    %4962 = vst [vmem:[#allocation3 + $0x100] sm:$0xff] %v4946
    %4963 = vst [vmem:[#allocation3 + $0x108] sm:$0xff] %v4947
    %4964 = vst [vmem:[#allocation3 + $0x110] sm:$0xff] %v4948
    %4965 = vst [vmem:[#allocation3 + $0x118] sm:$0xff] %v4949
    %4966 = vst [vmem:[#allocation3 + $0x120] sm:$0xff] %v4950
    %4967 = vst [vmem:[#allocation3 + $0x128] sm:$0xff] %v4951
    %4968 = vst [vmem:[#allocation3 + $0x130] sm:$0xff] %v4952
    %4969 = vst [vmem:[#allocation3 + $0x138] sm:$0xff] %v4953
    %4970 = vst [vmem:[#allocation3 + $0x140] sm:$0xff] %v4954
    %4971 = vst [vmem:[#allocation3 + $0x148] sm:$0xff] %v4955
    %4972 = vst [vmem:[#allocation3 + $0x150] sm:$0xff] %v4956
    %4973 = vst [vmem:[#allocation3 + $0x158] sm:$0xff] %v4957
    %4974 = vst [vmem:[#allocation3 + $0x160] sm:$0xff] %v4958
    %4975 = vst [vmem:[#allocation3 + $0x168] sm:$0xff] %v4959
    %4976 = vst [vmem:[#allocation3 + $0x170] sm:$0xff] %v4960
    %4977 = vst [vmem:[#allocation3 + $0x178] sm:$0xff] %v4961
    %vm4978 = vcmp.lt.s32.totalorder %v269, 10
    %vm4979 = vmand %vm3683, %vm4978
    %v4980 = vsel %vm4979, 1, 0
    %v4981 = vcvt.s32.f32 %v4980
    %vm4982 = vcmp.ge.s32.totalorder %v269, 16
    %vm4983 = vcmp.lt.s32.totalorder %v269, 26
    %vm4984 = vmand %vm4982, %vm4983
    %v4985 = vsel %vm4984, 1, 0
    %v4986 = vcvt.s32.f32 %v4985
    %vm4987 = vcmp.lt.s32.totalorder %v269, 42
    %vm4988 = vmand %vm3688, %vm4987
    %v4989 = vsel %vm4988, 1, 0
    %v4990 = vcvt.s32.f32 %v4989
    %vm4991 = vcmp.ge.s32.totalorder %v269, 48
    %vm4992 = vcmp.lt.s32.totalorder %v269, 58
    %vm4993 = vmand %vm4991, %vm4992
    %v4994 = vsel %vm4993, 1, 0
    %v4995 = vcvt.s32.f32 %v4994
    %vm4996 = vcmp.lt.s32.totalorder %v269, 74
    %vm4997 = vmand %vm3693, %vm4996
    %v4998 = vsel %vm4997, 1, 0
    %v4999 = vcvt.s32.f32 %v4998
    %vm5000 = vcmp.ge.s32.totalorder %v269, 80
    %vm5001 = vcmp.lt.s32.totalorder %v269, 90
    %vm5002 = vmand %vm5000, %vm5001
    %v5003 = vsel %vm5002, 1, 0
    %v5004 = vcvt.s32.f32 %v5003
    %vm5005 = vcmp.lt.s32.totalorder %v269, 106
    %vm5006 = vmand %vm3698, %vm5005
    %v5007 = vsel %vm5006, 1, 0
    %v5008 = vcvt.s32.f32 %v5007
    %vm5009 = vcmp.ge.s32.totalorder %v269, 112
    %vm5010 = vcmp.lt.s32.totalorder %v269, 122
    %vm5011 = vmand %vm5009, %vm5010
    %v5012 = vsel %vm5011, 1, 0
    %v5013 = vcvt.s32.f32 %v5012
    %v5014 = vld [vmem:[#allocation3] sm:$0xff]
    %v5015 = vmul.f32 %v5014, %v4981
    %v5016 = vadd.f32 %v5015, 0.0
    %v5017 = vld [vmem:[#allocation3 + $0x8] sm:$0xff]
    %v5018 = vmul.f32 %v5017, %v4986
    %v5019 = vadd.f32 %v5016, %v5018
    %v5020 = vld [vmem:[#allocation3 + $0x10] sm:$0xff]
    %v5021 = vmul.f32 %v5020, %v4990
    %v5022 = vadd.f32 %v5019, %v5021
    %v5023 = vld [vmem:[#allocation3 + $0x18] sm:$0xff]
    %v5024 = vmul.f32 %v5023, %v4995
    %v5025 = vadd.f32 %v5022, %v5024
    %v5026 = vld [vmem:[#allocation3 + $0x20] sm:$0xff]
    %v5027 = vmul.f32 %v5026, %v4999
    %v5028 = vadd.f32 %v5025, %v5027
    %v5029 = vld [vmem:[#allocation3 + $0x28] sm:$0xff]
    %v5030 = vmul.f32 %v5029, %v5004
    %v5031 = vadd.f32 %v5028, %v5030
    %v5032 = vld [vmem:[#allocation3 + $0x40] sm:$0xff]
    %v5033 = vmul.f32 %v5032, %v5008
    %v5034 = vadd.f32 %v5031, %v5033
    %v5035 = vld [vmem:[#allocation3 + $0x48] sm:$0xff]
    %v5036 = vmul.f32 %v5035, %v5013
    %v5037 = vadd.f32 %v5034, %v5036
    %5038 = vst [vmem:[#allocation4] sm:$0xff] %v5037
    %v5039 = vld [vmem:[#allocation3 + $0x50] sm:$0xff]
    %v5040 = vmul.f32 %v5039, %v4981
    %v5041 = vadd.f32 %v5040, 0.0
    %v5042 = vld [vmem:[#allocation3 + $0x58] sm:$0xff]
    %v5043 = vmul.f32 %v5042, %v4986
    %v5044 = vadd.f32 %v5041, %v5043
    %v5045 = vld [vmem:[#allocation3 + $0x60] sm:$0xff]
    %v5046 = vmul.f32 %v5045, %v4990
    %v5047 = vadd.f32 %v5044, %v5046
    %v5048 = vld [vmem:[#allocation3 + $0x68] sm:$0xff]
    %v5049 = vmul.f32 %v5048, %v4995
    %v5050 = vadd.f32 %v5047, %v5049
    %v5051 = vld [vmem:[#allocation3 + $0x80] sm:$0xff]
    %v5052 = vmul.f32 %v5051, %v4999
    %v5053 = vadd.f32 %v5050, %v5052
    %v5054 = vld [vmem:[#allocation3 + $0x88] sm:$0xff]
    %v5055 = vmul.f32 %v5054, %v5004
    %v5056 = vadd.f32 %v5053, %v5055
    %v5057 = vld [vmem:[#allocation3 + $0x90] sm:$0xff]
    %v5058 = vmul.f32 %v5057, %v5008
    %v5059 = vadd.f32 %v5056, %v5058
    %v5060 = vld [vmem:[#allocation3 + $0x98] sm:$0xff]
    %v5061 = vmul.f32 %v5060, %v5013
    %v5062 = vadd.f32 %v5059, %v5061
    %5063 = vst [vmem:[#allocation4 + $0x8] sm:$0xff] %v5062
    %v5064 = vld [vmem:[#allocation3 + $0xa0] sm:$0xff]
    %v5065 = vmul.f32 %v5064, %v4981
    %v5066 = vadd.f32 %v5065, 0.0
    %v5067 = vld [vmem:[#allocation3 + $0xa8] sm:$0xff]
    %v5068 = vmul.f32 %v5067, %v4986
    %v5069 = vadd.f32 %v5066, %v5068
    %v5070 = vld [vmem:[#allocation3 + $0xc0] sm:$0xff]
    %v5071 = vmul.f32 %v5070, %v4990
    %v5072 = vadd.f32 %v5069, %v5071
    %v5073 = vld [vmem:[#allocation3 + $0xc8] sm:$0xff]
    %v5074 = vmul.f32 %v5073, %v4995
    %v5075 = vadd.f32 %v5072, %v5074
    %v5076 = vld [vmem:[#allocation3 + $0xd0] sm:$0xff]
    %v5077 = vmul.f32 %v5076, %v4999
    %v5078 = vadd.f32 %v5075, %v5077
    %v5079 = vld [vmem:[#allocation3 + $0xd8] sm:$0xff]
    %v5080 = vmul.f32 %v5079, %v5004
    %v5081 = vadd.f32 %v5078, %v5080
    %v5082 = vld [vmem:[#allocation3 + $0xe0] sm:$0xff]
    %v5083 = vmul.f32 %v5082, %v5008
    %v5084 = vadd.f32 %v5081, %v5083
    %v5085 = vld [vmem:[#allocation3 + $0xe8] sm:$0xff]
    %v5086 = vmul.f32 %v5085, %v5013
    %v5087 = vadd.f32 %v5084, %v5086
    %5088 = vst [vmem:[#allocation4 + $0x10] sm:$0xff] %v5087
    %v5089 = vld [vmem:[#allocation3 + $0x100] sm:$0xff]
    %v5090 = vmul.f32 %v5089, %v4981
    %v5091 = vadd.f32 %v5090, 0.0
    %v5092 = vld [vmem:[#allocation3 + $0x108] sm:$0xff]
    %v5093 = vmul.f32 %v5092, %v4986
    %v5094 = vadd.f32 %v5091, %v5093
    %v5095 = vld [vmem:[#allocation3 + $0x110] sm:$0xff]
    %v5096 = vmul.f32 %v5095, %v4990
    %v5097 = vadd.f32 %v5094, %v5096
    %v5098 = vld [vmem:[#allocation3 + $0x118] sm:$0xff]
    %v5099 = vmul.f32 %v5098, %v4995
    %v5100 = vadd.f32 %v5097, %v5099
    %v5101 = vld [vmem:[#allocation3 + $0x120] sm:$0xff]
    %v5102 = vmul.f32 %v5101, %v4999
    %v5103 = vadd.f32 %v5100, %v5102
    %v5104 = vld [vmem:[#allocation3 + $0x128] sm:$0xff]
    %v5105 = vmul.f32 %v5104, %v5004
    %v5106 = vadd.f32 %v5103, %v5105
    %v5107 = vld [vmem:[#allocation3 + $0x140] sm:$0xff]
    %v5108 = vmul.f32 %v5107, %v5008
    %v5109 = vadd.f32 %v5106, %v5108
    %v5110 = vld [vmem:[#allocation3 + $0x148] sm:$0xff]
    %v5111 = vmul.f32 %v5110, %v5013
    %v5112 = vadd.f32 %v5109, %v5111
    %5113 = vst [vmem:[#allocation4 + $0x18] sm:$0xff] %v5112
    %v5114 = vld [vmem:[#allocation3 + $0x150] sm:$0xff]
    %v5115 = vmul.f32 %v5114, %v4981
    %v5116 = vadd.f32 %v5115, 0.0
    %v5117 = vld [vmem:[#allocation3 + $0x158] sm:$0xff]
    %v5118 = vmul.f32 %v5117, %v4986
    %v5119 = vadd.f32 %v5116, %v5118
    %v5120 = vld [vmem:[#allocation3 + $0x160] sm:$0xff]
    %v5121 = vmul.f32 %v5120, %v4990
    %v5122 = vadd.f32 %v5119, %v5121
    %v5123 = vld [vmem:[#allocation3 + $0x168] sm:$0xff]
    %v5124 = vmul.f32 %v5123, %v4995
    %v5125 = vadd.f32 %v5122, %v5124
    %5126 = vst [vmem:[#allocation4 + $0x20] sm:$0xff] %v5125
    %s5127 = smul.u32 4, 80
    %s5128 = smul.u32 %s5127, 1
    %s5129 = sshll.u32 %s5128, 4
    %5130 = dma.done [#allocation8], %s5129
    %v5131 = vld [vmem:[#allocation4] sm:$0xff]
    %v5132 = vld [vmem:[#allocation4 + $0x8] sm:$0xff]
    %v5133 = vld [vmem:[#allocation4 + $0x10] sm:$0xff]
    %v5134 = vld [vmem:[#allocation4 + $0x18] sm:$0xff]
    %v5135 = vld [vmem:[#allocation4 + $0x20] sm:$0xff]
    %v5136 = vpack.c.bf16 %v5131, %v5131
    %v5137 = vpack.c.bf16 %v5132, %v5132
    %v5138 = vpack.c.bf16 %v5133, %v5133
    %v5139 = vpack.c.bf16 %v5134, %v5134
    %v5140 = vpack.c.bf16 %v5135, %v5135
    %v5141 = vld [vmem:[#allocation5] sm:$0xff]
    %v5142 = vld [vmem:[#allocation5 + $0x8] sm:$0xff]
    %v5143 = vld [vmem:[#allocation5 + $0x10] sm:$0xff]
    %v5144 = vld [vmem:[#allocation5 + $0x18] sm:$0xff]
    %v5145 = vld [vmem:[#allocation5 + $0x20] sm:$0xff]
    %v5146 = vld [vmem:[#allocation5 + $0x28] sm:$0xff]
    %v5147 = vld [vmem:[#allocation5 + $0x30] sm:$0xff]
    %v5148 = vld [vmem:[#allocation5 + $0x38] sm:$0xff]
    %v5149 = vld [vmem:[#allocation5 + $0x40] sm:$0xff]
    %v5150 = vld [vmem:[#allocation5 + $0x48] sm:$0xff]
    %v5151 = vld [vmem:[#allocation5 + $0x50] sm:$0xff]
    %v5152 = vld [vmem:[#allocation5 + $0x58] sm:$0xff]
    %v5153 = vld [vmem:[#allocation5 + $0x60] sm:$0xff]
    %v5154 = vld [vmem:[#allocation5 + $0x68] sm:$0xff]
    %v5155 = vld [vmem:[#allocation5 + $0x70] sm:$0xff]
    %v5156 = vld [vmem:[#allocation5 + $0x78] sm:$0xff]
    %v5157 = vld [vmem:[#allocation5 + $0x80] sm:$0xff]
    %v5158 = vld [vmem:[#allocation5 + $0x88] sm:$0xff]
    %v5159 = vld [vmem:[#allocation5 + $0x90] sm:$0xff]
    %v5160 = vld [vmem:[#allocation5 + $0x98] sm:$0xff]
    %v5161 = vld [vmem:[#allocation5 + $0xa0] sm:$0xff]
    %v5162 = vld [vmem:[#allocation5 + $0xa8] sm:$0xff]
    %v5163 = vld [vmem:[#allocation5 + $0xb0] sm:$0xff]
    %v5164 = vld [vmem:[#allocation5 + $0xb8] sm:$0xff]
    %v5165 = vld [vmem:[#allocation5 + $0xc0] sm:$0xff]
    %v5166 = vld [vmem:[#allocation5 + $0xc8] sm:$0xff]
    %v5167 = vld [vmem:[#allocation5 + $0xd0] sm:$0xff]
    %v5168 = vld [vmem:[#allocation5 + $0xd8] sm:$0xff]
    %v5169 = vld [vmem:[#allocation5 + $0xe0] sm:$0xff]
    %v5170 = vld [vmem:[#allocation5 + $0xe8] sm:$0xff]
    %v5171 = vld [vmem:[#allocation5 + $0xf0] sm:$0xff]
    %v5172 = vld [vmem:[#allocation5 + $0xf8] sm:$0xff]
    %v5173 = vld [vmem:[#allocation5 + $0x100] sm:$0xff]
    %v5174 = vld [vmem:[#allocation5 + $0x108] sm:$0xff]
    %v5175 = vld [vmem:[#allocation5 + $0x110] sm:$0xff]
    %v5176 = vld [vmem:[#allocation5 + $0x118] sm:$0xff]
    %v5177 = vld [vmem:[#allocation5 + $0x120] sm:$0xff]
    %v5178 = vld [vmem:[#allocation5 + $0x128] sm:$0xff]
    %v5179 = vld [vmem:[#allocation5 + $0x130] sm:$0xff]
    %v5180 = vld [vmem:[#allocation5 + $0x138] sm:$0xff]
    %v5181 = vld [vmem:[%s6] sm:$0x1]
    %v5183 = vlaneseq
    %v5184 = vshrl.u32 %v5183, 7
    %v5185 = vsub.s32 0, %v5184
    %v5186 = vrot.slane %v5181, %v5185
    %5188 = vmatprep.subr.bf16.mxu0 0
    %5189 = vmatpush1.bf16.msra.mxu0 %v5141
    %5190 = vmatprep.subr.bf16.mxu0 0
    %5191 = vmatpush1.bf16.msra.mxu0 %v5142
    %5192 = vmatprep.subr.bf16.mxu0 0
    %5193 = vmatpush1.bf16.msra.mxu0 %v5143
    %5194 = vmatprep.subr.bf16.mxu0 0
    %5195 = vmatpush1.bf16.msra.mxu0 %v5144
    %5196 = vmatprep.subr.bf16.mxu0 0
    %5197 = vmatpush1.bf16.msra.mxu0 %v5145
    %5198 = vmatprep.subr.bf16.mxu0 0
    %5199 = vmatpush1.bf16.msra.mxu0 %v5146
    %5200 = vmatprep.subr.bf16.mxu0 0
    %5201 = vmatpush1.bf16.msra.mxu0 %v5147
    %5202 = vmatprep.subr.bf16.mxu0 0
    %5203 = vmatpush1.bf16.msra.mxu0 %v5148
    %5204 = vmatprep.subr.bf16.mxu0 0
    %5205 = vmatpush1.bf16.msra.mxu0 %v5149
    %5206 = vmatprep.subr.bf16.mxu0 0
    %5207 = vmatpush1.bf16.msra.mxu0 %v5150
    %5208 = vmatprep.subr.bf16.mxu0 0
    %5209 = vmatpush1.bf16.msra.mxu0 %v5151
    %5210 = vmatprep.subr.bf16.mxu0 0
    %5211 = vmatpush1.bf16.msra.mxu0 %v5152
    %5212 = vmatprep.subr.bf16.mxu0 0
    %5213 = vmatpush1.bf16.msra.mxu0 %v5153
    %5214 = vmatprep.subr.bf16.mxu0 0
    %5215 = vmatpush1.bf16.msra.mxu0 %v5154
    %5216 = vmatprep.subr.bf16.mxu0 0
    %5217 = vmatpush1.bf16.msra.mxu0 %v5155
    %5218 = vmatprep.subr.bf16.mxu0 0
    %5219 = vmatpush1.bf16.msra.mxu0 %v5156
    %5220 = vmatprep.mubr.bf16.mxu0 %v5137
    %5221 = vmatmul.mubr.bf16.gmra.mrb[0].mxu0 %v5136
    %v5222 = vpop.f32.mrb[0].mxu0
    %v5223 = vadd.f32 %v5186, %v5222
    %v5224 = vpop.f32.mrb[0].mxu0
    %v5225 = vpop.f32.mrb[0].mxu0
    %v5226 = vpop.f32.mrb[0].mxu0
    %5227 = vdwg.mxu0
    %5228 = vmatprep.subr.bf16.mxu0 0
    %5229 = vmatpush1.bf16.msra.mxu0 %v5157
    %5230 = vmatprep.subr.bf16.mxu0 0
    %5231 = vmatpush1.bf16.msra.mxu0 %v5158
    %5232 = vmatprep.subr.bf16.mxu0 0
    %5233 = vmatpush1.bf16.msra.mxu0 %v5159
    %5234 = vmatprep.subr.bf16.mxu0 0
    %5235 = vmatpush1.bf16.msra.mxu0 %v5160
    %5236 = vmatprep.subr.bf16.mxu0 0
    %5237 = vmatpush1.bf16.msra.mxu0 %v5161
    %5238 = vmatprep.subr.bf16.mxu0 0
    %5239 = vmatpush1.bf16.msra.mxu0 %v5162
    %5240 = vmatprep.subr.bf16.mxu0 0
    %5241 = vmatpush1.bf16.msra.mxu0 %v5163
    %5242 = vmatprep.subr.bf16.mxu0 0
    %5243 = vmatpush1.bf16.msra.mxu0 %v5164
    %5244 = vmatprep.subr.bf16.mxu0 0
    %5245 = vmatpush1.bf16.msra.mxu0 %v5165
    %5246 = vmatprep.subr.bf16.mxu0 0
    %5247 = vmatpush1.bf16.msra.mxu0 %v5166
    %5248 = vmatprep.subr.bf16.mxu0 0
    %5249 = vmatpush1.bf16.msra.mxu0 %v5167
    %5250 = vmatprep.subr.bf16.mxu0 0
    %5251 = vmatpush1.bf16.msra.mxu0 %v5168
    %5252 = vmatprep.subr.bf16.mxu0 0
    %5253 = vmatpush1.bf16.msra.mxu0 %v5169
    %5254 = vmatprep.subr.bf16.mxu0 0
    %5255 = vmatpush1.bf16.msra.mxu0 %v5170
    %5256 = vmatprep.subr.bf16.mxu0 0
    %5257 = vmatpush1.bf16.msra.mxu0 %v5171
    %5258 = vmatprep.subr.bf16.mxu0 0
    %5259 = vmatpush1.bf16.msra.mxu0 %v5172
    %5260 = vmatprep.mubr.bf16.mxu0 %v5139
    %5261 = vmatmul.mubr.bf16.gmra.mrb[0].mxu0 %v5138
    %v5262 = vpop.f32.mrb[0].mxu0
    %v5263 = vadd.f32 %v5223, %v5262
    %v5264 = vpop.f32.mrb[0].mxu0
    %v5265 = vpop.f32.mrb[0].mxu0
    %v5266 = vpop.f32.mrb[0].mxu0
    %5267 = vdwg.mxu0
    %5268 = vmatprep.subr.bf16.mxu0 0
    %5269 = vmatpush1.bf16.msra.mxu0 %v5173
    %5270 = vmatprep.subr.bf16.mxu0 0
    %5271 = vmatpush1.bf16.msra.mxu0 %v5174
    %5272 = vmatprep.subr.bf16.mxu0 0
    %5273 = vmatpush1.bf16.msra.mxu0 %v5175
    %5274 = vmatprep.subr.bf16.mxu0 0
    %5275 = vmatpush1.bf16.msra.mxu0 %v5176
    %5276 = vmatprep.subr.bf16.mxu0 0
    %5277 = vmatpush1.bf16.msra.mxu0 %v5177
    %5278 = vmatprep.subr.bf16.mxu0 0
    %5279 = vmatpush1.bf16.msra.mxu0 %v5178
    %5280 = vmatprep.subr.bf16.mxu0 0
    %5281 = vmatpush1.bf16.msra.mxu0 %v5179
    %5282 = vmatprep.subr.bf16.mxu0 0
    %5283 = vmatpush1.bf16.msra.mxu0 %v5180
    %5284 = vmatprep.subr.bf16.mxu0 0
    %5285 = vmatpush1.bf16.msra.mxu0 0
    %5286 = vmatprep.subr.bf16.mxu0 0
    %5287 = vmatpush1.bf16.msra.mxu0 0
    %5288 = vmatprep.subr.bf16.mxu0 0
    %5289 = vmatpush1.bf16.msra.mxu0 0
    %5290 = vmatprep.subr.bf16.mxu0 0
    %5291 = vmatpush1.bf16.msra.mxu0 0
    %5292 = vmatprep.subr.bf16.mxu0 0
    %5293 = vmatpush1.bf16.msra.mxu0 0
    %5294 = vmatprep.subr.bf16.mxu0 0
    %5295 = vmatpush1.bf16.msra.mxu0 0
    %5296 = vmatprep.subr.bf16.mxu0 0
    %5297 = vmatpush1.bf16.msra.mxu0 0
    %5298 = vmatprep.subr.bf16.mxu0 0
    %5299 = vmatpush1.bf16.msra.mxu0 0
    %5300 = vmatprep.mubr.bf16.mxu0 0
    %5301 = vmatmul.mubr.bf16.gmra.mrb[0].mxu0 %v5140
    %v5302 = vpop.f32.mrb[0].mxu0
    %v5303 = vadd.f32 %v5263, %v5302
    %v5304 = vpop.f32.mrb[0].mxu0
    %v5305 = vpop.f32.mrb[0].mxu0
    %v5306 = vpop.f32.mrb[0].mxu0
    %5307 = vdwg.mxu0
    %vm5308 = vcmp.gt.f32.partialorder %v5303, 0.0
    %v5309 = vmin.f32 %v5303, 0.0
    %v5310 = vmul.f32 %v5309, 1.442695
    %v5311 = vpow.pop %v5310
    %v5312 = vsub.f32 %v5311, 1.0
    %v5313 = vsel %vm5308, %v5303, %v5312
    %s5314 = smul.u32 4, 16
    %s5315 = smul.u32 %s5314, 1
    %s5316 = sshll.u32 %s5315, 4
    %5317 = dma.done %s154, %s5316
    %v5318 = vpack.c.bf16 %v5313, %v5313
    %v5319 = vld [vmem:[#allocation6] sm:$0xff]
    %v5320 = vld [vmem:[#allocation6 + $0x8] sm:$0xff]
    %v5321 = vld [vmem:[#allocation6 + $0x10] sm:$0xff]
    %v5322 = vld [vmem:[#allocation6 + $0x18] sm:$0xff]
    %v5323 = vld [vmem:[#allocation6 + $0x20] sm:$0xff]
    %v5324 = vld [vmem:[#allocation6 + $0x28] sm:$0xff]
    %v5325 = vld [vmem:[#allocation6 + $0x30] sm:$0xff]
    %v5326 = vld [vmem:[#allocation6 + $0x38] sm:$0xff]
    %v5327 = vld [vmem:[%s8] sm:$0x1]
    %v5329 = vlaneseq
    %v5330 = vshrl.u32 %v5329, 7
    %v5331 = vsub.s32 0, %v5330
    %v5332 = vrot.slane %v5327, %v5331
    %5334 = vmatprep.subr.bf16.mxu0 0
    %5335 = vmatpush1.bf16.msra.mxu0 %v5319
    %5336 = vmatprep.subr.bf16.mxu0 0
    %5337 = vmatpush1.bf16.msra.mxu0 %v5320
    %5338 = vmatprep.subr.bf16.mxu0 0
    %5339 = vmatpush1.bf16.msra.mxu0 %v5321
    %5340 = vmatprep.subr.bf16.mxu0 0
    %5341 = vmatpush1.bf16.msra.mxu0 %v5322
    %5342 = vmatprep.subr.bf16.mxu0 0
    %5343 = vmatpush1.bf16.msra.mxu0 %v5323
    %5344 = vmatprep.subr.bf16.mxu0 0
    %5345 = vmatpush1.bf16.msra.mxu0 %v5324
    %5346 = vmatprep.subr.bf16.mxu0 0
    %5347 = vmatpush1.bf16.msra.mxu0 %v5325
    %5348 = vmatprep.subr.bf16.mxu0 0
    %5349 = vmatpush1.bf16.msra.mxu0 %v5326
    %5350 = vmatprep.subr.bf16.mxu0 0
    %5351 = vmatpush1.bf16.msra.mxu0 0
    %5352 = vmatprep.subr.bf16.mxu0 0
    %5353 = vmatpush1.bf16.msra.mxu0 0
    %5354 = vmatprep.subr.bf16.mxu0 0
    %5355 = vmatpush1.bf16.msra.mxu0 0
    %5356 = vmatprep.subr.bf16.mxu0 0
    %5357 = vmatpush1.bf16.msra.mxu0 0
    %5358 = vmatprep.subr.bf16.mxu0 0
    %5359 = vmatpush1.bf16.msra.mxu0 0
    %5360 = vmatprep.subr.bf16.mxu0 0
    %5361 = vmatpush1.bf16.msra.mxu0 0
    %5362 = vmatprep.subr.bf16.mxu0 0
    %5363 = vmatpush1.bf16.msra.mxu0 0
    %5364 = vmatprep.subr.bf16.mxu0 0
    %5365 = vmatpush1.bf16.msra.mxu0 0
    %5366 = vmatprep.mubr.bf16.mxu0 0
    %5367 = vmatmul.mubr.bf16.gmra.mrb[0].mxu0 %v5318
    %v5368 = vpop.f32.mrb[0].mxu0
    %v5369 = vadd.f32 %v5332, %v5368
    %v5370 = vpop.f32.mrb[0].mxu0
    %v5371 = vpop.f32.mrb[0].mxu0
    %v5372 = vpop.f32.mrb[0].mxu0
    %5373 = vdwg.mxu0
    %vm5374 = vcmp.gt.f32.partialorder %v5369, 0.0
    %v5375 = vmin.f32 %v5369, 0.0
    %v5376 = vmul.f32 %v5375, 1.442695
    %v5377 = vpow.pop %v5376
    %v5378 = vsub.f32 %v5377, 1.0
    %v5379 = vsel %vm5374, %v5369, %v5378
    %s5380 = sshll.u32 %s5315, 4
    %5381 = dma.done %s211, %s5380
    %v5382 = vpack.c.bf16 %v5379, %v5379
    %v5383 = vld [vmem:[#allocation7] sm:$0xff]
    %v5384 = vld [vmem:[#allocation7 + $0x8] sm:$0xff]
    %v5385 = vld [vmem:[#allocation7 + $0x10] sm:$0xff]
    %v5386 = vld [vmem:[#allocation7 + $0x18] sm:$0xff]
    %v5387 = vld [vmem:[#allocation7 + $0x20] sm:$0xff]
    %v5388 = vld [vmem:[#allocation7 + $0x28] sm:$0xff]
    %v5389 = vld [vmem:[#allocation7 + $0x30] sm:$0xff]
    %v5390 = vld [vmem:[#allocation7 + $0x38] sm:$0xff]
    %v5391 = vld [vmem:[%s10] sm:$0x1]
    %v5393 = vlaneseq
    %v5394 = vshrl.u32 %v5393, 7
    %v5395 = vsub.s32 0, %v5394
    %v5396 = vrot.slane %v5391, %v5395
    %5398 = vmatprep.subr.bf16.mxu0 0
    %5399 = vmatpush1.bf16.msra.mxu0 %v5383
    %5400 = vmatprep.subr.bf16.mxu0 0
    %5401 = vmatpush1.bf16.msra.mxu0 %v5384
    %5402 = vmatprep.subr.bf16.mxu0 0
    %5403 = vmatpush1.bf16.msra.mxu0 %v5385
    %5404 = vmatprep.subr.bf16.mxu0 0
    %5405 = vmatpush1.bf16.msra.mxu0 %v5386
    %5406 = vmatprep.subr.bf16.mxu0 0
    %5407 = vmatpush1.bf16.msra.mxu0 %v5387
    %5408 = vmatprep.subr.bf16.mxu0 0
    %5409 = vmatpush1.bf16.msra.mxu0 %v5388
    %5410 = vmatprep.subr.bf16.mxu0 0
    %5411 = vmatpush1.bf16.msra.mxu0 %v5389
    %5412 = vmatprep.subr.bf16.mxu0 0
    %5413 = vmatpush1.bf16.msra.mxu0 %v5390
    %5414 = vmatprep.subr.bf16.mxu0 0
    %5415 = vmatpush1.bf16.msra.mxu0 0
    %5416 = vmatprep.subr.bf16.mxu0 0
    %5417 = vmatpush1.bf16.msra.mxu0 0
    %5418 = vmatprep.subr.bf16.mxu0 0
    %5419 = vmatpush1.bf16.msra.mxu0 0
    %5420 = vmatprep.subr.bf16.mxu0 0
    %5421 = vmatpush1.bf16.msra.mxu0 0
    %5422 = vmatprep.subr.bf16.mxu0 0
    %5423 = vmatpush1.bf16.msra.mxu0 0
    %5424 = vmatprep.subr.bf16.mxu0 0
    %5425 = vmatpush1.bf16.msra.mxu0 0
    %5426 = vmatprep.subr.bf16.mxu0 0
    %5427 = vmatpush1.bf16.msra.mxu0 0
    %5428 = vmatprep.subr.bf16.mxu0 0
    %5429 = vmatpush1.bf16.msra.mxu0 0
    %5430 = vmatprep.mubr.bf16.mxu0 0
    %5431 = vmatmul.mubr.bf16.gmra.mrb[0].mxu0 %v5382
    %v5432 = vpop.f32.mrb[0].mxu0
    %v5433 = vadd.f32 %v5396, %v5432
    %v5434 = vpop.f32.mrb[0].mxu0
    %v5435 = vpop.f32.mrb[0].mxu0
    %v5436 = vpop.f32.mrb[0].mxu0
    %5437 = vdwg.mxu0
    %vm5438 = vcmask 17408
    %5439 = vst.msk [vmem:[#allocation9] sm:$0x3] %vm5438, %v5433
    // Predicated region
    $region136: #{conv2d_net_forward.1} parent=1 // pred_check
      _
    $region137: #{conv2d_net_forward.1} parent=1 // pred_check_branch
      %5441 = sbr.rel (0) target = $region139
    $region138: #{conv2d_net_forward.1} parent=1 // pred_region
      %s5443 = ssub.s32 32, 32
      %5444 = vsyncadd [#allocation10], %s5443
      %s5446 = sshll.u32 [#allocation9], 4
      %s5447 = int_to_ptr.vmem [resolvable:$true] %s5446
      %5449 = dma.vmem_to_hbm [thread:$0]  %s5447, 32, %s11, [#allocation10]
    $region139: #{conv2d_net_forward.1} parent=1 // pred_fallthru
      _
    // Predicated region
    $region140: #{conv2d_net_forward.1} parent=1 // pred_check
      _
    $region141: #{conv2d_net_forward.1} parent=1 // pred_check_branch
      %5451 = sbr.rel (0) target = $region143
    $region142: #{conv2d_net_forward.1} parent=1 // pred_region
      %5452 = dma.done [#allocation10], 32
    $region143: #{conv2d_net_forward.1} parent=1 // pred_fallthru
      _
    %5453 = vsyncpa [#allocation10], 1
  %5454 = vsyncmov [#allocation8]
  %s5455 = vpop.sfrf %5454
  %p5456 = scmp.eq.s32.totalorder %s5455, 0
  %p5457 = pneg %p5456
  %5459 = shalt.err (%p5457)
  %s5460 = scalar_lea.sflag [#allocation8], 1
  %5461 = vsyncmov %s5460
  %s5462 = vpop.sfrf %5461
  %p5463 = scmp.eq.s32.totalorder %s5462, 0
  %p5464 = pneg %p5463
  %5466 = shalt.err (%p5464)
  %s5467 = scalar_lea.sflag [#allocation8], 2
  %5468 = vsyncmov %s5467
  %s5469 = vpop.sfrf %5468
  %p5470 = scmp.eq.s32.totalorder %s5469, 0
  %p5471 = pneg %p5470
  %5473 = shalt.err (%p5471)

</llo_original>
